<compile_context>
chip_gen: v7x
topology: tpu7x:2x2x1
jax: 0.10.0
libtpu: 0.0.40
codegen_flags: <defaults>
</compile_context>

<pallas_src>
import jax
import jax.numpy as jnp
from jax.experimental import pallas as pl
from jax.experimental.pallas import tpu as pltpu

MAX_LENGTH = 10
SOS_TOKEN = 0
NEG_INF = -1e30


# --------------------------------- kernel ------------------------------------
def decoder_rnn_kernel(h0_ref, emb_ref, wih_ref, whh_ref, bih_ref, bhn_ref,
                       wo_ref, bo_ref, logp_ref, hout_ref):
    Bp, Hp = h0_ref.shape
    Vp = emb_ref.shape[0]
    T = logp_ref.shape[0]
    cdt = emb_ref.dtype                       # MXU input dtype (bf16 or f32)

    # ---- loop-invariant values (hoisted once; JAX does not CSE broadcasts) --
    # NOTE: at production Vp, recompute `ids` per step (or switch to
    # lax.fori_loop) instead of holding a (Bp,Vp) iota live across the unroll.
    ids = jax.lax.broadcasted_iota(jnp.int32, (Bp, Vp), 1)    # (Bp, Vp)
    bih = bih_ref[...]                                        # (1, 3Hp) f32 (folded)
    bhn = bhn_ref[...]                                        # (1, Hp)  f32
    bo = bo_ref[...]                                          # (1, Vp)  f32 (-1e30 pad)

    h = h0_ref[...].astype(jnp.float32)                       # (Bp, Hp)
    tok = jnp.full((Bp, 1), SOS_TOKEN, dtype=jnp.int32)       # decoder_input = SOS

    # Static Python loop == fully unrolled single-invocation decode; every
    # logp_ref store below uses a static first-axis index.  At large V switch
    # to lax.fori_loop(..., unroll=True) to bound live ranges.
    for t in range(T):
        # -- embedding lookup (one-hot matmul; `ids` is needed for the argmax
        #    tie-break anyway) + F.relu
        # TODO(synk): at production vocab replace this with a real row gather
        #   (argmax token -> SMEM scalars -> per-row pl.ds/DMA gather) from a
        #   precomputed relu(emb) @ wih (V, 3H) table, removing both this
        #   O(B*V*H) matmul and the wih matmul from the serial chain.
        onehot = (ids == tok).astype(cdt)                     # (Bp, Vp)
        x = jnp.dot(onehot, emb_ref[...],
                    preferred_element_type=jnp.float32)       # (Bp, Hp)
        x = jnp.maximum(x, 0.0)

        # -- GRU cell (PyTorch gate order [r | z | n]; b_hn inside the r*() term)
        gx = jnp.dot(x.astype(cdt), wih_ref[...],
                     preferred_element_type=jnp.float32) + bih     # bias folded
        gh = jnp.dot(h, whh_ref[...],
                     preferred_element_type=jnp.float32)           # f32 recurrence
        r = jax.nn.sigmoid(gx[:, 0:Hp] + gh[:, 0:Hp])
        z = jax.nn.sigmoid(gx[:, Hp:2 * Hp] + gh[:, Hp:2 * Hp])
        n = jnp.tanh(gx[:, 2 * Hp:3 * Hp] + r * (gh[:, 2 * Hp:3 * Hp] + bhn))
        h = n + z * (h - n)                                   # == (1-z)*n + z*h

        # -- output projection (padded vocab columns carry bias -1e30)
        # TODO(synk): at production vocab stream wo in Hp x ~2048 tiles from HBM
        #   (pl.ANY + double-buffered pltpu.make_async_copy) with online
        #   max/LSE/argmax (carrying the argmax index, not re-comparing), and on
        #   v7x split the vocab range across the two TCs with a tiny combine.
        logits = jnp.dot(h.astype(cdt), wo_ref[...],
                         preferred_element_type=jnp.float32) + bo    # (Bp, Vp)

        # -- greedy next token: topk(1) == argmax (first occurrence on ties)
        maxv = jnp.max(logits, axis=-1, keepdims=True)
        cand = jnp.where(logits == maxv, ids, Vp)
        tok = jnp.min(cand, axis=-1, keepdims=True).astype(jnp.int32)

        # -- log_softmax along vocab (row-wise == log_softmax of the concat)
        lse = maxv + jnp.log(jnp.sum(jnp.exp(logits - maxv), axis=-1,
                                     keepdims=True))
        # TODO(synk): at production vocab stream this (Bp,Vp) slab to HBM with a
        #   per-step async copy instead of holding (T,Bp,Vp) VMEM-resident.
        logp_ref[t] = logits - lse                            # lane-dense store

    hout_ref[...] = h                                         # single final write


# ----------------------- one-time parameter preparation -----------------------
def _round_up(x, m):
    return (x + m - 1) // m * m


def _pad2(x, shape, fill=0.0):
    pads = [(0, s - d) for d, s in zip(x.shape, shape)]
    return jnp.pad(x, pads, constant_values=fill)


def _pad_gates(a, H, Hp, row_pad):
    """(R, 3H) -> (row_pad, 3Hp), keeping the [r|z|n] gate blocks Hp-aligned."""
    blocks = [_pad2(a[:, g * H:(g + 1) * H], (row_pad, Hp)) for g in range(3)]
    return jnp.concatenate(blocks, axis=1)


def prepare_decoder_params(params, batch_size, weight_dtype=jnp.bfloat16):
    """Pad / re-block / fold / cast the weights ONCE, at parameter-load time.

    Returns (padded_params, meta).  Call this outside the per-step path; the
    forward function consumes the pre-padded arrays directly.
    """
    emb, wih, whh, bih, bhh, wo, bo = (
        params["emb"], params["wih"], params["whh"], params["bih"],
        params["bhh"], params["wo"], params["bo"])
    V, H = emb.shape
    B = batch_size

    Bp = _round_up(max(B, 1), 8)     # sublane-aligned batch
    Hp = _round_up(H, 128)           # lane/MXU-aligned hidden
    Vp = _round_up(V, 128)           # lane/MXU-aligned vocab

    bih32 = bih.astype(jnp.float32)
    bhh32 = bhh.astype(jnp.float32)
    # Fold b_hr/b_hz into b_ir/b_iz (exact up to fp reassociation); keep b_hn
    # separate -- PyTorch applies it inside r * (Whh_n . h + b_hn).
    bih_fused = jnp.concatenate(
        [bih32[:, :2 * H] + bhh32[:, :2 * H], bih32[:, 2 * H:3 * H]], axis=1)

    padded = {
        "emb": _pad2(emb, (Vp, Hp)).astype(weight_dtype),
        "wih": _pad_gates(wih, H, Hp, Hp).astype(weight_dtype),
        # Recurrence matmul stays f32 so bf16 weight error does not compound
        # across the T-step hidden-state chain.
        "whh": _pad_gates(whh, H, Hp, Hp).astype(jnp.float32),
        "bih": _pad_gates(bih_fused, H, Hp, 1),
        "bhn": _pad2(bhh32[:, 2 * H:3 * H], (1, Hp)),
        "wo": _pad2(wo, (Hp, Vp)).astype(weight_dtype),
        # Padded vocab columns get a -1e30 bias: they never win argmax and are
        # exact zeros in the softmax, so real-lane results are unchanged.
        "bo": _pad2(bo.astype(jnp.float32), (1, Vp), fill=NEG_INF),
    }
    meta = dict(B=B, H=H, V=V, Bp=Bp, Hp=Hp, Vp=Vp)
    return padded, meta


# -------------------------------- forward -------------------------------------
def decoder_rnn_forward(encoder_outputs, encoder_hidden, padded_params, meta):
    """Pallas implementation of DecoderRNN.forward with target_tensor=None.

    Returns (log_probs (B, MAX_LENGTH, V), decoder_hidden (1, B, H), None).
    """
    B, H, V = meta["B"], meta["H"], meta["V"]
    Bp, Hp, Vp = meta["Bp"], meta["Hp"], meta["Vp"]
    assert encoder_outputs.shape[0] == B

    p = padded_params
    h0 = _pad2(encoder_hidden.reshape(B, H).astype(jnp.float32), (Bp, Hp))

    T = MAX_LENGTH
    w_item = jnp.dtype(p["emb"].dtype).itemsize

    # VMEM budget from the actual padded resident set (+50% headroom + 2 MiB),
    # floored at 8 MiB; v5e's default scoped limit is only 16 MiB so the
    # explicit value matters.  TODO(synk): once this approaches v7x's 64 MiB
    # physical VMEM, switch emb/wo/logp to the HBM-streaming plan in the kernel
    # TODOs instead of raising the limit further.
    weight_bytes = (p["emb"].size + p["wih"].size + p["wo"].size) * w_item
    f32_in_bytes = (p["whh"].size + p["bih"].size + p["bhn"].size
                    + p["bo"].size + Bp * Hp) * 4
    out_bytes = (T * Bp * Vp + Bp * Hp) * 4
    footprint = weight_bytes + f32_in_bytes + out_bytes
    vmem_limit = min(max(8 * 1024 * 1024, int(footprint * 1.5) + (2 << 20)),
                     128 * 1024 * 1024)

    flops = 2 * T * Bp * (Vp * Hp + 2 * Hp * 3 * Hp + Hp * Vp)
    transcendentals = T * Bp * (3 * Hp + Vp)
    bytes_accessed = footprint

    # No grid: the fused decode runs once; each operand is a single whole-array
    # VMEM block (no per-step double-buffering of grid-invariant weights).
    logp, h_final = pl.pallas_call(
        decoder_rnn_kernel,
        out_shape=(
            jax.ShapeDtypeStruct((T, Bp, Vp), jnp.float32),
            jax.ShapeDtypeStruct((Bp, Hp), jnp.float32),
        ),
        compiler_params=pltpu.CompilerParams(vmem_limit_bytes=vmem_limit),
        cost_estimate=pl.CostEstimate(
            flops=flops, transcendentals=transcendentals,
            bytes_accessed=bytes_accessed),
    )(h0, p["emb"], p["wih"], p["whh"], p["bih"], p["bhn"], p["wo"], p["bo"])

    # Keep the kernel's lane-dense (T,Bp,Vp) store layout; this transpose costs
    # one extra read+write of the (small) output outside the kernel, which is
    # cheaper than 1-sublane masked stores inside it.
    decoder_outputs = jnp.transpose(logp[:, :B, :V], (1, 0, 2))   # (B, T, V)
    decoder_hidden = h_final[:B, :H][None, :, :]                  # (1, B, H)
    return decoder_outputs, decoder_hidden, None


# ----------------------------- pure-JAX reference -----------------------------
def reference_forward(encoder_outputs, encoder_hidden, params):
    B = encoder_outputs.shape[0]
    emb, wih, whh, bih, bhh, wo, bo = (
        params["emb"], params["wih"], params["whh"], params["bih"],
        params["bhh"], params["wo"], params["bo"])
    V, H = emb.shape
    h = encoder_hidden.reshape(B, H)
    tok = jnp.full((B,), SOS_TOKEN, dtype=jnp.int32)
    outs = []
    for _ in range(MAX_LENGTH):
        x = jnp.maximum(emb[tok], 0.0)
        gx = x @ wih + bih
        gh = h @ whh + bhh
        r = jax.nn.sigmoid(gx[:, :H] + gh[:, :H])
        z = jax.nn.sigmoid(gx[:, H:2 * H] + gh[:, H:2 * H])
        n = jnp.tanh(gx[:, 2 * H:] + r * gh[:, 2 * H:])
        h = (1.0 - z) * n + z * h
        logits = h @ wo + bo
        outs.append(logits)
        tok = jnp.argmax(logits, axis=-1).astype(jnp.int32)
    logits_all = jnp.stack(outs, axis=1)                      # (B, T, V)
    return jax.nn.log_softmax(logits_all, axis=-1), h[None], None


def make_params(key, hidden_size, output_size):
    ks = jax.random.split(key, 7)
    H, V = hidden_size, output_size
    s = 1.0 / jnp.sqrt(H)
    return {
        "emb": jax.random.normal(ks[0], (V, H), jnp.float32),
        "wih": jax.random.uniform(ks[1], (H, 3 * H), jnp.float32, -s, s),
        "whh": jax.random.uniform(ks[2], (H, 3 * H), jnp.float32, -s, s),
        "bih": jax.random.uniform(ks[3], (1, 3 * H), jnp.float32, -s, s),
        "bhh": jax.random.uniform(ks[4], (1, 3 * H), jnp.float32, -s, s),
        "wo": jax.random.uniform(ks[5], (H, V), jnp.float32, -s, s),
        "bo": jax.random.uniform(ks[6], (1, V), jnp.float32, -s, s),
    }


if __name__ == "__main__":
    B, S, H, V = 2, 8, 32, 32            # batch, encoder seq len, hidden, vocab
    key = jax.random.PRNGKey(0)
    k_params, k_enc_out, k_enc_hid = jax.random.split(key, 3)

    params = make_params(k_params, H, V)
    encoder_outputs = jax.random.normal(k_enc_out, (B, S, H), jnp.float32)
    encoder_hidden = jax.random.normal(k_enc_hid, (1, B, H), jnp.float32)

    # f32-weight run: numerically comparable to the pure-JAX reference.
    p_f32, meta = prepare_decoder_params(params, batch_size=B,
                                         weight_dtype=jnp.float32)
    logp, h_final, _ = decoder_rnn_forward(encoder_outputs, encoder_hidden,
                                           p_f32, meta)
    jax.block_until_ready((logp, h_final))

    ref_logp, ref_h, _ = reference_forward(encoder_outputs, encoder_hidden, params)
    assert logp.shape == (B, MAX_LENGTH, V) and h_final.shape == (1, B, H)
    assert jnp.allclose(logp, ref_logp, atol=1e-3, rtol=1e-3)
    assert jnp.allclose(h_final, ref_h, atol=1e-3, rtol=1e-3)

    # Default bf16-weight run (MXU bf16 path, f32 accumulation + f32 recurrence):
    # shape/finiteness smoke test only -- greedy argmax may legitimately diverge
    # from f32 on near-ties.
    p_bf16, meta_bf16 = prepare_decoder_params(params, batch_size=B)  # bf16 default
    logp_bf16, h_bf16, _ = decoder_rnn_forward(encoder_outputs, encoder_hidden,
                                               p_bf16, meta_bf16)
    jax.block_until_ready((logp_bf16, h_bf16))
    assert logp_bf16.shape == (B, MAX_LENGTH, V) and h_bf16.shape == (1, B, H)
    assert bool(jnp.all(jnp.isfinite(logp_bf16))) and bool(jnp.all(jnp.isfinite(h_bf16)))

    print("KERNEL_OK")
</pallas_src>

<mosaic_0001>
module attributes {stable_mosaic.version = 11 : i64} {
  func.func @decoder_rnn_kernel(%arg0: memref<8x128xf32, #tpu.memory_space<vmem>>, %arg1: memref<128x128xf32, #tpu.memory_space<vmem>>, %arg2: memref<128x384xf32, #tpu.memory_space<vmem>>, %arg3: memref<128x384xf32, #tpu.memory_space<vmem>>, %arg4: memref<1x384xf32, #tpu.memory_space<vmem>>, %arg5: memref<1x128xf32, #tpu.memory_space<vmem>>, %arg6: memref<128x128xf32, #tpu.memory_space<vmem>>, %arg7: memref<1x128xf32, #tpu.memory_space<vmem>>, %arg8: memref<10x8x128xf32, #tpu.memory_space<vmem>>, %arg9: memref<8x128xf32, #tpu.memory_space<vmem>>) attributes {dimension_semantics = [], scalar_prefetch = 0 : i64, scratch_operands = 0 : i64, tpu.core_type = #tpu.core_type<tc>} {
    %0 = tpu.iota {dimensions = array<i32: 1>} : vector<8x128xi32>
    %c0 = arith.constant 0 : index
    %c0_0 = arith.constant 0 : index
    %1 = vector.load %arg4[%c0, %c0_0] : memref<1x384xf32, #tpu.memory_space<vmem>>, vector<1x384xf32>
    %c0_1 = arith.constant 0 : index
    %c0_2 = arith.constant 0 : index
    %2 = vector.load %arg5[%c0_1, %c0_2] : memref<1x128xf32, #tpu.memory_space<vmem>>, vector<1x128xf32>
    %c0_3 = arith.constant 0 : index
    %c0_4 = arith.constant 0 : index
    %3 = vector.load %arg7[%c0_3, %c0_4] : memref<1x128xf32, #tpu.memory_space<vmem>>, vector<1x128xf32>
    %c0_5 = arith.constant 0 : index
    %c0_6 = arith.constant 0 : index
    %4 = vector.load %arg0[%c0_5, %c0_6] : memref<8x128xf32, #tpu.memory_space<vmem>>, vector<8x128xf32>
    %c0_i32 = arith.constant 0 : i32
    %5 = vector.broadcast %c0_i32 : i32 to vector<8x1xi32>
    %6 = vector.broadcast %5 : vector<8x1xi32> to vector<8x128xi32>
    %7 = arith.cmpi eq, %0, %6 : vector<8x128xi32>
    %8 = arith.extui %7 : vector<8x128xi1> to vector<8x128xi32>
    %9 = arith.sitofp %8 : vector<8x128xi32> to vector<8x128xf32>
    %c0_7 = arith.constant 0 : index
    %c0_8 = arith.constant 0 : index
    %10 = vector.load %arg1[%c0_7, %c0_8] : memref<128x128xf32, #tpu.memory_space<vmem>>, vector<128x128xf32>
    %cst = arith.constant dense<0.000000e+00> : vector<8x128xf32>
    %11 = tpu.matmul %9, %10, %cst {dimension_numbers = #tpu.dot_dimension_numbers<[1], [0], [0], [1], [0, 0, 1, 1], [], []>} : vector<8x128xf32>, vector<128x128xf32>, vector<8x128xf32> -> vector<8x128xf32>
    %cst_9 = arith.constant 0.000000e+00 : f32
    %12 = vector.broadcast %cst_9 : f32 to vector<8x128xf32>
    %13 = arith.maximumf %11, %12 : vector<8x128xf32>
    %c0_10 = arith.constant 0 : index
    %c0_11 = arith.constant 0 : index
    %14 = vector.load %arg2[%c0_10, %c0_11] : memref<128x384xf32, #tpu.memory_space<vmem>>, vector<128x384xf32>
    %cst_12 = arith.constant dense<0.000000e+00> : vector<8x384xf32>
    %15 = tpu.matmul %13, %14, %cst_12 {dimension_numbers = #tpu.dot_dimension_numbers<[1], [0], [0], [1], [0, 0, 1, 1], [], []>} : vector<8x128xf32>, vector<128x384xf32>, vector<8x384xf32> -> vector<8x384xf32>
    %16 = vector.broadcast %1 : vector<1x384xf32> to vector<8x384xf32>
    %17 = arith.addf %15, %16 : vector<8x384xf32>
    %c0_13 = arith.constant 0 : index
    %c0_14 = arith.constant 0 : index
    %18 = vector.load %arg3[%c0_13, %c0_14] : memref<128x384xf32, #tpu.memory_space<vmem>>, vector<128x384xf32>
    %cst_15 = arith.constant dense<0.000000e+00> : vector<8x384xf32>
    %19 = tpu.matmul %4, %18, %cst_15 {dimension_numbers = #tpu.dot_dimension_numbers<[1], [0], [0], [1], [0, 0, 1, 1], [], []>} : vector<8x128xf32>, vector<128x384xf32>, vector<8x384xf32> -> vector<8x384xf32>
    %20 = vector.extract_strided_slice %17 {offsets = [0, 0], sizes = [8, 128], strides = [1, 1]} : vector<8x384xf32> to vector<8x128xf32>
    %21 = vector.extract_strided_slice %19 {offsets = [0, 0], sizes = [8, 128], strides = [1, 1]} : vector<8x384xf32> to vector<8x128xf32>
    %22 = arith.addf %20, %21 : vector<8x128xf32>
    %23 = arith.negf %22 : vector<8x128xf32>
    %24 = math.exp %23 : vector<8x128xf32>
    %cst_16 = arith.constant 1.000000e+00 : f32
    %25 = vector.broadcast %cst_16 : f32 to vector<8x128xf32>
    %26 = arith.addf %25, %24 : vector<8x128xf32>
    %27 = arith.divf %25, %26 : vector<8x128xf32>
    %28 = vector.extract_strided_slice %17 {offsets = [0, 128], sizes = [8, 128], strides = [1, 1]} : vector<8x384xf32> to vector<8x128xf32>
    %29 = vector.extract_strided_slice %19 {offsets = [0, 128], sizes = [8, 128], strides = [1, 1]} : vector<8x384xf32> to vector<8x128xf32>
    %30 = arith.addf %28, %29 : vector<8x128xf32>
    %31 = arith.negf %30 : vector<8x128xf32>
    %32 = math.exp %31 : vector<8x128xf32>
    %cst_17 = arith.constant 1.000000e+00 : f32
    %33 = vector.broadcast %cst_17 : f32 to vector<8x128xf32>
    %34 = arith.addf %33, %32 : vector<8x128xf32>
    %35 = arith.divf %33, %34 : vector<8x128xf32>
    %36 = vector.extract_strided_slice %17 {offsets = [0, 256], sizes = [8, 128], strides = [1, 1]} : vector<8x384xf32> to vector<8x128xf32>
    %37 = vector.extract_strided_slice %19 {offsets = [0, 256], sizes = [8, 128], strides = [1, 1]} : vector<8x384xf32> to vector<8x128xf32>
    %38 = vector.broadcast %2 : vector<1x128xf32> to vector<8x128xf32>
    %39 = arith.addf %37, %38 : vector<8x128xf32>
    %40 = arith.mulf %27, %39 : vector<8x128xf32>
    %41 = arith.addf %36, %40 : vector<8x128xf32>
    %42 = math.tanh %41 : vector<8x128xf32>
    %43 = arith.subf %4, %42 : vector<8x128xf32>
    %44 = arith.mulf %35, %43 : vector<8x128xf32>
    %45 = arith.addf %42, %44 : vector<8x128xf32>
    %c0_18 = arith.constant 0 : index
    %c0_19 = arith.constant 0 : index
    %46 = vector.load %arg6[%c0_18, %c0_19] : memref<128x128xf32, #tpu.memory_space<vmem>>, vector<128x128xf32>
    %cst_20 = arith.constant dense<0.000000e+00> : vector<8x128xf32>
    %47 = tpu.matmul %45, %46, %cst_20 {dimension_numbers = #tpu.dot_dimension_numbers<[1], [0], [0], [1], [0, 0, 1, 1], [], []>} : vector<8x128xf32>, vector<128x128xf32>, vector<8x128xf32> -> vector<8x128xf32>
    %48 = vector.broadcast %3 : vector<1x128xf32> to vector<8x128xf32>
    %49 = arith.addf %47, %48 : vector<8x128xf32>
    %cst_21 = arith.constant dense<0xFF800000> : vector<8xf32>
    %50 = vector.multi_reduction <maximumf>, %49, %cst_21 [1] : vector<8x128xf32> to vector<8xf32>
    %51 = vector.shape_cast %50 : vector<8xf32> to vector<8x1xf32>
    %52 = vector.broadcast %51 : vector<8x1xf32> to vector<8x128xf32>
    %53 = arith.cmpf oeq, %49, %52 : vector<8x128xf32>
    %c128_i32 = arith.constant 128 : i32
    %54 = vector.broadcast %c128_i32 : i32 to vector<8x128xi32>
    %55 = arith.select %53, %0, %54 : vector<8x128xi1>, vector<8x128xi32>
    %cst_22 = arith.constant dense<2147483647> : vector<8xi32>
    %56 = vector.multi_reduction <minsi>, %55, %cst_22 [1] : vector<8x128xi32> to vector<8xi32>
    %57 = vector.shape_cast %56 : vector<8xi32> to vector<8x1xi32>
    %58 = vector.broadcast %51 : vector<8x1xf32> to vector<8x128xf32>
    %59 = arith.subf %49, %58 : vector<8x128xf32>
    %60 = math.exp %59 : vector<8x128xf32>
    %cst_23 = arith.constant dense<0.000000e+00> : vector<8xf32>
    %61 = vector.multi_reduction <add>, %60, %cst_23 [1] : vector<8x128xf32> to vector<8xf32>
    %62 = vector.shape_cast %61 : vector<8xf32> to vector<8x1xf32>
    %63 = math.log %62 : vector<8x1xf32>
    %64 = arith.addf %51, %63 : vector<8x1xf32>
    %65 = vector.broadcast %64 : vector<8x1xf32> to vector<8x128xf32>
    %66 = arith.subf %49, %65 : vector<8x128xf32>
    %c0_24 = arith.constant 0 : index
    %c0_25 = arith.constant 0 : index
    %c0_26 = arith.constant 0 : index
    %67 = vector.load %arg8[%c0_24, %c0_25, %c0_26] : memref<10x8x128xf32, #tpu.memory_space<vmem>>, vector<1x8x128xf32>
    %68 = vector.shape_cast %67 : vector<1x8x128xf32> to vector<8x128xf32>
    %69 = vector.shape_cast %66 : vector<8x128xf32> to vector<1x8x128xf32>
    tpu.vector_store %arg8[%c0_24, %c0_25, %c0_26], %69 {strides = array<i32>} : memref<10x8x128xf32, #tpu.memory_space<vmem>>, vector<1x8x128xf32>,
    %70 = vector.broadcast %57 : vector<8x1xi32> to vector<8x128xi32>
    %71 = arith.cmpi eq, %0, %70 : vector<8x128xi32>
    %72 = arith.extui %71 : vector<8x128xi1> to vector<8x128xi32>
    %73 = arith.sitofp %72 : vector<8x128xi32> to vector<8x128xf32>
    %c0_27 = arith.constant 0 : index
    %c0_28 = arith.constant 0 : index
    %74 = vector.load %arg1[%c0_27, %c0_28] : memref<128x128xf32, #tpu.memory_space<vmem>>, vector<128x128xf32>
    %cst_29 = arith.constant dense<0.000000e+00> : vector<8x128xf32>
    %75 = tpu.matmul %73, %74, %cst_29 {dimension_numbers = #tpu.dot_dimension_numbers<[1], [0], [0], [1], [0, 0, 1, 1], [], []>} : vector<8x128xf32>, vector<128x128xf32>, vector<8x128xf32> -> vector<8x128xf32>
    %cst_30 = arith.constant 0.000000e+00 : f32
    %76 = vector.broadcast %cst_30 : f32 to vector<8x128xf32>
    %77 = arith.maximumf %75, %76 : vector<8x128xf32>
    %c0_31 = arith.constant 0 : index
    %c0_32 = arith.constant 0 : index
    %78 = vector.load %arg2[%c0_31, %c0_32] : memref<128x384xf32, #tpu.memory_space<vmem>>, vector<128x384xf32>
    %cst_33 = arith.constant dense<0.000000e+00> : vector<8x384xf32>
    %79 = tpu.matmul %77, %78, %cst_33 {dimension_numbers = #tpu.dot_dimension_numbers<[1], [0], [0], [1], [0, 0, 1, 1], [], []>} : vector<8x128xf32>, vector<128x384xf32>, vector<8x384xf32> -> vector<8x384xf32>
    %80 = vector.broadcast %1 : vector<1x384xf32> to vector<8x384xf32>
    %81 = arith.addf %79, %80 : vector<8x384xf32>
    %c0_34 = arith.constant 0 : index
    %c0_35 = arith.constant 0 : index
    %82 = vector.load %arg3[%c0_34, %c0_35] : memref<128x384xf32, #tpu.memory_space<vmem>>, vector<128x384xf32>
    %cst_36 = arith.constant dense<0.000000e+00> : vector<8x384xf32>
    %83 = tpu.matmul %45, %82, %cst_36 {dimension_numbers = #tpu.dot_dimension_numbers<[1], [0], [0], [1], [0, 0, 1, 1], [], []>} : vector<8x128xf32>, vector<128x384xf32>, vector<8x384xf32> -> vector<8x384xf32>
    %84 = vector.extract_strided_slice %81 {offsets = [0, 0], sizes = [8, 128], strides = [1, 1]} : vector<8x384xf32> to vector<8x128xf32>
    %85 = vector.extract_strided_slice %83 {offsets = [0, 0], sizes = [8, 128], strides = [1, 1]} : vector<8x384xf32> to vector<8x128xf32>
    %86 = arith.addf %84, %85 : vector<8x128xf32>
    %87 = arith.negf %86 : vector<8x128xf32>
    %88 = math.exp %87 : vector<8x128xf32>
    %cst_37 = arith.constant 1.000000e+00 : f32
    %89 = vector.broadcast %cst_37 : f32 to vector<8x128xf32>
    %90 = arith.addf %89, %88 : vector<8x128xf32>
    %91 = arith.divf %89, %90 : vector<8x128xf32>
    %92 = vector.extract_strided_slice %81 {offsets = [0, 128], sizes = [8, 128], strides = [1, 1]} : vector<8x384xf32> to vector<8x128xf32>
    %93 = vector.extract_strided_slice %83 {offsets = [0, 128], sizes = [8, 128], strides = [1, 1]} : vector<8x384xf32> to vector<8x128xf32>
    %94 = arith.addf %92, %93 : vector<8x128xf32>
    %95 = arith.negf %94 : vector<8x128xf32>
    %96 = math.exp %95 : vector<8x128xf32>
    %cst_38 = arith.constant 1.000000e+00 : f32
    %97 = vector.broadcast %cst_38 : f32 to vector<8x128xf32>
    %98 = arith.addf %97, %96 : vector<8x128xf32>
    %99 = arith.divf %97, %98 : vector<8x128xf32>
    %100 = vector.extract_strided_slice %81 {offsets = [0, 256], sizes = [8, 128], strides = [1, 1]} : vector<8x384xf32> to vector<8x128xf32>
    %101 = vector.extract_strided_slice %83 {offsets = [0, 256], sizes = [8, 128], strides = [1, 1]} : vector<8x384xf32> to vector<8x128xf32>
    %102 = vector.broadcast %2 : vector<1x128xf32> to vector<8x128xf32>
    %103 = arith.addf %101, %102 : vector<8x128xf32>
    %104 = arith.mulf %91, %103 : vector<8x128xf32>
    %105 = arith.addf %100, %104 : vector<8x128xf32>
    %106 = math.tanh %105 : vector<8x128xf32>
    %107 = arith.subf %45, %106 : vector<8x128xf32>
    %108 = arith.mulf %99, %107 : vector<8x128xf32>
    %109 = arith.addf %106, %108 : vector<8x128xf32>
    %c0_39 = arith.constant 0 : index
    %c0_40 = arith.constant 0 : index
    %110 = vector.load %arg6[%c0_39, %c0_40] : memref<128x128xf32, #tpu.memory_space<vmem>>, vector<128x128xf32>
    %cst_41 = arith.constant dense<0.000000e+00> : vector<8x128xf32>
    %111 = tpu.matmul %109, %110, %cst_41 {dimension_numbers = #tpu.dot_dimension_numbers<[1], [0], [0], [1], [0, 0, 1, 1], [], []>} : vector<8x128xf32>, vector<128x128xf32>, vector<8x128xf32> -> vector<8x128xf32>
    %112 = vector.broadcast %3 : vector<1x128xf32> to vector<8x128xf32>
    %113 = arith.addf %111, %112 : vector<8x128xf32>
    %cst_42 = arith.constant dense<0xFF800000> : vector<8xf32>
    %114 = vector.multi_reduction <maximumf>, %113, %cst_42 [1] : vector<8x128xf32> to vector<8xf32>
    %115 = vector.shape_cast %114 : vector<8xf32> to vector<8x1xf32>
    %116 = vector.broadcast %115 : vector<8x1xf32> to vector<8x128xf32>
    %117 = arith.cmpf oeq, %113, %116 : vector<8x128xf32>
    %c128_i32_43 = arith.constant 128 : i32
    %118 = vector.broadcast %c128_i32_43 : i32 to vector<8x128xi32>
    %119 = arith.select %117, %0, %118 : vector<8x128xi1>, vector<8x128xi32>
    %cst_44 = arith.constant dense<2147483647> : vector<8xi32>
    %120 = vector.multi_reduction <minsi>, %119, %cst_44 [1] : vector<8x128xi32> to vector<8xi32>
    %121 = vector.shape_cast %120 : vector<8xi32> to vector<8x1xi32>
    %122 = vector.broadcast %115 : vector<8x1xf32> to vector<8x128xf32>
    %123 = arith.subf %113, %122 : vector<8x128xf32>
    %124 = math.exp %123 : vector<8x128xf32>
    %cst_45 = arith.constant dense<0.000000e+00> : vector<8xf32>
    %125 = vector.multi_reduction <add>, %124, %cst_45 [1] : vector<8x128xf32> to vector<8xf32>
    %126 = vector.shape_cast %125 : vector<8xf32> to vector<8x1xf32>
    %127 = math.log %126 : vector<8x1xf32>
    %128 = arith.addf %115, %127 : vector<8x1xf32>
    %129 = vector.broadcast %128 : vector<8x1xf32> to vector<8x128xf32>
    %130 = arith.subf %113, %129 : vector<8x128xf32>
    %c1 = arith.constant 1 : index
    %c0_46 = arith.constant 0 : index
    %c0_47 = arith.constant 0 : index
    %131 = vector.load %arg8[%c1, %c0_46, %c0_47] : memref<10x8x128xf32, #tpu.memory_space<vmem>>, vector<1x8x128xf32>
    %132 = vector.shape_cast %131 : vector<1x8x128xf32> to vector<8x128xf32>
    %133 = vector.shape_cast %130 : vector<8x128xf32> to vector<1x8x128xf32>
    tpu.vector_store %arg8[%c1, %c0_46, %c0_47], %133 {strides = array<i32>} : memref<10x8x128xf32, #tpu.memory_space<vmem>>, vector<1x8x128xf32>,
    %134 = vector.broadcast %121 : vector<8x1xi32> to vector<8x128xi32>
    %135 = arith.cmpi eq, %0, %134 : vector<8x128xi32>
    %136 = arith.extui %135 : vector<8x128xi1> to vector<8x128xi32>
    %137 = arith.sitofp %136 : vector<8x128xi32> to vector<8x128xf32>
    %c0_48 = arith.constant 0 : index
    %c0_49 = arith.constant 0 : index
    %138 = vector.load %arg1[%c0_48, %c0_49] : memref<128x128xf32, #tpu.memory_space<vmem>>, vector<128x128xf32>
    %cst_50 = arith.constant dense<0.000000e+00> : vector<8x128xf32>
    %139 = tpu.matmul %137, %138, %cst_50 {dimension_numbers = #tpu.dot_dimension_numbers<[1], [0], [0], [1], [0, 0, 1, 1], [], []>} : vector<8x128xf32>, vector<128x128xf32>, vector<8x128xf32> -> vector<8x128xf32>
    %cst_51 = arith.constant 0.000000e+00 : f32
    %140 = vector.broadcast %cst_51 : f32 to vector<8x128xf32>
    %141 = arith.maximumf %139, %140 : vector<8x128xf32>
    %c0_52 = arith.constant 0 : index
    %c0_53 = arith.constant 0 : index
    %142 = vector.load %arg2[%c0_52, %c0_53] : memref<128x384xf32, #tpu.memory_space<vmem>>, vector<128x384xf32>
    %cst_54 = arith.constant dense<0.000000e+00> : vector<8x384xf32>
    %143 = tpu.matmul %141, %142, %cst_54 {dimension_numbers = #tpu.dot_dimension_numbers<[1], [0], [0], [1], [0, 0, 1, 1], [], []>} : vector<8x128xf32>, vector<128x384xf32>, vector<8x384xf32> -> vector<8x384xf32>
    %144 = vector.broadcast %1 : vector<1x384xf32> to vector<8x384xf32>
    %145 = arith.addf %143, %144 : vector<8x384xf32>
    %c0_55 = arith.constant 0 : index
    %c0_56 = arith.constant 0 : index
    %146 = vector.load %arg3[%c0_55, %c0_56] : memref<128x384xf32, #tpu.memory_space<vmem>>, vector<128x384xf32>
    %cst_57 = arith.constant dense<0.000000e+00> : vector<8x384xf32>
    %147 = tpu.matmul %109, %146, %cst_57 {dimension_numbers = #tpu.dot_dimension_numbers<[1], [0], [0], [1], [0, 0, 1, 1], [], []>} : vector<8x128xf32>, vector<128x384xf32>, vector<8x384xf32> -> vector<8x384xf32>
    %148 = vector.extract_strided_slice %145 {offsets = [0, 0], sizes = [8, 128], strides = [1, 1]} : vector<8x384xf32> to vector<8x128xf32>
    %149 = vector.extract_strided_slice %147 {offsets = [0, 0], sizes = [8, 128], strides = [1, 1]} : vector<8x384xf32> to vector<8x128xf32>
    %150 = arith.addf %148, %149 : vector<8x128xf32>
    %151 = arith.negf %150 : vector<8x128xf32>
    %152 = math.exp %151 : vector<8x128xf32>
    %cst_58 = arith.constant 1.000000e+00 : f32
    %153 = vector.broadcast %cst_58 : f32 to vector<8x128xf32>
    %154 = arith.addf %153, %152 : vector<8x128xf32>
    %155 = arith.divf %153, %154 : vector<8x128xf32>
    %156 = vector.extract_strided_slice %145 {offsets = [0, 128], sizes = [8, 128], strides = [1, 1]} : vector<8x384xf32> to vector<8x128xf32>
    %157 = vector.extract_strided_slice %147 {offsets = [0, 128], sizes = [8, 128], strides = [1, 1]} : vector<8x384xf32> to vector<8x128xf32>
    %158 = arith.addf %156, %157 : vector<8x128xf32>
    %159 = arith.negf %158 : vector<8x128xf32>
    %160 = math.exp %159 : vector<8x128xf32>
    %cst_59 = arith.constant 1.000000e+00 : f32
    %161 = vector.broadcast %cst_59 : f32 to vector<8x128xf32>
    %162 = arith.addf %161, %160 : vector<8x128xf32>
    %163 = arith.divf %161, %162 : vector<8x128xf32>
    %164 = vector.extract_strided_slice %145 {offsets = [0, 256], sizes = [8, 128], strides = [1, 1]} : vector<8x384xf32> to vector<8x128xf32>
    %165 = vector.extract_strided_slice %147 {offsets = [0, 256], sizes = [8, 128], strides = [1, 1]} : vector<8x384xf32> to vector<8x128xf32>
    %166 = vector.broadcast %2 : vector<1x128xf32> to vector<8x128xf32>
    %167 = arith.addf %165, %166 : vector<8x128xf32>
    %168 = arith.mulf %155, %167 : vector<8x128xf32>
    %169 = arith.addf %164, %168 : vector<8x128xf32>
    %170 = math.tanh %169 : vector<8x128xf32>
    %171 = arith.subf %109, %170 : vector<8x128xf32>
    %172 = arith.mulf %163, %171 : vector<8x128xf32>
    %173 = arith.addf %170, %172 : vector<8x128xf32>
    %c0_60 = arith.constant 0 : index
    %c0_61 = arith.constant 0 : index
    %174 = vector.load %arg6[%c0_60, %c0_61] : memref<128x128xf32, #tpu.memory_space<vmem>>, vector<128x128xf32>
    %cst_62 = arith.constant dense<0.000000e+00> : vector<8x128xf32>
    %175 = tpu.matmul %173, %174, %cst_62 {dimension_numbers = #tpu.dot_dimension_numbers<[1], [0], [0], [1], [0, 0, 1, 1], [], []>} : vector<8x128xf32>, vector<128x128xf32>, vector<8x128xf32> -> vector<8x128xf32>
    %176 = vector.broadcast %3 : vector<1x128xf32> to vector<8x128xf32>
    %177 = arith.addf %175, %176 : vector<8x128xf32>
    %cst_63 = arith.constant dense<0xFF800000> : vector<8xf32>
    %178 = vector.multi_reduction <maximumf>, %177, %cst_63 [1] : vector<8x128xf32> to vector<8xf32>
    %179 = vector.shape_cast %178 : vector<8xf32> to vector<8x1xf32>
    %180 = vector.broadcast %179 : vector<8x1xf32> to vector<8x128xf32>
    %181 = arith.cmpf oeq, %177, %180 : vector<8x128xf32>
    %c128_i32_64 = arith.constant 128 : i32
    %182 = vector.broadcast %c128_i32_64 : i32 to vector<8x128xi32>
    %183 = arith.select %181, %0, %182 : vector<8x128xi1>, vector<8x128xi32>
    %cst_65 = arith.constant dense<2147483647> : vector<8xi32>
    %184 = vector.multi_reduction <minsi>, %183, %cst_65 [1] : vector<8x128xi32> to vector<8xi32>
    %185 = vector.shape_cast %184 : vector<8xi32> to vector<8x1xi32>
    %186 = vector.broadcast %179 : vector<8x1xf32> to vector<8x128xf32>
    %187 = arith.subf %177, %186 : vector<8x128xf32>
    %188 = math.exp %187 : vector<8x128xf32>
    %cst_66 = arith.constant dense<0.000000e+00> : vector<8xf32>
    %189 = vector.multi_reduction <add>, %188, %cst_66 [1] : vector<8x128xf32> to vector<8xf32>
    %190 = vector.shape_cast %189 : vector<8xf32> to vector<8x1xf32>
    %191 = math.log %190 : vector<8x1xf32>
    %192 = arith.addf %179, %191 : vector<8x1xf32>
    %193 = vector.broadcast %192 : vector<8x1xf32> to vector<8x128xf32>
    %194 = arith.subf %177, %193 : vector<8x128xf32>
    %c2 = arith.constant 2 : index
    %c0_67 = arith.constant 0 : index
    %c0_68 = arith.constant 0 : index
    %195 = vector.load %arg8[%c2, %c0_67, %c0_68] : memref<10x8x128xf32, #tpu.memory_space<vmem>>, vector<1x8x128xf32>
    %196 = vector.shape_cast %195 : vector<1x8x128xf32> to vector<8x128xf32>
    %197 = vector.shape_cast %194 : vector<8x128xf32> to vector<1x8x128xf32>
    tpu.vector_store %arg8[%c2, %c0_67, %c0_68], %197 {strides = array<i32>} : memref<10x8x128xf32, #tpu.memory_space<vmem>>, vector<1x8x128xf32>,
    %198 = vector.broadcast %185 : vector<8x1xi32> to vector<8x128xi32>
    %199 = arith.cmpi eq, %0, %198 : vector<8x128xi32>
    %200 = arith.extui %199 : vector<8x128xi1> to vector<8x128xi32>
    %201 = arith.sitofp %200 : vector<8x128xi32> to vector<8x128xf32>
    %c0_69 = arith.constant 0 : index
    %c0_70 = arith.constant 0 : index
    %202 = vector.load %arg1[%c0_69, %c0_70] : memref<128x128xf32, #tpu.memory_space<vmem>>, vector<128x128xf32>
    %cst_71 = arith.constant dense<0.000000e+00> : vector<8x128xf32>
    %203 = tpu.matmul %201, %202, %cst_71 {dimension_numbers = #tpu.dot_dimension_numbers<[1], [0], [0], [1], [0, 0, 1, 1], [], []>} : vector<8x128xf32>, vector<128x128xf32>, vector<8x128xf32> -> vector<8x128xf32>
    %cst_72 = arith.constant 0.000000e+00 : f32
    %204 = vector.broadcast %cst_72 : f32 to vector<8x128xf32>
    %205 = arith.maximumf %203, %204 : vector<8x128xf32>
    %c0_73 = arith.constant 0 : index
    %c0_74 = arith.constant 0 : index
    %206 = vector.load %arg2[%c0_73, %c0_74] : memref<128x384xf32, #tpu.memory_space<vmem>>, vector<128x384xf32>
    %cst_75 = arith.constant dense<0.000000e+00> : vector<8x384xf32>
    %207 = tpu.matmul %205, %206, %cst_75 {dimension_numbers = #tpu.dot_dimension_numbers<[1], [0], [0], [1], [0, 0, 1, 1], [], []>} : vector<8x128xf32>, vector<128x384xf32>, vector<8x384xf32> -> vector<8x384xf32>
    %208 = vector.broadcast %1 : vector<1x384xf32> to vector<8x384xf32>
    %209 = arith.addf %207, %208 : vector<8x384xf32>
    %c0_76 = arith.constant 0 : index
    %c0_77 = arith.constant 0 : index
    %210 = vector.load %arg3[%c0_76, %c0_77] : memref<128x384xf32, #tpu.memory_space<vmem>>, vector<128x384xf32>
    %cst_78 = arith.constant dense<0.000000e+00> : vector<8x384xf32>
    %211 = tpu.matmul %173, %210, %cst_78 {dimension_numbers = #tpu.dot_dimension_numbers<[1], [0], [0], [1], [0, 0, 1, 1], [], []>} : vector<8x128xf32>, vector<128x384xf32>, vector<8x384xf32> -> vector<8x384xf32>
    %212 = vector.extract_strided_slice %209 {offsets = [0, 0], sizes = [8, 128], strides = [1, 1]} : vector<8x384xf32> to vector<8x128xf32>
    %213 = vector.extract_strided_slice %211 {offsets = [0, 0], sizes = [8, 128], strides = [1, 1]} : vector<8x384xf32> to vector<8x128xf32>
    %214 = arith.addf %212, %213 : vector<8x128xf32>
    %215 = arith.negf %214 : vector<8x128xf32>
    %216 = math.exp %215 : vector<8x128xf32>
    %cst_79 = arith.constant 1.000000e+00 : f32
    %217 = vector.broadcast %cst_79 : f32 to vector<8x128xf32>
    %218 = arith.addf %217, %216 : vector<8x128xf32>
    %219 = arith.divf %217, %218 : vector<8x128xf32>
    %220 = vector.extract_strided_slice %209 {offsets = [0, 128], sizes = [8, 128], strides = [1, 1]} : vector<8x384xf32> to vector<8x128xf32>
    %221 = vector.extract_strided_slice %211 {offsets = [0, 128], sizes = [8, 128], strides = [1, 1]} : vector<8x384xf32> to vector<8x128xf32>
    %222 = arith.addf %220, %221 : vector<8x128xf32>
    %223 = arith.negf %222 : vector<8x128xf32>
    %224 = math.exp %223 : vector<8x128xf32>
    %cst_80 = arith.constant 1.000000e+00 : f32
    %225 = vector.broadcast %cst_80 : f32 to vector<8x128xf32>
    %226 = arith.addf %225, %224 : vector<8x128xf32>
    %227 = arith.divf %225, %226 : vector<8x128xf32>
    %228 = vector.extract_strided_slice %209 {offsets = [0, 256], sizes = [8, 128], strides = [1, 1]} : vector<8x384xf32> to vector<8x128xf32>
    %229 = vector.extract_strided_slice %211 {offsets = [0, 256], sizes = [8, 128], strides = [1, 1]} : vector<8x384xf32> to vector<8x128xf32>
    %230 = vector.broadcast %2 : vector<1x128xf32> to vector<8x128xf32>
    %231 = arith.addf %229, %230 : vector<8x128xf32>
    %232 = arith.mulf %219, %231 : vector<8x128xf32>
    %233 = arith.addf %228, %232 : vector<8x128xf32>
    %234 = math.tanh %233 : vector<8x128xf32>
    %235 = arith.subf %173, %234 : vector<8x128xf32>
    %236 = arith.mulf %227, %235 : vector<8x128xf32>
    %237 = arith.addf %234, %236 : vector<8x128xf32>
    %c0_81 = arith.constant 0 : index
    %c0_82 = arith.constant 0 : index
    %238 = vector.load %arg6[%c0_81, %c0_82] : memref<128x128xf32, #tpu.memory_space<vmem>>, vector<128x128xf32>
    %cst_83 = arith.constant dense<0.000000e+00> : vector<8x128xf32>
    %239 = tpu.matmul %237, %238, %cst_83 {dimension_numbers = #tpu.dot_dimension_numbers<[1], [0], [0], [1], [0, 0, 1, 1], [], []>} : vector<8x128xf32>, vector<128x128xf32>, vector<8x128xf32> -> vector<8x128xf32>
    %240 = vector.broadcast %3 : vector<1x128xf32> to vector<8x128xf32>
    %241 = arith.addf %239, %240 : vector<8x128xf32>
    %cst_84 = arith.constant dense<0xFF800000> : vector<8xf32>
    %242 = vector.multi_reduction <maximumf>, %241, %cst_84 [1] : vector<8x128xf32> to vector<8xf32>
    %243 = vector.shape_cast %242 : vector<8xf32> to vector<8x1xf32>
    %244 = vector.broadcast %243 : vector<8x1xf32> to vector<8x128xf32>
    %245 = arith.cmpf oeq, %241, %244 : vector<8x128xf32>
    %c128_i32_85 = arith.constant 128 : i32
    %246 = vector.broadcast %c128_i32_85 : i32 to vector<8x128xi32>
    %247 = arith.select %245, %0, %246 : vector<8x128xi1>, vector<8x128xi32>
    %cst_86 = arith.constant dense<2147483647> : vector<8xi32>
    %248 = vector.multi_reduction <minsi>, %247, %cst_86 [1] : vector<8x128xi32> to vector<8xi32>
    %249 = vector.shape_cast %248 : vector<8xi32> to vector<8x1xi32>
    %250 = vector.broadcast %243 : vector<8x1xf32> to vector<8x128xf32>
    %251 = arith.subf %241, %250 : vector<8x128xf32>
    %252 = math.exp %251 : vector<8x128xf32>
    %cst_87 = arith.constant dense<0.000000e+00> : vector<8xf32>
    %253 = vector.multi_reduction <add>, %252, %cst_87 [1] : vector<8x128xf32> to vector<8xf32>
    %254 = vector.shape_cast %253 : vector<8xf32> to vector<8x1xf32>
    %255 = math.log %254 : vector<8x1xf32>
    %256 = arith.addf %243, %255 : vector<8x1xf32>
    %257 = vector.broadcast %256 : vector<8x1xf32> to vector<8x128xf32>
    %258 = arith.subf %241, %257 : vector<8x128xf32>
    %c3 = arith.constant 3 : index
    %c0_88 = arith.constant 0 : index
    %c0_89 = arith.constant 0 : index
    %259 = vector.load %arg8[%c3, %c0_88, %c0_89] : memref<10x8x128xf32, #tpu.memory_space<vmem>>, vector<1x8x128xf32>
    %260 = vector.shape_cast %259 : vector<1x8x128xf32> to vector<8x128xf32>
    %261 = vector.shape_cast %258 : vector<8x128xf32> to vector<1x8x128xf32>
    tpu.vector_store %arg8[%c3, %c0_88, %c0_89], %261 {strides = array<i32>} : memref<10x8x128xf32, #tpu.memory_space<vmem>>, vector<1x8x128xf32>,
    %262 = vector.broadcast %249 : vector<8x1xi32> to vector<8x128xi32>
    %263 = arith.cmpi eq, %0, %262 : vector<8x128xi32>
    %264 = arith.extui %263 : vector<8x128xi1> to vector<8x128xi32>
    %265 = arith.sitofp %264 : vector<8x128xi32> to vector<8x128xf32>
    %c0_90 = arith.constant 0 : index
    %c0_91 = arith.constant 0 : index
    %266 = vector.load %arg1[%c0_90, %c0_91] : memref<128x128xf32, #tpu.memory_space<vmem>>, vector<128x128xf32>
    %cst_92 = arith.constant dense<0.000000e+00> : vector<8x128xf32>
    %267 = tpu.matmul %265, %266, %cst_92 {dimension_numbers = #tpu.dot_dimension_numbers<[1], [0], [0], [1], [0, 0, 1, 1], [], []>} : vector<8x128xf32>, vector<128x128xf32>, vector<8x128xf32> -> vector<8x128xf32>
    %cst_93 = arith.constant 0.000000e+00 : f32
    %268 = vector.broadcast %cst_93 : f32 to vector<8x128xf32>
    %269 = arith.maximumf %267, %268 : vector<8x128xf32>
    %c0_94 = arith.constant 0 : index
    %c0_95 = arith.constant 0 : index
    %270 = vector.load %arg2[%c0_94, %c0_95] : memref<128x384xf32, #tpu.memory_space<vmem>>, vector<128x384xf32>
    %cst_96 = arith.constant dense<0.000000e+00> : vector<8x384xf32>
    %271 = tpu.matmul %269, %270, %cst_96 {dimension_numbers = #tpu.dot_dimension_numbers<[1], [0], [0], [1], [0, 0, 1, 1], [], []>} : vector<8x128xf32>, vector<128x384xf32>, vector<8x384xf32> -> vector<8x384xf32>
    %272 = vector.broadcast %1 : vector<1x384xf32> to vector<8x384xf32>
    %273 = arith.addf %271, %272 : vector<8x384xf32>
    %c0_97 = arith.constant 0 : index
    %c0_98 = arith.constant 0 : index
    %274 = vector.load %arg3[%c0_97, %c0_98] : memref<128x384xf32, #tpu.memory_space<vmem>>, vector<128x384xf32>
    %cst_99 = arith.constant dense<0.000000e+00> : vector<8x384xf32>
    %275 = tpu.matmul %237, %274, %cst_99 {dimension_numbers = #tpu.dot_dimension_numbers<[1], [0], [0], [1], [0, 0, 1, 1], [], []>} : vector<8x128xf32>, vector<128x384xf32>, vector<8x384xf32> -> vector<8x384xf32>
    %276 = vector.extract_strided_slice %273 {offsets = [0, 0], sizes = [8, 128], strides = [1, 1]} : vector<8x384xf32> to vector<8x128xf32>
    %277 = vector.extract_strided_slice %275 {offsets = [0, 0], sizes = [8, 128], strides = [1, 1]} : vector<8x384xf32> to vector<8x128xf32>
    %278 = arith.addf %276, %277 : vector<8x128xf32>
    %279 = arith.negf %278 : vector<8x128xf32>
    %280 = math.exp %279 : vector<8x128xf32>
    %cst_100 = arith.constant 1.000000e+00 : f32
    %281 = vector.broadcast %cst_100 : f32 to vector<8x128xf32>
    %282 = arith.addf %281, %280 : vector<8x128xf32>
    %283 = arith.divf %281, %282 : vector<8x128xf32>
    %284 = vector.extract_strided_slice %273 {offsets = [0, 128], sizes = [8, 128], strides = [1, 1]} : vector<8x384xf32> to vector<8x128xf32>
    %285 = vector.extract_strided_slice %275 {offsets = [0, 128], sizes = [8, 128], strides = [1, 1]} : vector<8x384xf32> to vector<8x128xf32>
    %286 = arith.addf %284, %285 : vector<8x128xf32>
    %287 = arith.negf %286 : vector<8x128xf32>
    %288 = math.exp %287 : vector<8x128xf32>
    %cst_101 = arith.constant 1.000000e+00 : f32
    %289 = vector.broadcast %cst_101 : f32 to vector<8x128xf32>
    %290 = arith.addf %289, %288 : vector<8x128xf32>
    %291 = arith.divf %289, %290 : vector<8x128xf32>
    %292 = vector.extract_strided_slice %273 {offsets = [0, 256], sizes = [8, 128], strides = [1, 1]} : vector<8x384xf32> to vector<8x128xf32>
    %293 = vector.extract_strided_slice %275 {offsets = [0, 256], sizes = [8, 128], strides = [1, 1]} : vector<8x384xf32> to vector<8x128xf32>
    %294 = vector.broadcast %2 : vector<1x128xf32> to vector<8x128xf32>
    %295 = arith.addf %293, %294 : vector<8x128xf32>
    %296 = arith.mulf %283, %295 : vector<8x128xf32>
    %297 = arith.addf %292, %296 : vector<8x128xf32>
    %298 = math.tanh %297 : vector<8x128xf32>
    %299 = arith.subf %237, %298 : vector<8x128xf32>
    %300 = arith.mulf %291, %299 : vector<8x128xf32>
    %301 = arith.addf %298, %300 : vector<8x128xf32>
    %c0_102 = arith.constant 0 : index
    %c0_103 = arith.constant 0 : index
    %302 = vector.load %arg6[%c0_102, %c0_103] : memref<128x128xf32, #tpu.memory_space<vmem>>, vector<128x128xf32>
    %cst_104 = arith.constant dense<0.000000e+00> : vector<8x128xf32>
    %303 = tpu.matmul %301, %302, %cst_104 {dimension_numbers = #tpu.dot_dimension_numbers<[1], [0], [0], [1], [0, 0, 1, 1], [], []>} : vector<8x128xf32>, vector<128x128xf32>, vector<8x128xf32> -> vector<8x128xf32>
    %304 = vector.broadcast %3 : vector<1x128xf32> to vector<8x128xf32>
    %305 = arith.addf %303, %304 : vector<8x128xf32>
    %cst_105 = arith.constant dense<0xFF800000> : vector<8xf32>
    %306 = vector.multi_reduction <maximumf>, %305, %cst_105 [1] : vector<8x128xf32> to vector<8xf32>
    %307 = vector.shape_cast %306 : vector<8xf32> to vector<8x1xf32>
    %308 = vector.broadcast %307 : vector<8x1xf32> to vector<8x128xf32>
    %309 = arith.cmpf oeq, %305, %308 : vector<8x128xf32>
    %c128_i32_106 = arith.constant 128 : i32
    %310 = vector.broadcast %c128_i32_106 : i32 to vector<8x128xi32>
    %311 = arith.select %309, %0, %310 : vector<8x128xi1>, vector<8x128xi32>
    %cst_107 = arith.constant dense<2147483647> : vector<8xi32>
    %312 = vector.multi_reduction <minsi>, %311, %cst_107 [1] : vector<8x128xi32> to vector<8xi32>
    %313 = vector.shape_cast %312 : vector<8xi32> to vector<8x1xi32>
    %314 = vector.broadcast %307 : vector<8x1xf32> to vector<8x128xf32>
    %315 = arith.subf %305, %314 : vector<8x128xf32>
    %316 = math.exp %315 : vector<8x128xf32>
    %cst_108 = arith.constant dense<0.000000e+00> : vector<8xf32>
    %317 = vector.multi_reduction <add>, %316, %cst_108 [1] : vector<8x128xf32> to vector<8xf32>
    %318 = vector.shape_cast %317 : vector<8xf32> to vector<8x1xf32>
    %319 = math.log %318 : vector<8x1xf32>
    %320 = arith.addf %307, %319 : vector<8x1xf32>
    %321 = vector.broadcast %320 : vector<8x1xf32> to vector<8x128xf32>
    %322 = arith.subf %305, %321 : vector<8x128xf32>
    %c4 = arith.constant 4 : index
    %c0_109 = arith.constant 0 : index
    %c0_110 = arith.constant 0 : index
    %323 = vector.load %arg8[%c4, %c0_109, %c0_110] : memref<10x8x128xf32, #tpu.memory_space<vmem>>, vector<1x8x128xf32>
    %324 = vector.shape_cast %323 : vector<1x8x128xf32> to vector<8x128xf32>
    %325 = vector.shape_cast %322 : vector<8x128xf32> to vector<1x8x128xf32>
    tpu.vector_store %arg8[%c4, %c0_109, %c0_110], %325 {strides = array<i32>} : memref<10x8x128xf32, #tpu.memory_space<vmem>>, vector<1x8x128xf32>,
    %326 = vector.broadcast %313 : vector<8x1xi32> to vector<8x128xi32>
    %327 = arith.cmpi eq, %0, %326 : vector<8x128xi32>
    %328 = arith.extui %327 : vector<8x128xi1> to vector<8x128xi32>
    %329 = arith.sitofp %328 : vector<8x128xi32> to vector<8x128xf32>
    %c0_111 = arith.constant 0 : index
    %c0_112 = arith.constant 0 : index
    %330 = vector.load %arg1[%c0_111, %c0_112] : memref<128x128xf32, #tpu.memory_space<vmem>>, vector<128x128xf32>
    %cst_113 = arith.constant dense<0.000000e+00> : vector<8x128xf32>
    %331 = tpu.matmul %329, %330, %cst_113 {dimension_numbers = #tpu.dot_dimension_numbers<[1], [0], [0], [1], [0, 0, 1, 1], [], []>} : vector<8x128xf32>, vector<128x128xf32>, vector<8x128xf32> -> vector<8x128xf32>
    %cst_114 = arith.constant 0.000000e+00 : f32
    %332 = vector.broadcast %cst_114 : f32 to vector<8x128xf32>
    %333 = arith.maximumf %331, %332 : vector<8x128xf32>
    %c0_115 = arith.constant 0 : index
    %c0_116 = arith.constant 0 : index
    %334 = vector.load %arg2[%c0_115, %c0_116] : memref<128x384xf32, #tpu.memory_space<vmem>>, vector<128x384xf32>
    %cst_117 = arith.constant dense<0.000000e+00> : vector<8x384xf32>
    %335 = tpu.matmul %333, %334, %cst_117 {dimension_numbers = #tpu.dot_dimension_numbers<[1], [0], [0], [1], [0, 0, 1, 1], [], []>} : vector<8x128xf32>, vector<128x384xf32>, vector<8x384xf32> -> vector<8x384xf32>
    %336 = vector.broadcast %1 : vector<1x384xf32> to vector<8x384xf32>
    %337 = arith.addf %335, %336 : vector<8x384xf32>
    %c0_118 = arith.constant 0 : index
    %c0_119 = arith.constant 0 : index
    %338 = vector.load %arg3[%c0_118, %c0_119] : memref<128x384xf32, #tpu.memory_space<vmem>>, vector<128x384xf32>
    %cst_120 = arith.constant dense<0.000000e+00> : vector<8x384xf32>
    %339 = tpu.matmul %301, %338, %cst_120 {dimension_numbers = #tpu.dot_dimension_numbers<[1], [0], [0], [1], [0, 0, 1, 1], [], []>} : vector<8x128xf32>, vector<128x384xf32>, vector<8x384xf32> -> vector<8x384xf32>
    %340 = vector.extract_strided_slice %337 {offsets = [0, 0], sizes = [8, 128], strides = [1, 1]} : vector<8x384xf32> to vector<8x128xf32>
    %341 = vector.extract_strided_slice %339 {offsets = [0, 0], sizes = [8, 128], strides = [1, 1]} : vector<8x384xf32> to vector<8x128xf32>
    %342 = arith.addf %340, %341 : vector<8x128xf32>
    %343 = arith.negf %342 : vector<8x128xf32>
    %344 = math.exp %343 : vector<8x128xf32>
    %cst_121 = arith.constant 1.000000e+00 : f32
    %345 = vector.broadcast %cst_121 : f32 to vector<8x128xf32>
    %346 = arith.addf %345, %344 : vector<8x128xf32>
    %347 = arith.divf %345, %346 : vector<8x128xf32>
    %348 = vector.extract_strided_slice %337 {offsets = [0, 128], sizes = [8, 128], strides = [1, 1]} : vector<8x384xf32> to vector<8x128xf32>
    %349 = vector.extract_strided_slice %339 {offsets = [0, 128], sizes = [8, 128], strides = [1, 1]} : vector<8x384xf32> to vector<8x128xf32>
    %350 = arith.addf %348, %349 : vector<8x128xf32>
    %351 = arith.negf %350 : vector<8x128xf32>
    %352 = math.exp %351 : vector<8x128xf32>
    %cst_122 = arith.constant 1.000000e+00 : f32
    %353 = vector.broadcast %cst_122 : f32 to vector<8x128xf32>
    %354 = arith.addf %353, %352 : vector<8x128xf32>
    %355 = arith.divf %353, %354 : vector<8x128xf32>
    %356 = vector.extract_strided_slice %337 {offsets = [0, 256], sizes = [8, 128], strides = [1, 1]} : vector<8x384xf32> to vector<8x128xf32>
    %357 = vector.extract_strided_slice %339 {offsets = [0, 256], sizes = [8, 128], strides = [1, 1]} : vector<8x384xf32> to vector<8x128xf32>
    %358 = vector.broadcast %2 : vector<1x128xf32> to vector<8x128xf32>
    %359 = arith.addf %357, %358 : vector<8x128xf32>
    %360 = arith.mulf %347, %359 : vector<8x128xf32>
    %361 = arith.addf %356, %360 : vector<8x128xf32>
    %362 = math.tanh %361 : vector<8x128xf32>
    %363 = arith.subf %301, %362 : vector<8x128xf32>
    %364 = arith.mulf %355, %363 : vector<8x128xf32>
    %365 = arith.addf %362, %364 : vector<8x128xf32>
    %c0_123 = arith.constant 0 : index
    %c0_124 = arith.constant 0 : index
    %366 = vector.load %arg6[%c0_123, %c0_124] : memref<128x128xf32, #tpu.memory_space<vmem>>, vector<128x128xf32>
    %cst_125 = arith.constant dense<0.000000e+00> : vector<8x128xf32>
    %367 = tpu.matmul %365, %366, %cst_125 {dimension_numbers = #tpu.dot_dimension_numbers<[1], [0], [0], [1], [0, 0, 1, 1], [], []>} : vector<8x128xf32>, vector<128x128xf32>, vector<8x128xf32> -> vector<8x128xf32>
    %368 = vector.broadcast %3 : vector<1x128xf32> to vector<8x128xf32>
    %369 = arith.addf %367, %368 : vector<8x128xf32>
    %cst_126 = arith.constant dense<0xFF800000> : vector<8xf32>
    %370 = vector.multi_reduction <maximumf>, %369, %cst_126 [1] : vector<8x128xf32> to vector<8xf32>
    %371 = vector.shape_cast %370 : vector<8xf32> to vector<8x1xf32>
    %372 = vector.broadcast %371 : vector<8x1xf32> to vector<8x128xf32>
    %373 = arith.cmpf oeq, %369, %372 : vector<8x128xf32>
    %c128_i32_127 = arith.constant 128 : i32
    %374 = vector.broadcast %c128_i32_127 : i32 to vector<8x128xi32>
    %375 = arith.select %373, %0, %374 : vector<8x128xi1>, vector<8x128xi32>
    %cst_128 = arith.constant dense<2147483647> : vector<8xi32>
    %376 = vector.multi_reduction <minsi>, %375, %cst_128 [1] : vector<8x128xi32> to vector<8xi32>
    %377 = vector.shape_cast %376 : vector<8xi32> to vector<8x1xi32>
    %378 = vector.broadcast %371 : vector<8x1xf32> to vector<8x128xf32>
    %379 = arith.subf %369, %378 : vector<8x128xf32>
    %380 = math.exp %379 : vector<8x128xf32>
    %cst_129 = arith.constant dense<0.000000e+00> : vector<8xf32>
    %381 = vector.multi_reduction <add>, %380, %cst_129 [1] : vector<8x128xf32> to vector<8xf32>
    %382 = vector.shape_cast %381 : vector<8xf32> to vector<8x1xf32>
    %383 = math.log %382 : vector<8x1xf32>
    %384 = arith.addf %371, %383 : vector<8x1xf32>
    %385 = vector.broadcast %384 : vector<8x1xf32> to vector<8x128xf32>
    %386 = arith.subf %369, %385 : vector<8x128xf32>
    %c5 = arith.constant 5 : index
    %c0_130 = arith.constant 0 : index
    %c0_131 = arith.constant 0 : index
    %387 = vector.load %arg8[%c5, %c0_130, %c0_131] : memref<10x8x128xf32, #tpu.memory_space<vmem>>, vector<1x8x128xf32>
    %388 = vector.shape_cast %387 : vector<1x8x128xf32> to vector<8x128xf32>
    %389 = vector.shape_cast %386 : vector<8x128xf32> to vector<1x8x128xf32>
    tpu.vector_store %arg8[%c5, %c0_130, %c0_131], %389 {strides = array<i32>} : memref<10x8x128xf32, #tpu.memory_space<vmem>>, vector<1x8x128xf32>,
    %390 = vector.broadcast %377 : vector<8x1xi32> to vector<8x128xi32>
    %391 = arith.cmpi eq, %0, %390 : vector<8x128xi32>
    %392 = arith.extui %391 : vector<8x128xi1> to vector<8x128xi32>
    %393 = arith.sitofp %392 : vector<8x128xi32> to vector<8x128xf32>
    %c0_132 = arith.constant 0 : index
    %c0_133 = arith.constant 0 : index
    %394 = vector.load %arg1[%c0_132, %c0_133] : memref<128x128xf32, #tpu.memory_space<vmem>>, vector<128x128xf32>
    %cst_134 = arith.constant dense<0.000000e+00> : vector<8x128xf32>
    %395 = tpu.matmul %393, %394, %cst_134 {dimension_numbers = #tpu.dot_dimension_numbers<[1], [0], [0], [1], [0, 0, 1, 1], [], []>} : vector<8x128xf32>, vector<128x128xf32>, vector<8x128xf32> -> vector<8x128xf32>
    %cst_135 = arith.constant 0.000000e+00 : f32
    %396 = vector.broadcast %cst_135 : f32 to vector<8x128xf32>
    %397 = arith.maximumf %395, %396 : vector<8x128xf32>
    %c0_136 = arith.constant 0 : index
    %c0_137 = arith.constant 0 : index
    %398 = vector.load %arg2[%c0_136, %c0_137] : memref<128x384xf32, #tpu.memory_space<vmem>>, vector<128x384xf32>
    %cst_138 = arith.constant dense<0.000000e+00> : vector<8x384xf32>
    %399 = tpu.matmul %397, %398, %cst_138 {dimension_numbers = #tpu.dot_dimension_numbers<[1], [0], [0], [1], [0, 0, 1, 1], [], []>} : vector<8x128xf32>, vector<128x384xf32>, vector<8x384xf32> -> vector<8x384xf32>
    %400 = vector.broadcast %1 : vector<1x384xf32> to vector<8x384xf32>
    %401 = arith.addf %399, %400 : vector<8x384xf32>
    %c0_139 = arith.constant 0 : index
    %c0_140 = arith.constant 0 : index
    %402 = vector.load %arg3[%c0_139, %c0_140] : memref<128x384xf32, #tpu.memory_space<vmem>>, vector<128x384xf32>
    %cst_141 = arith.constant dense<0.000000e+00> : vector<8x384xf32>
    %403 = tpu.matmul %365, %402, %cst_141 {dimension_numbers = #tpu.dot_dimension_numbers<[1], [0], [0], [1], [0, 0, 1, 1], [], []>} : vector<8x128xf32>, vector<128x384xf32>, vector<8x384xf32> -> vector<8x384xf32>
    %404 = vector.extract_strided_slice %401 {offsets = [0, 0], sizes = [8, 128], strides = [1, 1]} : vector<8x384xf32> to vector<8x128xf32>
    %405 = vector.extract_strided_slice %403 {offsets = [0, 0], sizes = [8, 128], strides = [1, 1]} : vector<8x384xf32> to vector<8x128xf32>
    %406 = arith.addf %404, %405 : vector<8x128xf32>
    %407 = arith.negf %406 : vector<8x128xf32>
    %408 = math.exp %407 : vector<8x128xf32>
    %cst_142 = arith.constant 1.000000e+00 : f32
    %409 = vector.broadcast %cst_142 : f32 to vector<8x128xf32>
    %410 = arith.addf %409, %408 : vector<8x128xf32>
    %411 = arith.divf %409, %410 : vector<8x128xf32>
    %412 = vector.extract_strided_slice %401 {offsets = [0, 128], sizes = [8, 128], strides = [1, 1]} : vector<8x384xf32> to vector<8x128xf32>
    %413 = vector.extract_strided_slice %403 {offsets = [0, 128], sizes = [8, 128], strides = [1, 1]} : vector<8x384xf32> to vector<8x128xf32>
    %414 = arith.addf %412, %413 : vector<8x128xf32>
    %415 = arith.negf %414 : vector<8x128xf32>
    %416 = math.exp %415 : vector<8x128xf32>
    %cst_143 = arith.constant 1.000000e+00 : f32
    %417 = vector.broadcast %cst_143 : f32 to vector<8x128xf32>
    %418 = arith.addf %417, %416 : vector<8x128xf32>
    %419 = arith.divf %417, %418 : vector<8x128xf32>
    %420 = vector.extract_strided_slice %401 {offsets = [0, 256], sizes = [8, 128], strides = [1, 1]} : vector<8x384xf32> to vector<8x128xf32>
    %421 = vector.extract_strided_slice %403 {offsets = [0, 256], sizes = [8, 128], strides = [1, 1]} : vector<8x384xf32> to vector<8x128xf32>
    %422 = vector.broadcast %2 : vector<1x128xf32> to vector<8x128xf32>
    %423 = arith.addf %421, %422 : vector<8x128xf32>
    %424 = arith.mulf %411, %423 : vector<8x128xf32>
    %425 = arith.addf %420, %424 : vector<8x128xf32>
    %426 = math.tanh %425 : vector<8x128xf32>
    %427 = arith.subf %365, %426 : vector<8x128xf32>
    %428 = arith.mulf %419, %427 : vector<8x128xf32>
    %429 = arith.addf %426, %428 : vector<8x128xf32>
    %c0_144 = arith.constant 0 : index
    %c0_145 = arith.constant 0 : index
    %430 = vector.load %arg6[%c0_144, %c0_145] : memref<128x128xf32, #tpu.memory_space<vmem>>, vector<128x128xf32>
    %cst_146 = arith.constant dense<0.000000e+00> : vector<8x128xf32>
    %431 = tpu.matmul %429, %430, %cst_146 {dimension_numbers = #tpu.dot_dimension_numbers<[1], [0], [0], [1], [0, 0, 1, 1], [], []>} : vector<8x128xf32>, vector<128x128xf32>, vector<8x128xf32> -> vector<8x128xf32>
    %432 = vector.broadcast %3 : vector<1x128xf32> to vector<8x128xf32>
    %433 = arith.addf %431, %432 : vector<8x128xf32>
    %cst_147 = arith.constant dense<0xFF800000> : vector<8xf32>
    %434 = vector.multi_reduction <maximumf>, %433, %cst_147 [1] : vector<8x128xf32> to vector<8xf32>
    %435 = vector.shape_cast %434 : vector<8xf32> to vector<8x1xf32>
    %436 = vector.broadcast %435 : vector<8x1xf32> to vector<8x128xf32>
    %437 = arith.cmpf oeq, %433, %436 : vector<8x128xf32>
    %c128_i32_148 = arith.constant 128 : i32
    %438 = vector.broadcast %c128_i32_148 : i32 to vector<8x128xi32>
    %439 = arith.select %437, %0, %438 : vector<8x128xi1>, vector<8x128xi32>
    %cst_149 = arith.constant dense<2147483647> : vector<8xi32>
    %440 = vector.multi_reduction <minsi>, %439, %cst_149 [1] : vector<8x128xi32> to vector<8xi32>
    %441 = vector.shape_cast %440 : vector<8xi32> to vector<8x1xi32>
    %442 = vector.broadcast %435 : vector<8x1xf32> to vector<8x128xf32>
    %443 = arith.subf %433, %442 : vector<8x128xf32>
    %444 = math.exp %443 : vector<8x128xf32>
    %cst_150 = arith.constant dense<0.000000e+00> : vector<8xf32>
    %445 = vector.multi_reduction <add>, %444, %cst_150 [1] : vector<8x128xf32> to vector<8xf32>
    %446 = vector.shape_cast %445 : vector<8xf32> to vector<8x1xf32>
    %447 = math.log %446 : vector<8x1xf32>
    %448 = arith.addf %435, %447 : vector<8x1xf32>
    %449 = vector.broadcast %448 : vector<8x1xf32> to vector<8x128xf32>
    %450 = arith.subf %433, %449 : vector<8x128xf32>
    %c6 = arith.constant 6 : index
    %c0_151 = arith.constant 0 : index
    %c0_152 = arith.constant 0 : index
    %451 = vector.load %arg8[%c6, %c0_151, %c0_152] : memref<10x8x128xf32, #tpu.memory_space<vmem>>, vector<1x8x128xf32>
    %452 = vector.shape_cast %451 : vector<1x8x128xf32> to vector<8x128xf32>
    %453 = vector.shape_cast %450 : vector<8x128xf32> to vector<1x8x128xf32>
    tpu.vector_store %arg8[%c6, %c0_151, %c0_152], %453 {strides = array<i32>} : memref<10x8x128xf32, #tpu.memory_space<vmem>>, vector<1x8x128xf32>,
    %454 = vector.broadcast %441 : vector<8x1xi32> to vector<8x128xi32>
    %455 = arith.cmpi eq, %0, %454 : vector<8x128xi32>
    %456 = arith.extui %455 : vector<8x128xi1> to vector<8x128xi32>
    %457 = arith.sitofp %456 : vector<8x128xi32> to vector<8x128xf32>
    %c0_153 = arith.constant 0 : index
    %c0_154 = arith.constant 0 : index
    %458 = vector.load %arg1[%c0_153, %c0_154] : memref<128x128xf32, #tpu.memory_space<vmem>>, vector<128x128xf32>
    %cst_155 = arith.constant dense<0.000000e+00> : vector<8x128xf32>
    %459 = tpu.matmul %457, %458, %cst_155 {dimension_numbers = #tpu.dot_dimension_numbers<[1], [0], [0], [1], [0, 0, 1, 1], [], []>} : vector<8x128xf32>, vector<128x128xf32>, vector<8x128xf32> -> vector<8x128xf32>
    %cst_156 = arith.constant 0.000000e+00 : f32
    %460 = vector.broadcast %cst_156 : f32 to vector<8x128xf32>
    %461 = arith.maximumf %459, %460 : vector<8x128xf32>
    %c0_157 = arith.constant 0 : index
    %c0_158 = arith.constant 0 : index
    %462 = vector.load %arg2[%c0_157, %c0_158] : memref<128x384xf32, #tpu.memory_space<vmem>>, vector<128x384xf32>
    %cst_159 = arith.constant dense<0.000000e+00> : vector<8x384xf32>
    %463 = tpu.matmul %461, %462, %cst_159 {dimension_numbers = #tpu.dot_dimension_numbers<[1], [0], [0], [1], [0, 0, 1, 1], [], []>} : vector<8x128xf32>, vector<128x384xf32>, vector<8x384xf32> -> vector<8x384xf32>
    %464 = vector.broadcast %1 : vector<1x384xf32> to vector<8x384xf32>
    %465 = arith.addf %463, %464 : vector<8x384xf32>
    %c0_160 = arith.constant 0 : index
    %c0_161 = arith.constant 0 : index
    %466 = vector.load %arg3[%c0_160, %c0_161] : memref<128x384xf32, #tpu.memory_space<vmem>>, vector<128x384xf32>
    %cst_162 = arith.constant dense<0.000000e+00> : vector<8x384xf32>
    %467 = tpu.matmul %429, %466, %cst_162 {dimension_numbers = #tpu.dot_dimension_numbers<[1], [0], [0], [1], [0, 0, 1, 1], [], []>} : vector<8x128xf32>, vector<128x384xf32>, vector<8x384xf32> -> vector<8x384xf32>
    %468 = vector.extract_strided_slice %465 {offsets = [0, 0], sizes = [8, 128], strides = [1, 1]} : vector<8x384xf32> to vector<8x128xf32>
    %469 = vector.extract_strided_slice %467 {offsets = [0, 0], sizes = [8, 128], strides = [1, 1]} : vector<8x384xf32> to vector<8x128xf32>
    %470 = arith.addf %468, %469 : vector<8x128xf32>
    %471 = arith.negf %470 : vector<8x128xf32>
    %472 = math.exp %471 : vector<8x128xf32>
    %cst_163 = arith.constant 1.000000e+00 : f32
    %473 = vector.broadcast %cst_163 : f32 to vector<8x128xf32>
    %474 = arith.addf %473, %472 : vector<8x128xf32>
    %475 = arith.divf %473, %474 : vector<8x128xf32>
    %476 = vector.extract_strided_slice %465 {offsets = [0, 128], sizes = [8, 128], strides = [1, 1]} : vector<8x384xf32> to vector<8x128xf32>
    %477 = vector.extract_strided_slice %467 {offsets = [0, 128], sizes = [8, 128], strides = [1, 1]} : vector<8x384xf32> to vector<8x128xf32>
    %478 = arith.addf %476, %477 : vector<8x128xf32>
    %479 = arith.negf %478 : vector<8x128xf32>
    %480 = math.exp %479 : vector<8x128xf32>
    %cst_164 = arith.constant 1.000000e+00 : f32
    %481 = vector.broadcast %cst_164 : f32 to vector<8x128xf32>
    %482 = arith.addf %481, %480 : vector<8x128xf32>
    %483 = arith.divf %481, %482 : vector<8x128xf32>
    %484 = vector.extract_strided_slice %465 {offsets = [0, 256], sizes = [8, 128], strides = [1, 1]} : vector<8x384xf32> to vector<8x128xf32>
    %485 = vector.extract_strided_slice %467 {offsets = [0, 256], sizes = [8, 128], strides = [1, 1]} : vector<8x384xf32> to vector<8x128xf32>
    %486 = vector.broadcast %2 : vector<1x128xf32> to vector<8x128xf32>
    %487 = arith.addf %485, %486 : vector<8x128xf32>
    %488 = arith.mulf %475, %487 : vector<8x128xf32>
    %489 = arith.addf %484, %488 : vector<8x128xf32>
    %490 = math.tanh %489 : vector<8x128xf32>
    %491 = arith.subf %429, %490 : vector<8x128xf32>
    %492 = arith.mulf %483, %491 : vector<8x128xf32>
    %493 = arith.addf %490, %492 : vector<8x128xf32>
    %c0_165 = arith.constant 0 : index
    %c0_166 = arith.constant 0 : index
    %494 = vector.load %arg6[%c0_165, %c0_166] : memref<128x128xf32, #tpu.memory_space<vmem>>, vector<128x128xf32>
    %cst_167 = arith.constant dense<0.000000e+00> : vector<8x128xf32>
    %495 = tpu.matmul %493, %494, %cst_167 {dimension_numbers = #tpu.dot_dimension_numbers<[1], [0], [0], [1], [0, 0, 1, 1], [], []>} : vector<8x128xf32>, vector<128x128xf32>, vector<8x128xf32> -> vector<8x128xf32>
    %496 = vector.broadcast %3 : vector<1x128xf32> to vector<8x128xf32>
    %497 = arith.addf %495, %496 : vector<8x128xf32>
    %cst_168 = arith.constant dense<0xFF800000> : vector<8xf32>
    %498 = vector.multi_reduction <maximumf>, %497, %cst_168 [1] : vector<8x128xf32> to vector<8xf32>
    %499 = vector.shape_cast %498 : vector<8xf32> to vector<8x1xf32>
    %500 = vector.broadcast %499 : vector<8x1xf32> to vector<8x128xf32>
    %501 = arith.cmpf oeq, %497, %500 : vector<8x128xf32>
    %c128_i32_169 = arith.constant 128 : i32
    %502 = vector.broadcast %c128_i32_169 : i32 to vector<8x128xi32>
    %503 = arith.select %501, %0, %502 : vector<8x128xi1>, vector<8x128xi32>
    %cst_170 = arith.constant dense<2147483647> : vector<8xi32>
    %504 = vector.multi_reduction <minsi>, %503, %cst_170 [1] : vector<8x128xi32> to vector<8xi32>
    %505 = vector.shape_cast %504 : vector<8xi32> to vector<8x1xi32>
    %506 = vector.broadcast %499 : vector<8x1xf32> to vector<8x128xf32>
    %507 = arith.subf %497, %506 : vector<8x128xf32>
    %508 = math.exp %507 : vector<8x128xf32>
    %cst_171 = arith.constant dense<0.000000e+00> : vector<8xf32>
    %509 = vector.multi_reduction <add>, %508, %cst_171 [1] : vector<8x128xf32> to vector<8xf32>
    %510 = vector.shape_cast %509 : vector<8xf32> to vector<8x1xf32>
    %511 = math.log %510 : vector<8x1xf32>
    %512 = arith.addf %499, %511 : vector<8x1xf32>
    %513 = vector.broadcast %512 : vector<8x1xf32> to vector<8x128xf32>
    %514 = arith.subf %497, %513 : vector<8x128xf32>
    %c7 = arith.constant 7 : index
    %c0_172 = arith.constant 0 : index
    %c0_173 = arith.constant 0 : index
    %515 = vector.load %arg8[%c7, %c0_172, %c0_173] : memref<10x8x128xf32, #tpu.memory_space<vmem>>, vector<1x8x128xf32>
    %516 = vector.shape_cast %515 : vector<1x8x128xf32> to vector<8x128xf32>
    %517 = vector.shape_cast %514 : vector<8x128xf32> to vector<1x8x128xf32>
    tpu.vector_store %arg8[%c7, %c0_172, %c0_173], %517 {strides = array<i32>} : memref<10x8x128xf32, #tpu.memory_space<vmem>>, vector<1x8x128xf32>,
    %518 = vector.broadcast %505 : vector<8x1xi32> to vector<8x128xi32>
    %519 = arith.cmpi eq, %0, %518 : vector<8x128xi32>
    %520 = arith.extui %519 : vector<8x128xi1> to vector<8x128xi32>
    %521 = arith.sitofp %520 : vector<8x128xi32> to vector<8x128xf32>
    %c0_174 = arith.constant 0 : index
    %c0_175 = arith.constant 0 : index
    %522 = vector.load %arg1[%c0_174, %c0_175] : memref<128x128xf32, #tpu.memory_space<vmem>>, vector<128x128xf32>
    %cst_176 = arith.constant dense<0.000000e+00> : vector<8x128xf32>
    %523 = tpu.matmul %521, %522, %cst_176 {dimension_numbers = #tpu.dot_dimension_numbers<[1], [0], [0], [1], [0, 0, 1, 1], [], []>} : vector<8x128xf32>, vector<128x128xf32>, vector<8x128xf32> -> vector<8x128xf32>
    %cst_177 = arith.constant 0.000000e+00 : f32
    %524 = vector.broadcast %cst_177 : f32 to vector<8x128xf32>
    %525 = arith.maximumf %523, %524 : vector<8x128xf32>
    %c0_178 = arith.constant 0 : index
    %c0_179 = arith.constant 0 : index
    %526 = vector.load %arg2[%c0_178, %c0_179] : memref<128x384xf32, #tpu.memory_space<vmem>>, vector<128x384xf32>
    %cst_180 = arith.constant dense<0.000000e+00> : vector<8x384xf32>
    %527 = tpu.matmul %525, %526, %cst_180 {dimension_numbers = #tpu.dot_dimension_numbers<[1], [0], [0], [1], [0, 0, 1, 1], [], []>} : vector<8x128xf32>, vector<128x384xf32>, vector<8x384xf32> -> vector<8x384xf32>
    %528 = vector.broadcast %1 : vector<1x384xf32> to vector<8x384xf32>
    %529 = arith.addf %527, %528 : vector<8x384xf32>
    %c0_181 = arith.constant 0 : index
    %c0_182 = arith.constant 0 : index
    %530 = vector.load %arg3[%c0_181, %c0_182] : memref<128x384xf32, #tpu.memory_space<vmem>>, vector<128x384xf32>
    %cst_183 = arith.constant dense<0.000000e+00> : vector<8x384xf32>
    %531 = tpu.matmul %493, %530, %cst_183 {dimension_numbers = #tpu.dot_dimension_numbers<[1], [0], [0], [1], [0, 0, 1, 1], [], []>} : vector<8x128xf32>, vector<128x384xf32>, vector<8x384xf32> -> vector<8x384xf32>
    %532 = vector.extract_strided_slice %529 {offsets = [0, 0], sizes = [8, 128], strides = [1, 1]} : vector<8x384xf32> to vector<8x128xf32>
    %533 = vector.extract_strided_slice %531 {offsets = [0, 0], sizes = [8, 128], strides = [1, 1]} : vector<8x384xf32> to vector<8x128xf32>
    %534 = arith.addf %532, %533 : vector<8x128xf32>
    %535 = arith.negf %534 : vector<8x128xf32>
    %536 = math.exp %535 : vector<8x128xf32>
    %cst_184 = arith.constant 1.000000e+00 : f32
    %537 = vector.broadcast %cst_184 : f32 to vector<8x128xf32>
    %538 = arith.addf %537, %536 : vector<8x128xf32>
    %539 = arith.divf %537, %538 : vector<8x128xf32>
    %540 = vector.extract_strided_slice %529 {offsets = [0, 128], sizes = [8, 128], strides = [1, 1]} : vector<8x384xf32> to vector<8x128xf32>
    %541 = vector.extract_strided_slice %531 {offsets = [0, 128], sizes = [8, 128], strides = [1, 1]} : vector<8x384xf32> to vector<8x128xf32>
    %542 = arith.addf %540, %541 : vector<8x128xf32>
    %543 = arith.negf %542 : vector<8x128xf32>
    %544 = math.exp %543 : vector<8x128xf32>
    %cst_185 = arith.constant 1.000000e+00 : f32
    %545 = vector.broadcast %cst_185 : f32 to vector<8x128xf32>
    %546 = arith.addf %545, %544 : vector<8x128xf32>
    %547 = arith.divf %545, %546 : vector<8x128xf32>
    %548 = vector.extract_strided_slice %529 {offsets = [0, 256], sizes = [8, 128], strides = [1, 1]} : vector<8x384xf32> to vector<8x128xf32>
    %549 = vector.extract_strided_slice %531 {offsets = [0, 256], sizes = [8, 128], strides = [1, 1]} : vector<8x384xf32> to vector<8x128xf32>
    %550 = vector.broadcast %2 : vector<1x128xf32> to vector<8x128xf32>
    %551 = arith.addf %549, %550 : vector<8x128xf32>
    %552 = arith.mulf %539, %551 : vector<8x128xf32>
    %553 = arith.addf %548, %552 : vector<8x128xf32>
    %554 = math.tanh %553 : vector<8x128xf32>
    %555 = arith.subf %493, %554 : vector<8x128xf32>
    %556 = arith.mulf %547, %555 : vector<8x128xf32>
    %557 = arith.addf %554, %556 : vector<8x128xf32>
    %c0_186 = arith.constant 0 : index
    %c0_187 = arith.constant 0 : index
    %558 = vector.load %arg6[%c0_186, %c0_187] : memref<128x128xf32, #tpu.memory_space<vmem>>, vector<128x128xf32>
    %cst_188 = arith.constant dense<0.000000e+00> : vector<8x128xf32>
    %559 = tpu.matmul %557, %558, %cst_188 {dimension_numbers = #tpu.dot_dimension_numbers<[1], [0], [0], [1], [0, 0, 1, 1], [], []>} : vector<8x128xf32>, vector<128x128xf32>, vector<8x128xf32> -> vector<8x128xf32>
    %560 = vector.broadcast %3 : vector<1x128xf32> to vector<8x128xf32>
    %561 = arith.addf %559, %560 : vector<8x128xf32>
    %cst_189 = arith.constant dense<0xFF800000> : vector<8xf32>
    %562 = vector.multi_reduction <maximumf>, %561, %cst_189 [1] : vector<8x128xf32> to vector<8xf32>
    %563 = vector.shape_cast %562 : vector<8xf32> to vector<8x1xf32>
    %564 = vector.broadcast %563 : vector<8x1xf32> to vector<8x128xf32>
    %565 = arith.cmpf oeq, %561, %564 : vector<8x128xf32>
    %c128_i32_190 = arith.constant 128 : i32
    %566 = vector.broadcast %c128_i32_190 : i32 to vector<8x128xi32>
    %567 = arith.select %565, %0, %566 : vector<8x128xi1>, vector<8x128xi32>
    %cst_191 = arith.constant dense<2147483647> : vector<8xi32>
    %568 = vector.multi_reduction <minsi>, %567, %cst_191 [1] : vector<8x128xi32> to vector<8xi32>
    %569 = vector.shape_cast %568 : vector<8xi32> to vector<8x1xi32>
    %570 = vector.broadcast %563 : vector<8x1xf32> to vector<8x128xf32>
    %571 = arith.subf %561, %570 : vector<8x128xf32>
    %572 = math.exp %571 : vector<8x128xf32>
    %cst_192 = arith.constant dense<0.000000e+00> : vector<8xf32>
    %573 = vector.multi_reduction <add>, %572, %cst_192 [1] : vector<8x128xf32> to vector<8xf32>
    %574 = vector.shape_cast %573 : vector<8xf32> to vector<8x1xf32>
    %575 = math.log %574 : vector<8x1xf32>
    %576 = arith.addf %563, %575 : vector<8x1xf32>
    %577 = vector.broadcast %576 : vector<8x1xf32> to vector<8x128xf32>
    %578 = arith.subf %561, %577 : vector<8x128xf32>
    %c8 = arith.constant 8 : index
    %c0_193 = arith.constant 0 : index
    %c0_194 = arith.constant 0 : index
    %579 = vector.load %arg8[%c8, %c0_193, %c0_194] : memref<10x8x128xf32, #tpu.memory_space<vmem>>, vector<1x8x128xf32>
    %580 = vector.shape_cast %579 : vector<1x8x128xf32> to vector<8x128xf32>
    %581 = vector.shape_cast %578 : vector<8x128xf32> to vector<1x8x128xf32>
    tpu.vector_store %arg8[%c8, %c0_193, %c0_194], %581 {strides = array<i32>} : memref<10x8x128xf32, #tpu.memory_space<vmem>>, vector<1x8x128xf32>,
    %582 = vector.broadcast %569 : vector<8x1xi32> to vector<8x128xi32>
    %583 = arith.cmpi eq, %0, %582 : vector<8x128xi32>
    %584 = arith.extui %583 : vector<8x128xi1> to vector<8x128xi32>
    %585 = arith.sitofp %584 : vector<8x128xi32> to vector<8x128xf32>
    %c0_195 = arith.constant 0 : index
    %c0_196 = arith.constant 0 : index
    %586 = vector.load %arg1[%c0_195, %c0_196] : memref<128x128xf32, #tpu.memory_space<vmem>>, vector<128x128xf32>
    %cst_197 = arith.constant dense<0.000000e+00> : vector<8x128xf32>
    %587 = tpu.matmul %585, %586, %cst_197 {dimension_numbers = #tpu.dot_dimension_numbers<[1], [0], [0], [1], [0, 0, 1, 1], [], []>} : vector<8x128xf32>, vector<128x128xf32>, vector<8x128xf32> -> vector<8x128xf32>
    %cst_198 = arith.constant 0.000000e+00 : f32
    %588 = vector.broadcast %cst_198 : f32 to vector<8x128xf32>
    %589 = arith.maximumf %587, %588 : vector<8x128xf32>
    %c0_199 = arith.constant 0 : index
    %c0_200 = arith.constant 0 : index
    %590 = vector.load %arg2[%c0_199, %c0_200] : memref<128x384xf32, #tpu.memory_space<vmem>>, vector<128x384xf32>
    %cst_201 = arith.constant dense<0.000000e+00> : vector<8x384xf32>
    %591 = tpu.matmul %589, %590, %cst_201 {dimension_numbers = #tpu.dot_dimension_numbers<[1], [0], [0], [1], [0, 0, 1, 1], [], []>} : vector<8x128xf32>, vector<128x384xf32>, vector<8x384xf32> -> vector<8x384xf32>
    %592 = vector.broadcast %1 : vector<1x384xf32> to vector<8x384xf32>
    %593 = arith.addf %591, %592 : vector<8x384xf32>
    %c0_202 = arith.constant 0 : index
    %c0_203 = arith.constant 0 : index
    %594 = vector.load %arg3[%c0_202, %c0_203] : memref<128x384xf32, #tpu.memory_space<vmem>>, vector<128x384xf32>
    %cst_204 = arith.constant dense<0.000000e+00> : vector<8x384xf32>
    %595 = tpu.matmul %557, %594, %cst_204 {dimension_numbers = #tpu.dot_dimension_numbers<[1], [0], [0], [1], [0, 0, 1, 1], [], []>} : vector<8x128xf32>, vector<128x384xf32>, vector<8x384xf32> -> vector<8x384xf32>
    %596 = vector.extract_strided_slice %593 {offsets = [0, 0], sizes = [8, 128], strides = [1, 1]} : vector<8x384xf32> to vector<8x128xf32>
    %597 = vector.extract_strided_slice %595 {offsets = [0, 0], sizes = [8, 128], strides = [1, 1]} : vector<8x384xf32> to vector<8x128xf32>
    %598 = arith.addf %596, %597 : vector<8x128xf32>
    %599 = arith.negf %598 : vector<8x128xf32>
    %600 = math.exp %599 : vector<8x128xf32>
    %cst_205 = arith.constant 1.000000e+00 : f32
    %601 = vector.broadcast %cst_205 : f32 to vector<8x128xf32>
    %602 = arith.addf %601, %600 : vector<8x128xf32>
    %603 = arith.divf %601, %602 : vector<8x128xf32>
    %604 = vector.extract_strided_slice %593 {offsets = [0, 128], sizes = [8, 128], strides = [1, 1]} : vector<8x384xf32> to vector<8x128xf32>
    %605 = vector.extract_strided_slice %595 {offsets = [0, 128], sizes = [8, 128], strides = [1, 1]} : vector<8x384xf32> to vector<8x128xf32>
    %606 = arith.addf %604, %605 : vector<8x128xf32>
    %607 = arith.negf %606 : vector<8x128xf32>
    %608 = math.exp %607 : vector<8x128xf32>
    %cst_206 = arith.constant 1.000000e+00 : f32
    %609 = vector.broadcast %cst_206 : f32 to vector<8x128xf32>
    %610 = arith.addf %609, %608 : vector<8x128xf32>
    %611 = arith.divf %609, %610 : vector<8x128xf32>
    %612 = vector.extract_strided_slice %593 {offsets = [0, 256], sizes = [8, 128], strides = [1, 1]} : vector<8x384xf32> to vector<8x128xf32>
    %613 = vector.extract_strided_slice %595 {offsets = [0, 256], sizes = [8, 128], strides = [1, 1]} : vector<8x384xf32> to vector<8x128xf32>
    %614 = vector.broadcast %2 : vector<1x128xf32> to vector<8x128xf32>
    %615 = arith.addf %613, %614 : vector<8x128xf32>
    %616 = arith.mulf %603, %615 : vector<8x128xf32>
    %617 = arith.addf %612, %616 : vector<8x128xf32>
    %618 = math.tanh %617 : vector<8x128xf32>
    %619 = arith.subf %557, %618 : vector<8x128xf32>
    %620 = arith.mulf %611, %619 : vector<8x128xf32>
    %621 = arith.addf %618, %620 : vector<8x128xf32>
    %c0_207 = arith.constant 0 : index
    %c0_208 = arith.constant 0 : index
    %622 = vector.load %arg6[%c0_207, %c0_208] : memref<128x128xf32, #tpu.memory_space<vmem>>, vector<128x128xf32>
    %cst_209 = arith.constant dense<0.000000e+00> : vector<8x128xf32>
    %623 = tpu.matmul %621, %622, %cst_209 {dimension_numbers = #tpu.dot_dimension_numbers<[1], [0], [0], [1], [0, 0, 1, 1], [], []>} : vector<8x128xf32>, vector<128x128xf32>, vector<8x128xf32> -> vector<8x128xf32>
    %624 = vector.broadcast %3 : vector<1x128xf32> to vector<8x128xf32>
    %625 = arith.addf %623, %624 : vector<8x128xf32>
    %cst_210 = arith.constant dense<0xFF800000> : vector<8xf32>
    %626 = vector.multi_reduction <maximumf>, %625, %cst_210 [1] : vector<8x128xf32> to vector<8xf32>
    %627 = vector.shape_cast %626 : vector<8xf32> to vector<8x1xf32>
    %628 = vector.broadcast %627 : vector<8x1xf32> to vector<8x128xf32>
    %629 = arith.subf %625, %628 : vector<8x128xf32>
    %630 = math.exp %629 : vector<8x128xf32>
    %cst_211 = arith.constant dense<0.000000e+00> : vector<8xf32>
    %631 = vector.multi_reduction <add>, %630, %cst_211 [1] : vector<8x128xf32> to vector<8xf32>
    %632 = vector.shape_cast %631 : vector<8xf32> to vector<8x1xf32>
    %633 = math.log %632 : vector<8x1xf32>
    %634 = arith.addf %627, %633 : vector<8x1xf32>
    %635 = vector.broadcast %634 : vector<8x1xf32> to vector<8x128xf32>
    %636 = arith.subf %625, %635 : vector<8x128xf32>
    %c9 = arith.constant 9 : index
    %c0_212 = arith.constant 0 : index
    %c0_213 = arith.constant 0 : index
    %637 = vector.load %arg8[%c9, %c0_212, %c0_213] : memref<10x8x128xf32, #tpu.memory_space<vmem>>, vector<1x8x128xf32>
    %638 = vector.shape_cast %637 : vector<1x8x128xf32> to vector<8x128xf32>
    %639 = vector.shape_cast %636 : vector<8x128xf32> to vector<1x8x128xf32>
    tpu.vector_store %arg8[%c9, %c0_212, %c0_213], %639 {strides = array<i32>} : memref<10x8x128xf32, #tpu.memory_space<vmem>>, vector<1x8x128xf32>,
    %c0_214 = arith.constant 0 : index
    %c0_215 = arith.constant 0 : index
    %640 = vector.load %arg9[%c0_214, %c0_215] : memref<8x128xf32, #tpu.memory_space<vmem>>, vector<8x128xf32>
    tpu.vector_store %arg9[%c0_214, %c0_215], %621 {strides = array<i32>} : memref<8x128xf32, #tpu.memory_space<vmem>>, vector<8x128xf32>,
    return
  }
}

</mosaic_0001>

<llo_original>
// kernel: tpu_custom_call.1
$region0: #{tpu_custom_call.1}
  #allocation0 [shape = 'u32[]', space=smem, size = 0x4, offset = 0x4, fixed_abs, tag = 'smem constant byte address 0x4 - core index']
  #allocation1 [shape = 'u32[144,128]{1,0:T(1,128)}', space=vmem, size = 0x12000, scoped, tag = 'internal scratch']
  %s0 = inlined_call_operand.hbm [shape: f32[8,128], index: 0, kind: input, shape index: {}]
  %s1 = inlined_call_operand.hbm [shape: f32[128,128], index: 1, kind: input, shape index: {}]
  %s2 = inlined_call_operand.hbm [shape: f32[128,384], index: 2, kind: input, shape index: {}]
  %s3 = inlined_call_operand.hbm [shape: f32[128,384], index: 3, kind: input, shape index: {}]
  %s4 = inlined_call_operand.vmem [shape: f32[1,384], index: 4, kind: input, shape index: {}]
  %s5 = inlined_call_operand.vmem [shape: f32[1,128], index: 5, kind: input, shape index: {}]
  %s6 = inlined_call_operand.hbm [shape: f32[128,128], index: 6, kind: input, shape index: {}]
  %s7 = inlined_call_operand.vmem [shape: f32[1,128], index: 7, kind: input, shape index: {}]
  %s8 = inlined_call_operand.hbm [shape: f32[10,8,128], index: 8, kind: output, shape index: {0}]
  %s9 = inlined_call_operand.hbm [shape: f32[8,128], index: 9, kind: output, shape index: {1}]
  %10 = xla_tuple %s8, %s9
  %s11 = sld [smem:[#allocation0]]
  $region70: #{tpu_custom_call.1} parent=0
    _
  %s13 = ssub.s32 1, %s11
  %s14 = scalar_select 0, %s13, %s11
  $region1: #{tpu_custom_call.1} parent=0
    #allocation2 [shape = 'u8[4096]{0}', space=vmem, size = 0x1000, scoped, tag = 'input window, operand 0, single buffered']
    #allocation3 [shape = 's32[1]{0}', space=sflag, size = 0x4, scoped, tag = 'scoped memory for tpu_custom_call.1']
    #allocation4 [shape = 's32[1]{0}', space=sflag, size = 0x4, scoped, tag = 'scoped memory for tpu_custom_call.1']
    #allocation5 [shape = 'u8[65536]{0}', space=vmem, size = 0x10000, scoped, tag = 'input window, operand 1, single buffered']
    #allocation6 [shape = 's32[1]{0}', space=sflag, size = 0x4, scoped, tag = 'scoped memory for tpu_custom_call.1']
    #allocation7 [shape = 'u8[196608]{0}', space=vmem, size = 0x30000, scoped, tag = 'input window, operand 2, single buffered']
    #allocation8 [shape = 'u8[196608]{0}', space=vmem, size = 0x30000, scoped, tag = 'input window, operand 3, single buffered']
    #allocation9 [shape = 's32[1]{0}', space=sflag, size = 0x4, scoped, tag = 'scoped memory for tpu_custom_call.1']
    #allocation10 [shape = 'u8[65536]{0}', space=vmem, size = 0x10000, scoped, tag = 'input window, operand 6, single buffered']
    #allocation11 [shape = 'u8[40960]{0}', space=vmem, size = 0xa000, scoped, tag = 'output window, operand 0, single buffered']
    #allocation12 [shape = 'u8[4096]{0}', space=vmem, size = 0x1000, scoped, tag = 'output window, operand 1, single buffered']
    #allocation13 [shape = 's32[1]{0}', space=sflag, size = 0x4, scoped, tag = 'scoped memory for tpu_custom_call.1']
    %15 = vsyncpa [#allocation3], 0
    %16 = vsyncpa [#allocation6], 0
    %17 = vsyncpa [#allocation9], 0
    %18 = vsyncpa [#allocation4], 0
    %19 = vsyncpa [#allocation13], 0
    // Predicated region
    $region2: #{tpu_custom_call.1} parent=1 // pred_check
      _
    $region3: #{tpu_custom_call.1} parent=1 // pred_check_branch
      %21 = sbr.rel (0) target = $region5
    $region4: #{tpu_custom_call.1} parent=1 // pred_region
      %s23 = ssub.s32 128, 128
      %24 = vsyncadd [#allocation3], %s23
      %s26 = sshll.u32 [#allocation2], 4
      %s27 = int_to_ptr.vmem [resolvable:$true] %s26
      %29 = dma.hbm_to_vmem [thread:$0]  %s0, 128, %s27, [#allocation3]
    $region5: #{tpu_custom_call.1} parent=1 // pred_fallthru
      _
    // Predicated region
    $region6: #{tpu_custom_call.1} parent=1 // pred_check
      _
    $region7: #{tpu_custom_call.1} parent=1 // pred_check_branch
      %31 = sbr.rel (0) target = $region9
    $region8: #{tpu_custom_call.1} parent=1 // pred_region
      %s33 = ssub.s32 2048, 2048
      %34 = vsyncadd [#allocation6], %s33
      %s35 = sshll.u32 [#allocation5], 4
      %s36 = int_to_ptr.vmem [resolvable:$true] %s35
      %41 = dma.hbm_to_vmem [thread:$0]  %s1, 2048, %s36, [#allocation6], 128, 128, 8
    $region9: #{tpu_custom_call.1} parent=1 // pred_fallthru
      _
    // Predicated region
    $region10: #{tpu_custom_call.1} parent=1 // pred_check
      _
    $region11: #{tpu_custom_call.1} parent=1 // pred_check_branch
      %43 = sbr.rel (0) target = $region13
    $region12: #{tpu_custom_call.1} parent=1 // pred_region
      %s45 = ssub.s32 6144, 6144
      %46 = vsyncadd [#allocation6], %s45
      %s47 = sshll.u32 [#allocation7], 4
      %s48 = int_to_ptr.vmem [resolvable:$true] %s47
      %53 = dma.hbm_to_vmem [thread:$0]  %s2, 6144, %s48, [#allocation6], 384, 384, 24
    $region13: #{tpu_custom_call.1} parent=1 // pred_fallthru
      _
    // Predicated region
    $region14: #{tpu_custom_call.1} parent=1 // pred_check
      _
    $region15: #{tpu_custom_call.1} parent=1 // pred_check_branch
      %55 = sbr.rel (0) target = $region17
    $region16: #{tpu_custom_call.1} parent=1 // pred_region
      %s57 = ssub.s32 6144, 6144
      %58 = vsyncadd [#allocation9], %s57
      %s59 = sshll.u32 [#allocation8], 4
      %s60 = int_to_ptr.vmem [resolvable:$true] %s59
      %65 = dma.hbm_to_vmem [thread:$0]  %s3, 6144, %s60, [#allocation9], 384, 384, 24
    $region17: #{tpu_custom_call.1} parent=1 // pred_fallthru
      _
    // Predicated region
    $region18: #{tpu_custom_call.1} parent=1 // pred_check
      _
    $region19: #{tpu_custom_call.1} parent=1 // pred_check_branch
      %67 = sbr.rel (0) target = $region21
    $region20: #{tpu_custom_call.1} parent=1 // pred_region
      _
    $region21: #{tpu_custom_call.1} parent=1 // pred_fallthru
      _
    // Predicated region
    $region22: #{tpu_custom_call.1} parent=1 // pred_check
      _
    $region23: #{tpu_custom_call.1} parent=1 // pred_check_branch
      %69 = sbr.rel (0) target = $region25
    $region24: #{tpu_custom_call.1} parent=1 // pred_region
      _
    $region25: #{tpu_custom_call.1} parent=1 // pred_fallthru
      _
    // Predicated region
    $region26: #{tpu_custom_call.1} parent=1 // pred_check
      _
    $region27: #{tpu_custom_call.1} parent=1 // pred_check_branch
      %71 = sbr.rel (0) target = $region29
    $region28: #{tpu_custom_call.1} parent=1 // pred_region
      %s73 = ssub.s32 2048, 2048
      %74 = vsyncadd [#allocation9], %s73
      %s75 = sshll.u32 [#allocation10], 4
      %s76 = int_to_ptr.vmem [resolvable:$true] %s75
      %81 = dma.hbm_to_vmem [thread:$0]  %s6, 2048, %s76, [#allocation9], 128, 128, 8
    $region29: #{tpu_custom_call.1} parent=1 // pred_fallthru
      _
    // Predicated region
    $region30: #{tpu_custom_call.1} parent=1 // pred_check
      _
    $region31: #{tpu_custom_call.1} parent=1 // pred_check_branch
      %83 = sbr.rel (0) target = $region33
    $region32: #{tpu_custom_call.1} parent=1 // pred_region
      _
    $region33: #{tpu_custom_call.1} parent=1 // pred_fallthru
      _
    // Predicated region
    $region34: #{tpu_custom_call.1} parent=1 // pred_check
      _
    $region35: #{tpu_custom_call.1} parent=1 // pred_check_branch
      %85 = sbr.rel (0) target = $region37
    $region36: #{tpu_custom_call.1} parent=1 // pred_region
      %86 = dma.done [#allocation3], 128
    $region37: #{tpu_custom_call.1} parent=1 // pred_fallthru
      _
    // Predicated region
    $region38: #{tpu_custom_call.1} parent=1 // pred_check
      _
    $region39: #{tpu_custom_call.1} parent=1 // pred_check_branch
      %88 = sbr.rel (0) target = $region41
    $region40: #{tpu_custom_call.1} parent=1 // pred_region
      %89 = dma.done [#allocation6], 2048
    $region41: #{tpu_custom_call.1} parent=1 // pred_fallthru
      _
    // Predicated region
    $region42: #{tpu_custom_call.1} parent=1 // pred_check
      _
    $region43: #{tpu_custom_call.1} parent=1 // pred_check_branch
      %91 = sbr.rel (0) target = $region45
    $region44: #{tpu_custom_call.1} parent=1 // pred_region
      %92 = dma.done [#allocation6], 6144
    $region45: #{tpu_custom_call.1} parent=1 // pred_fallthru
      _
    // Predicated region
    $region46: #{tpu_custom_call.1} parent=1 // pred_check
      _
    $region47: #{tpu_custom_call.1} parent=1 // pred_check_branch
      %94 = sbr.rel (0) target = $region49
    $region48: #{tpu_custom_call.1} parent=1 // pred_region
      %95 = dma.done [#allocation9], 6144
    $region49: #{tpu_custom_call.1} parent=1 // pred_fallthru
      _
    // Predicated region
    $region50: #{tpu_custom_call.1} parent=1 // pred_check
      _
    $region51: #{tpu_custom_call.1} parent=1 // pred_check_branch
      %97 = sbr.rel (0) target = $region53
    $region52: #{tpu_custom_call.1} parent=1 // pred_region
      %98 = dma.done [#allocation9], 2048
    $region53: #{tpu_custom_call.1} parent=1 // pred_fallthru
      _
    %v99 = vlaneseq
    %v100 = vand.u32 %v99, 127
    %v101 = vld [vmem:[%s4] sm:$0x7]
    %v102 = vld [vmem:[%s5] sm:$0x1]
    %v103 = vld [vmem:[%s7] sm:$0x1]
    %v104 = vld [vmem:[#allocation2] sm:$0xff]
    %vm105 = vcmp.eq.s32.totalorder %v100, 0
    %v106 = vsel %vm105, 1, 0
    %v107 = vcvt.s32.f32 %v106
    %v108 = vld [vmem:[#allocation5] sm:$0xff]
    %v109 = vld [vmem:[#allocation5 + $0x8] sm:$0xff]
    %v110 = vld [vmem:[#allocation5 + $0x10] sm:$0xff]
    %v111 = vld [vmem:[#allocation5 + $0x18] sm:$0xff]
    %v112 = vld [vmem:[#allocation5 + $0x20] sm:$0xff]
    %v113 = vld [vmem:[#allocation5 + $0x28] sm:$0xff]
    %v114 = vld [vmem:[#allocation5 + $0x30] sm:$0xff]
    %v115 = vld [vmem:[#allocation5 + $0x38] sm:$0xff]
    %v116 = vld [vmem:[#allocation5 + $0x40] sm:$0xff]
    %v117 = vld [vmem:[#allocation5 + $0x48] sm:$0xff]
    %v118 = vld [vmem:[#allocation5 + $0x50] sm:$0xff]
    %v119 = vld [vmem:[#allocation5 + $0x58] sm:$0xff]
    %v120 = vld [vmem:[#allocation5 + $0x60] sm:$0xff]
    %v121 = vld [vmem:[#allocation5 + $0x68] sm:$0xff]
    %v122 = vld [vmem:[#allocation5 + $0x70] sm:$0xff]
    %v123 = vld [vmem:[#allocation5 + $0x78] sm:$0xff]
    %124 = vmatprep.subr.mxu0 0.0
    %125 = vmatpush1.msra.mxu0 %v108
    %126 = vmatprep.subr.mxu0 0.0
    %127 = vmatpush1.msra.mxu0 %v109
    %128 = vmatprep.subr.mxu0 0.0
    %129 = vmatpush1.msra.mxu0 %v110
    %130 = vmatprep.subr.mxu0 0.0
    %131 = vmatpush1.msra.mxu0 %v111
    %132 = vmatprep.subr.mxu0 0.0
    %133 = vmatpush1.msra.mxu0 %v112
    %134 = vmatprep.subr.mxu0 0.0
    %135 = vmatpush1.msra.mxu0 %v113
    %136 = vmatprep.subr.mxu0 0.0
    %137 = vmatpush1.msra.mxu0 %v114
    %138 = vmatprep.subr.mxu0 0.0
    %139 = vmatpush1.msra.mxu0 %v115
    %140 = vmatprep.subr.mxu0 0.0
    %141 = vmatpush1.msra.mxu0 %v116
    %142 = vmatprep.subr.mxu0 0.0
    %143 = vmatpush1.msra.mxu0 %v117
    %144 = vmatprep.subr.mxu0 0.0
    %145 = vmatpush1.msra.mxu0 %v118
    %146 = vmatprep.subr.mxu0 0.0
    %147 = vmatpush1.msra.mxu0 %v119
    %148 = vmatprep.subr.mxu0 0.0
    %149 = vmatpush1.msra.mxu0 %v120
    %150 = vmatprep.subr.mxu0 0.0
    %151 = vmatpush1.msra.mxu0 %v121
    %152 = vmatprep.subr.mxu0 0.0
    %153 = vmatpush1.msra.mxu0 %v122
    %154 = vmatprep.subr.mxu0 0.0
    %155 = vmatpush1.msra.mxu0 %v123
    %156 = vmatprep.subr.mxu0 0.0
    %157 = vmatpush1.msra.mxu0 0.0
    %158 = vmatprep.subr.mxu0 0.0
    %159 = vmatpush1.msra.mxu0 0.0
    %160 = vmatprep.subr.mxu0 0.0
    %161 = vmatpush1.msra.mxu0 0.0
    %162 = vmatprep.subr.mxu0 0.0
    %163 = vmatpush1.msra.mxu0 0.0
    %164 = vmatprep.subr.mxu0 0.0
    %165 = vmatpush1.msra.mxu0 0.0
    %166 = vmatprep.subr.mxu0 0.0
    %167 = vmatpush1.msra.mxu0 0.0
    %168 = vmatprep.subr.mxu0 0.0
    %169 = vmatpush1.msra.mxu0 0.0
    %170 = vmatprep.subr.mxu0 0.0
    %171 = vmatpush1.msra.mxu0 0.0
    %172 = vmatprep.subr.mxu0 0.0
    %173 = vmatpush1.msra.mxu0 0.0
    %174 = vmatprep.subr.mxu0 0.0
    %175 = vmatpush1.msra.mxu0 0.0
    %176 = vmatprep.subr.mxu0 0.0
    %177 = vmatpush1.msra.mxu0 0.0
    %178 = vmatprep.subr.mxu0 0.0
    %179 = vmatpush1.msra.mxu0 0.0
    %180 = vmatprep.subr.mxu0 0.0
    %181 = vmatpush1.msra.mxu0 0.0
    %182 = vmatprep.subr.mxu0 0.0
    %183 = vmatpush1.msra.mxu0 0.0
    %184 = vmatprep.subr.mxu0 0.0
    %185 = vmatpush1.msra.mxu0 0.0
    %186 = vmatprep.subr.mxu0 0.0
    %187 = vmatpush1.msra.mxu0 0.0
    %188 = vmatprep.mubr.f32.mxu0 0.0
    %189 = vmatmul.mubr.f32.gmra.mrb[0].mxu0 %v107
    %v190 = vpop.f32.mrb[0].mxu0
    %v191 = vadd.f32 0.0, %v190
    %v192 = vpop.f32.mrb[0].mxu0
    %193 = vdwg.mxu0
    %v194 = vmax.f32 %v191, 0.0
    %v195 = vld [vmem:[#allocation7] sm:$0xff]
    %v196 = vld [vmem:[#allocation7 + $0x8] sm:$0xff]
    %v197 = vld [vmem:[#allocation7 + $0x10] sm:$0xff]
    %v198 = vld [vmem:[#allocation7 + $0x18] sm:$0xff]
    %v199 = vld [vmem:[#allocation7 + $0x20] sm:$0xff]
    %v200 = vld [vmem:[#allocation7 + $0x28] sm:$0xff]
    %v201 = vld [vmem:[#allocation7 + $0x30] sm:$0xff]
    %v202 = vld [vmem:[#allocation7 + $0x38] sm:$0xff]
    %v203 = vld [vmem:[#allocation7 + $0x40] sm:$0xff]
    %v204 = vld [vmem:[#allocation7 + $0x48] sm:$0xff]
    %v205 = vld [vmem:[#allocation7 + $0x50] sm:$0xff]
    %v206 = vld [vmem:[#allocation7 + $0x58] sm:$0xff]
    %v207 = vld [vmem:[#allocation7 + $0x60] sm:$0xff]
    %v208 = vld [vmem:[#allocation7 + $0x68] sm:$0xff]
    %v209 = vld [vmem:[#allocation7 + $0x70] sm:$0xff]
    %v210 = vld [vmem:[#allocation7 + $0x78] sm:$0xff]
    %v211 = vld [vmem:[#allocation7 + $0x80] sm:$0xff]
    %v212 = vld [vmem:[#allocation7 + $0x88] sm:$0xff]
    %v213 = vld [vmem:[#allocation7 + $0x90] sm:$0xff]
    %v214 = vld [vmem:[#allocation7 + $0x98] sm:$0xff]
    %v215 = vld [vmem:[#allocation7 + $0xa0] sm:$0xff]
    %v216 = vld [vmem:[#allocation7 + $0xa8] sm:$0xff]
    %v217 = vld [vmem:[#allocation7 + $0xb0] sm:$0xff]
    %v218 = vld [vmem:[#allocation7 + $0xb8] sm:$0xff]
    %v219 = vld [vmem:[#allocation7 + $0xc0] sm:$0xff]
    %v220 = vld [vmem:[#allocation7 + $0xc8] sm:$0xff]
    %v221 = vld [vmem:[#allocation7 + $0xd0] sm:$0xff]
    %v222 = vld [vmem:[#allocation7 + $0xd8] sm:$0xff]
    %v223 = vld [vmem:[#allocation7 + $0xe0] sm:$0xff]
    %v224 = vld [vmem:[#allocation7 + $0xe8] sm:$0xff]
    %v225 = vld [vmem:[#allocation7 + $0xf0] sm:$0xff]
    %v226 = vld [vmem:[#allocation7 + $0xf8] sm:$0xff]
    %v227 = vld [vmem:[#allocation7 + $0x100] sm:$0xff]
    %v228 = vld [vmem:[#allocation7 + $0x108] sm:$0xff]
    %v229 = vld [vmem:[#allocation7 + $0x110] sm:$0xff]
    %v230 = vld [vmem:[#allocation7 + $0x118] sm:$0xff]
    %v231 = vld [vmem:[#allocation7 + $0x120] sm:$0xff]
    %v232 = vld [vmem:[#allocation7 + $0x128] sm:$0xff]
    %v233 = vld [vmem:[#allocation7 + $0x130] sm:$0xff]
    %v234 = vld [vmem:[#allocation7 + $0x138] sm:$0xff]
    %v235 = vld [vmem:[#allocation7 + $0x140] sm:$0xff]
    %v236 = vld [vmem:[#allocation7 + $0x148] sm:$0xff]
    %v237 = vld [vmem:[#allocation7 + $0x150] sm:$0xff]
    %v238 = vld [vmem:[#allocation7 + $0x158] sm:$0xff]
    %v239 = vld [vmem:[#allocation7 + $0x160] sm:$0xff]
    %v240 = vld [vmem:[#allocation7 + $0x168] sm:$0xff]
    %v241 = vld [vmem:[#allocation7 + $0x170] sm:$0xff]
    %v242 = vld [vmem:[#allocation7 + $0x178] sm:$0xff]
    %v244 = vlaneseq
    %v245 = vshrl.u32 %v244, 7
    %v246 = vsub.s32 0, %v245
    %v247 = vrot.slane %v101, %v246
    %v248 = vlaneseq
    %v249 = vshrl.u32 %v248, 7
    %v250 = vsub.s32 1, %v249
    %v251 = vrot.slane %v101, %v250
    %v252 = vlaneseq
    %v253 = vshrl.u32 %v252, 7
    %v254 = vsub.s32 2, %v253
    %v255 = vrot.slane %v101, %v254
    %259 = vmatprep.subr.mxu0 %v196
    %260 = vmatpush1.msra.mxu0 %v195
    %261 = vmatprep.subr.mxu0 %v199
    %262 = vmatpush1.msra.mxu0 %v198
    %263 = vmatprep.subr.mxu0 %v202
    %264 = vmatpush1.msra.mxu0 %v201
    %265 = vmatprep.subr.mxu0 %v205
    %266 = vmatpush1.msra.mxu0 %v204
    %267 = vmatprep.subr.mxu0 %v208
    %268 = vmatpush1.msra.mxu0 %v207
    %269 = vmatprep.subr.mxu0 %v211
    %270 = vmatpush1.msra.mxu0 %v210
    %271 = vmatprep.subr.mxu0 %v214
    %272 = vmatpush1.msra.mxu0 %v213
    %273 = vmatprep.subr.mxu0 %v217
    %274 = vmatpush1.msra.mxu0 %v216
    %275 = vmatprep.subr.mxu0 %v220
    %276 = vmatpush1.msra.mxu0 %v219
    %277 = vmatprep.subr.mxu0 %v223
    %278 = vmatpush1.msra.mxu0 %v222
    %279 = vmatprep.subr.mxu0 %v226
    %280 = vmatpush1.msra.mxu0 %v225
    %281 = vmatprep.subr.mxu0 %v229
    %282 = vmatpush1.msra.mxu0 %v228
    %283 = vmatprep.subr.mxu0 %v232
    %284 = vmatpush1.msra.mxu0 %v231
    %285 = vmatprep.subr.mxu0 %v235
    %286 = vmatpush1.msra.mxu0 %v234
    %287 = vmatprep.subr.mxu0 %v238
    %288 = vmatpush1.msra.mxu0 %v237
    %289 = vmatprep.subr.mxu0 %v241
    %290 = vmatpush1.msra.mxu0 %v240
    %291 = vmatprep.subr.mxu0 0.0
    %292 = vmatpush1.msra.mxu0 0.0
    %293 = vmatprep.subr.mxu0 0.0
    %294 = vmatpush1.msra.mxu0 0.0
    %295 = vmatprep.subr.mxu0 0.0
    %296 = vmatpush1.msra.mxu0 0.0
    %297 = vmatprep.subr.mxu0 0.0
    %298 = vmatpush1.msra.mxu0 0.0
    %299 = vmatprep.subr.mxu0 0.0
    %300 = vmatpush1.msra.mxu0 0.0
    %301 = vmatprep.subr.mxu0 0.0
    %302 = vmatpush1.msra.mxu0 0.0
    %303 = vmatprep.subr.mxu0 0.0
    %304 = vmatpush1.msra.mxu0 0.0
    %305 = vmatprep.subr.mxu0 0.0
    %306 = vmatpush1.msra.mxu0 0.0
    %307 = vmatprep.subr.mxu0 0.0
    %308 = vmatpush1.msra.mxu0 0.0
    %309 = vmatprep.subr.mxu0 0.0
    %310 = vmatpush1.msra.mxu0 0.0
    %311 = vmatprep.subr.mxu0 0.0
    %312 = vmatpush1.msra.mxu0 0.0
    %313 = vmatprep.subr.mxu0 0.0
    %314 = vmatpush1.msra.mxu0 0.0
    %315 = vmatprep.subr.mxu0 0.0
    %316 = vmatpush1.msra.mxu0 0.0
    %317 = vmatprep.subr.mxu0 0.0
    %318 = vmatpush1.msra.mxu0 0.0
    %319 = vmatprep.subr.mxu0 0.0
    %320 = vmatpush1.msra.mxu0 0.0
    %321 = vmatprep.subr.mxu0 0.0
    %322 = vmatpush1.msra.mxu0 0.0
    %323 = vmatprep.mubr.f32.mxu0 0.0
    %324 = vmatmul.mubr.f32.gmra.mrb[0].mxu0 %v194
    %v325 = vpop.f32.mrb[0].mxu0
    %v326 = vadd.f32 %v247, %v325
    %v327 = vpop.f32.mrb[0].mxu0
    %v328 = vadd.f32 %v251, %v327
    %329 = vdwg.mxu0
    %330 = vmatprep.subr.mxu0 0.0
    %331 = vmatpush1.msra.mxu0 %v197
    %332 = vmatprep.subr.mxu0 0.0
    %333 = vmatpush1.msra.mxu0 %v200
    %334 = vmatprep.subr.mxu0 0.0
    %335 = vmatpush1.msra.mxu0 %v203
    %336 = vmatprep.subr.mxu0 0.0
    %337 = vmatpush1.msra.mxu0 %v206
    %338 = vmatprep.subr.mxu0 0.0
    %339 = vmatpush1.msra.mxu0 %v209
    %340 = vmatprep.subr.mxu0 0.0
    %341 = vmatpush1.msra.mxu0 %v212
    %342 = vmatprep.subr.mxu0 0.0
    %343 = vmatpush1.msra.mxu0 %v215
    %344 = vmatprep.subr.mxu0 0.0
    %345 = vmatpush1.msra.mxu0 %v218
    %346 = vmatprep.subr.mxu0 0.0
    %347 = vmatpush1.msra.mxu0 %v221
    %348 = vmatprep.subr.mxu0 0.0
    %349 = vmatpush1.msra.mxu0 %v224
    %350 = vmatprep.subr.mxu0 0.0
    %351 = vmatpush1.msra.mxu0 %v227
    %352 = vmatprep.subr.mxu0 0.0
    %353 = vmatpush1.msra.mxu0 %v230
    %354 = vmatprep.subr.mxu0 0.0
    %355 = vmatpush1.msra.mxu0 %v233
    %356 = vmatprep.subr.mxu0 0.0
    %357 = vmatpush1.msra.mxu0 %v236
    %358 = vmatprep.subr.mxu0 0.0
    %359 = vmatpush1.msra.mxu0 %v239
    %360 = vmatprep.subr.mxu0 0.0
    %361 = vmatpush1.msra.mxu0 %v242
    %362 = vmatprep.subr.mxu0 0.0
    %363 = vmatpush1.msra.mxu0 0.0
    %364 = vmatprep.subr.mxu0 0.0
    %365 = vmatpush1.msra.mxu0 0.0
    %366 = vmatprep.subr.mxu0 0.0
    %367 = vmatpush1.msra.mxu0 0.0
    %368 = vmatprep.subr.mxu0 0.0
    %369 = vmatpush1.msra.mxu0 0.0
    %370 = vmatprep.subr.mxu0 0.0
    %371 = vmatpush1.msra.mxu0 0.0
    %372 = vmatprep.subr.mxu0 0.0
    %373 = vmatpush1.msra.mxu0 0.0
    %374 = vmatprep.subr.mxu0 0.0
    %375 = vmatpush1.msra.mxu0 0.0
    %376 = vmatprep.subr.mxu0 0.0
    %377 = vmatpush1.msra.mxu0 0.0
    %378 = vmatprep.subr.mxu0 0.0
    %379 = vmatpush1.msra.mxu0 0.0
    %380 = vmatprep.subr.mxu0 0.0
    %381 = vmatpush1.msra.mxu0 0.0
    %382 = vmatprep.subr.mxu0 0.0
    %383 = vmatpush1.msra.mxu0 0.0
    %384 = vmatprep.subr.mxu0 0.0
    %385 = vmatpush1.msra.mxu0 0.0
    %386 = vmatprep.subr.mxu0 0.0
    %387 = vmatpush1.msra.mxu0 0.0
    %388 = vmatprep.subr.mxu0 0.0
    %389 = vmatpush1.msra.mxu0 0.0
    %390 = vmatprep.subr.mxu0 0.0
    %391 = vmatpush1.msra.mxu0 0.0
    %392 = vmatprep.subr.mxu0 0.0
    %393 = vmatpush1.msra.mxu0 0.0
    %394 = vmatprep.mubr.f32.mxu0 0.0
    %395 = vmatmul.mubr.f32.gmra.mrb[0].mxu0 %v194
    %v396 = vpop.f32.mrb[0].mxu0
    %v397 = vadd.f32 %v255, %v396
    %v398 = vpop.f32.mrb[0].mxu0
    %399 = vdwg.mxu0
    %v400 = vld [vmem:[#allocation8] sm:$0xff]
    %v401 = vld [vmem:[#allocation8 + $0x8] sm:$0xff]
    %v402 = vld [vmem:[#allocation8 + $0x10] sm:$0xff]
    %v403 = vld [vmem:[#allocation8 + $0x18] sm:$0xff]
    %v404 = vld [vmem:[#allocation8 + $0x20] sm:$0xff]
    %v405 = vld [vmem:[#allocation8 + $0x28] sm:$0xff]
    %v406 = vld [vmem:[#allocation8 + $0x30] sm:$0xff]
    %v407 = vld [vmem:[#allocation8 + $0x38] sm:$0xff]
    %v408 = vld [vmem:[#allocation8 + $0x40] sm:$0xff]
    %v409 = vld [vmem:[#allocation8 + $0x48] sm:$0xff]
    %v410 = vld [vmem:[#allocation8 + $0x50] sm:$0xff]
    %v411 = vld [vmem:[#allocation8 + $0x58] sm:$0xff]
    %v412 = vld [vmem:[#allocation8 + $0x60] sm:$0xff]
    %v413 = vld [vmem:[#allocation8 + $0x68] sm:$0xff]
    %v414 = vld [vmem:[#allocation8 + $0x70] sm:$0xff]
    %v415 = vld [vmem:[#allocation8 + $0x78] sm:$0xff]
    %v416 = vld [vmem:[#allocation8 + $0x80] sm:$0xff]
    %v417 = vld [vmem:[#allocation8 + $0x88] sm:$0xff]
    %v418 = vld [vmem:[#allocation8 + $0x90] sm:$0xff]
    %v419 = vld [vmem:[#allocation8 + $0x98] sm:$0xff]
    %v420 = vld [vmem:[#allocation8 + $0xa0] sm:$0xff]
    %v421 = vld [vmem:[#allocation8 + $0xa8] sm:$0xff]
    %v422 = vld [vmem:[#allocation8 + $0xb0] sm:$0xff]
    %v423 = vld [vmem:[#allocation8 + $0xb8] sm:$0xff]
    %v424 = vld [vmem:[#allocation8 + $0xc0] sm:$0xff]
    %v425 = vld [vmem:[#allocation8 + $0xc8] sm:$0xff]
    %v426 = vld [vmem:[#allocation8 + $0xd0] sm:$0xff]
    %v427 = vld [vmem:[#allocation8 + $0xd8] sm:$0xff]
    %v428 = vld [vmem:[#allocation8 + $0xe0] sm:$0xff]
    %v429 = vld [vmem:[#allocation8 + $0xe8] sm:$0xff]
    %v430 = vld [vmem:[#allocation8 + $0xf0] sm:$0xff]
    %v431 = vld [vmem:[#allocation8 + $0xf8] sm:$0xff]
    %v432 = vld [vmem:[#allocation8 + $0x100] sm:$0xff]
    %v433 = vld [vmem:[#allocation8 + $0x108] sm:$0xff]
    %v434 = vld [vmem:[#allocation8 + $0x110] sm:$0xff]
    %v435 = vld [vmem:[#allocation8 + $0x118] sm:$0xff]
    %v436 = vld [vmem:[#allocation8 + $0x120] sm:$0xff]
    %v437 = vld [vmem:[#allocation8 + $0x128] sm:$0xff]
    %v438 = vld [vmem:[#allocation8 + $0x130] sm:$0xff]
    %v439 = vld [vmem:[#allocation8 + $0x138] sm:$0xff]
    %v440 = vld [vmem:[#allocation8 + $0x140] sm:$0xff]
    %v441 = vld [vmem:[#allocation8 + $0x148] sm:$0xff]
    %v442 = vld [vmem:[#allocation8 + $0x150] sm:$0xff]
    %v443 = vld [vmem:[#allocation8 + $0x158] sm:$0xff]
    %v444 = vld [vmem:[#allocation8 + $0x160] sm:$0xff]
    %v445 = vld [vmem:[#allocation8 + $0x168] sm:$0xff]
    %v446 = vld [vmem:[#allocation8 + $0x170] sm:$0xff]
    %v447 = vld [vmem:[#allocation8 + $0x178] sm:$0xff]
    %448 = vmatprep.subr.mxu0 %v401
    %449 = vmatpush1.msra.mxu0 %v400
    %450 = vmatprep.subr.mxu0 %v404
    %451 = vmatpush1.msra.mxu0 %v403
    %452 = vmatprep.subr.mxu0 %v407
    %453 = vmatpush1.msra.mxu0 %v406
    %454 = vmatprep.subr.mxu0 %v410
    %455 = vmatpush1.msra.mxu0 %v409
    %456 = vmatprep.subr.mxu0 %v413
    %457 = vmatpush1.msra.mxu0 %v412
    %458 = vmatprep.subr.mxu0 %v416
    %459 = vmatpush1.msra.mxu0 %v415
    %460 = vmatprep.subr.mxu0 %v419
    %461 = vmatpush1.msra.mxu0 %v418
    %462 = vmatprep.subr.mxu0 %v422
    %463 = vmatpush1.msra.mxu0 %v421
    %464 = vmatprep.subr.mxu0 %v425
    %465 = vmatpush1.msra.mxu0 %v424
    %466 = vmatprep.subr.mxu0 %v428
    %467 = vmatpush1.msra.mxu0 %v427
    %468 = vmatprep.subr.mxu0 %v431
    %469 = vmatpush1.msra.mxu0 %v430
    %470 = vmatprep.subr.mxu0 %v434
    %471 = vmatpush1.msra.mxu0 %v433
    %472 = vmatprep.subr.mxu0 %v437
    %473 = vmatpush1.msra.mxu0 %v436
    %474 = vmatprep.subr.mxu0 %v440
    %475 = vmatpush1.msra.mxu0 %v439
    %476 = vmatprep.subr.mxu0 %v443
    %477 = vmatpush1.msra.mxu0 %v442
    %478 = vmatprep.subr.mxu0 %v446
    %479 = vmatpush1.msra.mxu0 %v445
    %480 = vmatprep.subr.mxu0 0.0
    %481 = vmatpush1.msra.mxu0 0.0
    %482 = vmatprep.subr.mxu0 0.0
    %483 = vmatpush1.msra.mxu0 0.0
    %484 = vmatprep.subr.mxu0 0.0
    %485 = vmatpush1.msra.mxu0 0.0
    %486 = vmatprep.subr.mxu0 0.0
    %487 = vmatpush1.msra.mxu0 0.0
    %488 = vmatprep.subr.mxu0 0.0
    %489 = vmatpush1.msra.mxu0 0.0
    %490 = vmatprep.subr.mxu0 0.0
    %491 = vmatpush1.msra.mxu0 0.0
    %492 = vmatprep.subr.mxu0 0.0
    %493 = vmatpush1.msra.mxu0 0.0
    %494 = vmatprep.subr.mxu0 0.0
    %495 = vmatpush1.msra.mxu0 0.0
    %496 = vmatprep.subr.mxu0 0.0
    %497 = vmatpush1.msra.mxu0 0.0
    %498 = vmatprep.subr.mxu0 0.0
    %499 = vmatpush1.msra.mxu0 0.0
    %500 = vmatprep.subr.mxu0 0.0
    %501 = vmatpush1.msra.mxu0 0.0
    %502 = vmatprep.subr.mxu0 0.0
    %503 = vmatpush1.msra.mxu0 0.0
    %504 = vmatprep.subr.mxu0 0.0
    %505 = vmatpush1.msra.mxu0 0.0
    %506 = vmatprep.subr.mxu0 0.0
    %507 = vmatpush1.msra.mxu0 0.0
    %508 = vmatprep.subr.mxu0 0.0
    %509 = vmatpush1.msra.mxu0 0.0
    %510 = vmatprep.subr.mxu0 0.0
    %511 = vmatpush1.msra.mxu0 0.0
    %512 = vmatprep.mubr.f32.mxu0 0.0
    %513 = vmatmul.mubr.f32.gmra.mrb[0].mxu0 %v104
    %v514 = vpop.f32.mrb[0].mxu0
    %v515 = vadd.f32 0.0, %v514
    %v516 = vpop.f32.mrb[0].mxu0
    %v517 = vadd.f32 0.0, %v516
    %518 = vdwg.mxu0
    %519 = vmatprep.subr.mxu0 0.0
    %520 = vmatpush1.msra.mxu0 %v402
    %521 = vmatprep.subr.mxu0 0.0
    %522 = vmatpush1.msra.mxu0 %v405
    %523 = vmatprep.subr.mxu0 0.0
    %524 = vmatpush1.msra.mxu0 %v408
    %525 = vmatprep.subr.mxu0 0.0
    %526 = vmatpush1.msra.mxu0 %v411
    %527 = vmatprep.subr.mxu0 0.0
    %528 = vmatpush1.msra.mxu0 %v414
    %529 = vmatprep.subr.mxu0 0.0
    %530 = vmatpush1.msra.mxu0 %v417
    %531 = vmatprep.subr.mxu0 0.0
    %532 = vmatpush1.msra.mxu0 %v420
    %533 = vmatprep.subr.mxu0 0.0
    %534 = vmatpush1.msra.mxu0 %v423
    %535 = vmatprep.subr.mxu0 0.0
    %536 = vmatpush1.msra.mxu0 %v426
    %537 = vmatprep.subr.mxu0 0.0
    %538 = vmatpush1.msra.mxu0 %v429
    %539 = vmatprep.subr.mxu0 0.0
    %540 = vmatpush1.msra.mxu0 %v432
    %541 = vmatprep.subr.mxu0 0.0
    %542 = vmatpush1.msra.mxu0 %v435
    %543 = vmatprep.subr.mxu0 0.0
    %544 = vmatpush1.msra.mxu0 %v438
    %545 = vmatprep.subr.mxu0 0.0
    %546 = vmatpush1.msra.mxu0 %v441
    %547 = vmatprep.subr.mxu0 0.0
    %548 = vmatpush1.msra.mxu0 %v444
    %549 = vmatprep.subr.mxu0 0.0
    %550 = vmatpush1.msra.mxu0 %v447
    %551 = vmatprep.subr.mxu0 0.0
    %552 = vmatpush1.msra.mxu0 0.0
    %553 = vmatprep.subr.mxu0 0.0
    %554 = vmatpush1.msra.mxu0 0.0
    %555 = vmatprep.subr.mxu0 0.0
    %556 = vmatpush1.msra.mxu0 0.0
    %557 = vmatprep.subr.mxu0 0.0
    %558 = vmatpush1.msra.mxu0 0.0
    %559 = vmatprep.subr.mxu0 0.0
    %560 = vmatpush1.msra.mxu0 0.0
    %561 = vmatprep.subr.mxu0 0.0
    %562 = vmatpush1.msra.mxu0 0.0
    %563 = vmatprep.subr.mxu0 0.0
    %564 = vmatpush1.msra.mxu0 0.0
    %565 = vmatprep.subr.mxu0 0.0
    %566 = vmatpush1.msra.mxu0 0.0
    %567 = vmatprep.subr.mxu0 0.0
    %568 = vmatpush1.msra.mxu0 0.0
    %569 = vmatprep.subr.mxu0 0.0
    %570 = vmatpush1.msra.mxu0 0.0
    %571 = vmatprep.subr.mxu0 0.0
    %572 = vmatpush1.msra.mxu0 0.0
    %573 = vmatprep.subr.mxu0 0.0
    %574 = vmatpush1.msra.mxu0 0.0
    %575 = vmatprep.subr.mxu0 0.0
    %576 = vmatpush1.msra.mxu0 0.0
    %577 = vmatprep.subr.mxu0 0.0
    %578 = vmatpush1.msra.mxu0 0.0
    %579 = vmatprep.subr.mxu0 0.0
    %580 = vmatpush1.msra.mxu0 0.0
    %581 = vmatprep.subr.mxu0 0.0
    %582 = vmatpush1.msra.mxu0 0.0
    %583 = vmatprep.mubr.f32.mxu0 0.0
    %584 = vmatmul.mubr.f32.gmra.mrb[0].mxu0 %v104
    %v585 = vpop.f32.mrb[0].mxu0
    %v586 = vadd.f32 0.0, %v585
    %v587 = vpop.f32.mrb[0].mxu0
    %588 = vdwg.mxu0
    %v589 = vadd.f32 %v326, %v515
    %v590 = vxor.u32 %v589, 2147483648
    %v591 = vmul.f32 %v590, 1.442695
    %v592 = vpow.pop %v591
    %v593 = vadd.f32 %v592, 1.0
    %v594 = vrcp.pop %v593
    %v595 = vmul.f32 1.0, %v594
    %v596 = vadd.f32 %v328, %v517
    %v597 = vxor.u32 %v596, 2147483648
    %v598 = vmul.f32 %v597, 1.442695
    %v599 = vpow.pop %v598
    %v600 = vadd.f32 %v599, 1.0
    %v601 = vrcp.pop %v600
    %v602 = vmul.f32 1.0, %v601
    %v604 = vlaneseq
    %v605 = vshrl.u32 %v604, 7
    %v606 = vsub.s32 0, %v605
    %v607 = vrot.slane %v102, %v606
    %v609 = vadd.f32 %v586, %v607
    %v610 = vmul.f32 %v595, %v609
    %v611 = vadd.f32 %v397, %v610
    %v612 = vtanh.pop %v611
    %v613 = vsub.f32 %v104, %v612
    %v614 = vmul.f32 %v602, %v613
    %v615 = vadd.f32 %v612, %v614
    %v616 = vld [vmem:[#allocation10] sm:$0xff]
    %v617 = vld [vmem:[#allocation10 + $0x8] sm:$0xff]
    %v618 = vld [vmem:[#allocation10 + $0x10] sm:$0xff]
    %v619 = vld [vmem:[#allocation10 + $0x18] sm:$0xff]
    %v620 = vld [vmem:[#allocation10 + $0x20] sm:$0xff]
    %v621 = vld [vmem:[#allocation10 + $0x28] sm:$0xff]
    %v622 = vld [vmem:[#allocation10 + $0x30] sm:$0xff]
    %v623 = vld [vmem:[#allocation10 + $0x38] sm:$0xff]
    %v624 = vld [vmem:[#allocation10 + $0x40] sm:$0xff]
    %v625 = vld [vmem:[#allocation10 + $0x48] sm:$0xff]
    %v626 = vld [vmem:[#allocation10 + $0x50] sm:$0xff]
    %v627 = vld [vmem:[#allocation10 + $0x58] sm:$0xff]
    %v628 = vld [vmem:[#allocation10 + $0x60] sm:$0xff]
    %v629 = vld [vmem:[#allocation10 + $0x68] sm:$0xff]
    %v630 = vld [vmem:[#allocation10 + $0x70] sm:$0xff]
    %v631 = vld [vmem:[#allocation10 + $0x78] sm:$0xff]
    %v633 = vlaneseq
    %v634 = vshrl.u32 %v633, 7
    %v635 = vsub.s32 0, %v634
    %v636 = vrot.slane %v103, %v635
    %638 = vmatprep.subr.mxu0 0.0
    %639 = vmatpush1.msra.mxu0 %v616
    %640 = vmatprep.subr.mxu0 0.0
    %641 = vmatpush1.msra.mxu0 %v617
    %642 = vmatprep.subr.mxu0 0.0
    %643 = vmatpush1.msra.mxu0 %v618
    %644 = vmatprep.subr.mxu0 0.0
    %645 = vmatpush1.msra.mxu0 %v619
    %646 = vmatprep.subr.mxu0 0.0
    %647 = vmatpush1.msra.mxu0 %v620
    %648 = vmatprep.subr.mxu0 0.0
    %649 = vmatpush1.msra.mxu0 %v621
    %650 = vmatprep.subr.mxu0 0.0
    %651 = vmatpush1.msra.mxu0 %v622
    %652 = vmatprep.subr.mxu0 0.0
    %653 = vmatpush1.msra.mxu0 %v623
    %654 = vmatprep.subr.mxu0 0.0
    %655 = vmatpush1.msra.mxu0 %v624
    %656 = vmatprep.subr.mxu0 0.0
    %657 = vmatpush1.msra.mxu0 %v625
    %658 = vmatprep.subr.mxu0 0.0
    %659 = vmatpush1.msra.mxu0 %v626
    %660 = vmatprep.subr.mxu0 0.0
    %661 = vmatpush1.msra.mxu0 %v627
    %662 = vmatprep.subr.mxu0 0.0
    %663 = vmatpush1.msra.mxu0 %v628
    %664 = vmatprep.subr.mxu0 0.0
    %665 = vmatpush1.msra.mxu0 %v629
    %666 = vmatprep.subr.mxu0 0.0
    %667 = vmatpush1.msra.mxu0 %v630
    %668 = vmatprep.subr.mxu0 0.0
    %669 = vmatpush1.msra.mxu0 %v631
    %670 = vmatprep.subr.mxu0 0.0
    %671 = vmatpush1.msra.mxu0 0.0
    %672 = vmatprep.subr.mxu0 0.0
    %673 = vmatpush1.msra.mxu0 0.0
    %674 = vmatprep.subr.mxu0 0.0
    %675 = vmatpush1.msra.mxu0 0.0
    %676 = vmatprep.subr.mxu0 0.0
    %677 = vmatpush1.msra.mxu0 0.0
    %678 = vmatprep.subr.mxu0 0.0
    %679 = vmatpush1.msra.mxu0 0.0
    %680 = vmatprep.subr.mxu0 0.0
    %681 = vmatpush1.msra.mxu0 0.0
    %682 = vmatprep.subr.mxu0 0.0
    %683 = vmatpush1.msra.mxu0 0.0
    %684 = vmatprep.subr.mxu0 0.0
    %685 = vmatpush1.msra.mxu0 0.0
    %686 = vmatprep.subr.mxu0 0.0
    %687 = vmatpush1.msra.mxu0 0.0
    %688 = vmatprep.subr.mxu0 0.0
    %689 = vmatpush1.msra.mxu0 0.0
    %690 = vmatprep.subr.mxu0 0.0
    %691 = vmatpush1.msra.mxu0 0.0
    %692 = vmatprep.subr.mxu0 0.0
    %693 = vmatpush1.msra.mxu0 0.0
    %694 = vmatprep.subr.mxu0 0.0
    %695 = vmatpush1.msra.mxu0 0.0
    %696 = vmatprep.subr.mxu0 0.0
    %697 = vmatpush1.msra.mxu0 0.0
    %698 = vmatprep.subr.mxu0 0.0
    %699 = vmatpush1.msra.mxu0 0.0
    %700 = vmatprep.subr.mxu0 0.0
    %701 = vmatpush1.msra.mxu0 0.0
    %702 = vmatprep.mubr.f32.mxu0 0.0
    %703 = vmatmul.mubr.f32.gmra.mrb[0].mxu0 %v615
    %v704 = vpop.f32.mrb[0].mxu0
    %v705 = vadd.f32 %v636, %v704
    %v706 = vpop.f32.mrb[0].mxu0
    %707 = vdwg.mxu0
    %708 = vmax.xlane.f32.xlu0 %v705
    %v709 = vpop.xlane.xlu0 %708
    %vm710 = vcmp.eq.f32.partialorder %v705, %v709
    %v711 = vsel %vm710, %v100, 128
    %v712 = vand.u32 %v711, 65535
    %v713 = vshra.s32 %v711, 16
    %v714 = vcvt.s32.f32 %v712
    %v715 = vcvt.s32.f32 %v713
    %716 = vmin.xlane.f32.xlu0 %v715
    %v717 = vpop.xlane.xlu0 %716
    %vm718 = vcmp.eq.f32.partialorder %v715, %v717
    %v719 = vsel %vm718, %v714, inf
    %720 = vmin.xlane.f32.xlu0 %v719
    %v721 = vpop.xlane.xlu0 %720
    %v722 = vcvt.f32.s32 %v721
    %v723 = vcvt.f32.s32 %v717
    %v724 = vshll.u32 %v723, 16
    %v725 = vadd.s32 %v724, %v722
    %v726 = vsub.f32 %v705, %v709
    %v727 = vmul.f32 %v726, 1.442695
    %v728 = vpow.pop %v727
    %729 = vadd.xlane.f32.xlu0 %v728
    %v730 = vpop.xlane.xlu0 %729
    %v731 = vlog2.pop %v730
    %v732 = vmul.f32 %v731, 0.6931472
    %v733 = vadd.f32 %v709, %v732
    %v734 = vsub.f32 %v705, %v733
    %735 = vst [vmem:[#allocation11] sm:$0xff] %v734
    %vm736 = vcmp.eq.s32.totalorder %v100, %v725
    %v737 = vsel %vm736, 1, 0
    %v738 = vcvt.s32.f32 %v737
    %v739 = vld [vmem:[#allocation5] sm:$0xff]
    %v740 = vld [vmem:[#allocation5 + $0x8] sm:$0xff]
    %v741 = vld [vmem:[#allocation5 + $0x10] sm:$0xff]
    %v742 = vld [vmem:[#allocation5 + $0x18] sm:$0xff]
    %v743 = vld [vmem:[#allocation5 + $0x20] sm:$0xff]
    %v744 = vld [vmem:[#allocation5 + $0x28] sm:$0xff]
    %v745 = vld [vmem:[#allocation5 + $0x30] sm:$0xff]
    %v746 = vld [vmem:[#allocation5 + $0x38] sm:$0xff]
    %v747 = vld [vmem:[#allocation5 + $0x40] sm:$0xff]
    %v748 = vld [vmem:[#allocation5 + $0x48] sm:$0xff]
    %v749 = vld [vmem:[#allocation5 + $0x50] sm:$0xff]
    %v750 = vld [vmem:[#allocation5 + $0x58] sm:$0xff]
    %v751 = vld [vmem:[#allocation5 + $0x60] sm:$0xff]
    %v752 = vld [vmem:[#allocation5 + $0x68] sm:$0xff]
    %v753 = vld [vmem:[#allocation5 + $0x70] sm:$0xff]
    %v754 = vld [vmem:[#allocation5 + $0x78] sm:$0xff]
    %755 = vmatprep.subr.mxu0 0.0
    %756 = vmatpush1.msra.mxu0 %v739
    %757 = vmatprep.subr.mxu0 0.0
    %758 = vmatpush1.msra.mxu0 %v740
    %759 = vmatprep.subr.mxu0 0.0
    %760 = vmatpush1.msra.mxu0 %v741
    %761 = vmatprep.subr.mxu0 0.0
    %762 = vmatpush1.msra.mxu0 %v742
    %763 = vmatprep.subr.mxu0 0.0
    %764 = vmatpush1.msra.mxu0 %v743
    %765 = vmatprep.subr.mxu0 0.0
    %766 = vmatpush1.msra.mxu0 %v744
    %767 = vmatprep.subr.mxu0 0.0
    %768 = vmatpush1.msra.mxu0 %v745
    %769 = vmatprep.subr.mxu0 0.0
    %770 = vmatpush1.msra.mxu0 %v746
    %771 = vmatprep.subr.mxu0 0.0
    %772 = vmatpush1.msra.mxu0 %v747
    %773 = vmatprep.subr.mxu0 0.0
    %774 = vmatpush1.msra.mxu0 %v748
    %775 = vmatprep.subr.mxu0 0.0
    %776 = vmatpush1.msra.mxu0 %v749
    %777 = vmatprep.subr.mxu0 0.0
    %778 = vmatpush1.msra.mxu0 %v750
    %779 = vmatprep.subr.mxu0 0.0
    %780 = vmatpush1.msra.mxu0 %v751
    %781 = vmatprep.subr.mxu0 0.0
    %782 = vmatpush1.msra.mxu0 %v752
    %783 = vmatprep.subr.mxu0 0.0
    %784 = vmatpush1.msra.mxu0 %v753
    %785 = vmatprep.subr.mxu0 0.0
    %786 = vmatpush1.msra.mxu0 %v754
    %787 = vmatprep.subr.mxu0 0.0
    %788 = vmatpush1.msra.mxu0 0.0
    %789 = vmatprep.subr.mxu0 0.0
    %790 = vmatpush1.msra.mxu0 0.0
    %791 = vmatprep.subr.mxu0 0.0
    %792 = vmatpush1.msra.mxu0 0.0
    %793 = vmatprep.subr.mxu0 0.0
    %794 = vmatpush1.msra.mxu0 0.0
    %795 = vmatprep.subr.mxu0 0.0
    %796 = vmatpush1.msra.mxu0 0.0
    %797 = vmatprep.subr.mxu0 0.0
    %798 = vmatpush1.msra.mxu0 0.0
    %799 = vmatprep.subr.mxu0 0.0
    %800 = vmatpush1.msra.mxu0 0.0
    %801 = vmatprep.subr.mxu0 0.0
    %802 = vmatpush1.msra.mxu0 0.0
    %803 = vmatprep.subr.mxu0 0.0
    %804 = vmatpush1.msra.mxu0 0.0
    %805 = vmatprep.subr.mxu0 0.0
    %806 = vmatpush1.msra.mxu0 0.0
    %807 = vmatprep.subr.mxu0 0.0
    %808 = vmatpush1.msra.mxu0 0.0
    %809 = vmatprep.subr.mxu0 0.0
    %810 = vmatpush1.msra.mxu0 0.0
    %811 = vmatprep.subr.mxu0 0.0
    %812 = vmatpush1.msra.mxu0 0.0
    %813 = vmatprep.subr.mxu0 0.0
    %814 = vmatpush1.msra.mxu0 0.0
    %815 = vmatprep.subr.mxu0 0.0
    %816 = vmatpush1.msra.mxu0 0.0
    %817 = vmatprep.subr.mxu0 0.0
    %818 = vmatpush1.msra.mxu0 0.0
    %819 = vmatprep.mubr.f32.mxu0 0.0
    %820 = vmatmul.mubr.f32.gmra.mrb[0].mxu0 %v738
    %v821 = vpop.f32.mrb[0].mxu0
    %v822 = vadd.f32 0.0, %v821
    %v823 = vpop.f32.mrb[0].mxu0
    %824 = vdwg.mxu0
    %v825 = vmax.f32 %v822, 0.0
    %v826 = vld [vmem:[#allocation7] sm:$0xff]
    %v827 = vld [vmem:[#allocation7 + $0x8] sm:$0xff]
    %v828 = vld [vmem:[#allocation7 + $0x10] sm:$0xff]
    %v829 = vld [vmem:[#allocation7 + $0x18] sm:$0xff]
    %v830 = vld [vmem:[#allocation7 + $0x20] sm:$0xff]
    %v831 = vld [vmem:[#allocation7 + $0x28] sm:$0xff]
    %v832 = vld [vmem:[#allocation7 + $0x30] sm:$0xff]
    %v833 = vld [vmem:[#allocation7 + $0x38] sm:$0xff]
    %v834 = vld [vmem:[#allocation7 + $0x40] sm:$0xff]
    %v835 = vld [vmem:[#allocation7 + $0x48] sm:$0xff]
    %v836 = vld [vmem:[#allocation7 + $0x50] sm:$0xff]
    %v837 = vld [vmem:[#allocation7 + $0x58] sm:$0xff]
    %v838 = vld [vmem:[#allocation7 + $0x60] sm:$0xff]
    %v839 = vld [vmem:[#allocation7 + $0x68] sm:$0xff]
    %v840 = vld [vmem:[#allocation7 + $0x70] sm:$0xff]
    %v841 = vld [vmem:[#allocation7 + $0x78] sm:$0xff]
    %v842 = vld [vmem:[#allocation7 + $0x80] sm:$0xff]
    %v843 = vld [vmem:[#allocation7 + $0x88] sm:$0xff]
    %v844 = vld [vmem:[#allocation7 + $0x90] sm:$0xff]
    %v845 = vld [vmem:[#allocation7 + $0x98] sm:$0xff]
    %v846 = vld [vmem:[#allocation7 + $0xa0] sm:$0xff]
    %v847 = vld [vmem:[#allocation7 + $0xa8] sm:$0xff]
    %v848 = vld [vmem:[#allocation7 + $0xb0] sm:$0xff]
    %v849 = vld [vmem:[#allocation7 + $0xb8] sm:$0xff]
    %v850 = vld [vmem:[#allocation7 + $0xc0] sm:$0xff]
    %v851 = vld [vmem:[#allocation7 + $0xc8] sm:$0xff]
    %v852 = vld [vmem:[#allocation7 + $0xd0] sm:$0xff]
    %v853 = vld [vmem:[#allocation7 + $0xd8] sm:$0xff]
    %v854 = vld [vmem:[#allocation7 + $0xe0] sm:$0xff]
    %v855 = vld [vmem:[#allocation7 + $0xe8] sm:$0xff]
    %v856 = vld [vmem:[#allocation7 + $0xf0] sm:$0xff]
    %v857 = vld [vmem:[#allocation7 + $0xf8] sm:$0xff]
    %v858 = vld [vmem:[#allocation7 + $0x100] sm:$0xff]
    %v859 = vld [vmem:[#allocation7 + $0x108] sm:$0xff]
    %v860 = vld [vmem:[#allocation7 + $0x110] sm:$0xff]
    %v861 = vld [vmem:[#allocation7 + $0x118] sm:$0xff]
    %v862 = vld [vmem:[#allocation7 + $0x120] sm:$0xff]
    %v863 = vld [vmem:[#allocation7 + $0x128] sm:$0xff]
    %v864 = vld [vmem:[#allocation7 + $0x130] sm:$0xff]
    %v865 = vld [vmem:[#allocation7 + $0x138] sm:$0xff]
    %v866 = vld [vmem:[#allocation7 + $0x140] sm:$0xff]
    %v867 = vld [vmem:[#allocation7 + $0x148] sm:$0xff]
    %v868 = vld [vmem:[#allocation7 + $0x150] sm:$0xff]
    %v869 = vld [vmem:[#allocation7 + $0x158] sm:$0xff]
    %v870 = vld [vmem:[#allocation7 + $0x160] sm:$0xff]
    %v871 = vld [vmem:[#allocation7 + $0x168] sm:$0xff]
    %v872 = vld [vmem:[#allocation7 + $0x170] sm:$0xff]
    %v873 = vld [vmem:[#allocation7 + $0x178] sm:$0xff]
    %874 = vmatprep.subr.mxu0 %v827
    %875 = vmatpush1.msra.mxu0 %v826
    %876 = vmatprep.subr.mxu0 %v830
    %877 = vmatpush1.msra.mxu0 %v829
    %878 = vmatprep.subr.mxu0 %v833
    %879 = vmatpush1.msra.mxu0 %v832
    %880 = vmatprep.subr.mxu0 %v836
    %881 = vmatpush1.msra.mxu0 %v835
    %882 = vmatprep.subr.mxu0 %v839
    %883 = vmatpush1.msra.mxu0 %v838
    %884 = vmatprep.subr.mxu0 %v842
    %885 = vmatpush1.msra.mxu0 %v841
    %886 = vmatprep.subr.mxu0 %v845
    %887 = vmatpush1.msra.mxu0 %v844
    %888 = vmatprep.subr.mxu0 %v848
    %889 = vmatpush1.msra.mxu0 %v847
    %890 = vmatprep.subr.mxu0 %v851
    %891 = vmatpush1.msra.mxu0 %v850
    %892 = vmatprep.subr.mxu0 %v854
    %893 = vmatpush1.msra.mxu0 %v853
    %894 = vmatprep.subr.mxu0 %v857
    %895 = vmatpush1.msra.mxu0 %v856
    %896 = vmatprep.subr.mxu0 %v860
    %897 = vmatpush1.msra.mxu0 %v859
    %898 = vmatprep.subr.mxu0 %v863
    %899 = vmatpush1.msra.mxu0 %v862
    %900 = vmatprep.subr.mxu0 %v866
    %901 = vmatpush1.msra.mxu0 %v865
    %902 = vmatprep.subr.mxu0 %v869
    %903 = vmatpush1.msra.mxu0 %v868
    %904 = vmatprep.subr.mxu0 %v872
    %905 = vmatpush1.msra.mxu0 %v871
    %906 = vmatprep.subr.mxu0 0.0
    %907 = vmatpush1.msra.mxu0 0.0
    %908 = vmatprep.subr.mxu0 0.0
    %909 = vmatpush1.msra.mxu0 0.0
    %910 = vmatprep.subr.mxu0 0.0
    %911 = vmatpush1.msra.mxu0 0.0
    %912 = vmatprep.subr.mxu0 0.0
    %913 = vmatpush1.msra.mxu0 0.0
    %914 = vmatprep.subr.mxu0 0.0
    %915 = vmatpush1.msra.mxu0 0.0
    %916 = vmatprep.subr.mxu0 0.0
    %917 = vmatpush1.msra.mxu0 0.0
    %918 = vmatprep.subr.mxu0 0.0
    %919 = vmatpush1.msra.mxu0 0.0
    %920 = vmatprep.subr.mxu0 0.0
    %921 = vmatpush1.msra.mxu0 0.0
    %922 = vmatprep.subr.mxu0 0.0
    %923 = vmatpush1.msra.mxu0 0.0
    %924 = vmatprep.subr.mxu0 0.0
    %925 = vmatpush1.msra.mxu0 0.0
    %926 = vmatprep.subr.mxu0 0.0
    %927 = vmatpush1.msra.mxu0 0.0
    %928 = vmatprep.subr.mxu0 0.0
    %929 = vmatpush1.msra.mxu0 0.0
    %930 = vmatprep.subr.mxu0 0.0
    %931 = vmatpush1.msra.mxu0 0.0
    %932 = vmatprep.subr.mxu0 0.0
    %933 = vmatpush1.msra.mxu0 0.0
    %934 = vmatprep.subr.mxu0 0.0
    %935 = vmatpush1.msra.mxu0 0.0
    %936 = vmatprep.subr.mxu0 0.0
    %937 = vmatpush1.msra.mxu0 0.0
    %938 = vmatprep.mubr.f32.mxu0 0.0
    %939 = vmatmul.mubr.f32.gmra.mrb[0].mxu0 %v825
    %v940 = vpop.f32.mrb[0].mxu0
    %v941 = vadd.f32 %v247, %v940
    %v942 = vpop.f32.mrb[0].mxu0
    %v943 = vadd.f32 %v251, %v942
    %944 = vdwg.mxu0
    %945 = vmatprep.subr.mxu0 0.0
    %946 = vmatpush1.msra.mxu0 %v828
    %947 = vmatprep.subr.mxu0 0.0
    %948 = vmatpush1.msra.mxu0 %v831
    %949 = vmatprep.subr.mxu0 0.0
    %950 = vmatpush1.msra.mxu0 %v834
    %951 = vmatprep.subr.mxu0 0.0
    %952 = vmatpush1.msra.mxu0 %v837
    %953 = vmatprep.subr.mxu0 0.0
    %954 = vmatpush1.msra.mxu0 %v840
    %955 = vmatprep.subr.mxu0 0.0
    %956 = vmatpush1.msra.mxu0 %v843
    %957 = vmatprep.subr.mxu0 0.0
    %958 = vmatpush1.msra.mxu0 %v846
    %959 = vmatprep.subr.mxu0 0.0
    %960 = vmatpush1.msra.mxu0 %v849
    %961 = vmatprep.subr.mxu0 0.0
    %962 = vmatpush1.msra.mxu0 %v852
    %963 = vmatprep.subr.mxu0 0.0
    %964 = vmatpush1.msra.mxu0 %v855
    %965 = vmatprep.subr.mxu0 0.0
    %966 = vmatpush1.msra.mxu0 %v858
    %967 = vmatprep.subr.mxu0 0.0
    %968 = vmatpush1.msra.mxu0 %v861
    %969 = vmatprep.subr.mxu0 0.0
    %970 = vmatpush1.msra.mxu0 %v864
    %971 = vmatprep.subr.mxu0 0.0
    %972 = vmatpush1.msra.mxu0 %v867
    %973 = vmatprep.subr.mxu0 0.0
    %974 = vmatpush1.msra.mxu0 %v870
    %975 = vmatprep.subr.mxu0 0.0
    %976 = vmatpush1.msra.mxu0 %v873
    %977 = vmatprep.subr.mxu0 0.0
    %978 = vmatpush1.msra.mxu0 0.0
    %979 = vmatprep.subr.mxu0 0.0
    %980 = vmatpush1.msra.mxu0 0.0
    %981 = vmatprep.subr.mxu0 0.0
    %982 = vmatpush1.msra.mxu0 0.0
    %983 = vmatprep.subr.mxu0 0.0
    %984 = vmatpush1.msra.mxu0 0.0
    %985 = vmatprep.subr.mxu0 0.0
    %986 = vmatpush1.msra.mxu0 0.0
    %987 = vmatprep.subr.mxu0 0.0
    %988 = vmatpush1.msra.mxu0 0.0
    %989 = vmatprep.subr.mxu0 0.0
    %990 = vmatpush1.msra.mxu0 0.0
    %991 = vmatprep.subr.mxu0 0.0
    %992 = vmatpush1.msra.mxu0 0.0
    %993 = vmatprep.subr.mxu0 0.0
    %994 = vmatpush1.msra.mxu0 0.0
    %995 = vmatprep.subr.mxu0 0.0
    %996 = vmatpush1.msra.mxu0 0.0
    %997 = vmatprep.subr.mxu0 0.0
    %998 = vmatpush1.msra.mxu0 0.0
    %999 = vmatprep.subr.mxu0 0.0
    %1000 = vmatpush1.msra.mxu0 0.0
    %1001 = vmatprep.subr.mxu0 0.0
    %1002 = vmatpush1.msra.mxu0 0.0
    %1003 = vmatprep.subr.mxu0 0.0
    %1004 = vmatpush1.msra.mxu0 0.0
    %1005 = vmatprep.subr.mxu0 0.0
    %1006 = vmatpush1.msra.mxu0 0.0
    %1007 = vmatprep.subr.mxu0 0.0
    %1008 = vmatpush1.msra.mxu0 0.0
    %1009 = vmatprep.mubr.f32.mxu0 0.0
    %1010 = vmatmul.mubr.f32.gmra.mrb[0].mxu0 %v825
    %v1011 = vpop.f32.mrb[0].mxu0
    %v1012 = vadd.f32 %v255, %v1011
    %v1013 = vpop.f32.mrb[0].mxu0
    %1014 = vdwg.mxu0
    %v1015 = vld [vmem:[#allocation8] sm:$0xff]
    %v1016 = vld [vmem:[#allocation8 + $0x8] sm:$0xff]
    %v1017 = vld [vmem:[#allocation8 + $0x10] sm:$0xff]
    %v1018 = vld [vmem:[#allocation8 + $0x18] sm:$0xff]
    %v1019 = vld [vmem:[#allocation8 + $0x20] sm:$0xff]
    %v1020 = vld [vmem:[#allocation8 + $0x28] sm:$0xff]
    %v1021 = vld [vmem:[#allocation8 + $0x30] sm:$0xff]
    %v1022 = vld [vmem:[#allocation8 + $0x38] sm:$0xff]
    %v1023 = vld [vmem:[#allocation8 + $0x40] sm:$0xff]
    %v1024 = vld [vmem:[#allocation8 + $0x48] sm:$0xff]
    %v1025 = vld [vmem:[#allocation8 + $0x50] sm:$0xff]
    %v1026 = vld [vmem:[#allocation8 + $0x58] sm:$0xff]
    %v1027 = vld [vmem:[#allocation8 + $0x60] sm:$0xff]
    %v1028 = vld [vmem:[#allocation8 + $0x68] sm:$0xff]
    %v1029 = vld [vmem:[#allocation8 + $0x70] sm:$0xff]
    %v1030 = vld [vmem:[#allocation8 + $0x78] sm:$0xff]
    %v1031 = vld [vmem:[#allocation8 + $0x80] sm:$0xff]
    %v1032 = vld [vmem:[#allocation8 + $0x88] sm:$0xff]
    %v1033 = vld [vmem:[#allocation8 + $0x90] sm:$0xff]
    %v1034 = vld [vmem:[#allocation8 + $0x98] sm:$0xff]
    %v1035 = vld [vmem:[#allocation8 + $0xa0] sm:$0xff]
    %v1036 = vld [vmem:[#allocation8 + $0xa8] sm:$0xff]
    %v1037 = vld [vmem:[#allocation8 + $0xb0] sm:$0xff]
    %v1038 = vld [vmem:[#allocation8 + $0xb8] sm:$0xff]
    %v1039 = vld [vmem:[#allocation8 + $0xc0] sm:$0xff]
    %v1040 = vld [vmem:[#allocation8 + $0xc8] sm:$0xff]
    %v1041 = vld [vmem:[#allocation8 + $0xd0] sm:$0xff]
    %v1042 = vld [vmem:[#allocation8 + $0xd8] sm:$0xff]
    %v1043 = vld [vmem:[#allocation8 + $0xe0] sm:$0xff]
    %v1044 = vld [vmem:[#allocation8 + $0xe8] sm:$0xff]
    %v1045 = vld [vmem:[#allocation8 + $0xf0] sm:$0xff]
    %v1046 = vld [vmem:[#allocation8 + $0xf8] sm:$0xff]
    %v1047 = vld [vmem:[#allocation8 + $0x100] sm:$0xff]
    %v1048 = vld [vmem:[#allocation8 + $0x108] sm:$0xff]
    %v1049 = vld [vmem:[#allocation8 + $0x110] sm:$0xff]
    %v1050 = vld [vmem:[#allocation8 + $0x118] sm:$0xff]
    %v1051 = vld [vmem:[#allocation8 + $0x120] sm:$0xff]
    %v1052 = vld [vmem:[#allocation8 + $0x128] sm:$0xff]
    %v1053 = vld [vmem:[#allocation8 + $0x130] sm:$0xff]
    %v1054 = vld [vmem:[#allocation8 + $0x138] sm:$0xff]
    %v1055 = vld [vmem:[#allocation8 + $0x140] sm:$0xff]
    %v1056 = vld [vmem:[#allocation8 + $0x148] sm:$0xff]
    %v1057 = vld [vmem:[#allocation8 + $0x150] sm:$0xff]
    %v1058 = vld [vmem:[#allocation8 + $0x158] sm:$0xff]
    %v1059 = vld [vmem:[#allocation8 + $0x160] sm:$0xff]
    %v1060 = vld [vmem:[#allocation8 + $0x168] sm:$0xff]
    %v1061 = vld [vmem:[#allocation8 + $0x170] sm:$0xff]
    %v1062 = vld [vmem:[#allocation8 + $0x178] sm:$0xff]
    %1063 = vmatprep.subr.mxu0 %v1016
    %1064 = vmatpush1.msra.mxu0 %v1015
    %1065 = vmatprep.subr.mxu0 %v1019
    %1066 = vmatpush1.msra.mxu0 %v1018
    %1067 = vmatprep.subr.mxu0 %v1022
    %1068 = vmatpush1.msra.mxu0 %v1021
    %1069 = vmatprep.subr.mxu0 %v1025
    %1070 = vmatpush1.msra.mxu0 %v1024
    %1071 = vmatprep.subr.mxu0 %v1028
    %1072 = vmatpush1.msra.mxu0 %v1027
    %1073 = vmatprep.subr.mxu0 %v1031
    %1074 = vmatpush1.msra.mxu0 %v1030
    %1075 = vmatprep.subr.mxu0 %v1034
    %1076 = vmatpush1.msra.mxu0 %v1033
    %1077 = vmatprep.subr.mxu0 %v1037
    %1078 = vmatpush1.msra.mxu0 %v1036
    %1079 = vmatprep.subr.mxu0 %v1040
    %1080 = vmatpush1.msra.mxu0 %v1039
    %1081 = vmatprep.subr.mxu0 %v1043
    %1082 = vmatpush1.msra.mxu0 %v1042
    %1083 = vmatprep.subr.mxu0 %v1046
    %1084 = vmatpush1.msra.mxu0 %v1045
    %1085 = vmatprep.subr.mxu0 %v1049
    %1086 = vmatpush1.msra.mxu0 %v1048
    %1087 = vmatprep.subr.mxu0 %v1052
    %1088 = vmatpush1.msra.mxu0 %v1051
    %1089 = vmatprep.subr.mxu0 %v1055
    %1090 = vmatpush1.msra.mxu0 %v1054
    %1091 = vmatprep.subr.mxu0 %v1058
    %1092 = vmatpush1.msra.mxu0 %v1057
    %1093 = vmatprep.subr.mxu0 %v1061
    %1094 = vmatpush1.msra.mxu0 %v1060
    %1095 = vmatprep.subr.mxu0 0.0
    %1096 = vmatpush1.msra.mxu0 0.0
    %1097 = vmatprep.subr.mxu0 0.0
    %1098 = vmatpush1.msra.mxu0 0.0
    %1099 = vmatprep.subr.mxu0 0.0
    %1100 = vmatpush1.msra.mxu0 0.0
    %1101 = vmatprep.subr.mxu0 0.0
    %1102 = vmatpush1.msra.mxu0 0.0
    %1103 = vmatprep.subr.mxu0 0.0
    %1104 = vmatpush1.msra.mxu0 0.0
    %1105 = vmatprep.subr.mxu0 0.0
    %1106 = vmatpush1.msra.mxu0 0.0
    %1107 = vmatprep.subr.mxu0 0.0
    %1108 = vmatpush1.msra.mxu0 0.0
    %1109 = vmatprep.subr.mxu0 0.0
    %1110 = vmatpush1.msra.mxu0 0.0
    %1111 = vmatprep.subr.mxu0 0.0
    %1112 = vmatpush1.msra.mxu0 0.0
    %1113 = vmatprep.subr.mxu0 0.0
    %1114 = vmatpush1.msra.mxu0 0.0
    %1115 = vmatprep.subr.mxu0 0.0
    %1116 = vmatpush1.msra.mxu0 0.0
    %1117 = vmatprep.subr.mxu0 0.0
    %1118 = vmatpush1.msra.mxu0 0.0
    %1119 = vmatprep.subr.mxu0 0.0
    %1120 = vmatpush1.msra.mxu0 0.0
    %1121 = vmatprep.subr.mxu0 0.0
    %1122 = vmatpush1.msra.mxu0 0.0
    %1123 = vmatprep.subr.mxu0 0.0
    %1124 = vmatpush1.msra.mxu0 0.0
    %1125 = vmatprep.subr.mxu0 0.0
    %1126 = vmatpush1.msra.mxu0 0.0
    %1127 = vmatprep.mubr.f32.mxu0 0.0
    %1128 = vmatmul.mubr.f32.gmra.mrb[0].mxu0 %v615
    %v1129 = vpop.f32.mrb[0].mxu0
    %v1130 = vadd.f32 0.0, %v1129
    %v1131 = vpop.f32.mrb[0].mxu0
    %v1132 = vadd.f32 0.0, %v1131
    %1133 = vdwg.mxu0
    %1134 = vmatprep.subr.mxu0 0.0
    %1135 = vmatpush1.msra.mxu0 %v1017
    %1136 = vmatprep.subr.mxu0 0.0
    %1137 = vmatpush1.msra.mxu0 %v1020
    %1138 = vmatprep.subr.mxu0 0.0
    %1139 = vmatpush1.msra.mxu0 %v1023
    %1140 = vmatprep.subr.mxu0 0.0
    %1141 = vmatpush1.msra.mxu0 %v1026
    %1142 = vmatprep.subr.mxu0 0.0
    %1143 = vmatpush1.msra.mxu0 %v1029
    %1144 = vmatprep.subr.mxu0 0.0
    %1145 = vmatpush1.msra.mxu0 %v1032
    %1146 = vmatprep.subr.mxu0 0.0
    %1147 = vmatpush1.msra.mxu0 %v1035
    %1148 = vmatprep.subr.mxu0 0.0
    %1149 = vmatpush1.msra.mxu0 %v1038
    %1150 = vmatprep.subr.mxu0 0.0
    %1151 = vmatpush1.msra.mxu0 %v1041
    %1152 = vmatprep.subr.mxu0 0.0
    %1153 = vmatpush1.msra.mxu0 %v1044
    %1154 = vmatprep.subr.mxu0 0.0
    %1155 = vmatpush1.msra.mxu0 %v1047
    %1156 = vmatprep.subr.mxu0 0.0
    %1157 = vmatpush1.msra.mxu0 %v1050
    %1158 = vmatprep.subr.mxu0 0.0
    %1159 = vmatpush1.msra.mxu0 %v1053
    %1160 = vmatprep.subr.mxu0 0.0
    %1161 = vmatpush1.msra.mxu0 %v1056
    %1162 = vmatprep.subr.mxu0 0.0
    %1163 = vmatpush1.msra.mxu0 %v1059
    %1164 = vmatprep.subr.mxu0 0.0
    %1165 = vmatpush1.msra.mxu0 %v1062
    %1166 = vmatprep.subr.mxu0 0.0
    %1167 = vmatpush1.msra.mxu0 0.0
    %1168 = vmatprep.subr.mxu0 0.0
    %1169 = vmatpush1.msra.mxu0 0.0
    %1170 = vmatprep.subr.mxu0 0.0
    %1171 = vmatpush1.msra.mxu0 0.0
    %1172 = vmatprep.subr.mxu0 0.0
    %1173 = vmatpush1.msra.mxu0 0.0
    %1174 = vmatprep.subr.mxu0 0.0
    %1175 = vmatpush1.msra.mxu0 0.0
    %1176 = vmatprep.subr.mxu0 0.0
    %1177 = vmatpush1.msra.mxu0 0.0
    %1178 = vmatprep.subr.mxu0 0.0
    %1179 = vmatpush1.msra.mxu0 0.0
    %1180 = vmatprep.subr.mxu0 0.0
    %1181 = vmatpush1.msra.mxu0 0.0
    %1182 = vmatprep.subr.mxu0 0.0
    %1183 = vmatpush1.msra.mxu0 0.0
    %1184 = vmatprep.subr.mxu0 0.0
    %1185 = vmatpush1.msra.mxu0 0.0
    %1186 = vmatprep.subr.mxu0 0.0
    %1187 = vmatpush1.msra.mxu0 0.0
    %1188 = vmatprep.subr.mxu0 0.0
    %1189 = vmatpush1.msra.mxu0 0.0
    %1190 = vmatprep.subr.mxu0 0.0
    %1191 = vmatpush1.msra.mxu0 0.0
    %1192 = vmatprep.subr.mxu0 0.0
    %1193 = vmatpush1.msra.mxu0 0.0
    %1194 = vmatprep.subr.mxu0 0.0
    %1195 = vmatpush1.msra.mxu0 0.0
    %1196 = vmatprep.subr.mxu0 0.0
    %1197 = vmatpush1.msra.mxu0 0.0
    %1198 = vmatprep.mubr.f32.mxu0 0.0
    %1199 = vmatmul.mubr.f32.gmra.mrb[0].mxu0 %v615
    %v1200 = vpop.f32.mrb[0].mxu0
    %v1201 = vadd.f32 0.0, %v1200
    %v1202 = vpop.f32.mrb[0].mxu0
    %1203 = vdwg.mxu0
    %v1204 = vadd.f32 %v941, %v1130
    %v1205 = vxor.u32 %v1204, 2147483648
    %v1206 = vmul.f32 %v1205, 1.442695
    %v1207 = vpow.pop %v1206
    %v1208 = vadd.f32 %v1207, 1.0
    %v1209 = vrcp.pop %v1208
    %v1210 = vmul.f32 1.0, %v1209
    %v1211 = vadd.f32 %v943, %v1132
    %v1212 = vxor.u32 %v1211, 2147483648
    %v1213 = vmul.f32 %v1212, 1.442695
    %v1214 = vpow.pop %v1213
    %v1215 = vadd.f32 %v1214, 1.0
    %v1216 = vrcp.pop %v1215
    %v1217 = vmul.f32 1.0, %v1216
    %v1218 = vadd.f32 %v1201, %v607
    %v1219 = vmul.f32 %v1210, %v1218
    %v1220 = vadd.f32 %v1012, %v1219
    %v1221 = vtanh.pop %v1220
    %v1222 = vsub.f32 %v615, %v1221
    %v1223 = vmul.f32 %v1217, %v1222
    %v1224 = vadd.f32 %v1221, %v1223
    %v1225 = vld [vmem:[#allocation10] sm:$0xff]
    %v1226 = vld [vmem:[#allocation10 + $0x8] sm:$0xff]
    %v1227 = vld [vmem:[#allocation10 + $0x10] sm:$0xff]
    %v1228 = vld [vmem:[#allocation10 + $0x18] sm:$0xff]
    %v1229 = vld [vmem:[#allocation10 + $0x20] sm:$0xff]
    %v1230 = vld [vmem:[#allocation10 + $0x28] sm:$0xff]
    %v1231 = vld [vmem:[#allocation10 + $0x30] sm:$0xff]
    %v1232 = vld [vmem:[#allocation10 + $0x38] sm:$0xff]
    %v1233 = vld [vmem:[#allocation10 + $0x40] sm:$0xff]
    %v1234 = vld [vmem:[#allocation10 + $0x48] sm:$0xff]
    %v1235 = vld [vmem:[#allocation10 + $0x50] sm:$0xff]
    %v1236 = vld [vmem:[#allocation10 + $0x58] sm:$0xff]
    %v1237 = vld [vmem:[#allocation10 + $0x60] sm:$0xff]
    %v1238 = vld [vmem:[#allocation10 + $0x68] sm:$0xff]
    %v1239 = vld [vmem:[#allocation10 + $0x70] sm:$0xff]
    %v1240 = vld [vmem:[#allocation10 + $0x78] sm:$0xff]
    %1241 = vmatprep.subr.mxu0 0.0
    %1242 = vmatpush1.msra.mxu0 %v1225
    %1243 = vmatprep.subr.mxu0 0.0
    %1244 = vmatpush1.msra.mxu0 %v1226
    %1245 = vmatprep.subr.mxu0 0.0
    %1246 = vmatpush1.msra.mxu0 %v1227
    %1247 = vmatprep.subr.mxu0 0.0
    %1248 = vmatpush1.msra.mxu0 %v1228
    %1249 = vmatprep.subr.mxu0 0.0
    %1250 = vmatpush1.msra.mxu0 %v1229
    %1251 = vmatprep.subr.mxu0 0.0
    %1252 = vmatpush1.msra.mxu0 %v1230
    %1253 = vmatprep.subr.mxu0 0.0
    %1254 = vmatpush1.msra.mxu0 %v1231
    %1255 = vmatprep.subr.mxu0 0.0
    %1256 = vmatpush1.msra.mxu0 %v1232
    %1257 = vmatprep.subr.mxu0 0.0
    %1258 = vmatpush1.msra.mxu0 %v1233
    %1259 = vmatprep.subr.mxu0 0.0
    %1260 = vmatpush1.msra.mxu0 %v1234
    %1261 = vmatprep.subr.mxu0 0.0
    %1262 = vmatpush1.msra.mxu0 %v1235
    %1263 = vmatprep.subr.mxu0 0.0
    %1264 = vmatpush1.msra.mxu0 %v1236
    %1265 = vmatprep.subr.mxu0 0.0
    %1266 = vmatpush1.msra.mxu0 %v1237
    %1267 = vmatprep.subr.mxu0 0.0
    %1268 = vmatpush1.msra.mxu0 %v1238
    %1269 = vmatprep.subr.mxu0 0.0
    %1270 = vmatpush1.msra.mxu0 %v1239
    %1271 = vmatprep.subr.mxu0 0.0
    %1272 = vmatpush1.msra.mxu0 %v1240
    %1273 = vmatprep.subr.mxu0 0.0
    %1274 = vmatpush1.msra.mxu0 0.0
    %1275 = vmatprep.subr.mxu0 0.0
    %1276 = vmatpush1.msra.mxu0 0.0
    %1277 = vmatprep.subr.mxu0 0.0
    %1278 = vmatpush1.msra.mxu0 0.0
    %1279 = vmatprep.subr.mxu0 0.0
    %1280 = vmatpush1.msra.mxu0 0.0
    %1281 = vmatprep.subr.mxu0 0.0
    %1282 = vmatpush1.msra.mxu0 0.0
    %1283 = vmatprep.subr.mxu0 0.0
    %1284 = vmatpush1.msra.mxu0 0.0
    %1285 = vmatprep.subr.mxu0 0.0
    %1286 = vmatpush1.msra.mxu0 0.0
    %1287 = vmatprep.subr.mxu0 0.0
    %1288 = vmatpush1.msra.mxu0 0.0
    %1289 = vmatprep.subr.mxu0 0.0
    %1290 = vmatpush1.msra.mxu0 0.0
    %1291 = vmatprep.subr.mxu0 0.0
    %1292 = vmatpush1.msra.mxu0 0.0
    %1293 = vmatprep.subr.mxu0 0.0
    %1294 = vmatpush1.msra.mxu0 0.0
    %1295 = vmatprep.subr.mxu0 0.0
    %1296 = vmatpush1.msra.mxu0 0.0
    %1297 = vmatprep.subr.mxu0 0.0
    %1298 = vmatpush1.msra.mxu0 0.0
    %1299 = vmatprep.subr.mxu0 0.0
    %1300 = vmatpush1.msra.mxu0 0.0
    %1301 = vmatprep.subr.mxu0 0.0
    %1302 = vmatpush1.msra.mxu0 0.0
    %1303 = vmatprep.subr.mxu0 0.0
    %1304 = vmatpush1.msra.mxu0 0.0
    %1305 = vmatprep.mubr.f32.mxu0 0.0
    %1306 = vmatmul.mubr.f32.gmra.mrb[0].mxu0 %v1224
    %v1307 = vpop.f32.mrb[0].mxu0
    %v1308 = vadd.f32 %v636, %v1307
    %v1309 = vpop.f32.mrb[0].mxu0
    %1310 = vdwg.mxu0
    %1311 = vmax.xlane.f32.xlu0 %v1308
    %v1312 = vpop.xlane.xlu0 %1311
    %vm1313 = vcmp.eq.f32.partialorder %v1308, %v1312
    %v1314 = vsel %vm1313, %v100, 128
    %v1315 = vand.u32 %v1314, 65535
    %v1316 = vshra.s32 %v1314, 16
    %v1317 = vcvt.s32.f32 %v1315
    %v1318 = vcvt.s32.f32 %v1316
    %1319 = vmin.xlane.f32.xlu0 %v1318
    %v1320 = vpop.xlane.xlu0 %1319
    %vm1321 = vcmp.eq.f32.partialorder %v1318, %v1320
    %v1322 = vsel %vm1321, %v1317, inf
    %1323 = vmin.xlane.f32.xlu0 %v1322
    %v1324 = vpop.xlane.xlu0 %1323
    %v1325 = vcvt.f32.s32 %v1324
    %v1326 = vcvt.f32.s32 %v1320
    %v1327 = vshll.u32 %v1326, 16
    %v1328 = vadd.s32 %v1327, %v1325
    %v1329 = vsub.f32 %v1308, %v1312
    %v1330 = vmul.f32 %v1329, 1.442695
    %v1331 = vpow.pop %v1330
    %1332 = vadd.xlane.f32.xlu0 %v1331
    %v1333 = vpop.xlane.xlu0 %1332
    %v1334 = vlog2.pop %v1333
    %v1335 = vmul.f32 %v1334, 0.6931472
    %v1336 = vadd.f32 %v1312, %v1335
    %v1337 = vsub.f32 %v1308, %v1336
    %s1338 = scalar_lea.vmem [#allocation11], 8
    %1339 = vst [vmem:[%s1338] sm:$0xff] %v1337
    %vm1340 = vcmp.eq.s32.totalorder %v100, %v1328
    %v1341 = vsel %vm1340, 1, 0
    %v1342 = vcvt.s32.f32 %v1341
    %v1343 = vld [vmem:[#allocation5] sm:$0xff]
    %v1344 = vld [vmem:[#allocation5 + $0x8] sm:$0xff]
    %v1345 = vld [vmem:[#allocation5 + $0x10] sm:$0xff]
    %v1346 = vld [vmem:[#allocation5 + $0x18] sm:$0xff]
    %v1347 = vld [vmem:[#allocation5 + $0x20] sm:$0xff]
    %v1348 = vld [vmem:[#allocation5 + $0x28] sm:$0xff]
    %v1349 = vld [vmem:[#allocation5 + $0x30] sm:$0xff]
    %v1350 = vld [vmem:[#allocation5 + $0x38] sm:$0xff]
    %v1351 = vld [vmem:[#allocation5 + $0x40] sm:$0xff]
    %v1352 = vld [vmem:[#allocation5 + $0x48] sm:$0xff]
    %v1353 = vld [vmem:[#allocation5 + $0x50] sm:$0xff]
    %v1354 = vld [vmem:[#allocation5 + $0x58] sm:$0xff]
    %v1355 = vld [vmem:[#allocation5 + $0x60] sm:$0xff]
    %v1356 = vld [vmem:[#allocation5 + $0x68] sm:$0xff]
    %v1357 = vld [vmem:[#allocation5 + $0x70] sm:$0xff]
    %v1358 = vld [vmem:[#allocation5 + $0x78] sm:$0xff]
    %1359 = vmatprep.subr.mxu0 0.0
    %1360 = vmatpush1.msra.mxu0 %v1343
    %1361 = vmatprep.subr.mxu0 0.0
    %1362 = vmatpush1.msra.mxu0 %v1344
    %1363 = vmatprep.subr.mxu0 0.0
    %1364 = vmatpush1.msra.mxu0 %v1345
    %1365 = vmatprep.subr.mxu0 0.0
    %1366 = vmatpush1.msra.mxu0 %v1346
    %1367 = vmatprep.subr.mxu0 0.0
    %1368 = vmatpush1.msra.mxu0 %v1347
    %1369 = vmatprep.subr.mxu0 0.0
    %1370 = vmatpush1.msra.mxu0 %v1348
    %1371 = vmatprep.subr.mxu0 0.0
    %1372 = vmatpush1.msra.mxu0 %v1349
    %1373 = vmatprep.subr.mxu0 0.0
    %1374 = vmatpush1.msra.mxu0 %v1350
    %1375 = vmatprep.subr.mxu0 0.0
    %1376 = vmatpush1.msra.mxu0 %v1351
    %1377 = vmatprep.subr.mxu0 0.0
    %1378 = vmatpush1.msra.mxu0 %v1352
    %1379 = vmatprep.subr.mxu0 0.0
    %1380 = vmatpush1.msra.mxu0 %v1353
    %1381 = vmatprep.subr.mxu0 0.0
    %1382 = vmatpush1.msra.mxu0 %v1354
    %1383 = vmatprep.subr.mxu0 0.0
    %1384 = vmatpush1.msra.mxu0 %v1355
    %1385 = vmatprep.subr.mxu0 0.0
    %1386 = vmatpush1.msra.mxu0 %v1356
    %1387 = vmatprep.subr.mxu0 0.0
    %1388 = vmatpush1.msra.mxu0 %v1357
    %1389 = vmatprep.subr.mxu0 0.0
    %1390 = vmatpush1.msra.mxu0 %v1358
    %1391 = vmatprep.subr.mxu0 0.0
    %1392 = vmatpush1.msra.mxu0 0.0
    %1393 = vmatprep.subr.mxu0 0.0
    %1394 = vmatpush1.msra.mxu0 0.0
    %1395 = vmatprep.subr.mxu0 0.0
    %1396 = vmatpush1.msra.mxu0 0.0
    %1397 = vmatprep.subr.mxu0 0.0
    %1398 = vmatpush1.msra.mxu0 0.0
    %1399 = vmatprep.subr.mxu0 0.0
    %1400 = vmatpush1.msra.mxu0 0.0
    %1401 = vmatprep.subr.mxu0 0.0
    %1402 = vmatpush1.msra.mxu0 0.0
    %1403 = vmatprep.subr.mxu0 0.0
    %1404 = vmatpush1.msra.mxu0 0.0
    %1405 = vmatprep.subr.mxu0 0.0
    %1406 = vmatpush1.msra.mxu0 0.0
    %1407 = vmatprep.subr.mxu0 0.0
    %1408 = vmatpush1.msra.mxu0 0.0
    %1409 = vmatprep.subr.mxu0 0.0
    %1410 = vmatpush1.msra.mxu0 0.0
    %1411 = vmatprep.subr.mxu0 0.0
    %1412 = vmatpush1.msra.mxu0 0.0
    %1413 = vmatprep.subr.mxu0 0.0
    %1414 = vmatpush1.msra.mxu0 0.0
    %1415 = vmatprep.subr.mxu0 0.0
    %1416 = vmatpush1.msra.mxu0 0.0
    %1417 = vmatprep.subr.mxu0 0.0
    %1418 = vmatpush1.msra.mxu0 0.0
    %1419 = vmatprep.subr.mxu0 0.0
    %1420 = vmatpush1.msra.mxu0 0.0
    %1421 = vmatprep.subr.mxu0 0.0
    %1422 = vmatpush1.msra.mxu0 0.0
    %1423 = vmatprep.mubr.f32.mxu0 0.0
    %1424 = vmatmul.mubr.f32.gmra.mrb[0].mxu0 %v1342
    %v1425 = vpop.f32.mrb[0].mxu0
    %v1426 = vadd.f32 0.0, %v1425
    %v1427 = vpop.f32.mrb[0].mxu0
    %1428 = vdwg.mxu0
    %v1429 = vmax.f32 %v1426, 0.0
    %v1430 = vld [vmem:[#allocation7] sm:$0xff]
    %v1431 = vld [vmem:[#allocation7 + $0x8] sm:$0xff]
    %v1432 = vld [vmem:[#allocation7 + $0x10] sm:$0xff]
    %v1433 = vld [vmem:[#allocation7 + $0x18] sm:$0xff]
    %v1434 = vld [vmem:[#allocation7 + $0x20] sm:$0xff]
    %v1435 = vld [vmem:[#allocation7 + $0x28] sm:$0xff]
    %v1436 = vld [vmem:[#allocation7 + $0x30] sm:$0xff]
    %v1437 = vld [vmem:[#allocation7 + $0x38] sm:$0xff]
    %v1438 = vld [vmem:[#allocation7 + $0x40] sm:$0xff]
    %v1439 = vld [vmem:[#allocation7 + $0x48] sm:$0xff]
    %v1440 = vld [vmem:[#allocation7 + $0x50] sm:$0xff]
    %v1441 = vld [vmem:[#allocation7 + $0x58] sm:$0xff]
    %v1442 = vld [vmem:[#allocation7 + $0x60] sm:$0xff]
    %v1443 = vld [vmem:[#allocation7 + $0x68] sm:$0xff]
    %v1444 = vld [vmem:[#allocation7 + $0x70] sm:$0xff]
    %v1445 = vld [vmem:[#allocation7 + $0x78] sm:$0xff]
    %v1446 = vld [vmem:[#allocation7 + $0x80] sm:$0xff]
    %v1447 = vld [vmem:[#allocation7 + $0x88] sm:$0xff]
    %v1448 = vld [vmem:[#allocation7 + $0x90] sm:$0xff]
    %v1449 = vld [vmem:[#allocation7 + $0x98] sm:$0xff]
    %v1450 = vld [vmem:[#allocation7 + $0xa0] sm:$0xff]
    %v1451 = vld [vmem:[#allocation7 + $0xa8] sm:$0xff]
    %v1452 = vld [vmem:[#allocation7 + $0xb0] sm:$0xff]
    %v1453 = vld [vmem:[#allocation7 + $0xb8] sm:$0xff]
    %v1454 = vld [vmem:[#allocation7 + $0xc0] sm:$0xff]
    %v1455 = vld [vmem:[#allocation7 + $0xc8] sm:$0xff]
    %v1456 = vld [vmem:[#allocation7 + $0xd0] sm:$0xff]
    %v1457 = vld [vmem:[#allocation7 + $0xd8] sm:$0xff]
    %v1458 = vld [vmem:[#allocation7 + $0xe0] sm:$0xff]
    %v1459 = vld [vmem:[#allocation7 + $0xe8] sm:$0xff]
    %v1460 = vld [vmem:[#allocation7 + $0xf0] sm:$0xff]
    %v1461 = vld [vmem:[#allocation7 + $0xf8] sm:$0xff]
    %v1462 = vld [vmem:[#allocation7 + $0x100] sm:$0xff]
    %v1463 = vld [vmem:[#allocation7 + $0x108] sm:$0xff]
    %v1464 = vld [vmem:[#allocation7 + $0x110] sm:$0xff]
    %v1465 = vld [vmem:[#allocation7 + $0x118] sm:$0xff]
    %v1466 = vld [vmem:[#allocation7 + $0x120] sm:$0xff]
    %v1467 = vld [vmem:[#allocation7 + $0x128] sm:$0xff]
    %v1468 = vld [vmem:[#allocation7 + $0x130] sm:$0xff]
    %v1469 = vld [vmem:[#allocation7 + $0x138] sm:$0xff]
    %v1470 = vld [vmem:[#allocation7 + $0x140] sm:$0xff]
    %v1471 = vld [vmem:[#allocation7 + $0x148] sm:$0xff]
    %v1472 = vld [vmem:[#allocation7 + $0x150] sm:$0xff]
    %v1473 = vld [vmem:[#allocation7 + $0x158] sm:$0xff]
    %v1474 = vld [vmem:[#allocation7 + $0x160] sm:$0xff]
    %v1475 = vld [vmem:[#allocation7 + $0x168] sm:$0xff]
    %v1476 = vld [vmem:[#allocation7 + $0x170] sm:$0xff]
    %v1477 = vld [vmem:[#allocation7 + $0x178] sm:$0xff]
    %1478 = vmatprep.subr.mxu0 %v1431
    %1479 = vmatpush1.msra.mxu0 %v1430
    %1480 = vmatprep.subr.mxu0 %v1434
    %1481 = vmatpush1.msra.mxu0 %v1433
    %1482 = vmatprep.subr.mxu0 %v1437
    %1483 = vmatpush1.msra.mxu0 %v1436
    %1484 = vmatprep.subr.mxu0 %v1440
    %1485 = vmatpush1.msra.mxu0 %v1439
    %1486 = vmatprep.subr.mxu0 %v1443
    %1487 = vmatpush1.msra.mxu0 %v1442
    %1488 = vmatprep.subr.mxu0 %v1446
    %1489 = vmatpush1.msra.mxu0 %v1445
    %1490 = vmatprep.subr.mxu0 %v1449
    %1491 = vmatpush1.msra.mxu0 %v1448
    %1492 = vmatprep.subr.mxu0 %v1452
    %1493 = vmatpush1.msra.mxu0 %v1451
    %1494 = vmatprep.subr.mxu0 %v1455
    %1495 = vmatpush1.msra.mxu0 %v1454
    %1496 = vmatprep.subr.mxu0 %v1458
    %1497 = vmatpush1.msra.mxu0 %v1457
    %1498 = vmatprep.subr.mxu0 %v1461
    %1499 = vmatpush1.msra.mxu0 %v1460
    %1500 = vmatprep.subr.mxu0 %v1464
    %1501 = vmatpush1.msra.mxu0 %v1463
    %1502 = vmatprep.subr.mxu0 %v1467
    %1503 = vmatpush1.msra.mxu0 %v1466
    %1504 = vmatprep.subr.mxu0 %v1470
    %1505 = vmatpush1.msra.mxu0 %v1469
    %1506 = vmatprep.subr.mxu0 %v1473
    %1507 = vmatpush1.msra.mxu0 %v1472
    %1508 = vmatprep.subr.mxu0 %v1476
    %1509 = vmatpush1.msra.mxu0 %v1475
    %1510 = vmatprep.subr.mxu0 0.0
    %1511 = vmatpush1.msra.mxu0 0.0
    %1512 = vmatprep.subr.mxu0 0.0
    %1513 = vmatpush1.msra.mxu0 0.0
    %1514 = vmatprep.subr.mxu0 0.0
    %1515 = vmatpush1.msra.mxu0 0.0
    %1516 = vmatprep.subr.mxu0 0.0
    %1517 = vmatpush1.msra.mxu0 0.0
    %1518 = vmatprep.subr.mxu0 0.0
    %1519 = vmatpush1.msra.mxu0 0.0
    %1520 = vmatprep.subr.mxu0 0.0
    %1521 = vmatpush1.msra.mxu0 0.0
    %1522 = vmatprep.subr.mxu0 0.0
    %1523 = vmatpush1.msra.mxu0 0.0
    %1524 = vmatprep.subr.mxu0 0.0
    %1525 = vmatpush1.msra.mxu0 0.0
    %1526 = vmatprep.subr.mxu0 0.0
    %1527 = vmatpush1.msra.mxu0 0.0
    %1528 = vmatprep.subr.mxu0 0.0
    %1529 = vmatpush1.msra.mxu0 0.0
    %1530 = vmatprep.subr.mxu0 0.0
    %1531 = vmatpush1.msra.mxu0 0.0
    %1532 = vmatprep.subr.mxu0 0.0
    %1533 = vmatpush1.msra.mxu0 0.0
    %1534 = vmatprep.subr.mxu0 0.0
    %1535 = vmatpush1.msra.mxu0 0.0
    %1536 = vmatprep.subr.mxu0 0.0
    %1537 = vmatpush1.msra.mxu0 0.0
    %1538 = vmatprep.subr.mxu0 0.0
    %1539 = vmatpush1.msra.mxu0 0.0
    %1540 = vmatprep.subr.mxu0 0.0
    %1541 = vmatpush1.msra.mxu0 0.0
    %1542 = vmatprep.mubr.f32.mxu0 0.0
    %1543 = vmatmul.mubr.f32.gmra.mrb[0].mxu0 %v1429
    %v1544 = vpop.f32.mrb[0].mxu0
    %v1545 = vadd.f32 %v247, %v1544
    %v1546 = vpop.f32.mrb[0].mxu0
    %v1547 = vadd.f32 %v251, %v1546
    %1548 = vdwg.mxu0
    %1549 = vmatprep.subr.mxu0 0.0
    %1550 = vmatpush1.msra.mxu0 %v1432
    %1551 = vmatprep.subr.mxu0 0.0
    %1552 = vmatpush1.msra.mxu0 %v1435
    %1553 = vmatprep.subr.mxu0 0.0
    %1554 = vmatpush1.msra.mxu0 %v1438
    %1555 = vmatprep.subr.mxu0 0.0
    %1556 = vmatpush1.msra.mxu0 %v1441
    %1557 = vmatprep.subr.mxu0 0.0
    %1558 = vmatpush1.msra.mxu0 %v1444
    %1559 = vmatprep.subr.mxu0 0.0
    %1560 = vmatpush1.msra.mxu0 %v1447
    %1561 = vmatprep.subr.mxu0 0.0
    %1562 = vmatpush1.msra.mxu0 %v1450
    %1563 = vmatprep.subr.mxu0 0.0
    %1564 = vmatpush1.msra.mxu0 %v1453
    %1565 = vmatprep.subr.mxu0 0.0
    %1566 = vmatpush1.msra.mxu0 %v1456
    %1567 = vmatprep.subr.mxu0 0.0
    %1568 = vmatpush1.msra.mxu0 %v1459
    %1569 = vmatprep.subr.mxu0 0.0
    %1570 = vmatpush1.msra.mxu0 %v1462
    %1571 = vmatprep.subr.mxu0 0.0
    %1572 = vmatpush1.msra.mxu0 %v1465
    %1573 = vmatprep.subr.mxu0 0.0
    %1574 = vmatpush1.msra.mxu0 %v1468
    %1575 = vmatprep.subr.mxu0 0.0
    %1576 = vmatpush1.msra.mxu0 %v1471
    %1577 = vmatprep.subr.mxu0 0.0
    %1578 = vmatpush1.msra.mxu0 %v1474
    %1579 = vmatprep.subr.mxu0 0.0
    %1580 = vmatpush1.msra.mxu0 %v1477
    %1581 = vmatprep.subr.mxu0 0.0
    %1582 = vmatpush1.msra.mxu0 0.0
    %1583 = vmatprep.subr.mxu0 0.0
    %1584 = vmatpush1.msra.mxu0 0.0
    %1585 = vmatprep.subr.mxu0 0.0
    %1586 = vmatpush1.msra.mxu0 0.0
    %1587 = vmatprep.subr.mxu0 0.0
    %1588 = vmatpush1.msra.mxu0 0.0
    %1589 = vmatprep.subr.mxu0 0.0
    %1590 = vmatpush1.msra.mxu0 0.0
    %1591 = vmatprep.subr.mxu0 0.0
    %1592 = vmatpush1.msra.mxu0 0.0
    %1593 = vmatprep.subr.mxu0 0.0
    %1594 = vmatpush1.msra.mxu0 0.0
    %1595 = vmatprep.subr.mxu0 0.0
    %1596 = vmatpush1.msra.mxu0 0.0
    %1597 = vmatprep.subr.mxu0 0.0
    %1598 = vmatpush1.msra.mxu0 0.0
    %1599 = vmatprep.subr.mxu0 0.0
    %1600 = vmatpush1.msra.mxu0 0.0
    %1601 = vmatprep.subr.mxu0 0.0
    %1602 = vmatpush1.msra.mxu0 0.0
    %1603 = vmatprep.subr.mxu0 0.0
    %1604 = vmatpush1.msra.mxu0 0.0
    %1605 = vmatprep.subr.mxu0 0.0
    %1606 = vmatpush1.msra.mxu0 0.0
    %1607 = vmatprep.subr.mxu0 0.0
    %1608 = vmatpush1.msra.mxu0 0.0
    %1609 = vmatprep.subr.mxu0 0.0
    %1610 = vmatpush1.msra.mxu0 0.0
    %1611 = vmatprep.subr.mxu0 0.0
    %1612 = vmatpush1.msra.mxu0 0.0
    %1613 = vmatprep.mubr.f32.mxu0 0.0
    %1614 = vmatmul.mubr.f32.gmra.mrb[0].mxu0 %v1429
    %v1615 = vpop.f32.mrb[0].mxu0
    %v1616 = vadd.f32 %v255, %v1615
    %v1617 = vpop.f32.mrb[0].mxu0
    %1618 = vdwg.mxu0
    %v1619 = vld [vmem:[#allocation8] sm:$0xff]
    %v1620 = vld [vmem:[#allocation8 + $0x8] sm:$0xff]
    %v1621 = vld [vmem:[#allocation8 + $0x10] sm:$0xff]
    %v1622 = vld [vmem:[#allocation8 + $0x18] sm:$0xff]
    %v1623 = vld [vmem:[#allocation8 + $0x20] sm:$0xff]
    %v1624 = vld [vmem:[#allocation8 + $0x28] sm:$0xff]
    %v1625 = vld [vmem:[#allocation8 + $0x30] sm:$0xff]
    %v1626 = vld [vmem:[#allocation8 + $0x38] sm:$0xff]
    %v1627 = vld [vmem:[#allocation8 + $0x40] sm:$0xff]
    %v1628 = vld [vmem:[#allocation8 + $0x48] sm:$0xff]
    %v1629 = vld [vmem:[#allocation8 + $0x50] sm:$0xff]
    %v1630 = vld [vmem:[#allocation8 + $0x58] sm:$0xff]
    %v1631 = vld [vmem:[#allocation8 + $0x60] sm:$0xff]
    %v1632 = vld [vmem:[#allocation8 + $0x68] sm:$0xff]
    %v1633 = vld [vmem:[#allocation8 + $0x70] sm:$0xff]
    %v1634 = vld [vmem:[#allocation8 + $0x78] sm:$0xff]
    %v1635 = vld [vmem:[#allocation8 + $0x80] sm:$0xff]
    %v1636 = vld [vmem:[#allocation8 + $0x88] sm:$0xff]
    %v1637 = vld [vmem:[#allocation8 + $0x90] sm:$0xff]
    %v1638 = vld [vmem:[#allocation8 + $0x98] sm:$0xff]
    %v1639 = vld [vmem:[#allocation8 + $0xa0] sm:$0xff]
    %v1640 = vld [vmem:[#allocation8 + $0xa8] sm:$0xff]
    %v1641 = vld [vmem:[#allocation8 + $0xb0] sm:$0xff]
    %v1642 = vld [vmem:[#allocation8 + $0xb8] sm:$0xff]
    %v1643 = vld [vmem:[#allocation8 + $0xc0] sm:$0xff]
    %v1644 = vld [vmem:[#allocation8 + $0xc8] sm:$0xff]
    %v1645 = vld [vmem:[#allocation8 + $0xd0] sm:$0xff]
    %v1646 = vld [vmem:[#allocation8 + $0xd8] sm:$0xff]
    %v1647 = vld [vmem:[#allocation8 + $0xe0] sm:$0xff]
    %v1648 = vld [vmem:[#allocation8 + $0xe8] sm:$0xff]
    %v1649 = vld [vmem:[#allocation8 + $0xf0] sm:$0xff]
    %v1650 = vld [vmem:[#allocation8 + $0xf8] sm:$0xff]
    %v1651 = vld [vmem:[#allocation8 + $0x100] sm:$0xff]
    %v1652 = vld [vmem:[#allocation8 + $0x108] sm:$0xff]
    %v1653 = vld [vmem:[#allocation8 + $0x110] sm:$0xff]
    %v1654 = vld [vmem:[#allocation8 + $0x118] sm:$0xff]
    %v1655 = vld [vmem:[#allocation8 + $0x120] sm:$0xff]
    %v1656 = vld [vmem:[#allocation8 + $0x128] sm:$0xff]
    %v1657 = vld [vmem:[#allocation8 + $0x130] sm:$0xff]
    %v1658 = vld [vmem:[#allocation8 + $0x138] sm:$0xff]
    %v1659 = vld [vmem:[#allocation8 + $0x140] sm:$0xff]
    %v1660 = vld [vmem:[#allocation8 + $0x148] sm:$0xff]
    %v1661 = vld [vmem:[#allocation8 + $0x150] sm:$0xff]
    %v1662 = vld [vmem:[#allocation8 + $0x158] sm:$0xff]
    %v1663 = vld [vmem:[#allocation8 + $0x160] sm:$0xff]
    %v1664 = vld [vmem:[#allocation8 + $0x168] sm:$0xff]
    %v1665 = vld [vmem:[#allocation8 + $0x170] sm:$0xff]
    %v1666 = vld [vmem:[#allocation8 + $0x178] sm:$0xff]
    %1667 = vmatprep.subr.mxu0 %v1620
    %1668 = vmatpush1.msra.mxu0 %v1619
    %1669 = vmatprep.subr.mxu0 %v1623
    %1670 = vmatpush1.msra.mxu0 %v1622
    %1671 = vmatprep.subr.mxu0 %v1626
    %1672 = vmatpush1.msra.mxu0 %v1625
    %1673 = vmatprep.subr.mxu0 %v1629
    %1674 = vmatpush1.msra.mxu0 %v1628
    %1675 = vmatprep.subr.mxu0 %v1632
    %1676 = vmatpush1.msra.mxu0 %v1631
    %1677 = vmatprep.subr.mxu0 %v1635
    %1678 = vmatpush1.msra.mxu0 %v1634
    %1679 = vmatprep.subr.mxu0 %v1638
    %1680 = vmatpush1.msra.mxu0 %v1637
    %1681 = vmatprep.subr.mxu0 %v1641
    %1682 = vmatpush1.msra.mxu0 %v1640
    %1683 = vmatprep.subr.mxu0 %v1644
    %1684 = vmatpush1.msra.mxu0 %v1643
    %1685 = vmatprep.subr.mxu0 %v1647
    %1686 = vmatpush1.msra.mxu0 %v1646
    %1687 = vmatprep.subr.mxu0 %v1650
    %1688 = vmatpush1.msra.mxu0 %v1649
    %1689 = vmatprep.subr.mxu0 %v1653
    %1690 = vmatpush1.msra.mxu0 %v1652
    %1691 = vmatprep.subr.mxu0 %v1656
    %1692 = vmatpush1.msra.mxu0 %v1655
    %1693 = vmatprep.subr.mxu0 %v1659
    %1694 = vmatpush1.msra.mxu0 %v1658
    %1695 = vmatprep.subr.mxu0 %v1662
    %1696 = vmatpush1.msra.mxu0 %v1661
    %1697 = vmatprep.subr.mxu0 %v1665
    %1698 = vmatpush1.msra.mxu0 %v1664
    %1699 = vmatprep.subr.mxu0 0.0
    %1700 = vmatpush1.msra.mxu0 0.0
    %1701 = vmatprep.subr.mxu0 0.0
    %1702 = vmatpush1.msra.mxu0 0.0
    %1703 = vmatprep.subr.mxu0 0.0
    %1704 = vmatpush1.msra.mxu0 0.0
    %1705 = vmatprep.subr.mxu0 0.0
    %1706 = vmatpush1.msra.mxu0 0.0
    %1707 = vmatprep.subr.mxu0 0.0
    %1708 = vmatpush1.msra.mxu0 0.0
    %1709 = vmatprep.subr.mxu0 0.0
    %1710 = vmatpush1.msra.mxu0 0.0
    %1711 = vmatprep.subr.mxu0 0.0
    %1712 = vmatpush1.msra.mxu0 0.0
    %1713 = vmatprep.subr.mxu0 0.0
    %1714 = vmatpush1.msra.mxu0 0.0
    %1715 = vmatprep.subr.mxu0 0.0
    %1716 = vmatpush1.msra.mxu0 0.0
    %1717 = vmatprep.subr.mxu0 0.0
    %1718 = vmatpush1.msra.mxu0 0.0
    %1719 = vmatprep.subr.mxu0 0.0
    %1720 = vmatpush1.msra.mxu0 0.0
    %1721 = vmatprep.subr.mxu0 0.0
    %1722 = vmatpush1.msra.mxu0 0.0
    %1723 = vmatprep.subr.mxu0 0.0
    %1724 = vmatpush1.msra.mxu0 0.0
    %1725 = vmatprep.subr.mxu0 0.0
    %1726 = vmatpush1.msra.mxu0 0.0
    %1727 = vmatprep.subr.mxu0 0.0
    %1728 = vmatpush1.msra.mxu0 0.0
    %1729 = vmatprep.subr.mxu0 0.0
    %1730 = vmatpush1.msra.mxu0 0.0
    %1731 = vmatprep.mubr.f32.mxu0 0.0
    %1732 = vmatmul.mubr.f32.gmra.mrb[0].mxu0 %v1224
    %v1733 = vpop.f32.mrb[0].mxu0
    %v1734 = vadd.f32 0.0, %v1733
    %v1735 = vpop.f32.mrb[0].mxu0
    %v1736 = vadd.f32 0.0, %v1735
    %1737 = vdwg.mxu0
    %1738 = vmatprep.subr.mxu0 0.0
    %1739 = vmatpush1.msra.mxu0 %v1621
    %1740 = vmatprep.subr.mxu0 0.0
    %1741 = vmatpush1.msra.mxu0 %v1624
    %1742 = vmatprep.subr.mxu0 0.0
    %1743 = vmatpush1.msra.mxu0 %v1627
    %1744 = vmatprep.subr.mxu0 0.0
    %1745 = vmatpush1.msra.mxu0 %v1630
    %1746 = vmatprep.subr.mxu0 0.0
    %1747 = vmatpush1.msra.mxu0 %v1633
    %1748 = vmatprep.subr.mxu0 0.0
    %1749 = vmatpush1.msra.mxu0 %v1636
    %1750 = vmatprep.subr.mxu0 0.0
    %1751 = vmatpush1.msra.mxu0 %v1639
    %1752 = vmatprep.subr.mxu0 0.0
    %1753 = vmatpush1.msra.mxu0 %v1642
    %1754 = vmatprep.subr.mxu0 0.0
    %1755 = vmatpush1.msra.mxu0 %v1645
    %1756 = vmatprep.subr.mxu0 0.0
    %1757 = vmatpush1.msra.mxu0 %v1648
    %1758 = vmatprep.subr.mxu0 0.0
    %1759 = vmatpush1.msra.mxu0 %v1651
    %1760 = vmatprep.subr.mxu0 0.0
    %1761 = vmatpush1.msra.mxu0 %v1654
    %1762 = vmatprep.subr.mxu0 0.0
    %1763 = vmatpush1.msra.mxu0 %v1657
    %1764 = vmatprep.subr.mxu0 0.0
    %1765 = vmatpush1.msra.mxu0 %v1660
    %1766 = vmatprep.subr.mxu0 0.0
    %1767 = vmatpush1.msra.mxu0 %v1663
    %1768 = vmatprep.subr.mxu0 0.0
    %1769 = vmatpush1.msra.mxu0 %v1666
    %1770 = vmatprep.subr.mxu0 0.0
    %1771 = vmatpush1.msra.mxu0 0.0
    %1772 = vmatprep.subr.mxu0 0.0
    %1773 = vmatpush1.msra.mxu0 0.0
    %1774 = vmatprep.subr.mxu0 0.0
    %1775 = vmatpush1.msra.mxu0 0.0
    %1776 = vmatprep.subr.mxu0 0.0
    %1777 = vmatpush1.msra.mxu0 0.0
    %1778 = vmatprep.subr.mxu0 0.0
    %1779 = vmatpush1.msra.mxu0 0.0
    %1780 = vmatprep.subr.mxu0 0.0
    %1781 = vmatpush1.msra.mxu0 0.0
    %1782 = vmatprep.subr.mxu0 0.0
    %1783 = vmatpush1.msra.mxu0 0.0
    %1784 = vmatprep.subr.mxu0 0.0
    %1785 = vmatpush1.msra.mxu0 0.0
    %1786 = vmatprep.subr.mxu0 0.0
    %1787 = vmatpush1.msra.mxu0 0.0
    %1788 = vmatprep.subr.mxu0 0.0
    %1789 = vmatpush1.msra.mxu0 0.0
    %1790 = vmatprep.subr.mxu0 0.0
    %1791 = vmatpush1.msra.mxu0 0.0
    %1792 = vmatprep.subr.mxu0 0.0
    %1793 = vmatpush1.msra.mxu0 0.0
    %1794 = vmatprep.subr.mxu0 0.0
    %1795 = vmatpush1.msra.mxu0 0.0
    %1796 = vmatprep.subr.mxu0 0.0
    %1797 = vmatpush1.msra.mxu0 0.0
    %1798 = vmatprep.subr.mxu0 0.0
    %1799 = vmatpush1.msra.mxu0 0.0
    %1800 = vmatprep.subr.mxu0 0.0
    %1801 = vmatpush1.msra.mxu0 0.0
    %1802 = vmatprep.mubr.f32.mxu0 0.0
    %1803 = vmatmul.mubr.f32.gmra.mrb[0].mxu0 %v1224
    %v1804 = vpop.f32.mrb[0].mxu0
    %v1805 = vadd.f32 0.0, %v1804
    %v1806 = vpop.f32.mrb[0].mxu0
    %1807 = vdwg.mxu0
    %v1808 = vadd.f32 %v1545, %v1734
    %v1809 = vxor.u32 %v1808, 2147483648
    %v1810 = vmul.f32 %v1809, 1.442695
    %v1811 = vpow.pop %v1810
    %v1812 = vadd.f32 %v1811, 1.0
    %v1813 = vrcp.pop %v1812
    %v1814 = vmul.f32 1.0, %v1813
    %v1815 = vadd.f32 %v1547, %v1736
    %v1816 = vxor.u32 %v1815, 2147483648
    %v1817 = vmul.f32 %v1816, 1.442695
    %v1818 = vpow.pop %v1817
    %v1819 = vadd.f32 %v1818, 1.0
    %v1820 = vrcp.pop %v1819
    %v1821 = vmul.f32 1.0, %v1820
    %v1822 = vadd.f32 %v1805, %v607
    %v1823 = vmul.f32 %v1814, %v1822
    %v1824 = vadd.f32 %v1616, %v1823
    %v1825 = vtanh.pop %v1824
    %v1826 = vsub.f32 %v1224, %v1825
    %v1827 = vmul.f32 %v1821, %v1826
    %v1828 = vadd.f32 %v1825, %v1827
    %v1829 = vld [vmem:[#allocation10] sm:$0xff]
    %v1830 = vld [vmem:[#allocation10 + $0x8] sm:$0xff]
    %v1831 = vld [vmem:[#allocation10 + $0x10] sm:$0xff]
    %v1832 = vld [vmem:[#allocation10 + $0x18] sm:$0xff]
    %v1833 = vld [vmem:[#allocation10 + $0x20] sm:$0xff]
    %v1834 = vld [vmem:[#allocation10 + $0x28] sm:$0xff]
    %v1835 = vld [vmem:[#allocation10 + $0x30] sm:$0xff]
    %v1836 = vld [vmem:[#allocation10 + $0x38] sm:$0xff]
    %v1837 = vld [vmem:[#allocation10 + $0x40] sm:$0xff]
    %v1838 = vld [vmem:[#allocation10 + $0x48] sm:$0xff]
    %v1839 = vld [vmem:[#allocation10 + $0x50] sm:$0xff]
    %v1840 = vld [vmem:[#allocation10 + $0x58] sm:$0xff]
    %v1841 = vld [vmem:[#allocation10 + $0x60] sm:$0xff]
    %v1842 = vld [vmem:[#allocation10 + $0x68] sm:$0xff]
    %v1843 = vld [vmem:[#allocation10 + $0x70] sm:$0xff]
    %v1844 = vld [vmem:[#allocation10 + $0x78] sm:$0xff]
    %1845 = vmatprep.subr.mxu0 0.0
    %1846 = vmatpush1.msra.mxu0 %v1829
    %1847 = vmatprep.subr.mxu0 0.0
    %1848 = vmatpush1.msra.mxu0 %v1830
    %1849 = vmatprep.subr.mxu0 0.0
    %1850 = vmatpush1.msra.mxu0 %v1831
    %1851 = vmatprep.subr.mxu0 0.0
    %1852 = vmatpush1.msra.mxu0 %v1832
    %1853 = vmatprep.subr.mxu0 0.0
    %1854 = vmatpush1.msra.mxu0 %v1833
    %1855 = vmatprep.subr.mxu0 0.0
    %1856 = vmatpush1.msra.mxu0 %v1834
    %1857 = vmatprep.subr.mxu0 0.0
    %1858 = vmatpush1.msra.mxu0 %v1835
    %1859 = vmatprep.subr.mxu0 0.0
    %1860 = vmatpush1.msra.mxu0 %v1836
    %1861 = vmatprep.subr.mxu0 0.0
    %1862 = vmatpush1.msra.mxu0 %v1837
    %1863 = vmatprep.subr.mxu0 0.0
    %1864 = vmatpush1.msra.mxu0 %v1838
    %1865 = vmatprep.subr.mxu0 0.0
    %1866 = vmatpush1.msra.mxu0 %v1839
    %1867 = vmatprep.subr.mxu0 0.0
    %1868 = vmatpush1.msra.mxu0 %v1840
    %1869 = vmatprep.subr.mxu0 0.0
    %1870 = vmatpush1.msra.mxu0 %v1841
    %1871 = vmatprep.subr.mxu0 0.0
    %1872 = vmatpush1.msra.mxu0 %v1842
    %1873 = vmatprep.subr.mxu0 0.0
    %1874 = vmatpush1.msra.mxu0 %v1843
    %1875 = vmatprep.subr.mxu0 0.0
    %1876 = vmatpush1.msra.mxu0 %v1844
    %1877 = vmatprep.subr.mxu0 0.0
    %1878 = vmatpush1.msra.mxu0 0.0
    %1879 = vmatprep.subr.mxu0 0.0
    %1880 = vmatpush1.msra.mxu0 0.0
    %1881 = vmatprep.subr.mxu0 0.0
    %1882 = vmatpush1.msra.mxu0 0.0
    %1883 = vmatprep.subr.mxu0 0.0
    %1884 = vmatpush1.msra.mxu0 0.0
    %1885 = vmatprep.subr.mxu0 0.0
    %1886 = vmatpush1.msra.mxu0 0.0
    %1887 = vmatprep.subr.mxu0 0.0
    %1888 = vmatpush1.msra.mxu0 0.0
    %1889 = vmatprep.subr.mxu0 0.0
    %1890 = vmatpush1.msra.mxu0 0.0
    %1891 = vmatprep.subr.mxu0 0.0
    %1892 = vmatpush1.msra.mxu0 0.0
    %1893 = vmatprep.subr.mxu0 0.0
    %1894 = vmatpush1.msra.mxu0 0.0
    %1895 = vmatprep.subr.mxu0 0.0
    %1896 = vmatpush1.msra.mxu0 0.0
    %1897 = vmatprep.subr.mxu0 0.0
    %1898 = vmatpush1.msra.mxu0 0.0
    %1899 = vmatprep.subr.mxu0 0.0
    %1900 = vmatpush1.msra.mxu0 0.0
    %1901 = vmatprep.subr.mxu0 0.0
    %1902 = vmatpush1.msra.mxu0 0.0
    %1903 = vmatprep.subr.mxu0 0.0
    %1904 = vmatpush1.msra.mxu0 0.0
    %1905 = vmatprep.subr.mxu0 0.0
    %1906 = vmatpush1.msra.mxu0 0.0
    %1907 = vmatprep.subr.mxu0 0.0
    %1908 = vmatpush1.msra.mxu0 0.0
    %1909 = vmatprep.mubr.f32.mxu0 0.0
    %1910 = vmatmul.mubr.f32.gmra.mrb[0].mxu0 %v1828
    %v1911 = vpop.f32.mrb[0].mxu0
    %v1912 = vadd.f32 %v636, %v1911
    %v1913 = vpop.f32.mrb[0].mxu0
    %1914 = vdwg.mxu0
    %1915 = vmax.xlane.f32.xlu0 %v1912
    %v1916 = vpop.xlane.xlu0 %1915
    %vm1917 = vcmp.eq.f32.partialorder %v1912, %v1916
    %v1918 = vsel %vm1917, %v100, 128
    %v1919 = vand.u32 %v1918, 65535
    %v1920 = vshra.s32 %v1918, 16
    %v1921 = vcvt.s32.f32 %v1919
    %v1922 = vcvt.s32.f32 %v1920
    %1923 = vmin.xlane.f32.xlu0 %v1922
    %v1924 = vpop.xlane.xlu0 %1923
    %vm1925 = vcmp.eq.f32.partialorder %v1922, %v1924
    %v1926 = vsel %vm1925, %v1921, inf
    %1927 = vmin.xlane.f32.xlu0 %v1926
    %v1928 = vpop.xlane.xlu0 %1927
    %v1929 = vcvt.f32.s32 %v1928
    %v1930 = vcvt.f32.s32 %v1924
    %v1931 = vshll.u32 %v1930, 16
    %v1932 = vadd.s32 %v1931, %v1929
    %v1933 = vsub.f32 %v1912, %v1916
    %v1934 = vmul.f32 %v1933, 1.442695
    %v1935 = vpow.pop %v1934
    %1936 = vadd.xlane.f32.xlu0 %v1935
    %v1937 = vpop.xlane.xlu0 %1936
    %v1938 = vlog2.pop %v1937
    %v1939 = vmul.f32 %v1938, 0.6931472
    %v1940 = vadd.f32 %v1916, %v1939
    %v1941 = vsub.f32 %v1912, %v1940
    %s1942 = scalar_lea.vmem [#allocation11], 16
    %1943 = vst [vmem:[%s1942] sm:$0xff] %v1941
    %vm1944 = vcmp.eq.s32.totalorder %v100, %v1932
    %v1945 = vsel %vm1944, 1, 0
    %v1946 = vcvt.s32.f32 %v1945
    %v1947 = vld [vmem:[#allocation5] sm:$0xff]
    %v1948 = vld [vmem:[#allocation5 + $0x8] sm:$0xff]
    %v1949 = vld [vmem:[#allocation5 + $0x10] sm:$0xff]
    %v1950 = vld [vmem:[#allocation5 + $0x18] sm:$0xff]
    %v1951 = vld [vmem:[#allocation5 + $0x20] sm:$0xff]
    %v1952 = vld [vmem:[#allocation5 + $0x28] sm:$0xff]
    %v1953 = vld [vmem:[#allocation5 + $0x30] sm:$0xff]
    %v1954 = vld [vmem:[#allocation5 + $0x38] sm:$0xff]
    %v1955 = vld [vmem:[#allocation5 + $0x40] sm:$0xff]
    %v1956 = vld [vmem:[#allocation5 + $0x48] sm:$0xff]
    %v1957 = vld [vmem:[#allocation5 + $0x50] sm:$0xff]
    %v1958 = vld [vmem:[#allocation5 + $0x58] sm:$0xff]
    %v1959 = vld [vmem:[#allocation5 + $0x60] sm:$0xff]
    %v1960 = vld [vmem:[#allocation5 + $0x68] sm:$0xff]
    %v1961 = vld [vmem:[#allocation5 + $0x70] sm:$0xff]
    %v1962 = vld [vmem:[#allocation5 + $0x78] sm:$0xff]
    %1963 = vmatprep.subr.mxu0 0.0
    %1964 = vmatpush1.msra.mxu0 %v1947
    %1965 = vmatprep.subr.mxu0 0.0
    %1966 = vmatpush1.msra.mxu0 %v1948
    %1967 = vmatprep.subr.mxu0 0.0
    %1968 = vmatpush1.msra.mxu0 %v1949
    %1969 = vmatprep.subr.mxu0 0.0
    %1970 = vmatpush1.msra.mxu0 %v1950
    %1971 = vmatprep.subr.mxu0 0.0
    %1972 = vmatpush1.msra.mxu0 %v1951
    %1973 = vmatprep.subr.mxu0 0.0
    %1974 = vmatpush1.msra.mxu0 %v1952
    %1975 = vmatprep.subr.mxu0 0.0
    %1976 = vmatpush1.msra.mxu0 %v1953
    %1977 = vmatprep.subr.mxu0 0.0
    %1978 = vmatpush1.msra.mxu0 %v1954
    %1979 = vmatprep.subr.mxu0 0.0
    %1980 = vmatpush1.msra.mxu0 %v1955
    %1981 = vmatprep.subr.mxu0 0.0
    %1982 = vmatpush1.msra.mxu0 %v1956
    %1983 = vmatprep.subr.mxu0 0.0
    %1984 = vmatpush1.msra.mxu0 %v1957
    %1985 = vmatprep.subr.mxu0 0.0
    %1986 = vmatpush1.msra.mxu0 %v1958
    %1987 = vmatprep.subr.mxu0 0.0
    %1988 = vmatpush1.msra.mxu0 %v1959
    %1989 = vmatprep.subr.mxu0 0.0
    %1990 = vmatpush1.msra.mxu0 %v1960
    %1991 = vmatprep.subr.mxu0 0.0
    %1992 = vmatpush1.msra.mxu0 %v1961
    %1993 = vmatprep.subr.mxu0 0.0
    %1994 = vmatpush1.msra.mxu0 %v1962
    %1995 = vmatprep.subr.mxu0 0.0
    %1996 = vmatpush1.msra.mxu0 0.0
    %1997 = vmatprep.subr.mxu0 0.0
    %1998 = vmatpush1.msra.mxu0 0.0
    %1999 = vmatprep.subr.mxu0 0.0
    %2000 = vmatpush1.msra.mxu0 0.0
    %2001 = vmatprep.subr.mxu0 0.0
    %2002 = vmatpush1.msra.mxu0 0.0
    %2003 = vmatprep.subr.mxu0 0.0
    %2004 = vmatpush1.msra.mxu0 0.0
    %2005 = vmatprep.subr.mxu0 0.0
    %2006 = vmatpush1.msra.mxu0 0.0
    %2007 = vmatprep.subr.mxu0 0.0
    %2008 = vmatpush1.msra.mxu0 0.0
    %2009 = vmatprep.subr.mxu0 0.0
    %2010 = vmatpush1.msra.mxu0 0.0
    %2011 = vmatprep.subr.mxu0 0.0
    %2012 = vmatpush1.msra.mxu0 0.0
    %2013 = vmatprep.subr.mxu0 0.0
    %2014 = vmatpush1.msra.mxu0 0.0
    %2015 = vmatprep.subr.mxu0 0.0
    %2016 = vmatpush1.msra.mxu0 0.0
    %2017 = vmatprep.subr.mxu0 0.0
    %2018 = vmatpush1.msra.mxu0 0.0
    %2019 = vmatprep.subr.mxu0 0.0
    %2020 = vmatpush1.msra.mxu0 0.0
    %2021 = vmatprep.subr.mxu0 0.0
    %2022 = vmatpush1.msra.mxu0 0.0
    %2023 = vmatprep.subr.mxu0 0.0
    %2024 = vmatpush1.msra.mxu0 0.0
    %2025 = vmatprep.subr.mxu0 0.0
    %2026 = vmatpush1.msra.mxu0 0.0
    %2027 = vmatprep.mubr.f32.mxu0 0.0
    %2028 = vmatmul.mubr.f32.gmra.mrb[0].mxu0 %v1946
    %v2029 = vpop.f32.mrb[0].mxu0
    %v2030 = vadd.f32 0.0, %v2029
    %v2031 = vpop.f32.mrb[0].mxu0
    %2032 = vdwg.mxu0
    %v2033 = vmax.f32 %v2030, 0.0
    %v2034 = vld [vmem:[#allocation7] sm:$0xff]
    %v2035 = vld [vmem:[#allocation7 + $0x8] sm:$0xff]
    %v2036 = vld [vmem:[#allocation7 + $0x10] sm:$0xff]
    %v2037 = vld [vmem:[#allocation7 + $0x18] sm:$0xff]
    %v2038 = vld [vmem:[#allocation7 + $0x20] sm:$0xff]
    %v2039 = vld [vmem:[#allocation7 + $0x28] sm:$0xff]
    %v2040 = vld [vmem:[#allocation7 + $0x30] sm:$0xff]
    %v2041 = vld [vmem:[#allocation7 + $0x38] sm:$0xff]
    %v2042 = vld [vmem:[#allocation7 + $0x40] sm:$0xff]
    %v2043 = vld [vmem:[#allocation7 + $0x48] sm:$0xff]
    %v2044 = vld [vmem:[#allocation7 + $0x50] sm:$0xff]
    %v2045 = vld [vmem:[#allocation7 + $0x58] sm:$0xff]
    %v2046 = vld [vmem:[#allocation7 + $0x60] sm:$0xff]
    %v2047 = vld [vmem:[#allocation7 + $0x68] sm:$0xff]
    %v2048 = vld [vmem:[#allocation7 + $0x70] sm:$0xff]
    %v2049 = vld [vmem:[#allocation7 + $0x78] sm:$0xff]
    %v2050 = vld [vmem:[#allocation7 + $0x80] sm:$0xff]
    %v2051 = vld [vmem:[#allocation7 + $0x88] sm:$0xff]
    %v2052 = vld [vmem:[#allocation7 + $0x90] sm:$0xff]
    %v2053 = vld [vmem:[#allocation7 + $0x98] sm:$0xff]
    %v2054 = vld [vmem:[#allocation7 + $0xa0] sm:$0xff]
    %v2055 = vld [vmem:[#allocation7 + $0xa8] sm:$0xff]
    %v2056 = vld [vmem:[#allocation7 + $0xb0] sm:$0xff]
    %v2057 = vld [vmem:[#allocation7 + $0xb8] sm:$0xff]
    %v2058 = vld [vmem:[#allocation7 + $0xc0] sm:$0xff]
    %v2059 = vld [vmem:[#allocation7 + $0xc8] sm:$0xff]
    %v2060 = vld [vmem:[#allocation7 + $0xd0] sm:$0xff]
    %v2061 = vld [vmem:[#allocation7 + $0xd8] sm:$0xff]
    %v2062 = vld [vmem:[#allocation7 + $0xe0] sm:$0xff]
    %v2063 = vld [vmem:[#allocation7 + $0xe8] sm:$0xff]
    %v2064 = vld [vmem:[#allocation7 + $0xf0] sm:$0xff]
    %v2065 = vld [vmem:[#allocation7 + $0xf8] sm:$0xff]
    %v2066 = vld [vmem:[#allocation7 + $0x100] sm:$0xff]
    %v2067 = vld [vmem:[#allocation7 + $0x108] sm:$0xff]
    %v2068 = vld [vmem:[#allocation7 + $0x110] sm:$0xff]
    %v2069 = vld [vmem:[#allocation7 + $0x118] sm:$0xff]
    %v2070 = vld [vmem:[#allocation7 + $0x120] sm:$0xff]
    %v2071 = vld [vmem:[#allocation7 + $0x128] sm:$0xff]
    %v2072 = vld [vmem:[#allocation7 + $0x130] sm:$0xff]
    %v2073 = vld [vmem:[#allocation7 + $0x138] sm:$0xff]
    %v2074 = vld [vmem:[#allocation7 + $0x140] sm:$0xff]
    %v2075 = vld [vmem:[#allocation7 + $0x148] sm:$0xff]
    %v2076 = vld [vmem:[#allocation7 + $0x150] sm:$0xff]
    %v2077 = vld [vmem:[#allocation7 + $0x158] sm:$0xff]
    %v2078 = vld [vmem:[#allocation7 + $0x160] sm:$0xff]
    %v2079 = vld [vmem:[#allocation7 + $0x168] sm:$0xff]
    %v2080 = vld [vmem:[#allocation7 + $0x170] sm:$0xff]
    %v2081 = vld [vmem:[#allocation7 + $0x178] sm:$0xff]
    %2082 = vmatprep.subr.mxu0 %v2035
    %2083 = vmatpush1.msra.mxu0 %v2034
    %2084 = vmatprep.subr.mxu0 %v2038
    %2085 = vmatpush1.msra.mxu0 %v2037
    %2086 = vmatprep.subr.mxu0 %v2041
    %2087 = vmatpush1.msra.mxu0 %v2040
    %2088 = vmatprep.subr.mxu0 %v2044
    %2089 = vmatpush1.msra.mxu0 %v2043
    %2090 = vmatprep.subr.mxu0 %v2047
    %2091 = vmatpush1.msra.mxu0 %v2046
    %2092 = vmatprep.subr.mxu0 %v2050
    %2093 = vmatpush1.msra.mxu0 %v2049
    %2094 = vmatprep.subr.mxu0 %v2053
    %2095 = vmatpush1.msra.mxu0 %v2052
    %2096 = vmatprep.subr.mxu0 %v2056
    %2097 = vmatpush1.msra.mxu0 %v2055
    %2098 = vmatprep.subr.mxu0 %v2059
    %2099 = vmatpush1.msra.mxu0 %v2058
    %2100 = vmatprep.subr.mxu0 %v2062
    %2101 = vmatpush1.msra.mxu0 %v2061
    %2102 = vmatprep.subr.mxu0 %v2065
    %2103 = vmatpush1.msra.mxu0 %v2064
    %2104 = vmatprep.subr.mxu0 %v2068
    %2105 = vmatpush1.msra.mxu0 %v2067
    %2106 = vmatprep.subr.mxu0 %v2071
    %2107 = vmatpush1.msra.mxu0 %v2070
    %2108 = vmatprep.subr.mxu0 %v2074
    %2109 = vmatpush1.msra.mxu0 %v2073
    %2110 = vmatprep.subr.mxu0 %v2077
    %2111 = vmatpush1.msra.mxu0 %v2076
    %2112 = vmatprep.subr.mxu0 %v2080
    %2113 = vmatpush1.msra.mxu0 %v2079
    %2114 = vmatprep.subr.mxu0 0.0
    %2115 = vmatpush1.msra.mxu0 0.0
    %2116 = vmatprep.subr.mxu0 0.0
    %2117 = vmatpush1.msra.mxu0 0.0
    %2118 = vmatprep.subr.mxu0 0.0
    %2119 = vmatpush1.msra.mxu0 0.0
    %2120 = vmatprep.subr.mxu0 0.0
    %2121 = vmatpush1.msra.mxu0 0.0
    %2122 = vmatprep.subr.mxu0 0.0
    %2123 = vmatpush1.msra.mxu0 0.0
    %2124 = vmatprep.subr.mxu0 0.0
    %2125 = vmatpush1.msra.mxu0 0.0
    %2126 = vmatprep.subr.mxu0 0.0
    %2127 = vmatpush1.msra.mxu0 0.0
    %2128 = vmatprep.subr.mxu0 0.0
    %2129 = vmatpush1.msra.mxu0 0.0
    %2130 = vmatprep.subr.mxu0 0.0
    %2131 = vmatpush1.msra.mxu0 0.0
    %2132 = vmatprep.subr.mxu0 0.0
    %2133 = vmatpush1.msra.mxu0 0.0
    %2134 = vmatprep.subr.mxu0 0.0
    %2135 = vmatpush1.msra.mxu0 0.0
    %2136 = vmatprep.subr.mxu0 0.0
    %2137 = vmatpush1.msra.mxu0 0.0
    %2138 = vmatprep.subr.mxu0 0.0
    %2139 = vmatpush1.msra.mxu0 0.0
    %2140 = vmatprep.subr.mxu0 0.0
    %2141 = vmatpush1.msra.mxu0 0.0
    %2142 = vmatprep.subr.mxu0 0.0
    %2143 = vmatpush1.msra.mxu0 0.0
    %2144 = vmatprep.subr.mxu0 0.0
    %2145 = vmatpush1.msra.mxu0 0.0
    %2146 = vmatprep.mubr.f32.mxu0 0.0
    %2147 = vmatmul.mubr.f32.gmra.mrb[0].mxu0 %v2033
    %v2148 = vpop.f32.mrb[0].mxu0
    %v2149 = vadd.f32 %v247, %v2148
    %v2150 = vpop.f32.mrb[0].mxu0
    %v2151 = vadd.f32 %v251, %v2150
    %2152 = vdwg.mxu0
    %2153 = vmatprep.subr.mxu0 0.0
    %2154 = vmatpush1.msra.mxu0 %v2036
    %2155 = vmatprep.subr.mxu0 0.0
    %2156 = vmatpush1.msra.mxu0 %v2039
    %2157 = vmatprep.subr.mxu0 0.0
    %2158 = vmatpush1.msra.mxu0 %v2042
    %2159 = vmatprep.subr.mxu0 0.0
    %2160 = vmatpush1.msra.mxu0 %v2045
    %2161 = vmatprep.subr.mxu0 0.0
    %2162 = vmatpush1.msra.mxu0 %v2048
    %2163 = vmatprep.subr.mxu0 0.0
    %2164 = vmatpush1.msra.mxu0 %v2051
    %2165 = vmatprep.subr.mxu0 0.0
    %2166 = vmatpush1.msra.mxu0 %v2054
    %2167 = vmatprep.subr.mxu0 0.0
    %2168 = vmatpush1.msra.mxu0 %v2057
    %2169 = vmatprep.subr.mxu0 0.0
    %2170 = vmatpush1.msra.mxu0 %v2060
    %2171 = vmatprep.subr.mxu0 0.0
    %2172 = vmatpush1.msra.mxu0 %v2063
    %2173 = vmatprep.subr.mxu0 0.0
    %2174 = vmatpush1.msra.mxu0 %v2066
    %2175 = vmatprep.subr.mxu0 0.0
    %2176 = vmatpush1.msra.mxu0 %v2069
    %2177 = vmatprep.subr.mxu0 0.0
    %2178 = vmatpush1.msra.mxu0 %v2072
    %2179 = vmatprep.subr.mxu0 0.0
    %2180 = vmatpush1.msra.mxu0 %v2075
    %2181 = vmatprep.subr.mxu0 0.0
    %2182 = vmatpush1.msra.mxu0 %v2078
    %2183 = vmatprep.subr.mxu0 0.0
    %2184 = vmatpush1.msra.mxu0 %v2081
    %2185 = vmatprep.subr.mxu0 0.0
    %2186 = vmatpush1.msra.mxu0 0.0
    %2187 = vmatprep.subr.mxu0 0.0
    %2188 = vmatpush1.msra.mxu0 0.0
    %2189 = vmatprep.subr.mxu0 0.0
    %2190 = vmatpush1.msra.mxu0 0.0
    %2191 = vmatprep.subr.mxu0 0.0
    %2192 = vmatpush1.msra.mxu0 0.0
    %2193 = vmatprep.subr.mxu0 0.0
    %2194 = vmatpush1.msra.mxu0 0.0
    %2195 = vmatprep.subr.mxu0 0.0
    %2196 = vmatpush1.msra.mxu0 0.0
    %2197 = vmatprep.subr.mxu0 0.0
    %2198 = vmatpush1.msra.mxu0 0.0
    %2199 = vmatprep.subr.mxu0 0.0
    %2200 = vmatpush1.msra.mxu0 0.0
    %2201 = vmatprep.subr.mxu0 0.0
    %2202 = vmatpush1.msra.mxu0 0.0
    %2203 = vmatprep.subr.mxu0 0.0
    %2204 = vmatpush1.msra.mxu0 0.0
    %2205 = vmatprep.subr.mxu0 0.0
    %2206 = vmatpush1.msra.mxu0 0.0
    %2207 = vmatprep.subr.mxu0 0.0
    %2208 = vmatpush1.msra.mxu0 0.0
    %2209 = vmatprep.subr.mxu0 0.0
    %2210 = vmatpush1.msra.mxu0 0.0
    %2211 = vmatprep.subr.mxu0 0.0
    %2212 = vmatpush1.msra.mxu0 0.0
    %2213 = vmatprep.subr.mxu0 0.0
    %2214 = vmatpush1.msra.mxu0 0.0
    %2215 = vmatprep.subr.mxu0 0.0
    %2216 = vmatpush1.msra.mxu0 0.0
    %2217 = vmatprep.mubr.f32.mxu0 0.0
    %2218 = vmatmul.mubr.f32.gmra.mrb[0].mxu0 %v2033
    %v2219 = vpop.f32.mrb[0].mxu0
    %v2220 = vadd.f32 %v255, %v2219
    %v2221 = vpop.f32.mrb[0].mxu0
    %2222 = vdwg.mxu0
    %v2223 = vld [vmem:[#allocation8] sm:$0xff]
    %v2224 = vld [vmem:[#allocation8 + $0x8] sm:$0xff]
    %v2225 = vld [vmem:[#allocation8 + $0x10] sm:$0xff]
    %v2226 = vld [vmem:[#allocation8 + $0x18] sm:$0xff]
    %v2227 = vld [vmem:[#allocation8 + $0x20] sm:$0xff]
    %v2228 = vld [vmem:[#allocation8 + $0x28] sm:$0xff]
    %v2229 = vld [vmem:[#allocation8 + $0x30] sm:$0xff]
    %v2230 = vld [vmem:[#allocation8 + $0x38] sm:$0xff]
    %v2231 = vld [vmem:[#allocation8 + $0x40] sm:$0xff]
    %v2232 = vld [vmem:[#allocation8 + $0x48] sm:$0xff]
    %v2233 = vld [vmem:[#allocation8 + $0x50] sm:$0xff]
    %v2234 = vld [vmem:[#allocation8 + $0x58] sm:$0xff]
    %v2235 = vld [vmem:[#allocation8 + $0x60] sm:$0xff]
    %v2236 = vld [vmem:[#allocation8 + $0x68] sm:$0xff]
    %v2237 = vld [vmem:[#allocation8 + $0x70] sm:$0xff]
    %v2238 = vld [vmem:[#allocation8 + $0x78] sm:$0xff]
    %v2239 = vld [vmem:[#allocation8 + $0x80] sm:$0xff]
    %v2240 = vld [vmem:[#allocation8 + $0x88] sm:$0xff]
    %v2241 = vld [vmem:[#allocation8 + $0x90] sm:$0xff]
    %v2242 = vld [vmem:[#allocation8 + $0x98] sm:$0xff]
    %v2243 = vld [vmem:[#allocation8 + $0xa0] sm:$0xff]
    %v2244 = vld [vmem:[#allocation8 + $0xa8] sm:$0xff]
    %v2245 = vld [vmem:[#allocation8 + $0xb0] sm:$0xff]
    %v2246 = vld [vmem:[#allocation8 + $0xb8] sm:$0xff]
    %v2247 = vld [vmem:[#allocation8 + $0xc0] sm:$0xff]
    %v2248 = vld [vmem:[#allocation8 + $0xc8] sm:$0xff]
    %v2249 = vld [vmem:[#allocation8 + $0xd0] sm:$0xff]
    %v2250 = vld [vmem:[#allocation8 + $0xd8] sm:$0xff]
    %v2251 = vld [vmem:[#allocation8 + $0xe0] sm:$0xff]
    %v2252 = vld [vmem:[#allocation8 + $0xe8] sm:$0xff]
    %v2253 = vld [vmem:[#allocation8 + $0xf0] sm:$0xff]
    %v2254 = vld [vmem:[#allocation8 + $0xf8] sm:$0xff]
    %v2255 = vld [vmem:[#allocation8 + $0x100] sm:$0xff]
    %v2256 = vld [vmem:[#allocation8 + $0x108] sm:$0xff]
    %v2257 = vld [vmem:[#allocation8 + $0x110] sm:$0xff]
    %v2258 = vld [vmem:[#allocation8 + $0x118] sm:$0xff]
    %v2259 = vld [vmem:[#allocation8 + $0x120] sm:$0xff]
    %v2260 = vld [vmem:[#allocation8 + $0x128] sm:$0xff]
    %v2261 = vld [vmem:[#allocation8 + $0x130] sm:$0xff]
    %v2262 = vld [vmem:[#allocation8 + $0x138] sm:$0xff]
    %v2263 = vld [vmem:[#allocation8 + $0x140] sm:$0xff]
    %v2264 = vld [vmem:[#allocation8 + $0x148] sm:$0xff]
    %v2265 = vld [vmem:[#allocation8 + $0x150] sm:$0xff]
    %v2266 = vld [vmem:[#allocation8 + $0x158] sm:$0xff]
    %v2267 = vld [vmem:[#allocation8 + $0x160] sm:$0xff]
    %v2268 = vld [vmem:[#allocation8 + $0x168] sm:$0xff]
    %v2269 = vld [vmem:[#allocation8 + $0x170] sm:$0xff]
    %v2270 = vld [vmem:[#allocation8 + $0x178] sm:$0xff]
    %2271 = vmatprep.subr.mxu0 %v2224
    %2272 = vmatpush1.msra.mxu0 %v2223
    %2273 = vmatprep.subr.mxu0 %v2227
    %2274 = vmatpush1.msra.mxu0 %v2226
    %2275 = vmatprep.subr.mxu0 %v2230
    %2276 = vmatpush1.msra.mxu0 %v2229
    %2277 = vmatprep.subr.mxu0 %v2233
    %2278 = vmatpush1.msra.mxu0 %v2232
    %2279 = vmatprep.subr.mxu0 %v2236
    %2280 = vmatpush1.msra.mxu0 %v2235
    %2281 = vmatprep.subr.mxu0 %v2239
    %2282 = vmatpush1.msra.mxu0 %v2238
    %2283 = vmatprep.subr.mxu0 %v2242
    %2284 = vmatpush1.msra.mxu0 %v2241
    %2285 = vmatprep.subr.mxu0 %v2245
    %2286 = vmatpush1.msra.mxu0 %v2244
    %2287 = vmatprep.subr.mxu0 %v2248
    %2288 = vmatpush1.msra.mxu0 %v2247
    %2289 = vmatprep.subr.mxu0 %v2251
    %2290 = vmatpush1.msra.mxu0 %v2250
    %2291 = vmatprep.subr.mxu0 %v2254
    %2292 = vmatpush1.msra.mxu0 %v2253
    %2293 = vmatprep.subr.mxu0 %v2257
    %2294 = vmatpush1.msra.mxu0 %v2256
    %2295 = vmatprep.subr.mxu0 %v2260
    %2296 = vmatpush1.msra.mxu0 %v2259
    %2297 = vmatprep.subr.mxu0 %v2263
    %2298 = vmatpush1.msra.mxu0 %v2262
    %2299 = vmatprep.subr.mxu0 %v2266
    %2300 = vmatpush1.msra.mxu0 %v2265
    %2301 = vmatprep.subr.mxu0 %v2269
    %2302 = vmatpush1.msra.mxu0 %v2268
    %2303 = vmatprep.subr.mxu0 0.0
    %2304 = vmatpush1.msra.mxu0 0.0
    %2305 = vmatprep.subr.mxu0 0.0
    %2306 = vmatpush1.msra.mxu0 0.0
    %2307 = vmatprep.subr.mxu0 0.0
    %2308 = vmatpush1.msra.mxu0 0.0
    %2309 = vmatprep.subr.mxu0 0.0
    %2310 = vmatpush1.msra.mxu0 0.0
    %2311 = vmatprep.subr.mxu0 0.0
    %2312 = vmatpush1.msra.mxu0 0.0
    %2313 = vmatprep.subr.mxu0 0.0
    %2314 = vmatpush1.msra.mxu0 0.0
    %2315 = vmatprep.subr.mxu0 0.0
    %2316 = vmatpush1.msra.mxu0 0.0
    %2317 = vmatprep.subr.mxu0 0.0
    %2318 = vmatpush1.msra.mxu0 0.0
    %2319 = vmatprep.subr.mxu0 0.0
    %2320 = vmatpush1.msra.mxu0 0.0
    %2321 = vmatprep.subr.mxu0 0.0
    %2322 = vmatpush1.msra.mxu0 0.0
    %2323 = vmatprep.subr.mxu0 0.0
    %2324 = vmatpush1.msra.mxu0 0.0
    %2325 = vmatprep.subr.mxu0 0.0
    %2326 = vmatpush1.msra.mxu0 0.0
    %2327 = vmatprep.subr.mxu0 0.0
    %2328 = vmatpush1.msra.mxu0 0.0
    %2329 = vmatprep.subr.mxu0 0.0
    %2330 = vmatpush1.msra.mxu0 0.0
    %2331 = vmatprep.subr.mxu0 0.0
    %2332 = vmatpush1.msra.mxu0 0.0
    %2333 = vmatprep.subr.mxu0 0.0
    %2334 = vmatpush1.msra.mxu0 0.0
    %2335 = vmatprep.mubr.f32.mxu0 0.0
    %2336 = vmatmul.mubr.f32.gmra.mrb[0].mxu0 %v1828
    %v2337 = vpop.f32.mrb[0].mxu0
    %v2338 = vadd.f32 0.0, %v2337
    %v2339 = vpop.f32.mrb[0].mxu0
    %v2340 = vadd.f32 0.0, %v2339
    %2341 = vdwg.mxu0
    %2342 = vmatprep.subr.mxu0 0.0
    %2343 = vmatpush1.msra.mxu0 %v2225
    %2344 = vmatprep.subr.mxu0 0.0
    %2345 = vmatpush1.msra.mxu0 %v2228
    %2346 = vmatprep.subr.mxu0 0.0
    %2347 = vmatpush1.msra.mxu0 %v2231
    %2348 = vmatprep.subr.mxu0 0.0
    %2349 = vmatpush1.msra.mxu0 %v2234
    %2350 = vmatprep.subr.mxu0 0.0
    %2351 = vmatpush1.msra.mxu0 %v2237
    %2352 = vmatprep.subr.mxu0 0.0
    %2353 = vmatpush1.msra.mxu0 %v2240
    %2354 = vmatprep.subr.mxu0 0.0
    %2355 = vmatpush1.msra.mxu0 %v2243
    %2356 = vmatprep.subr.mxu0 0.0
    %2357 = vmatpush1.msra.mxu0 %v2246
    %2358 = vmatprep.subr.mxu0 0.0
    %2359 = vmatpush1.msra.mxu0 %v2249
    %2360 = vmatprep.subr.mxu0 0.0
    %2361 = vmatpush1.msra.mxu0 %v2252
    %2362 = vmatprep.subr.mxu0 0.0
    %2363 = vmatpush1.msra.mxu0 %v2255
    %2364 = vmatprep.subr.mxu0 0.0
    %2365 = vmatpush1.msra.mxu0 %v2258
    %2366 = vmatprep.subr.mxu0 0.0
    %2367 = vmatpush1.msra.mxu0 %v2261
    %2368 = vmatprep.subr.mxu0 0.0
    %2369 = vmatpush1.msra.mxu0 %v2264
    %2370 = vmatprep.subr.mxu0 0.0
    %2371 = vmatpush1.msra.mxu0 %v2267
    %2372 = vmatprep.subr.mxu0 0.0
    %2373 = vmatpush1.msra.mxu0 %v2270
    %2374 = vmatprep.subr.mxu0 0.0
    %2375 = vmatpush1.msra.mxu0 0.0
    %2376 = vmatprep.subr.mxu0 0.0
    %2377 = vmatpush1.msra.mxu0 0.0
    %2378 = vmatprep.subr.mxu0 0.0
    %2379 = vmatpush1.msra.mxu0 0.0
    %2380 = vmatprep.subr.mxu0 0.0
    %2381 = vmatpush1.msra.mxu0 0.0
    %2382 = vmatprep.subr.mxu0 0.0
    %2383 = vmatpush1.msra.mxu0 0.0
    %2384 = vmatprep.subr.mxu0 0.0
    %2385 = vmatpush1.msra.mxu0 0.0
    %2386 = vmatprep.subr.mxu0 0.0
    %2387 = vmatpush1.msra.mxu0 0.0
    %2388 = vmatprep.subr.mxu0 0.0
    %2389 = vmatpush1.msra.mxu0 0.0
    %2390 = vmatprep.subr.mxu0 0.0
    %2391 = vmatpush1.msra.mxu0 0.0
    %2392 = vmatprep.subr.mxu0 0.0
    %2393 = vmatpush1.msra.mxu0 0.0
    %2394 = vmatprep.subr.mxu0 0.0
    %2395 = vmatpush1.msra.mxu0 0.0
    %2396 = vmatprep.subr.mxu0 0.0
    %2397 = vmatpush1.msra.mxu0 0.0
    %2398 = vmatprep.subr.mxu0 0.0
    %2399 = vmatpush1.msra.mxu0 0.0
    %2400 = vmatprep.subr.mxu0 0.0
    %2401 = vmatpush1.msra.mxu0 0.0
    %2402 = vmatprep.subr.mxu0 0.0
    %2403 = vmatpush1.msra.mxu0 0.0
    %2404 = vmatprep.subr.mxu0 0.0
    %2405 = vmatpush1.msra.mxu0 0.0
    %2406 = vmatprep.mubr.f32.mxu0 0.0
    %2407 = vmatmul.mubr.f32.gmra.mrb[0].mxu0 %v1828
    %v2408 = vpop.f32.mrb[0].mxu0
    %v2409 = vadd.f32 0.0, %v2408
    %v2410 = vpop.f32.mrb[0].mxu0
    %2411 = vdwg.mxu0
    %v2412 = vadd.f32 %v2149, %v2338
    %v2413 = vxor.u32 %v2412, 2147483648
    %v2414 = vmul.f32 %v2413, 1.442695
    %v2415 = vpow.pop %v2414
    %v2416 = vadd.f32 %v2415, 1.0
    %v2417 = vrcp.pop %v2416
    %v2418 = vmul.f32 1.0, %v2417
    %v2419 = vadd.f32 %v2151, %v2340
    %v2420 = vxor.u32 %v2419, 2147483648
    %v2421 = vmul.f32 %v2420, 1.442695
    %v2422 = vpow.pop %v2421
    %v2423 = vadd.f32 %v2422, 1.0
    %v2424 = vrcp.pop %v2423
    %v2425 = vmul.f32 1.0, %v2424
    %v2426 = vadd.f32 %v2409, %v607
    %v2427 = vmul.f32 %v2418, %v2426
    %v2428 = vadd.f32 %v2220, %v2427
    %v2429 = vtanh.pop %v2428
    %v2430 = vsub.f32 %v1828, %v2429
    %v2431 = vmul.f32 %v2425, %v2430
    %v2432 = vadd.f32 %v2429, %v2431
    %v2433 = vld [vmem:[#allocation10] sm:$0xff]
    %v2434 = vld [vmem:[#allocation10 + $0x8] sm:$0xff]
    %v2435 = vld [vmem:[#allocation10 + $0x10] sm:$0xff]
    %v2436 = vld [vmem:[#allocation10 + $0x18] sm:$0xff]
    %v2437 = vld [vmem:[#allocation10 + $0x20] sm:$0xff]
    %v2438 = vld [vmem:[#allocation10 + $0x28] sm:$0xff]
    %v2439 = vld [vmem:[#allocation10 + $0x30] sm:$0xff]
    %v2440 = vld [vmem:[#allocation10 + $0x38] sm:$0xff]
    %v2441 = vld [vmem:[#allocation10 + $0x40] sm:$0xff]
    %v2442 = vld [vmem:[#allocation10 + $0x48] sm:$0xff]
    %v2443 = vld [vmem:[#allocation10 + $0x50] sm:$0xff]
    %v2444 = vld [vmem:[#allocation10 + $0x58] sm:$0xff]
    %v2445 = vld [vmem:[#allocation10 + $0x60] sm:$0xff]
    %v2446 = vld [vmem:[#allocation10 + $0x68] sm:$0xff]
    %v2447 = vld [vmem:[#allocation10 + $0x70] sm:$0xff]
    %v2448 = vld [vmem:[#allocation10 + $0x78] sm:$0xff]
    %2449 = vmatprep.subr.mxu0 0.0
    %2450 = vmatpush1.msra.mxu0 %v2433
    %2451 = vmatprep.subr.mxu0 0.0
    %2452 = vmatpush1.msra.mxu0 %v2434
    %2453 = vmatprep.subr.mxu0 0.0
    %2454 = vmatpush1.msra.mxu0 %v2435
    %2455 = vmatprep.subr.mxu0 0.0
    %2456 = vmatpush1.msra.mxu0 %v2436
    %2457 = vmatprep.subr.mxu0 0.0
    %2458 = vmatpush1.msra.mxu0 %v2437
    %2459 = vmatprep.subr.mxu0 0.0
    %2460 = vmatpush1.msra.mxu0 %v2438
    %2461 = vmatprep.subr.mxu0 0.0
    %2462 = vmatpush1.msra.mxu0 %v2439
    %2463 = vmatprep.subr.mxu0 0.0
    %2464 = vmatpush1.msra.mxu0 %v2440
    %2465 = vmatprep.subr.mxu0 0.0
    %2466 = vmatpush1.msra.mxu0 %v2441
    %2467 = vmatprep.subr.mxu0 0.0
    %2468 = vmatpush1.msra.mxu0 %v2442
    %2469 = vmatprep.subr.mxu0 0.0
    %2470 = vmatpush1.msra.mxu0 %v2443
    %2471 = vmatprep.subr.mxu0 0.0
    %2472 = vmatpush1.msra.mxu0 %v2444
    %2473 = vmatprep.subr.mxu0 0.0
    %2474 = vmatpush1.msra.mxu0 %v2445
    %2475 = vmatprep.subr.mxu0 0.0
    %2476 = vmatpush1.msra.mxu0 %v2446
    %2477 = vmatprep.subr.mxu0 0.0
    %2478 = vmatpush1.msra.mxu0 %v2447
    %2479 = vmatprep.subr.mxu0 0.0
    %2480 = vmatpush1.msra.mxu0 %v2448
    %2481 = vmatprep.subr.mxu0 0.0
    %2482 = vmatpush1.msra.mxu0 0.0
    %2483 = vmatprep.subr.mxu0 0.0
    %2484 = vmatpush1.msra.mxu0 0.0
    %2485 = vmatprep.subr.mxu0 0.0
    %2486 = vmatpush1.msra.mxu0 0.0
    %2487 = vmatprep.subr.mxu0 0.0
    %2488 = vmatpush1.msra.mxu0 0.0
    %2489 = vmatprep.subr.mxu0 0.0
    %2490 = vmatpush1.msra.mxu0 0.0
    %2491 = vmatprep.subr.mxu0 0.0
    %2492 = vmatpush1.msra.mxu0 0.0
    %2493 = vmatprep.subr.mxu0 0.0
    %2494 = vmatpush1.msra.mxu0 0.0
    %2495 = vmatprep.subr.mxu0 0.0
    %2496 = vmatpush1.msra.mxu0 0.0
    %2497 = vmatprep.subr.mxu0 0.0
    %2498 = vmatpush1.msra.mxu0 0.0
    %2499 = vmatprep.subr.mxu0 0.0
    %2500 = vmatpush1.msra.mxu0 0.0
    %2501 = vmatprep.subr.mxu0 0.0
    %2502 = vmatpush1.msra.mxu0 0.0
    %2503 = vmatprep.subr.mxu0 0.0
    %2504 = vmatpush1.msra.mxu0 0.0
    %2505 = vmatprep.subr.mxu0 0.0
    %2506 = vmatpush1.msra.mxu0 0.0
    %2507 = vmatprep.subr.mxu0 0.0
    %2508 = vmatpush1.msra.mxu0 0.0
    %2509 = vmatprep.subr.mxu0 0.0
    %2510 = vmatpush1.msra.mxu0 0.0
    %2511 = vmatprep.subr.mxu0 0.0
    %2512 = vmatpush1.msra.mxu0 0.0
    %2513 = vmatprep.mubr.f32.mxu0 0.0
    %2514 = vmatmul.mubr.f32.gmra.mrb[0].mxu0 %v2432
    %v2515 = vpop.f32.mrb[0].mxu0
    %v2516 = vadd.f32 %v636, %v2515
    %v2517 = vpop.f32.mrb[0].mxu0
    %2518 = vdwg.mxu0
    %2519 = vmax.xlane.f32.xlu0 %v2516
    %v2520 = vpop.xlane.xlu0 %2519
    %vm2521 = vcmp.eq.f32.partialorder %v2516, %v2520
    %v2522 = vsel %vm2521, %v100, 128
    %v2523 = vand.u32 %v2522, 65535
    %v2524 = vshra.s32 %v2522, 16
    %v2525 = vcvt.s32.f32 %v2523
    %v2526 = vcvt.s32.f32 %v2524
    %2527 = vmin.xlane.f32.xlu0 %v2526
    %v2528 = vpop.xlane.xlu0 %2527
    %vm2529 = vcmp.eq.f32.partialorder %v2526, %v2528
    %v2530 = vsel %vm2529, %v2525, inf
    %2531 = vmin.xlane.f32.xlu0 %v2530
    %v2532 = vpop.xlane.xlu0 %2531
    %v2533 = vcvt.f32.s32 %v2532
    %v2534 = vcvt.f32.s32 %v2528
    %v2535 = vshll.u32 %v2534, 16
    %v2536 = vadd.s32 %v2535, %v2533
    %v2537 = vsub.f32 %v2516, %v2520
    %v2538 = vmul.f32 %v2537, 1.442695
    %v2539 = vpow.pop %v2538
    %2540 = vadd.xlane.f32.xlu0 %v2539
    %v2541 = vpop.xlane.xlu0 %2540
    %v2542 = vlog2.pop %v2541
    %v2543 = vmul.f32 %v2542, 0.6931472
    %v2544 = vadd.f32 %v2520, %v2543
    %v2545 = vsub.f32 %v2516, %v2544
    %s2546 = scalar_lea.vmem [#allocation11], 24
    %2547 = vst [vmem:[%s2546] sm:$0xff] %v2545
    %vm2548 = vcmp.eq.s32.totalorder %v100, %v2536
    %v2549 = vsel %vm2548, 1, 0
    %v2550 = vcvt.s32.f32 %v2549
    %v2551 = vld [vmem:[#allocation5] sm:$0xff]
    %v2552 = vld [vmem:[#allocation5 + $0x8] sm:$0xff]
    %v2553 = vld [vmem:[#allocation5 + $0x10] sm:$0xff]
    %v2554 = vld [vmem:[#allocation5 + $0x18] sm:$0xff]
    %v2555 = vld [vmem:[#allocation5 + $0x20] sm:$0xff]
    %v2556 = vld [vmem:[#allocation5 + $0x28] sm:$0xff]
    %v2557 = vld [vmem:[#allocation5 + $0x30] sm:$0xff]
    %v2558 = vld [vmem:[#allocation5 + $0x38] sm:$0xff]
    %v2559 = vld [vmem:[#allocation5 + $0x40] sm:$0xff]
    %v2560 = vld [vmem:[#allocation5 + $0x48] sm:$0xff]
    %v2561 = vld [vmem:[#allocation5 + $0x50] sm:$0xff]
    %v2562 = vld [vmem:[#allocation5 + $0x58] sm:$0xff]
    %v2563 = vld [vmem:[#allocation5 + $0x60] sm:$0xff]
    %v2564 = vld [vmem:[#allocation5 + $0x68] sm:$0xff]
    %v2565 = vld [vmem:[#allocation5 + $0x70] sm:$0xff]
    %v2566 = vld [vmem:[#allocation5 + $0x78] sm:$0xff]
    %2567 = vmatprep.subr.mxu0 0.0
    %2568 = vmatpush1.msra.mxu0 %v2551
    %2569 = vmatprep.subr.mxu0 0.0
    %2570 = vmatpush1.msra.mxu0 %v2552
    %2571 = vmatprep.subr.mxu0 0.0
    %2572 = vmatpush1.msra.mxu0 %v2553
    %2573 = vmatprep.subr.mxu0 0.0
    %2574 = vmatpush1.msra.mxu0 %v2554
    %2575 = vmatprep.subr.mxu0 0.0
    %2576 = vmatpush1.msra.mxu0 %v2555
    %2577 = vmatprep.subr.mxu0 0.0
    %2578 = vmatpush1.msra.mxu0 %v2556
    %2579 = vmatprep.subr.mxu0 0.0
    %2580 = vmatpush1.msra.mxu0 %v2557
    %2581 = vmatprep.subr.mxu0 0.0
    %2582 = vmatpush1.msra.mxu0 %v2558
    %2583 = vmatprep.subr.mxu0 0.0
    %2584 = vmatpush1.msra.mxu0 %v2559
    %2585 = vmatprep.subr.mxu0 0.0
    %2586 = vmatpush1.msra.mxu0 %v2560
    %2587 = vmatprep.subr.mxu0 0.0
    %2588 = vmatpush1.msra.mxu0 %v2561
    %2589 = vmatprep.subr.mxu0 0.0
    %2590 = vmatpush1.msra.mxu0 %v2562
    %2591 = vmatprep.subr.mxu0 0.0
    %2592 = vmatpush1.msra.mxu0 %v2563
    %2593 = vmatprep.subr.mxu0 0.0
    %2594 = vmatpush1.msra.mxu0 %v2564
    %2595 = vmatprep.subr.mxu0 0.0
    %2596 = vmatpush1.msra.mxu0 %v2565
    %2597 = vmatprep.subr.mxu0 0.0
    %2598 = vmatpush1.msra.mxu0 %v2566
    %2599 = vmatprep.subr.mxu0 0.0
    %2600 = vmatpush1.msra.mxu0 0.0
    %2601 = vmatprep.subr.mxu0 0.0
    %2602 = vmatpush1.msra.mxu0 0.0
    %2603 = vmatprep.subr.mxu0 0.0
    %2604 = vmatpush1.msra.mxu0 0.0
    %2605 = vmatprep.subr.mxu0 0.0
    %2606 = vmatpush1.msra.mxu0 0.0
    %2607 = vmatprep.subr.mxu0 0.0
    %2608 = vmatpush1.msra.mxu0 0.0
    %2609 = vmatprep.subr.mxu0 0.0
    %2610 = vmatpush1.msra.mxu0 0.0
    %2611 = vmatprep.subr.mxu0 0.0
    %2612 = vmatpush1.msra.mxu0 0.0
    %2613 = vmatprep.subr.mxu0 0.0
    %2614 = vmatpush1.msra.mxu0 0.0
    %2615 = vmatprep.subr.mxu0 0.0
    %2616 = vmatpush1.msra.mxu0 0.0
    %2617 = vmatprep.subr.mxu0 0.0
    %2618 = vmatpush1.msra.mxu0 0.0
    %2619 = vmatprep.subr.mxu0 0.0
    %2620 = vmatpush1.msra.mxu0 0.0
    %2621 = vmatprep.subr.mxu0 0.0
    %2622 = vmatpush1.msra.mxu0 0.0
    %2623 = vmatprep.subr.mxu0 0.0
    %2624 = vmatpush1.msra.mxu0 0.0
    %2625 = vmatprep.subr.mxu0 0.0
    %2626 = vmatpush1.msra.mxu0 0.0
    %2627 = vmatprep.subr.mxu0 0.0
    %2628 = vmatpush1.msra.mxu0 0.0
    %2629 = vmatprep.subr.mxu0 0.0
    %2630 = vmatpush1.msra.mxu0 0.0
    %2631 = vmatprep.mubr.f32.mxu0 0.0
    %2632 = vmatmul.mubr.f32.gmra.mrb[0].mxu0 %v2550
    %v2633 = vpop.f32.mrb[0].mxu0
    %v2634 = vadd.f32 0.0, %v2633
    %v2635 = vpop.f32.mrb[0].mxu0
    %2636 = vdwg.mxu0
    %v2637 = vmax.f32 %v2634, 0.0
    %v2638 = vld [vmem:[#allocation7] sm:$0xff]
    %v2639 = vld [vmem:[#allocation7 + $0x8] sm:$0xff]
    %v2640 = vld [vmem:[#allocation7 + $0x10] sm:$0xff]
    %v2641 = vld [vmem:[#allocation7 + $0x18] sm:$0xff]
    %v2642 = vld [vmem:[#allocation7 + $0x20] sm:$0xff]
    %v2643 = vld [vmem:[#allocation7 + $0x28] sm:$0xff]
    %v2644 = vld [vmem:[#allocation7 + $0x30] sm:$0xff]
    %v2645 = vld [vmem:[#allocation7 + $0x38] sm:$0xff]
    %v2646 = vld [vmem:[#allocation7 + $0x40] sm:$0xff]
    %v2647 = vld [vmem:[#allocation7 + $0x48] sm:$0xff]
    %v2648 = vld [vmem:[#allocation7 + $0x50] sm:$0xff]
    %v2649 = vld [vmem:[#allocation7 + $0x58] sm:$0xff]
    %v2650 = vld [vmem:[#allocation7 + $0x60] sm:$0xff]
    %v2651 = vld [vmem:[#allocation7 + $0x68] sm:$0xff]
    %v2652 = vld [vmem:[#allocation7 + $0x70] sm:$0xff]
    %v2653 = vld [vmem:[#allocation7 + $0x78] sm:$0xff]
    %v2654 = vld [vmem:[#allocation7 + $0x80] sm:$0xff]
    %v2655 = vld [vmem:[#allocation7 + $0x88] sm:$0xff]
    %v2656 = vld [vmem:[#allocation7 + $0x90] sm:$0xff]
    %v2657 = vld [vmem:[#allocation7 + $0x98] sm:$0xff]
    %v2658 = vld [vmem:[#allocation7 + $0xa0] sm:$0xff]
    %v2659 = vld [vmem:[#allocation7 + $0xa8] sm:$0xff]
    %v2660 = vld [vmem:[#allocation7 + $0xb0] sm:$0xff]
    %v2661 = vld [vmem:[#allocation7 + $0xb8] sm:$0xff]
    %v2662 = vld [vmem:[#allocation7 + $0xc0] sm:$0xff]
    %v2663 = vld [vmem:[#allocation7 + $0xc8] sm:$0xff]
    %v2664 = vld [vmem:[#allocation7 + $0xd0] sm:$0xff]
    %v2665 = vld [vmem:[#allocation7 + $0xd8] sm:$0xff]
    %v2666 = vld [vmem:[#allocation7 + $0xe0] sm:$0xff]
    %v2667 = vld [vmem:[#allocation7 + $0xe8] sm:$0xff]
    %v2668 = vld [vmem:[#allocation7 + $0xf0] sm:$0xff]
    %v2669 = vld [vmem:[#allocation7 + $0xf8] sm:$0xff]
    %v2670 = vld [vmem:[#allocation7 + $0x100] sm:$0xff]
    %v2671 = vld [vmem:[#allocation7 + $0x108] sm:$0xff]
    %v2672 = vld [vmem:[#allocation7 + $0x110] sm:$0xff]
    %v2673 = vld [vmem:[#allocation7 + $0x118] sm:$0xff]
    %v2674 = vld [vmem:[#allocation7 + $0x120] sm:$0xff]
    %v2675 = vld [vmem:[#allocation7 + $0x128] sm:$0xff]
    %v2676 = vld [vmem:[#allocation7 + $0x130] sm:$0xff]
    %v2677 = vld [vmem:[#allocation7 + $0x138] sm:$0xff]
    %v2678 = vld [vmem:[#allocation7 + $0x140] sm:$0xff]
    %v2679 = vld [vmem:[#allocation7 + $0x148] sm:$0xff]
    %v2680 = vld [vmem:[#allocation7 + $0x150] sm:$0xff]
    %v2681 = vld [vmem:[#allocation7 + $0x158] sm:$0xff]
    %v2682 = vld [vmem:[#allocation7 + $0x160] sm:$0xff]
    %v2683 = vld [vmem:[#allocation7 + $0x168] sm:$0xff]
    %v2684 = vld [vmem:[#allocation7 + $0x170] sm:$0xff]
    %v2685 = vld [vmem:[#allocation7 + $0x178] sm:$0xff]
    %2686 = vmatprep.subr.mxu0 %v2639
    %2687 = vmatpush1.msra.mxu0 %v2638
    %2688 = vmatprep.subr.mxu0 %v2642
    %2689 = vmatpush1.msra.mxu0 %v2641
    %2690 = vmatprep.subr.mxu0 %v2645
    %2691 = vmatpush1.msra.mxu0 %v2644
    %2692 = vmatprep.subr.mxu0 %v2648
    %2693 = vmatpush1.msra.mxu0 %v2647
    %2694 = vmatprep.subr.mxu0 %v2651
    %2695 = vmatpush1.msra.mxu0 %v2650
    %2696 = vmatprep.subr.mxu0 %v2654
    %2697 = vmatpush1.msra.mxu0 %v2653
    %2698 = vmatprep.subr.mxu0 %v2657
    %2699 = vmatpush1.msra.mxu0 %v2656
    %2700 = vmatprep.subr.mxu0 %v2660
    %2701 = vmatpush1.msra.mxu0 %v2659
    %2702 = vmatprep.subr.mxu0 %v2663
    %2703 = vmatpush1.msra.mxu0 %v2662
    %2704 = vmatprep.subr.mxu0 %v2666
    %2705 = vmatpush1.msra.mxu0 %v2665
    %2706 = vmatprep.subr.mxu0 %v2669
    %2707 = vmatpush1.msra.mxu0 %v2668
    %2708 = vmatprep.subr.mxu0 %v2672
    %2709 = vmatpush1.msra.mxu0 %v2671
    %2710 = vmatprep.subr.mxu0 %v2675
    %2711 = vmatpush1.msra.mxu0 %v2674
    %2712 = vmatprep.subr.mxu0 %v2678
    %2713 = vmatpush1.msra.mxu0 %v2677
    %2714 = vmatprep.subr.mxu0 %v2681
    %2715 = vmatpush1.msra.mxu0 %v2680
    %2716 = vmatprep.subr.mxu0 %v2684
    %2717 = vmatpush1.msra.mxu0 %v2683
    %2718 = vmatprep.subr.mxu0 0.0
    %2719 = vmatpush1.msra.mxu0 0.0
    %2720 = vmatprep.subr.mxu0 0.0
    %2721 = vmatpush1.msra.mxu0 0.0
    %2722 = vmatprep.subr.mxu0 0.0
    %2723 = vmatpush1.msra.mxu0 0.0
    %2724 = vmatprep.subr.mxu0 0.0
    %2725 = vmatpush1.msra.mxu0 0.0
    %2726 = vmatprep.subr.mxu0 0.0
    %2727 = vmatpush1.msra.mxu0 0.0
    %2728 = vmatprep.subr.mxu0 0.0
    %2729 = vmatpush1.msra.mxu0 0.0
    %2730 = vmatprep.subr.mxu0 0.0
    %2731 = vmatpush1.msra.mxu0 0.0
    %2732 = vmatprep.subr.mxu0 0.0
    %2733 = vmatpush1.msra.mxu0 0.0
    %2734 = vmatprep.subr.mxu0 0.0
    %2735 = vmatpush1.msra.mxu0 0.0
    %2736 = vmatprep.subr.mxu0 0.0
    %2737 = vmatpush1.msra.mxu0 0.0
    %2738 = vmatprep.subr.mxu0 0.0
    %2739 = vmatpush1.msra.mxu0 0.0
    %2740 = vmatprep.subr.mxu0 0.0
    %2741 = vmatpush1.msra.mxu0 0.0
    %2742 = vmatprep.subr.mxu0 0.0
    %2743 = vmatpush1.msra.mxu0 0.0
    %2744 = vmatprep.subr.mxu0 0.0
    %2745 = vmatpush1.msra.mxu0 0.0
    %2746 = vmatprep.subr.mxu0 0.0
    %2747 = vmatpush1.msra.mxu0 0.0
    %2748 = vmatprep.subr.mxu0 0.0
    %2749 = vmatpush1.msra.mxu0 0.0
    %2750 = vmatprep.mubr.f32.mxu0 0.0
    %2751 = vmatmul.mubr.f32.gmra.mrb[0].mxu0 %v2637
    %v2752 = vpop.f32.mrb[0].mxu0
    %v2753 = vadd.f32 %v247, %v2752
    %v2754 = vpop.f32.mrb[0].mxu0
    %v2755 = vadd.f32 %v251, %v2754
    %2756 = vdwg.mxu0
    %2757 = vmatprep.subr.mxu0 0.0
    %2758 = vmatpush1.msra.mxu0 %v2640
    %2759 = vmatprep.subr.mxu0 0.0
    %2760 = vmatpush1.msra.mxu0 %v2643
    %2761 = vmatprep.subr.mxu0 0.0
    %2762 = vmatpush1.msra.mxu0 %v2646
    %2763 = vmatprep.subr.mxu0 0.0
    %2764 = vmatpush1.msra.mxu0 %v2649
    %2765 = vmatprep.subr.mxu0 0.0
    %2766 = vmatpush1.msra.mxu0 %v2652
    %2767 = vmatprep.subr.mxu0 0.0
    %2768 = vmatpush1.msra.mxu0 %v2655
    %2769 = vmatprep.subr.mxu0 0.0
    %2770 = vmatpush1.msra.mxu0 %v2658
    %2771 = vmatprep.subr.mxu0 0.0
    %2772 = vmatpush1.msra.mxu0 %v2661
    %2773 = vmatprep.subr.mxu0 0.0
    %2774 = vmatpush1.msra.mxu0 %v2664
    %2775 = vmatprep.subr.mxu0 0.0
    %2776 = vmatpush1.msra.mxu0 %v2667
    %2777 = vmatprep.subr.mxu0 0.0
    %2778 = vmatpush1.msra.mxu0 %v2670
    %2779 = vmatprep.subr.mxu0 0.0
    %2780 = vmatpush1.msra.mxu0 %v2673
    %2781 = vmatprep.subr.mxu0 0.0
    %2782 = vmatpush1.msra.mxu0 %v2676
    %2783 = vmatprep.subr.mxu0 0.0
    %2784 = vmatpush1.msra.mxu0 %v2679
    %2785 = vmatprep.subr.mxu0 0.0
    %2786 = vmatpush1.msra.mxu0 %v2682
    %2787 = vmatprep.subr.mxu0 0.0
    %2788 = vmatpush1.msra.mxu0 %v2685
    %2789 = vmatprep.subr.mxu0 0.0
    %2790 = vmatpush1.msra.mxu0 0.0
    %2791 = vmatprep.subr.mxu0 0.0
    %2792 = vmatpush1.msra.mxu0 0.0
    %2793 = vmatprep.subr.mxu0 0.0
    %2794 = vmatpush1.msra.mxu0 0.0
    %2795 = vmatprep.subr.mxu0 0.0
    %2796 = vmatpush1.msra.mxu0 0.0
    %2797 = vmatprep.subr.mxu0 0.0
    %2798 = vmatpush1.msra.mxu0 0.0
    %2799 = vmatprep.subr.mxu0 0.0
    %2800 = vmatpush1.msra.mxu0 0.0
    %2801 = vmatprep.subr.mxu0 0.0
    %2802 = vmatpush1.msra.mxu0 0.0
    %2803 = vmatprep.subr.mxu0 0.0
    %2804 = vmatpush1.msra.mxu0 0.0
    %2805 = vmatprep.subr.mxu0 0.0
    %2806 = vmatpush1.msra.mxu0 0.0
    %2807 = vmatprep.subr.mxu0 0.0
    %2808 = vmatpush1.msra.mxu0 0.0
    %2809 = vmatprep.subr.mxu0 0.0
    %2810 = vmatpush1.msra.mxu0 0.0
    %2811 = vmatprep.subr.mxu0 0.0
    %2812 = vmatpush1.msra.mxu0 0.0
    %2813 = vmatprep.subr.mxu0 0.0
    %2814 = vmatpush1.msra.mxu0 0.0
    %2815 = vmatprep.subr.mxu0 0.0
    %2816 = vmatpush1.msra.mxu0 0.0
    %2817 = vmatprep.subr.mxu0 0.0
    %2818 = vmatpush1.msra.mxu0 0.0
    %2819 = vmatprep.subr.mxu0 0.0
    %2820 = vmatpush1.msra.mxu0 0.0
    %2821 = vmatprep.mubr.f32.mxu0 0.0
    %2822 = vmatmul.mubr.f32.gmra.mrb[0].mxu0 %v2637
    %v2823 = vpop.f32.mrb[0].mxu0
    %v2824 = vadd.f32 %v255, %v2823
    %v2825 = vpop.f32.mrb[0].mxu0
    %2826 = vdwg.mxu0
    %v2827 = vld [vmem:[#allocation8] sm:$0xff]
    %v2828 = vld [vmem:[#allocation8 + $0x8] sm:$0xff]
    %v2829 = vld [vmem:[#allocation8 + $0x10] sm:$0xff]
    %v2830 = vld [vmem:[#allocation8 + $0x18] sm:$0xff]
    %v2831 = vld [vmem:[#allocation8 + $0x20] sm:$0xff]
    %v2832 = vld [vmem:[#allocation8 + $0x28] sm:$0xff]
    %v2833 = vld [vmem:[#allocation8 + $0x30] sm:$0xff]
    %v2834 = vld [vmem:[#allocation8 + $0x38] sm:$0xff]
    %v2835 = vld [vmem:[#allocation8 + $0x40] sm:$0xff]
    %v2836 = vld [vmem:[#allocation8 + $0x48] sm:$0xff]
    %v2837 = vld [vmem:[#allocation8 + $0x50] sm:$0xff]
    %v2838 = vld [vmem:[#allocation8 + $0x58] sm:$0xff]
    %v2839 = vld [vmem:[#allocation8 + $0x60] sm:$0xff]
    %v2840 = vld [vmem:[#allocation8 + $0x68] sm:$0xff]
    %v2841 = vld [vmem:[#allocation8 + $0x70] sm:$0xff]
    %v2842 = vld [vmem:[#allocation8 + $0x78] sm:$0xff]
    %v2843 = vld [vmem:[#allocation8 + $0x80] sm:$0xff]
    %v2844 = vld [vmem:[#allocation8 + $0x88] sm:$0xff]
    %v2845 = vld [vmem:[#allocation8 + $0x90] sm:$0xff]
    %v2846 = vld [vmem:[#allocation8 + $0x98] sm:$0xff]
    %v2847 = vld [vmem:[#allocation8 + $0xa0] sm:$0xff]
    %v2848 = vld [vmem:[#allocation8 + $0xa8] sm:$0xff]
    %v2849 = vld [vmem:[#allocation8 + $0xb0] sm:$0xff]
    %v2850 = vld [vmem:[#allocation8 + $0xb8] sm:$0xff]
    %v2851 = vld [vmem:[#allocation8 + $0xc0] sm:$0xff]
    %v2852 = vld [vmem:[#allocation8 + $0xc8] sm:$0xff]
    %v2853 = vld [vmem:[#allocation8 + $0xd0] sm:$0xff]
    %v2854 = vld [vmem:[#allocation8 + $0xd8] sm:$0xff]
    %v2855 = vld [vmem:[#allocation8 + $0xe0] sm:$0xff]
    %v2856 = vld [vmem:[#allocation8 + $0xe8] sm:$0xff]
    %v2857 = vld [vmem:[#allocation8 + $0xf0] sm:$0xff]
    %v2858 = vld [vmem:[#allocation8 + $0xf8] sm:$0xff]
    %v2859 = vld [vmem:[#allocation8 + $0x100] sm:$0xff]
    %v2860 = vld [vmem:[#allocation8 + $0x108] sm:$0xff]
    %v2861 = vld [vmem:[#allocation8 + $0x110] sm:$0xff]
    %v2862 = vld [vmem:[#allocation8 + $0x118] sm:$0xff]
    %v2863 = vld [vmem:[#allocation8 + $0x120] sm:$0xff]
    %v2864 = vld [vmem:[#allocation8 + $0x128] sm:$0xff]
    %v2865 = vld [vmem:[#allocation8 + $0x130] sm:$0xff]
    %v2866 = vld [vmem:[#allocation8 + $0x138] sm:$0xff]
    %v2867 = vld [vmem:[#allocation8 + $0x140] sm:$0xff]
    %v2868 = vld [vmem:[#allocation8 + $0x148] sm:$0xff]
    %v2869 = vld [vmem:[#allocation8 + $0x150] sm:$0xff]
    %v2870 = vld [vmem:[#allocation8 + $0x158] sm:$0xff]
    %v2871 = vld [vmem:[#allocation8 + $0x160] sm:$0xff]
    %v2872 = vld [vmem:[#allocation8 + $0x168] sm:$0xff]
    %v2873 = vld [vmem:[#allocation8 + $0x170] sm:$0xff]
    %v2874 = vld [vmem:[#allocation8 + $0x178] sm:$0xff]
    %2875 = vmatprep.subr.mxu0 %v2828
    %2876 = vmatpush1.msra.mxu0 %v2827
    %2877 = vmatprep.subr.mxu0 %v2831
    %2878 = vmatpush1.msra.mxu0 %v2830
    %2879 = vmatprep.subr.mxu0 %v2834
    %2880 = vmatpush1.msra.mxu0 %v2833
    %2881 = vmatprep.subr.mxu0 %v2837
    %2882 = vmatpush1.msra.mxu0 %v2836
    %2883 = vmatprep.subr.mxu0 %v2840
    %2884 = vmatpush1.msra.mxu0 %v2839
    %2885 = vmatprep.subr.mxu0 %v2843
    %2886 = vmatpush1.msra.mxu0 %v2842
    %2887 = vmatprep.subr.mxu0 %v2846
    %2888 = vmatpush1.msra.mxu0 %v2845
    %2889 = vmatprep.subr.mxu0 %v2849
    %2890 = vmatpush1.msra.mxu0 %v2848
    %2891 = vmatprep.subr.mxu0 %v2852
    %2892 = vmatpush1.msra.mxu0 %v2851
    %2893 = vmatprep.subr.mxu0 %v2855
    %2894 = vmatpush1.msra.mxu0 %v2854
    %2895 = vmatprep.subr.mxu0 %v2858
    %2896 = vmatpush1.msra.mxu0 %v2857
    %2897 = vmatprep.subr.mxu0 %v2861
    %2898 = vmatpush1.msra.mxu0 %v2860
    %2899 = vmatprep.subr.mxu0 %v2864
    %2900 = vmatpush1.msra.mxu0 %v2863
    %2901 = vmatprep.subr.mxu0 %v2867
    %2902 = vmatpush1.msra.mxu0 %v2866
    %2903 = vmatprep.subr.mxu0 %v2870
    %2904 = vmatpush1.msra.mxu0 %v2869
    %2905 = vmatprep.subr.mxu0 %v2873
    %2906 = vmatpush1.msra.mxu0 %v2872
    %2907 = vmatprep.subr.mxu0 0.0
    %2908 = vmatpush1.msra.mxu0 0.0
    %2909 = vmatprep.subr.mxu0 0.0
    %2910 = vmatpush1.msra.mxu0 0.0
    %2911 = vmatprep.subr.mxu0 0.0
    %2912 = vmatpush1.msra.mxu0 0.0
    %2913 = vmatprep.subr.mxu0 0.0
    %2914 = vmatpush1.msra.mxu0 0.0
    %2915 = vmatprep.subr.mxu0 0.0
    %2916 = vmatpush1.msra.mxu0 0.0
    %2917 = vmatprep.subr.mxu0 0.0
    %2918 = vmatpush1.msra.mxu0 0.0
    %2919 = vmatprep.subr.mxu0 0.0
    %2920 = vmatpush1.msra.mxu0 0.0
    %2921 = vmatprep.subr.mxu0 0.0
    %2922 = vmatpush1.msra.mxu0 0.0
    %2923 = vmatprep.subr.mxu0 0.0
    %2924 = vmatpush1.msra.mxu0 0.0
    %2925 = vmatprep.subr.mxu0 0.0
    %2926 = vmatpush1.msra.mxu0 0.0
    %2927 = vmatprep.subr.mxu0 0.0
    %2928 = vmatpush1.msra.mxu0 0.0
    %2929 = vmatprep.subr.mxu0 0.0
    %2930 = vmatpush1.msra.mxu0 0.0
    %2931 = vmatprep.subr.mxu0 0.0
    %2932 = vmatpush1.msra.mxu0 0.0
    %2933 = vmatprep.subr.mxu0 0.0
    %2934 = vmatpush1.msra.mxu0 0.0
    %2935 = vmatprep.subr.mxu0 0.0
    %2936 = vmatpush1.msra.mxu0 0.0
    %2937 = vmatprep.subr.mxu0 0.0
    %2938 = vmatpush1.msra.mxu0 0.0
    %2939 = vmatprep.mubr.f32.mxu0 0.0
    %2940 = vmatmul.mubr.f32.gmra.mrb[0].mxu0 %v2432
    %v2941 = vpop.f32.mrb[0].mxu0
    %v2942 = vadd.f32 0.0, %v2941
    %v2943 = vpop.f32.mrb[0].mxu0
    %v2944 = vadd.f32 0.0, %v2943
    %2945 = vdwg.mxu0
    %2946 = vmatprep.subr.mxu0 0.0
    %2947 = vmatpush1.msra.mxu0 %v2829
    %2948 = vmatprep.subr.mxu0 0.0
    %2949 = vmatpush1.msra.mxu0 %v2832
    %2950 = vmatprep.subr.mxu0 0.0
    %2951 = vmatpush1.msra.mxu0 %v2835
    %2952 = vmatprep.subr.mxu0 0.0
    %2953 = vmatpush1.msra.mxu0 %v2838
    %2954 = vmatprep.subr.mxu0 0.0
    %2955 = vmatpush1.msra.mxu0 %v2841
    %2956 = vmatprep.subr.mxu0 0.0
    %2957 = vmatpush1.msra.mxu0 %v2844
    %2958 = vmatprep.subr.mxu0 0.0
    %2959 = vmatpush1.msra.mxu0 %v2847
    %2960 = vmatprep.subr.mxu0 0.0
    %2961 = vmatpush1.msra.mxu0 %v2850
    %2962 = vmatprep.subr.mxu0 0.0
    %2963 = vmatpush1.msra.mxu0 %v2853
    %2964 = vmatprep.subr.mxu0 0.0
    %2965 = vmatpush1.msra.mxu0 %v2856
    %2966 = vmatprep.subr.mxu0 0.0
    %2967 = vmatpush1.msra.mxu0 %v2859
    %2968 = vmatprep.subr.mxu0 0.0
    %2969 = vmatpush1.msra.mxu0 %v2862
    %2970 = vmatprep.subr.mxu0 0.0
    %2971 = vmatpush1.msra.mxu0 %v2865
    %2972 = vmatprep.subr.mxu0 0.0
    %2973 = vmatpush1.msra.mxu0 %v2868
    %2974 = vmatprep.subr.mxu0 0.0
    %2975 = vmatpush1.msra.mxu0 %v2871
    %2976 = vmatprep.subr.mxu0 0.0
    %2977 = vmatpush1.msra.mxu0 %v2874
    %2978 = vmatprep.subr.mxu0 0.0
    %2979 = vmatpush1.msra.mxu0 0.0
    %2980 = vmatprep.subr.mxu0 0.0
    %2981 = vmatpush1.msra.mxu0 0.0
    %2982 = vmatprep.subr.mxu0 0.0
    %2983 = vmatpush1.msra.mxu0 0.0
    %2984 = vmatprep.subr.mxu0 0.0
    %2985 = vmatpush1.msra.mxu0 0.0
    %2986 = vmatprep.subr.mxu0 0.0
    %2987 = vmatpush1.msra.mxu0 0.0
    %2988 = vmatprep.subr.mxu0 0.0
    %2989 = vmatpush1.msra.mxu0 0.0
    %2990 = vmatprep.subr.mxu0 0.0
    %2991 = vmatpush1.msra.mxu0 0.0
    %2992 = vmatprep.subr.mxu0 0.0
    %2993 = vmatpush1.msra.mxu0 0.0
    %2994 = vmatprep.subr.mxu0 0.0
    %2995 = vmatpush1.msra.mxu0 0.0
    %2996 = vmatprep.subr.mxu0 0.0
    %2997 = vmatpush1.msra.mxu0 0.0
    %2998 = vmatprep.subr.mxu0 0.0
    %2999 = vmatpush1.msra.mxu0 0.0
    %3000 = vmatprep.subr.mxu0 0.0
    %3001 = vmatpush1.msra.mxu0 0.0
    %3002 = vmatprep.subr.mxu0 0.0
    %3003 = vmatpush1.msra.mxu0 0.0
    %3004 = vmatprep.subr.mxu0 0.0
    %3005 = vmatpush1.msra.mxu0 0.0
    %3006 = vmatprep.subr.mxu0 0.0
    %3007 = vmatpush1.msra.mxu0 0.0
    %3008 = vmatprep.subr.mxu0 0.0
    %3009 = vmatpush1.msra.mxu0 0.0
    %3010 = vmatprep.mubr.f32.mxu0 0.0
    %3011 = vmatmul.mubr.f32.gmra.mrb[0].mxu0 %v2432
    %v3012 = vpop.f32.mrb[0].mxu0
    %v3013 = vadd.f32 0.0, %v3012
    %v3014 = vpop.f32.mrb[0].mxu0
    %3015 = vdwg.mxu0
    %v3016 = vadd.f32 %v2753, %v2942
    %v3017 = vxor.u32 %v3016, 2147483648
    %v3018 = vmul.f32 %v3017, 1.442695
    %v3019 = vpow.pop %v3018
    %v3020 = vadd.f32 %v3019, 1.0
    %v3021 = vrcp.pop %v3020
    %v3022 = vmul.f32 1.0, %v3021
    %v3023 = vadd.f32 %v2755, %v2944
    %v3024 = vxor.u32 %v3023, 2147483648
    %v3025 = vmul.f32 %v3024, 1.442695
    %v3026 = vpow.pop %v3025
    %v3027 = vadd.f32 %v3026, 1.0
    %v3028 = vrcp.pop %v3027
    %v3029 = vmul.f32 1.0, %v3028
    %v3030 = vadd.f32 %v3013, %v607
    %v3031 = vmul.f32 %v3022, %v3030
    %v3032 = vadd.f32 %v2824, %v3031
    %v3033 = vtanh.pop %v3032
    %v3034 = vsub.f32 %v2432, %v3033
    %v3035 = vmul.f32 %v3029, %v3034
    %v3036 = vadd.f32 %v3033, %v3035
    %v3037 = vld [vmem:[#allocation10] sm:$0xff]
    %v3038 = vld [vmem:[#allocation10 + $0x8] sm:$0xff]
    %v3039 = vld [vmem:[#allocation10 + $0x10] sm:$0xff]
    %v3040 = vld [vmem:[#allocation10 + $0x18] sm:$0xff]
    %v3041 = vld [vmem:[#allocation10 + $0x20] sm:$0xff]
    %v3042 = vld [vmem:[#allocation10 + $0x28] sm:$0xff]
    %v3043 = vld [vmem:[#allocation10 + $0x30] sm:$0xff]
    %v3044 = vld [vmem:[#allocation10 + $0x38] sm:$0xff]
    %v3045 = vld [vmem:[#allocation10 + $0x40] sm:$0xff]
    %v3046 = vld [vmem:[#allocation10 + $0x48] sm:$0xff]
    %v3047 = vld [vmem:[#allocation10 + $0x50] sm:$0xff]
    %v3048 = vld [vmem:[#allocation10 + $0x58] sm:$0xff]
    %v3049 = vld [vmem:[#allocation10 + $0x60] sm:$0xff]
    %v3050 = vld [vmem:[#allocation10 + $0x68] sm:$0xff]
    %v3051 = vld [vmem:[#allocation10 + $0x70] sm:$0xff]
    %v3052 = vld [vmem:[#allocation10 + $0x78] sm:$0xff]
    %3053 = vmatprep.subr.mxu0 0.0
    %3054 = vmatpush1.msra.mxu0 %v3037
    %3055 = vmatprep.subr.mxu0 0.0
    %3056 = vmatpush1.msra.mxu0 %v3038
    %3057 = vmatprep.subr.mxu0 0.0
    %3058 = vmatpush1.msra.mxu0 %v3039
    %3059 = vmatprep.subr.mxu0 0.0
    %3060 = vmatpush1.msra.mxu0 %v3040
    %3061 = vmatprep.subr.mxu0 0.0
    %3062 = vmatpush1.msra.mxu0 %v3041
    %3063 = vmatprep.subr.mxu0 0.0
    %3064 = vmatpush1.msra.mxu0 %v3042
    %3065 = vmatprep.subr.mxu0 0.0
    %3066 = vmatpush1.msra.mxu0 %v3043
    %3067 = vmatprep.subr.mxu0 0.0
    %3068 = vmatpush1.msra.mxu0 %v3044
    %3069 = vmatprep.subr.mxu0 0.0
    %3070 = vmatpush1.msra.mxu0 %v3045
    %3071 = vmatprep.subr.mxu0 0.0
    %3072 = vmatpush1.msra.mxu0 %v3046
    %3073 = vmatprep.subr.mxu0 0.0
    %3074 = vmatpush1.msra.mxu0 %v3047
    %3075 = vmatprep.subr.mxu0 0.0
    %3076 = vmatpush1.msra.mxu0 %v3048
    %3077 = vmatprep.subr.mxu0 0.0
    %3078 = vmatpush1.msra.mxu0 %v3049
    %3079 = vmatprep.subr.mxu0 0.0
    %3080 = vmatpush1.msra.mxu0 %v3050
    %3081 = vmatprep.subr.mxu0 0.0
    %3082 = vmatpush1.msra.mxu0 %v3051
    %3083 = vmatprep.subr.mxu0 0.0
    %3084 = vmatpush1.msra.mxu0 %v3052
    %3085 = vmatprep.subr.mxu0 0.0
    %3086 = vmatpush1.msra.mxu0 0.0
    %3087 = vmatprep.subr.mxu0 0.0
    %3088 = vmatpush1.msra.mxu0 0.0
    %3089 = vmatprep.subr.mxu0 0.0
    %3090 = vmatpush1.msra.mxu0 0.0
    %3091 = vmatprep.subr.mxu0 0.0
    %3092 = vmatpush1.msra.mxu0 0.0
    %3093 = vmatprep.subr.mxu0 0.0
    %3094 = vmatpush1.msra.mxu0 0.0
    %3095 = vmatprep.subr.mxu0 0.0
    %3096 = vmatpush1.msra.mxu0 0.0
    %3097 = vmatprep.subr.mxu0 0.0
    %3098 = vmatpush1.msra.mxu0 0.0
    %3099 = vmatprep.subr.mxu0 0.0
    %3100 = vmatpush1.msra.mxu0 0.0
    %3101 = vmatprep.subr.mxu0 0.0
    %3102 = vmatpush1.msra.mxu0 0.0
    %3103 = vmatprep.subr.mxu0 0.0
    %3104 = vmatpush1.msra.mxu0 0.0
    %3105 = vmatprep.subr.mxu0 0.0
    %3106 = vmatpush1.msra.mxu0 0.0
    %3107 = vmatprep.subr.mxu0 0.0
    %3108 = vmatpush1.msra.mxu0 0.0
    %3109 = vmatprep.subr.mxu0 0.0
    %3110 = vmatpush1.msra.mxu0 0.0
    %3111 = vmatprep.subr.mxu0 0.0
    %3112 = vmatpush1.msra.mxu0 0.0
    %3113 = vmatprep.subr.mxu0 0.0
    %3114 = vmatpush1.msra.mxu0 0.0
    %3115 = vmatprep.subr.mxu0 0.0
    %3116 = vmatpush1.msra.mxu0 0.0
    %3117 = vmatprep.mubr.f32.mxu0 0.0
    %3118 = vmatmul.mubr.f32.gmra.mrb[0].mxu0 %v3036
    %v3119 = vpop.f32.mrb[0].mxu0
    %v3120 = vadd.f32 %v636, %v3119
    %v3121 = vpop.f32.mrb[0].mxu0
    %3122 = vdwg.mxu0
    %3123 = vmax.xlane.f32.xlu0 %v3120
    %v3124 = vpop.xlane.xlu0 %3123
    %vm3125 = vcmp.eq.f32.partialorder %v3120, %v3124
    %v3126 = vsel %vm3125, %v100, 128
    %v3127 = vand.u32 %v3126, 65535
    %v3128 = vshra.s32 %v3126, 16
    %v3129 = vcvt.s32.f32 %v3127
    %v3130 = vcvt.s32.f32 %v3128
    %3131 = vmin.xlane.f32.xlu0 %v3130
    %v3132 = vpop.xlane.xlu0 %3131
    %vm3133 = vcmp.eq.f32.partialorder %v3130, %v3132
    %v3134 = vsel %vm3133, %v3129, inf
    %3135 = vmin.xlane.f32.xlu0 %v3134
    %v3136 = vpop.xlane.xlu0 %3135
    %v3137 = vcvt.f32.s32 %v3136
    %v3138 = vcvt.f32.s32 %v3132
    %v3139 = vshll.u32 %v3138, 16
    %v3140 = vadd.s32 %v3139, %v3137
    %v3141 = vsub.f32 %v3120, %v3124
    %v3142 = vmul.f32 %v3141, 1.442695
    %v3143 = vpow.pop %v3142
    %3144 = vadd.xlane.f32.xlu0 %v3143
    %v3145 = vpop.xlane.xlu0 %3144
    %v3146 = vlog2.pop %v3145
    %v3147 = vmul.f32 %v3146, 0.6931472
    %v3148 = vadd.f32 %v3124, %v3147
    %v3149 = vsub.f32 %v3120, %v3148
    %s3150 = scalar_lea.vmem [#allocation11], 32
    %3151 = vst [vmem:[%s3150] sm:$0xff] %v3149
    %vm3152 = vcmp.eq.s32.totalorder %v100, %v3140
    %v3153 = vsel %vm3152, 1, 0
    %v3154 = vcvt.s32.f32 %v3153
    %v3155 = vld [vmem:[#allocation5] sm:$0xff]
    %v3156 = vld [vmem:[#allocation5 + $0x8] sm:$0xff]
    %v3157 = vld [vmem:[#allocation5 + $0x10] sm:$0xff]
    %v3158 = vld [vmem:[#allocation5 + $0x18] sm:$0xff]
    %v3159 = vld [vmem:[#allocation5 + $0x20] sm:$0xff]
    %v3160 = vld [vmem:[#allocation5 + $0x28] sm:$0xff]
    %v3161 = vld [vmem:[#allocation5 + $0x30] sm:$0xff]
    %v3162 = vld [vmem:[#allocation5 + $0x38] sm:$0xff]
    %v3163 = vld [vmem:[#allocation5 + $0x40] sm:$0xff]
    %v3164 = vld [vmem:[#allocation5 + $0x48] sm:$0xff]
    %v3165 = vld [vmem:[#allocation5 + $0x50] sm:$0xff]
    %v3166 = vld [vmem:[#allocation5 + $0x58] sm:$0xff]
    %v3167 = vld [vmem:[#allocation5 + $0x60] sm:$0xff]
    %v3168 = vld [vmem:[#allocation5 + $0x68] sm:$0xff]
    %v3169 = vld [vmem:[#allocation5 + $0x70] sm:$0xff]
    %v3170 = vld [vmem:[#allocation5 + $0x78] sm:$0xff]
    %3171 = vmatprep.subr.mxu0 0.0
    %3172 = vmatpush1.msra.mxu0 %v3155
    %3173 = vmatprep.subr.mxu0 0.0
    %3174 = vmatpush1.msra.mxu0 %v3156
    %3175 = vmatprep.subr.mxu0 0.0
    %3176 = vmatpush1.msra.mxu0 %v3157
    %3177 = vmatprep.subr.mxu0 0.0
    %3178 = vmatpush1.msra.mxu0 %v3158
    %3179 = vmatprep.subr.mxu0 0.0
    %3180 = vmatpush1.msra.mxu0 %v3159
    %3181 = vmatprep.subr.mxu0 0.0
    %3182 = vmatpush1.msra.mxu0 %v3160
    %3183 = vmatprep.subr.mxu0 0.0
    %3184 = vmatpush1.msra.mxu0 %v3161
    %3185 = vmatprep.subr.mxu0 0.0
    %3186 = vmatpush1.msra.mxu0 %v3162
    %3187 = vmatprep.subr.mxu0 0.0
    %3188 = vmatpush1.msra.mxu0 %v3163
    %3189 = vmatprep.subr.mxu0 0.0
    %3190 = vmatpush1.msra.mxu0 %v3164
    %3191 = vmatprep.subr.mxu0 0.0
    %3192 = vmatpush1.msra.mxu0 %v3165
    %3193 = vmatprep.subr.mxu0 0.0
    %3194 = vmatpush1.msra.mxu0 %v3166
    %3195 = vmatprep.subr.mxu0 0.0
    %3196 = vmatpush1.msra.mxu0 %v3167
    %3197 = vmatprep.subr.mxu0 0.0
    %3198 = vmatpush1.msra.mxu0 %v3168
    %3199 = vmatprep.subr.mxu0 0.0
    %3200 = vmatpush1.msra.mxu0 %v3169
    %3201 = vmatprep.subr.mxu0 0.0
    %3202 = vmatpush1.msra.mxu0 %v3170
    %3203 = vmatprep.subr.mxu0 0.0
    %3204 = vmatpush1.msra.mxu0 0.0
    %3205 = vmatprep.subr.mxu0 0.0
    %3206 = vmatpush1.msra.mxu0 0.0
    %3207 = vmatprep.subr.mxu0 0.0
    %3208 = vmatpush1.msra.mxu0 0.0
    %3209 = vmatprep.subr.mxu0 0.0
    %3210 = vmatpush1.msra.mxu0 0.0
    %3211 = vmatprep.subr.mxu0 0.0
    %3212 = vmatpush1.msra.mxu0 0.0
    %3213 = vmatprep.subr.mxu0 0.0
    %3214 = vmatpush1.msra.mxu0 0.0
    %3215 = vmatprep.subr.mxu0 0.0
    %3216 = vmatpush1.msra.mxu0 0.0
    %3217 = vmatprep.subr.mxu0 0.0
    %3218 = vmatpush1.msra.mxu0 0.0
    %3219 = vmatprep.subr.mxu0 0.0
    %3220 = vmatpush1.msra.mxu0 0.0
    %3221 = vmatprep.subr.mxu0 0.0
    %3222 = vmatpush1.msra.mxu0 0.0
    %3223 = vmatprep.subr.mxu0 0.0
    %3224 = vmatpush1.msra.mxu0 0.0
    %3225 = vmatprep.subr.mxu0 0.0
    %3226 = vmatpush1.msra.mxu0 0.0
    %3227 = vmatprep.subr.mxu0 0.0
    %3228 = vmatpush1.msra.mxu0 0.0
    %3229 = vmatprep.subr.mxu0 0.0
    %3230 = vmatpush1.msra.mxu0 0.0
    %3231 = vmatprep.subr.mxu0 0.0
    %3232 = vmatpush1.msra.mxu0 0.0
    %3233 = vmatprep.subr.mxu0 0.0
    %3234 = vmatpush1.msra.mxu0 0.0
    %3235 = vmatprep.mubr.f32.mxu0 0.0
    %3236 = vmatmul.mubr.f32.gmra.mrb[0].mxu0 %v3154
    %v3237 = vpop.f32.mrb[0].mxu0
    %v3238 = vadd.f32 0.0, %v3237
    %v3239 = vpop.f32.mrb[0].mxu0
    %3240 = vdwg.mxu0
    %v3241 = vmax.f32 %v3238, 0.0
    %v3242 = vld [vmem:[#allocation7] sm:$0xff]
    %v3243 = vld [vmem:[#allocation7 + $0x8] sm:$0xff]
    %v3244 = vld [vmem:[#allocation7 + $0x10] sm:$0xff]
    %v3245 = vld [vmem:[#allocation7 + $0x18] sm:$0xff]
    %v3246 = vld [vmem:[#allocation7 + $0x20] sm:$0xff]
    %v3247 = vld [vmem:[#allocation7 + $0x28] sm:$0xff]
    %v3248 = vld [vmem:[#allocation7 + $0x30] sm:$0xff]
    %v3249 = vld [vmem:[#allocation7 + $0x38] sm:$0xff]
    %v3250 = vld [vmem:[#allocation7 + $0x40] sm:$0xff]
    %v3251 = vld [vmem:[#allocation7 + $0x48] sm:$0xff]
    %v3252 = vld [vmem:[#allocation7 + $0x50] sm:$0xff]
    %v3253 = vld [vmem:[#allocation7 + $0x58] sm:$0xff]
    %v3254 = vld [vmem:[#allocation7 + $0x60] sm:$0xff]
    %v3255 = vld [vmem:[#allocation7 + $0x68] sm:$0xff]
    %v3256 = vld [vmem:[#allocation7 + $0x70] sm:$0xff]
    %v3257 = vld [vmem:[#allocation7 + $0x78] sm:$0xff]
    %v3258 = vld [vmem:[#allocation7 + $0x80] sm:$0xff]
    %v3259 = vld [vmem:[#allocation7 + $0x88] sm:$0xff]
    %v3260 = vld [vmem:[#allocation7 + $0x90] sm:$0xff]
    %v3261 = vld [vmem:[#allocation7 + $0x98] sm:$0xff]
    %v3262 = vld [vmem:[#allocation7 + $0xa0] sm:$0xff]
    %v3263 = vld [vmem:[#allocation7 + $0xa8] sm:$0xff]
    %v3264 = vld [vmem:[#allocation7 + $0xb0] sm:$0xff]
    %v3265 = vld [vmem:[#allocation7 + $0xb8] sm:$0xff]
    %v3266 = vld [vmem:[#allocation7 + $0xc0] sm:$0xff]
    %v3267 = vld [vmem:[#allocation7 + $0xc8] sm:$0xff]
    %v3268 = vld [vmem:[#allocation7 + $0xd0] sm:$0xff]
    %v3269 = vld [vmem:[#allocation7 + $0xd8] sm:$0xff]
    %v3270 = vld [vmem:[#allocation7 + $0xe0] sm:$0xff]
    %v3271 = vld [vmem:[#allocation7 + $0xe8] sm:$0xff]
    %v3272 = vld [vmem:[#allocation7 + $0xf0] sm:$0xff]
    %v3273 = vld [vmem:[#allocation7 + $0xf8] sm:$0xff]
    %v3274 = vld [vmem:[#allocation7 + $0x100] sm:$0xff]
    %v3275 = vld [vmem:[#allocation7 + $0x108] sm:$0xff]
    %v3276 = vld [vmem:[#allocation7 + $0x110] sm:$0xff]
    %v3277 = vld [vmem:[#allocation7 + $0x118] sm:$0xff]
    %v3278 = vld [vmem:[#allocation7 + $0x120] sm:$0xff]
    %v3279 = vld [vmem:[#allocation7 + $0x128] sm:$0xff]
    %v3280 = vld [vmem:[#allocation7 + $0x130] sm:$0xff]
    %v3281 = vld [vmem:[#allocation7 + $0x138] sm:$0xff]
    %v3282 = vld [vmem:[#allocation7 + $0x140] sm:$0xff]
    %v3283 = vld [vmem:[#allocation7 + $0x148] sm:$0xff]
    %v3284 = vld [vmem:[#allocation7 + $0x150] sm:$0xff]
    %v3285 = vld [vmem:[#allocation7 + $0x158] sm:$0xff]
    %v3286 = vld [vmem:[#allocation7 + $0x160] sm:$0xff]
    %v3287 = vld [vmem:[#allocation7 + $0x168] sm:$0xff]
    %v3288 = vld [vmem:[#allocation7 + $0x170] sm:$0xff]
    %v3289 = vld [vmem:[#allocation7 + $0x178] sm:$0xff]
    %3290 = vmatprep.subr.mxu0 %v3243
    %3291 = vmatpush1.msra.mxu0 %v3242
    %3292 = vmatprep.subr.mxu0 %v3246
    %3293 = vmatpush1.msra.mxu0 %v3245
    %3294 = vmatprep.subr.mxu0 %v3249
    %3295 = vmatpush1.msra.mxu0 %v3248
    %3296 = vmatprep.subr.mxu0 %v3252
    %3297 = vmatpush1.msra.mxu0 %v3251
    %3298 = vmatprep.subr.mxu0 %v3255
    %3299 = vmatpush1.msra.mxu0 %v3254
    %3300 = vmatprep.subr.mxu0 %v3258
    %3301 = vmatpush1.msra.mxu0 %v3257
    %3302 = vmatprep.subr.mxu0 %v3261
    %3303 = vmatpush1.msra.mxu0 %v3260
    %3304 = vmatprep.subr.mxu0 %v3264
    %3305 = vmatpush1.msra.mxu0 %v3263
    %3306 = vmatprep.subr.mxu0 %v3267
    %3307 = vmatpush1.msra.mxu0 %v3266
    %3308 = vmatprep.subr.mxu0 %v3270
    %3309 = vmatpush1.msra.mxu0 %v3269
    %3310 = vmatprep.subr.mxu0 %v3273
    %3311 = vmatpush1.msra.mxu0 %v3272
    %3312 = vmatprep.subr.mxu0 %v3276
    %3313 = vmatpush1.msra.mxu0 %v3275
    %3314 = vmatprep.subr.mxu0 %v3279
    %3315 = vmatpush1.msra.mxu0 %v3278
    %3316 = vmatprep.subr.mxu0 %v3282
    %3317 = vmatpush1.msra.mxu0 %v3281
    %3318 = vmatprep.subr.mxu0 %v3285
    %3319 = vmatpush1.msra.mxu0 %v3284
    %3320 = vmatprep.subr.mxu0 %v3288
    %3321 = vmatpush1.msra.mxu0 %v3287
    %3322 = vmatprep.subr.mxu0 0.0
    %3323 = vmatpush1.msra.mxu0 0.0
    %3324 = vmatprep.subr.mxu0 0.0
    %3325 = vmatpush1.msra.mxu0 0.0
    %3326 = vmatprep.subr.mxu0 0.0
    %3327 = vmatpush1.msra.mxu0 0.0
    %3328 = vmatprep.subr.mxu0 0.0
    %3329 = vmatpush1.msra.mxu0 0.0
    %3330 = vmatprep.subr.mxu0 0.0
    %3331 = vmatpush1.msra.mxu0 0.0
    %3332 = vmatprep.subr.mxu0 0.0
    %3333 = vmatpush1.msra.mxu0 0.0
    %3334 = vmatprep.subr.mxu0 0.0
    %3335 = vmatpush1.msra.mxu0 0.0
    %3336 = vmatprep.subr.mxu0 0.0
    %3337 = vmatpush1.msra.mxu0 0.0
    %3338 = vmatprep.subr.mxu0 0.0
    %3339 = vmatpush1.msra.mxu0 0.0
    %3340 = vmatprep.subr.mxu0 0.0
    %3341 = vmatpush1.msra.mxu0 0.0
    %3342 = vmatprep.subr.mxu0 0.0
    %3343 = vmatpush1.msra.mxu0 0.0
    %3344 = vmatprep.subr.mxu0 0.0
    %3345 = vmatpush1.msra.mxu0 0.0
    %3346 = vmatprep.subr.mxu0 0.0
    %3347 = vmatpush1.msra.mxu0 0.0
    %3348 = vmatprep.subr.mxu0 0.0
    %3349 = vmatpush1.msra.mxu0 0.0
    %3350 = vmatprep.subr.mxu0 0.0
    %3351 = vmatpush1.msra.mxu0 0.0
    %3352 = vmatprep.subr.mxu0 0.0
    %3353 = vmatpush1.msra.mxu0 0.0
    %3354 = vmatprep.mubr.f32.mxu0 0.0
    %3355 = vmatmul.mubr.f32.gmra.mrb[0].mxu0 %v3241
    %v3356 = vpop.f32.mrb[0].mxu0
    %v3357 = vadd.f32 %v247, %v3356
    %v3358 = vpop.f32.mrb[0].mxu0
    %v3359 = vadd.f32 %v251, %v3358
    %3360 = vdwg.mxu0
    %3361 = vmatprep.subr.mxu0 0.0
    %3362 = vmatpush1.msra.mxu0 %v3244
    %3363 = vmatprep.subr.mxu0 0.0
    %3364 = vmatpush1.msra.mxu0 %v3247
    %3365 = vmatprep.subr.mxu0 0.0
    %3366 = vmatpush1.msra.mxu0 %v3250
    %3367 = vmatprep.subr.mxu0 0.0
    %3368 = vmatpush1.msra.mxu0 %v3253
    %3369 = vmatprep.subr.mxu0 0.0
    %3370 = vmatpush1.msra.mxu0 %v3256
    %3371 = vmatprep.subr.mxu0 0.0
    %3372 = vmatpush1.msra.mxu0 %v3259
    %3373 = vmatprep.subr.mxu0 0.0
    %3374 = vmatpush1.msra.mxu0 %v3262
    %3375 = vmatprep.subr.mxu0 0.0
    %3376 = vmatpush1.msra.mxu0 %v3265
    %3377 = vmatprep.subr.mxu0 0.0
    %3378 = vmatpush1.msra.mxu0 %v3268
    %3379 = vmatprep.subr.mxu0 0.0
    %3380 = vmatpush1.msra.mxu0 %v3271
    %3381 = vmatprep.subr.mxu0 0.0
    %3382 = vmatpush1.msra.mxu0 %v3274
    %3383 = vmatprep.subr.mxu0 0.0
    %3384 = vmatpush1.msra.mxu0 %v3277
    %3385 = vmatprep.subr.mxu0 0.0
    %3386 = vmatpush1.msra.mxu0 %v3280
    %3387 = vmatprep.subr.mxu0 0.0
    %3388 = vmatpush1.msra.mxu0 %v3283
    %3389 = vmatprep.subr.mxu0 0.0
    %3390 = vmatpush1.msra.mxu0 %v3286
    %3391 = vmatprep.subr.mxu0 0.0
    %3392 = vmatpush1.msra.mxu0 %v3289
    %3393 = vmatprep.subr.mxu0 0.0
    %3394 = vmatpush1.msra.mxu0 0.0
    %3395 = vmatprep.subr.mxu0 0.0
    %3396 = vmatpush1.msra.mxu0 0.0
    %3397 = vmatprep.subr.mxu0 0.0
    %3398 = vmatpush1.msra.mxu0 0.0
    %3399 = vmatprep.subr.mxu0 0.0
    %3400 = vmatpush1.msra.mxu0 0.0
    %3401 = vmatprep.subr.mxu0 0.0
    %3402 = vmatpush1.msra.mxu0 0.0
    %3403 = vmatprep.subr.mxu0 0.0
    %3404 = vmatpush1.msra.mxu0 0.0
    %3405 = vmatprep.subr.mxu0 0.0
    %3406 = vmatpush1.msra.mxu0 0.0
    %3407 = vmatprep.subr.mxu0 0.0
    %3408 = vmatpush1.msra.mxu0 0.0
    %3409 = vmatprep.subr.mxu0 0.0
    %3410 = vmatpush1.msra.mxu0 0.0
    %3411 = vmatprep.subr.mxu0 0.0
    %3412 = vmatpush1.msra.mxu0 0.0
    %3413 = vmatprep.subr.mxu0 0.0
    %3414 = vmatpush1.msra.mxu0 0.0
    %3415 = vmatprep.subr.mxu0 0.0
    %3416 = vmatpush1.msra.mxu0 0.0
    %3417 = vmatprep.subr.mxu0 0.0
    %3418 = vmatpush1.msra.mxu0 0.0
    %3419 = vmatprep.subr.mxu0 0.0
    %3420 = vmatpush1.msra.mxu0 0.0
    %3421 = vmatprep.subr.mxu0 0.0
    %3422 = vmatpush1.msra.mxu0 0.0
    %3423 = vmatprep.subr.mxu0 0.0
    %3424 = vmatpush1.msra.mxu0 0.0
    %3425 = vmatprep.mubr.f32.mxu0 0.0
    %3426 = vmatmul.mubr.f32.gmra.mrb[0].mxu0 %v3241
    %v3427 = vpop.f32.mrb[0].mxu0
    %v3428 = vadd.f32 %v255, %v3427
    %v3429 = vpop.f32.mrb[0].mxu0
    %3430 = vdwg.mxu0
    %v3431 = vld [vmem:[#allocation8] sm:$0xff]
    %v3432 = vld [vmem:[#allocation8 + $0x8] sm:$0xff]
    %v3433 = vld [vmem:[#allocation8 + $0x10] sm:$0xff]
    %v3434 = vld [vmem:[#allocation8 + $0x18] sm:$0xff]
    %v3435 = vld [vmem:[#allocation8 + $0x20] sm:$0xff]
    %v3436 = vld [vmem:[#allocation8 + $0x28] sm:$0xff]
    %v3437 = vld [vmem:[#allocation8 + $0x30] sm:$0xff]
    %v3438 = vld [vmem:[#allocation8 + $0x38] sm:$0xff]
    %v3439 = vld [vmem:[#allocation8 + $0x40] sm:$0xff]
    %v3440 = vld [vmem:[#allocation8 + $0x48] sm:$0xff]
    %v3441 = vld [vmem:[#allocation8 + $0x50] sm:$0xff]
    %v3442 = vld [vmem:[#allocation8 + $0x58] sm:$0xff]
    %v3443 = vld [vmem:[#allocation8 + $0x60] sm:$0xff]
    %v3444 = vld [vmem:[#allocation8 + $0x68] sm:$0xff]
    %v3445 = vld [vmem:[#allocation8 + $0x70] sm:$0xff]
    %v3446 = vld [vmem:[#allocation8 + $0x78] sm:$0xff]
    %v3447 = vld [vmem:[#allocation8 + $0x80] sm:$0xff]
    %v3448 = vld [vmem:[#allocation8 + $0x88] sm:$0xff]
    %v3449 = vld [vmem:[#allocation8 + $0x90] sm:$0xff]
    %v3450 = vld [vmem:[#allocation8 + $0x98] sm:$0xff]
    %v3451 = vld [vmem:[#allocation8 + $0xa0] sm:$0xff]
    %v3452 = vld [vmem:[#allocation8 + $0xa8] sm:$0xff]
    %v3453 = vld [vmem:[#allocation8 + $0xb0] sm:$0xff]
    %v3454 = vld [vmem:[#allocation8 + $0xb8] sm:$0xff]
    %v3455 = vld [vmem:[#allocation8 + $0xc0] sm:$0xff]
    %v3456 = vld [vmem:[#allocation8 + $0xc8] sm:$0xff]
    %v3457 = vld [vmem:[#allocation8 + $0xd0] sm:$0xff]
    %v3458 = vld [vmem:[#allocation8 + $0xd8] sm:$0xff]
    %v3459 = vld [vmem:[#allocation8 + $0xe0] sm:$0xff]
    %v3460 = vld [vmem:[#allocation8 + $0xe8] sm:$0xff]
    %v3461 = vld [vmem:[#allocation8 + $0xf0] sm:$0xff]
    %v3462 = vld [vmem:[#allocation8 + $0xf8] sm:$0xff]
    %v3463 = vld [vmem:[#allocation8 + $0x100] sm:$0xff]
    %v3464 = vld [vmem:[#allocation8 + $0x108] sm:$0xff]
    %v3465 = vld [vmem:[#allocation8 + $0x110] sm:$0xff]
    %v3466 = vld [vmem:[#allocation8 + $0x118] sm:$0xff]
    %v3467 = vld [vmem:[#allocation8 + $0x120] sm:$0xff]
    %v3468 = vld [vmem:[#allocation8 + $0x128] sm:$0xff]
    %v3469 = vld [vmem:[#allocation8 + $0x130] sm:$0xff]
    %v3470 = vld [vmem:[#allocation8 + $0x138] sm:$0xff]
    %v3471 = vld [vmem:[#allocation8 + $0x140] sm:$0xff]
    %v3472 = vld [vmem:[#allocation8 + $0x148] sm:$0xff]
    %v3473 = vld [vmem:[#allocation8 + $0x150] sm:$0xff]
    %v3474 = vld [vmem:[#allocation8 + $0x158] sm:$0xff]
    %v3475 = vld [vmem:[#allocation8 + $0x160] sm:$0xff]
    %v3476 = vld [vmem:[#allocation8 + $0x168] sm:$0xff]
    %v3477 = vld [vmem:[#allocation8 + $0x170] sm:$0xff]
    %v3478 = vld [vmem:[#allocation8 + $0x178] sm:$0xff]
    %3479 = vmatprep.subr.mxu0 %v3432
    %3480 = vmatpush1.msra.mxu0 %v3431
    %3481 = vmatprep.subr.mxu0 %v3435
    %3482 = vmatpush1.msra.mxu0 %v3434
    %3483 = vmatprep.subr.mxu0 %v3438
    %3484 = vmatpush1.msra.mxu0 %v3437
    %3485 = vmatprep.subr.mxu0 %v3441
    %3486 = vmatpush1.msra.mxu0 %v3440
    %3487 = vmatprep.subr.mxu0 %v3444
    %3488 = vmatpush1.msra.mxu0 %v3443
    %3489 = vmatprep.subr.mxu0 %v3447
    %3490 = vmatpush1.msra.mxu0 %v3446
    %3491 = vmatprep.subr.mxu0 %v3450
    %3492 = vmatpush1.msra.mxu0 %v3449
    %3493 = vmatprep.subr.mxu0 %v3453
    %3494 = vmatpush1.msra.mxu0 %v3452
    %3495 = vmatprep.subr.mxu0 %v3456
    %3496 = vmatpush1.msra.mxu0 %v3455
    %3497 = vmatprep.subr.mxu0 %v3459
    %3498 = vmatpush1.msra.mxu0 %v3458
    %3499 = vmatprep.subr.mxu0 %v3462
    %3500 = vmatpush1.msra.mxu0 %v3461
    %3501 = vmatprep.subr.mxu0 %v3465
    %3502 = vmatpush1.msra.mxu0 %v3464
    %3503 = vmatprep.subr.mxu0 %v3468
    %3504 = vmatpush1.msra.mxu0 %v3467
    %3505 = vmatprep.subr.mxu0 %v3471
    %3506 = vmatpush1.msra.mxu0 %v3470
    %3507 = vmatprep.subr.mxu0 %v3474
    %3508 = vmatpush1.msra.mxu0 %v3473
    %3509 = vmatprep.subr.mxu0 %v3477
    %3510 = vmatpush1.msra.mxu0 %v3476
    %3511 = vmatprep.subr.mxu0 0.0
    %3512 = vmatpush1.msra.mxu0 0.0
    %3513 = vmatprep.subr.mxu0 0.0
    %3514 = vmatpush1.msra.mxu0 0.0
    %3515 = vmatprep.subr.mxu0 0.0
    %3516 = vmatpush1.msra.mxu0 0.0
    %3517 = vmatprep.subr.mxu0 0.0
    %3518 = vmatpush1.msra.mxu0 0.0
    %3519 = vmatprep.subr.mxu0 0.0
    %3520 = vmatpush1.msra.mxu0 0.0
    %3521 = vmatprep.subr.mxu0 0.0
    %3522 = vmatpush1.msra.mxu0 0.0
    %3523 = vmatprep.subr.mxu0 0.0
    %3524 = vmatpush1.msra.mxu0 0.0
    %3525 = vmatprep.subr.mxu0 0.0
    %3526 = vmatpush1.msra.mxu0 0.0
    %3527 = vmatprep.subr.mxu0 0.0
    %3528 = vmatpush1.msra.mxu0 0.0
    %3529 = vmatprep.subr.mxu0 0.0
    %3530 = vmatpush1.msra.mxu0 0.0
    %3531 = vmatprep.subr.mxu0 0.0
    %3532 = vmatpush1.msra.mxu0 0.0
    %3533 = vmatprep.subr.mxu0 0.0
    %3534 = vmatpush1.msra.mxu0 0.0
    %3535 = vmatprep.subr.mxu0 0.0
    %3536 = vmatpush1.msra.mxu0 0.0
    %3537 = vmatprep.subr.mxu0 0.0
    %3538 = vmatpush1.msra.mxu0 0.0
    %3539 = vmatprep.subr.mxu0 0.0
    %3540 = vmatpush1.msra.mxu0 0.0
    %3541 = vmatprep.subr.mxu0 0.0
    %3542 = vmatpush1.msra.mxu0 0.0
    %3543 = vmatprep.mubr.f32.mxu0 0.0
    %3544 = vmatmul.mubr.f32.gmra.mrb[0].mxu0 %v3036
    %v3545 = vpop.f32.mrb[0].mxu0
    %v3546 = vadd.f32 0.0, %v3545
    %v3547 = vpop.f32.mrb[0].mxu0
    %v3548 = vadd.f32 0.0, %v3547
    %3549 = vdwg.mxu0
    %3550 = vmatprep.subr.mxu0 0.0
    %3551 = vmatpush1.msra.mxu0 %v3433
    %3552 = vmatprep.subr.mxu0 0.0
    %3553 = vmatpush1.msra.mxu0 %v3436
    %3554 = vmatprep.subr.mxu0 0.0
    %3555 = vmatpush1.msra.mxu0 %v3439
    %3556 = vmatprep.subr.mxu0 0.0
    %3557 = vmatpush1.msra.mxu0 %v3442
    %3558 = vmatprep.subr.mxu0 0.0
    %3559 = vmatpush1.msra.mxu0 %v3445
    %3560 = vmatprep.subr.mxu0 0.0
    %3561 = vmatpush1.msra.mxu0 %v3448
    %3562 = vmatprep.subr.mxu0 0.0
    %3563 = vmatpush1.msra.mxu0 %v3451
    %3564 = vmatprep.subr.mxu0 0.0
    %3565 = vmatpush1.msra.mxu0 %v3454
    %3566 = vmatprep.subr.mxu0 0.0
    %3567 = vmatpush1.msra.mxu0 %v3457
    %3568 = vmatprep.subr.mxu0 0.0
    %3569 = vmatpush1.msra.mxu0 %v3460
    %3570 = vmatprep.subr.mxu0 0.0
    %3571 = vmatpush1.msra.mxu0 %v3463
    %3572 = vmatprep.subr.mxu0 0.0
    %3573 = vmatpush1.msra.mxu0 %v3466
    %3574 = vmatprep.subr.mxu0 0.0
    %3575 = vmatpush1.msra.mxu0 %v3469
    %3576 = vmatprep.subr.mxu0 0.0
    %3577 = vmatpush1.msra.mxu0 %v3472
    %3578 = vmatprep.subr.mxu0 0.0
    %3579 = vmatpush1.msra.mxu0 %v3475
    %3580 = vmatprep.subr.mxu0 0.0
    %3581 = vmatpush1.msra.mxu0 %v3478
    %3582 = vmatprep.subr.mxu0 0.0
    %3583 = vmatpush1.msra.mxu0 0.0
    %3584 = vmatprep.subr.mxu0 0.0
    %3585 = vmatpush1.msra.mxu0 0.0
    %3586 = vmatprep.subr.mxu0 0.0
    %3587 = vmatpush1.msra.mxu0 0.0
    %3588 = vmatprep.subr.mxu0 0.0
    %3589 = vmatpush1.msra.mxu0 0.0
    %3590 = vmatprep.subr.mxu0 0.0
    %3591 = vmatpush1.msra.mxu0 0.0
    %3592 = vmatprep.subr.mxu0 0.0
    %3593 = vmatpush1.msra.mxu0 0.0
    %3594 = vmatprep.subr.mxu0 0.0
    %3595 = vmatpush1.msra.mxu0 0.0
    %3596 = vmatprep.subr.mxu0 0.0
    %3597 = vmatpush1.msra.mxu0 0.0
    %3598 = vmatprep.subr.mxu0 0.0
    %3599 = vmatpush1.msra.mxu0 0.0
    %3600 = vmatprep.subr.mxu0 0.0
    %3601 = vmatpush1.msra.mxu0 0.0
    %3602 = vmatprep.subr.mxu0 0.0
    %3603 = vmatpush1.msra.mxu0 0.0
    %3604 = vmatprep.subr.mxu0 0.0
    %3605 = vmatpush1.msra.mxu0 0.0
    %3606 = vmatprep.subr.mxu0 0.0
    %3607 = vmatpush1.msra.mxu0 0.0
    %3608 = vmatprep.subr.mxu0 0.0
    %3609 = vmatpush1.msra.mxu0 0.0
    %3610 = vmatprep.subr.mxu0 0.0
    %3611 = vmatpush1.msra.mxu0 0.0
    %3612 = vmatprep.subr.mxu0 0.0
    %3613 = vmatpush1.msra.mxu0 0.0
    %3614 = vmatprep.mubr.f32.mxu0 0.0
    %3615 = vmatmul.mubr.f32.gmra.mrb[0].mxu0 %v3036
    %v3616 = vpop.f32.mrb[0].mxu0
    %v3617 = vadd.f32 0.0, %v3616
    %v3618 = vpop.f32.mrb[0].mxu0
    %3619 = vdwg.mxu0
    %v3620 = vadd.f32 %v3357, %v3546
    %v3621 = vxor.u32 %v3620, 2147483648
    %v3622 = vmul.f32 %v3621, 1.442695
    %v3623 = vpow.pop %v3622
    %v3624 = vadd.f32 %v3623, 1.0
    %v3625 = vrcp.pop %v3624
    %v3626 = vmul.f32 1.0, %v3625
    %v3627 = vadd.f32 %v3359, %v3548
    %v3628 = vxor.u32 %v3627, 2147483648
    %v3629 = vmul.f32 %v3628, 1.442695
    %v3630 = vpow.pop %v3629
    %v3631 = vadd.f32 %v3630, 1.0
    %v3632 = vrcp.pop %v3631
    %v3633 = vmul.f32 1.0, %v3632
    %v3634 = vadd.f32 %v3617, %v607
    %v3635 = vmul.f32 %v3626, %v3634
    %v3636 = vadd.f32 %v3428, %v3635
    %v3637 = vtanh.pop %v3636
    %v3638 = vsub.f32 %v3036, %v3637
    %v3639 = vmul.f32 %v3633, %v3638
    %v3640 = vadd.f32 %v3637, %v3639
    %v3641 = vld [vmem:[#allocation10] sm:$0xff]
    %v3642 = vld [vmem:[#allocation10 + $0x8] sm:$0xff]
    %v3643 = vld [vmem:[#allocation10 + $0x10] sm:$0xff]
    %v3644 = vld [vmem:[#allocation10 + $0x18] sm:$0xff]
    %v3645 = vld [vmem:[#allocation10 + $0x20] sm:$0xff]
    %v3646 = vld [vmem:[#allocation10 + $0x28] sm:$0xff]
    %v3647 = vld [vmem:[#allocation10 + $0x30] sm:$0xff]
    %v3648 = vld [vmem:[#allocation10 + $0x38] sm:$0xff]
    %v3649 = vld [vmem:[#allocation10 + $0x40] sm:$0xff]
    %v3650 = vld [vmem:[#allocation10 + $0x48] sm:$0xff]
    %v3651 = vld [vmem:[#allocation10 + $0x50] sm:$0xff]
    %v3652 = vld [vmem:[#allocation10 + $0x58] sm:$0xff]
    %v3653 = vld [vmem:[#allocation10 + $0x60] sm:$0xff]
    %v3654 = vld [vmem:[#allocation10 + $0x68] sm:$0xff]
    %v3655 = vld [vmem:[#allocation10 + $0x70] sm:$0xff]
    %v3656 = vld [vmem:[#allocation10 + $0x78] sm:$0xff]
    %3657 = vmatprep.subr.mxu0 0.0
    %3658 = vmatpush1.msra.mxu0 %v3641
    %3659 = vmatprep.subr.mxu0 0.0
    %3660 = vmatpush1.msra.mxu0 %v3642
    %3661 = vmatprep.subr.mxu0 0.0
    %3662 = vmatpush1.msra.mxu0 %v3643
    %3663 = vmatprep.subr.mxu0 0.0
    %3664 = vmatpush1.msra.mxu0 %v3644
    %3665 = vmatprep.subr.mxu0 0.0
    %3666 = vmatpush1.msra.mxu0 %v3645
    %3667 = vmatprep.subr.mxu0 0.0
    %3668 = vmatpush1.msra.mxu0 %v3646
    %3669 = vmatprep.subr.mxu0 0.0
    %3670 = vmatpush1.msra.mxu0 %v3647
    %3671 = vmatprep.subr.mxu0 0.0
    %3672 = vmatpush1.msra.mxu0 %v3648
    %3673 = vmatprep.subr.mxu0 0.0
    %3674 = vmatpush1.msra.mxu0 %v3649
    %3675 = vmatprep.subr.mxu0 0.0
    %3676 = vmatpush1.msra.mxu0 %v3650
    %3677 = vmatprep.subr.mxu0 0.0
    %3678 = vmatpush1.msra.mxu0 %v3651
    %3679 = vmatprep.subr.mxu0 0.0
    %3680 = vmatpush1.msra.mxu0 %v3652
    %3681 = vmatprep.subr.mxu0 0.0
    %3682 = vmatpush1.msra.mxu0 %v3653
    %3683 = vmatprep.subr.mxu0 0.0
    %3684 = vmatpush1.msra.mxu0 %v3654
    %3685 = vmatprep.subr.mxu0 0.0
    %3686 = vmatpush1.msra.mxu0 %v3655
    %3687 = vmatprep.subr.mxu0 0.0
    %3688 = vmatpush1.msra.mxu0 %v3656
    %3689 = vmatprep.subr.mxu0 0.0
    %3690 = vmatpush1.msra.mxu0 0.0
    %3691 = vmatprep.subr.mxu0 0.0
    %3692 = vmatpush1.msra.mxu0 0.0
    %3693 = vmatprep.subr.mxu0 0.0
    %3694 = vmatpush1.msra.mxu0 0.0
    %3695 = vmatprep.subr.mxu0 0.0
    %3696 = vmatpush1.msra.mxu0 0.0
    %3697 = vmatprep.subr.mxu0 0.0
    %3698 = vmatpush1.msra.mxu0 0.0
    %3699 = vmatprep.subr.mxu0 0.0
    %3700 = vmatpush1.msra.mxu0 0.0
    %3701 = vmatprep.subr.mxu0 0.0
    %3702 = vmatpush1.msra.mxu0 0.0
    %3703 = vmatprep.subr.mxu0 0.0
    %3704 = vmatpush1.msra.mxu0 0.0
    %3705 = vmatprep.subr.mxu0 0.0
    %3706 = vmatpush1.msra.mxu0 0.0
    %3707 = vmatprep.subr.mxu0 0.0
    %3708 = vmatpush1.msra.mxu0 0.0
    %3709 = vmatprep.subr.mxu0 0.0
    %3710 = vmatpush1.msra.mxu0 0.0
    %3711 = vmatprep.subr.mxu0 0.0
    %3712 = vmatpush1.msra.mxu0 0.0
    %3713 = vmatprep.subr.mxu0 0.0
    %3714 = vmatpush1.msra.mxu0 0.0
    %3715 = vmatprep.subr.mxu0 0.0
    %3716 = vmatpush1.msra.mxu0 0.0
    %3717 = vmatprep.subr.mxu0 0.0
    %3718 = vmatpush1.msra.mxu0 0.0
    %3719 = vmatprep.subr.mxu0 0.0
    %3720 = vmatpush1.msra.mxu0 0.0
    %3721 = vmatprep.mubr.f32.mxu0 0.0
    %3722 = vmatmul.mubr.f32.gmra.mrb[0].mxu0 %v3640
    %v3723 = vpop.f32.mrb[0].mxu0
    %v3724 = vadd.f32 %v636, %v3723
    %v3725 = vpop.f32.mrb[0].mxu0
    %3726 = vdwg.mxu0
    %3727 = vmax.xlane.f32.xlu0 %v3724
    %v3728 = vpop.xlane.xlu0 %3727
    %vm3729 = vcmp.eq.f32.partialorder %v3724, %v3728
    %v3730 = vsel %vm3729, %v100, 128
    %v3731 = vand.u32 %v3730, 65535
    %v3732 = vshra.s32 %v3730, 16
    %v3733 = vcvt.s32.f32 %v3731
    %v3734 = vcvt.s32.f32 %v3732
    %3735 = vmin.xlane.f32.xlu0 %v3734
    %v3736 = vpop.xlane.xlu0 %3735
    %vm3737 = vcmp.eq.f32.partialorder %v3734, %v3736
    %v3738 = vsel %vm3737, %v3733, inf
    %3739 = vmin.xlane.f32.xlu0 %v3738
    %v3740 = vpop.xlane.xlu0 %3739
    %v3741 = vcvt.f32.s32 %v3740
    %v3742 = vcvt.f32.s32 %v3736
    %v3743 = vshll.u32 %v3742, 16
    %v3744 = vadd.s32 %v3743, %v3741
    %v3745 = vsub.f32 %v3724, %v3728
    %v3746 = vmul.f32 %v3745, 1.442695
    %v3747 = vpow.pop %v3746
    %3748 = vadd.xlane.f32.xlu0 %v3747
    %v3749 = vpop.xlane.xlu0 %3748
    %v3750 = vlog2.pop %v3749
    %v3751 = vmul.f32 %v3750, 0.6931472
    %v3752 = vadd.f32 %v3728, %v3751
    %v3753 = vsub.f32 %v3724, %v3752
    %s3754 = scalar_lea.vmem [#allocation11], 40
    %3755 = vst [vmem:[%s3754] sm:$0xff] %v3753
    %vm3756 = vcmp.eq.s32.totalorder %v100, %v3744
    %v3757 = vsel %vm3756, 1, 0
    %v3758 = vcvt.s32.f32 %v3757
    %v3759 = vld [vmem:[#allocation5] sm:$0xff]
    %v3760 = vld [vmem:[#allocation5 + $0x8] sm:$0xff]
    %v3761 = vld [vmem:[#allocation5 + $0x10] sm:$0xff]
    %v3762 = vld [vmem:[#allocation5 + $0x18] sm:$0xff]
    %v3763 = vld [vmem:[#allocation5 + $0x20] sm:$0xff]
    %v3764 = vld [vmem:[#allocation5 + $0x28] sm:$0xff]
    %v3765 = vld [vmem:[#allocation5 + $0x30] sm:$0xff]
    %v3766 = vld [vmem:[#allocation5 + $0x38] sm:$0xff]
    %v3767 = vld [vmem:[#allocation5 + $0x40] sm:$0xff]
    %v3768 = vld [vmem:[#allocation5 + $0x48] sm:$0xff]
    %v3769 = vld [vmem:[#allocation5 + $0x50] sm:$0xff]
    %v3770 = vld [vmem:[#allocation5 + $0x58] sm:$0xff]
    %v3771 = vld [vmem:[#allocation5 + $0x60] sm:$0xff]
    %v3772 = vld [vmem:[#allocation5 + $0x68] sm:$0xff]
    %v3773 = vld [vmem:[#allocation5 + $0x70] sm:$0xff]
    %v3774 = vld [vmem:[#allocation5 + $0x78] sm:$0xff]
    %3775 = vmatprep.subr.mxu0 0.0
    %3776 = vmatpush1.msra.mxu0 %v3759
    %3777 = vmatprep.subr.mxu0 0.0
    %3778 = vmatpush1.msra.mxu0 %v3760
    %3779 = vmatprep.subr.mxu0 0.0
    %3780 = vmatpush1.msra.mxu0 %v3761
    %3781 = vmatprep.subr.mxu0 0.0
    %3782 = vmatpush1.msra.mxu0 %v3762
    %3783 = vmatprep.subr.mxu0 0.0
    %3784 = vmatpush1.msra.mxu0 %v3763
    %3785 = vmatprep.subr.mxu0 0.0
    %3786 = vmatpush1.msra.mxu0 %v3764
    %3787 = vmatprep.subr.mxu0 0.0
    %3788 = vmatpush1.msra.mxu0 %v3765
    %3789 = vmatprep.subr.mxu0 0.0
    %3790 = vmatpush1.msra.mxu0 %v3766
    %3791 = vmatprep.subr.mxu0 0.0
    %3792 = vmatpush1.msra.mxu0 %v3767
    %3793 = vmatprep.subr.mxu0 0.0
    %3794 = vmatpush1.msra.mxu0 %v3768
    %3795 = vmatprep.subr.mxu0 0.0
    %3796 = vmatpush1.msra.mxu0 %v3769
    %3797 = vmatprep.subr.mxu0 0.0
    %3798 = vmatpush1.msra.mxu0 %v3770
    %3799 = vmatprep.subr.mxu0 0.0
    %3800 = vmatpush1.msra.mxu0 %v3771
    %3801 = vmatprep.subr.mxu0 0.0
    %3802 = vmatpush1.msra.mxu0 %v3772
    %3803 = vmatprep.subr.mxu0 0.0
    %3804 = vmatpush1.msra.mxu0 %v3773
    %3805 = vmatprep.subr.mxu0 0.0
    %3806 = vmatpush1.msra.mxu0 %v3774
    %3807 = vmatprep.subr.mxu0 0.0
    %3808 = vmatpush1.msra.mxu0 0.0
    %3809 = vmatprep.subr.mxu0 0.0
    %3810 = vmatpush1.msra.mxu0 0.0
    %3811 = vmatprep.subr.mxu0 0.0
    %3812 = vmatpush1.msra.mxu0 0.0
    %3813 = vmatprep.subr.mxu0 0.0
    %3814 = vmatpush1.msra.mxu0 0.0
    %3815 = vmatprep.subr.mxu0 0.0
    %3816 = vmatpush1.msra.mxu0 0.0
    %3817 = vmatprep.subr.mxu0 0.0
    %3818 = vmatpush1.msra.mxu0 0.0
    %3819 = vmatprep.subr.mxu0 0.0
    %3820 = vmatpush1.msra.mxu0 0.0
    %3821 = vmatprep.subr.mxu0 0.0
    %3822 = vmatpush1.msra.mxu0 0.0
    %3823 = vmatprep.subr.mxu0 0.0
    %3824 = vmatpush1.msra.mxu0 0.0
    %3825 = vmatprep.subr.mxu0 0.0
    %3826 = vmatpush1.msra.mxu0 0.0
    %3827 = vmatprep.subr.mxu0 0.0
    %3828 = vmatpush1.msra.mxu0 0.0
    %3829 = vmatprep.subr.mxu0 0.0
    %3830 = vmatpush1.msra.mxu0 0.0
    %3831 = vmatprep.subr.mxu0 0.0
    %3832 = vmatpush1.msra.mxu0 0.0
    %3833 = vmatprep.subr.mxu0 0.0
    %3834 = vmatpush1.msra.mxu0 0.0
    %3835 = vmatprep.subr.mxu0 0.0
    %3836 = vmatpush1.msra.mxu0 0.0
    %3837 = vmatprep.subr.mxu0 0.0
    %3838 = vmatpush1.msra.mxu0 0.0
    %3839 = vmatprep.mubr.f32.mxu0 0.0
    %3840 = vmatmul.mubr.f32.gmra.mrb[0].mxu0 %v3758
    %v3841 = vpop.f32.mrb[0].mxu0
    %v3842 = vadd.f32 0.0, %v3841
    %v3843 = vpop.f32.mrb[0].mxu0
    %3844 = vdwg.mxu0
    %v3845 = vmax.f32 %v3842, 0.0
    %v3846 = vld [vmem:[#allocation7] sm:$0xff]
    %v3847 = vld [vmem:[#allocation7 + $0x8] sm:$0xff]
    %v3848 = vld [vmem:[#allocation7 + $0x10] sm:$0xff]
    %v3849 = vld [vmem:[#allocation7 + $0x18] sm:$0xff]
    %v3850 = vld [vmem:[#allocation7 + $0x20] sm:$0xff]
    %v3851 = vld [vmem:[#allocation7 + $0x28] sm:$0xff]
    %v3852 = vld [vmem:[#allocation7 + $0x30] sm:$0xff]
    %v3853 = vld [vmem:[#allocation7 + $0x38] sm:$0xff]
    %v3854 = vld [vmem:[#allocation7 + $0x40] sm:$0xff]
    %v3855 = vld [vmem:[#allocation7 + $0x48] sm:$0xff]
    %v3856 = vld [vmem:[#allocation7 + $0x50] sm:$0xff]
    %v3857 = vld [vmem:[#allocation7 + $0x58] sm:$0xff]
    %v3858 = vld [vmem:[#allocation7 + $0x60] sm:$0xff]
    %v3859 = vld [vmem:[#allocation7 + $0x68] sm:$0xff]
    %v3860 = vld [vmem:[#allocation7 + $0x70] sm:$0xff]
    %v3861 = vld [vmem:[#allocation7 + $0x78] sm:$0xff]
    %v3862 = vld [vmem:[#allocation7 + $0x80] sm:$0xff]
    %v3863 = vld [vmem:[#allocation7 + $0x88] sm:$0xff]
    %v3864 = vld [vmem:[#allocation7 + $0x90] sm:$0xff]
    %v3865 = vld [vmem:[#allocation7 + $0x98] sm:$0xff]
    %v3866 = vld [vmem:[#allocation7 + $0xa0] sm:$0xff]
    %v3867 = vld [vmem:[#allocation7 + $0xa8] sm:$0xff]
    %v3868 = vld [vmem:[#allocation7 + $0xb0] sm:$0xff]
    %v3869 = vld [vmem:[#allocation7 + $0xb8] sm:$0xff]
    %v3870 = vld [vmem:[#allocation7 + $0xc0] sm:$0xff]
    %v3871 = vld [vmem:[#allocation7 + $0xc8] sm:$0xff]
    %v3872 = vld [vmem:[#allocation7 + $0xd0] sm:$0xff]
    %v3873 = vld [vmem:[#allocation7 + $0xd8] sm:$0xff]
    %v3874 = vld [vmem:[#allocation7 + $0xe0] sm:$0xff]
    %v3875 = vld [vmem:[#allocation7 + $0xe8] sm:$0xff]
    %v3876 = vld [vmem:[#allocation7 + $0xf0] sm:$0xff]
    %v3877 = vld [vmem:[#allocation7 + $0xf8] sm:$0xff]
    %v3878 = vld [vmem:[#allocation7 + $0x100] sm:$0xff]
    %v3879 = vld [vmem:[#allocation7 + $0x108] sm:$0xff]
    %v3880 = vld [vmem:[#allocation7 + $0x110] sm:$0xff]
    %v3881 = vld [vmem:[#allocation7 + $0x118] sm:$0xff]
    %v3882 = vld [vmem:[#allocation7 + $0x120] sm:$0xff]
    %v3883 = vld [vmem:[#allocation7 + $0x128] sm:$0xff]
    %v3884 = vld [vmem:[#allocation7 + $0x130] sm:$0xff]
    %v3885 = vld [vmem:[#allocation7 + $0x138] sm:$0xff]
    %v3886 = vld [vmem:[#allocation7 + $0x140] sm:$0xff]
    %v3887 = vld [vmem:[#allocation7 + $0x148] sm:$0xff]
    %v3888 = vld [vmem:[#allocation7 + $0x150] sm:$0xff]
    %v3889 = vld [vmem:[#allocation7 + $0x158] sm:$0xff]
    %v3890 = vld [vmem:[#allocation7 + $0x160] sm:$0xff]
    %v3891 = vld [vmem:[#allocation7 + $0x168] sm:$0xff]
    %v3892 = vld [vmem:[#allocation7 + $0x170] sm:$0xff]
    %v3893 = vld [vmem:[#allocation7 + $0x178] sm:$0xff]
    %3894 = vmatprep.subr.mxu0 %v3847
    %3895 = vmatpush1.msra.mxu0 %v3846
    %3896 = vmatprep.subr.mxu0 %v3850
    %3897 = vmatpush1.msra.mxu0 %v3849
    %3898 = vmatprep.subr.mxu0 %v3853
    %3899 = vmatpush1.msra.mxu0 %v3852
    %3900 = vmatprep.subr.mxu0 %v3856
    %3901 = vmatpush1.msra.mxu0 %v3855
    %3902 = vmatprep.subr.mxu0 %v3859
    %3903 = vmatpush1.msra.mxu0 %v3858
    %3904 = vmatprep.subr.mxu0 %v3862
    %3905 = vmatpush1.msra.mxu0 %v3861
    %3906 = vmatprep.subr.mxu0 %v3865
    %3907 = vmatpush1.msra.mxu0 %v3864
    %3908 = vmatprep.subr.mxu0 %v3868
    %3909 = vmatpush1.msra.mxu0 %v3867
    %3910 = vmatprep.subr.mxu0 %v3871
    %3911 = vmatpush1.msra.mxu0 %v3870
    %3912 = vmatprep.subr.mxu0 %v3874
    %3913 = vmatpush1.msra.mxu0 %v3873
    %3914 = vmatprep.subr.mxu0 %v3877
    %3915 = vmatpush1.msra.mxu0 %v3876
    %3916 = vmatprep.subr.mxu0 %v3880
    %3917 = vmatpush1.msra.mxu0 %v3879
    %3918 = vmatprep.subr.mxu0 %v3883
    %3919 = vmatpush1.msra.mxu0 %v3882
    %3920 = vmatprep.subr.mxu0 %v3886
    %3921 = vmatpush1.msra.mxu0 %v3885
    %3922 = vmatprep.subr.mxu0 %v3889
    %3923 = vmatpush1.msra.mxu0 %v3888
    %3924 = vmatprep.subr.mxu0 %v3892
    %3925 = vmatpush1.msra.mxu0 %v3891
    %3926 = vmatprep.subr.mxu0 0.0
    %3927 = vmatpush1.msra.mxu0 0.0
    %3928 = vmatprep.subr.mxu0 0.0
    %3929 = vmatpush1.msra.mxu0 0.0
    %3930 = vmatprep.subr.mxu0 0.0
    %3931 = vmatpush1.msra.mxu0 0.0
    %3932 = vmatprep.subr.mxu0 0.0
    %3933 = vmatpush1.msra.mxu0 0.0
    %3934 = vmatprep.subr.mxu0 0.0
    %3935 = vmatpush1.msra.mxu0 0.0
    %3936 = vmatprep.subr.mxu0 0.0
    %3937 = vmatpush1.msra.mxu0 0.0
    %3938 = vmatprep.subr.mxu0 0.0
    %3939 = vmatpush1.msra.mxu0 0.0
    %3940 = vmatprep.subr.mxu0 0.0
    %3941 = vmatpush1.msra.mxu0 0.0
    %3942 = vmatprep.subr.mxu0 0.0
    %3943 = vmatpush1.msra.mxu0 0.0
    %3944 = vmatprep.subr.mxu0 0.0
    %3945 = vmatpush1.msra.mxu0 0.0
    %3946 = vmatprep.subr.mxu0 0.0
    %3947 = vmatpush1.msra.mxu0 0.0
    %3948 = vmatprep.subr.mxu0 0.0
    %3949 = vmatpush1.msra.mxu0 0.0
    %3950 = vmatprep.subr.mxu0 0.0
    %3951 = vmatpush1.msra.mxu0 0.0
    %3952 = vmatprep.subr.mxu0 0.0
    %3953 = vmatpush1.msra.mxu0 0.0
    %3954 = vmatprep.subr.mxu0 0.0
    %3955 = vmatpush1.msra.mxu0 0.0
    %3956 = vmatprep.subr.mxu0 0.0
    %3957 = vmatpush1.msra.mxu0 0.0
    %3958 = vmatprep.mubr.f32.mxu0 0.0
    %3959 = vmatmul.mubr.f32.gmra.mrb[0].mxu0 %v3845
    %v3960 = vpop.f32.mrb[0].mxu0
    %v3961 = vadd.f32 %v247, %v3960
    %v3962 = vpop.f32.mrb[0].mxu0
    %v3963 = vadd.f32 %v251, %v3962
    %3964 = vdwg.mxu0
    %3965 = vmatprep.subr.mxu0 0.0
    %3966 = vmatpush1.msra.mxu0 %v3848
    %3967 = vmatprep.subr.mxu0 0.0
    %3968 = vmatpush1.msra.mxu0 %v3851
    %3969 = vmatprep.subr.mxu0 0.0
    %3970 = vmatpush1.msra.mxu0 %v3854
    %3971 = vmatprep.subr.mxu0 0.0
    %3972 = vmatpush1.msra.mxu0 %v3857
    %3973 = vmatprep.subr.mxu0 0.0
    %3974 = vmatpush1.msra.mxu0 %v3860
    %3975 = vmatprep.subr.mxu0 0.0
    %3976 = vmatpush1.msra.mxu0 %v3863
    %3977 = vmatprep.subr.mxu0 0.0
    %3978 = vmatpush1.msra.mxu0 %v3866
    %3979 = vmatprep.subr.mxu0 0.0
    %3980 = vmatpush1.msra.mxu0 %v3869
    %3981 = vmatprep.subr.mxu0 0.0
    %3982 = vmatpush1.msra.mxu0 %v3872
    %3983 = vmatprep.subr.mxu0 0.0
    %3984 = vmatpush1.msra.mxu0 %v3875
    %3985 = vmatprep.subr.mxu0 0.0
    %3986 = vmatpush1.msra.mxu0 %v3878
    %3987 = vmatprep.subr.mxu0 0.0
    %3988 = vmatpush1.msra.mxu0 %v3881
    %3989 = vmatprep.subr.mxu0 0.0
    %3990 = vmatpush1.msra.mxu0 %v3884
    %3991 = vmatprep.subr.mxu0 0.0
    %3992 = vmatpush1.msra.mxu0 %v3887
    %3993 = vmatprep.subr.mxu0 0.0
    %3994 = vmatpush1.msra.mxu0 %v3890
    %3995 = vmatprep.subr.mxu0 0.0
    %3996 = vmatpush1.msra.mxu0 %v3893
    %3997 = vmatprep.subr.mxu0 0.0
    %3998 = vmatpush1.msra.mxu0 0.0
    %3999 = vmatprep.subr.mxu0 0.0
    %4000 = vmatpush1.msra.mxu0 0.0
    %4001 = vmatprep.subr.mxu0 0.0
    %4002 = vmatpush1.msra.mxu0 0.0
    %4003 = vmatprep.subr.mxu0 0.0
    %4004 = vmatpush1.msra.mxu0 0.0
    %4005 = vmatprep.subr.mxu0 0.0
    %4006 = vmatpush1.msra.mxu0 0.0
    %4007 = vmatprep.subr.mxu0 0.0
    %4008 = vmatpush1.msra.mxu0 0.0
    %4009 = vmatprep.subr.mxu0 0.0
    %4010 = vmatpush1.msra.mxu0 0.0
    %4011 = vmatprep.subr.mxu0 0.0
    %4012 = vmatpush1.msra.mxu0 0.0
    %4013 = vmatprep.subr.mxu0 0.0
    %4014 = vmatpush1.msra.mxu0 0.0
    %4015 = vmatprep.subr.mxu0 0.0
    %4016 = vmatpush1.msra.mxu0 0.0
    %4017 = vmatprep.subr.mxu0 0.0
    %4018 = vmatpush1.msra.mxu0 0.0
    %4019 = vmatprep.subr.mxu0 0.0
    %4020 = vmatpush1.msra.mxu0 0.0
    %4021 = vmatprep.subr.mxu0 0.0
    %4022 = vmatpush1.msra.mxu0 0.0
    %4023 = vmatprep.subr.mxu0 0.0
    %4024 = vmatpush1.msra.mxu0 0.0
    %4025 = vmatprep.subr.mxu0 0.0
    %4026 = vmatpush1.msra.mxu0 0.0
    %4027 = vmatprep.subr.mxu0 0.0
    %4028 = vmatpush1.msra.mxu0 0.0
    %4029 = vmatprep.mubr.f32.mxu0 0.0
    %4030 = vmatmul.mubr.f32.gmra.mrb[0].mxu0 %v3845
    %v4031 = vpop.f32.mrb[0].mxu0
    %v4032 = vadd.f32 %v255, %v4031
    %v4033 = vpop.f32.mrb[0].mxu0
    %4034 = vdwg.mxu0
    %v4035 = vld [vmem:[#allocation8] sm:$0xff]
    %v4036 = vld [vmem:[#allocation8 + $0x8] sm:$0xff]
    %v4037 = vld [vmem:[#allocation8 + $0x10] sm:$0xff]
    %v4038 = vld [vmem:[#allocation8 + $0x18] sm:$0xff]
    %v4039 = vld [vmem:[#allocation8 + $0x20] sm:$0xff]
    %v4040 = vld [vmem:[#allocation8 + $0x28] sm:$0xff]
    %v4041 = vld [vmem:[#allocation8 + $0x30] sm:$0xff]
    %v4042 = vld [vmem:[#allocation8 + $0x38] sm:$0xff]
    %v4043 = vld [vmem:[#allocation8 + $0x40] sm:$0xff]
    %v4044 = vld [vmem:[#allocation8 + $0x48] sm:$0xff]
    %v4045 = vld [vmem:[#allocation8 + $0x50] sm:$0xff]
    %v4046 = vld [vmem:[#allocation8 + $0x58] sm:$0xff]
    %v4047 = vld [vmem:[#allocation8 + $0x60] sm:$0xff]
    %v4048 = vld [vmem:[#allocation8 + $0x68] sm:$0xff]
    %v4049 = vld [vmem:[#allocation8 + $0x70] sm:$0xff]
    %v4050 = vld [vmem:[#allocation8 + $0x78] sm:$0xff]
    %v4051 = vld [vmem:[#allocation8 + $0x80] sm:$0xff]
    %v4052 = vld [vmem:[#allocation8 + $0x88] sm:$0xff]
    %v4053 = vld [vmem:[#allocation8 + $0x90] sm:$0xff]
    %v4054 = vld [vmem:[#allocation8 + $0x98] sm:$0xff]
    %v4055 = vld [vmem:[#allocation8 + $0xa0] sm:$0xff]
    %v4056 = vld [vmem:[#allocation8 + $0xa8] sm:$0xff]
    %v4057 = vld [vmem:[#allocation8 + $0xb0] sm:$0xff]
    %v4058 = vld [vmem:[#allocation8 + $0xb8] sm:$0xff]
    %v4059 = vld [vmem:[#allocation8 + $0xc0] sm:$0xff]
    %v4060 = vld [vmem:[#allocation8 + $0xc8] sm:$0xff]
    %v4061 = vld [vmem:[#allocation8 + $0xd0] sm:$0xff]
    %v4062 = vld [vmem:[#allocation8 + $0xd8] sm:$0xff]
    %v4063 = vld [vmem:[#allocation8 + $0xe0] sm:$0xff]
    %v4064 = vld [vmem:[#allocation8 + $0xe8] sm:$0xff]
    %v4065 = vld [vmem:[#allocation8 + $0xf0] sm:$0xff]
    %v4066 = vld [vmem:[#allocation8 + $0xf8] sm:$0xff]
    %v4067 = vld [vmem:[#allocation8 + $0x100] sm:$0xff]
    %v4068 = vld [vmem:[#allocation8 + $0x108] sm:$0xff]
    %v4069 = vld [vmem:[#allocation8 + $0x110] sm:$0xff]
    %v4070 = vld [vmem:[#allocation8 + $0x118] sm:$0xff]
    %v4071 = vld [vmem:[#allocation8 + $0x120] sm:$0xff]
    %v4072 = vld [vmem:[#allocation8 + $0x128] sm:$0xff]
    %v4073 = vld [vmem:[#allocation8 + $0x130] sm:$0xff]
    %v4074 = vld [vmem:[#allocation8 + $0x138] sm:$0xff]
    %v4075 = vld [vmem:[#allocation8 + $0x140] sm:$0xff]
    %v4076 = vld [vmem:[#allocation8 + $0x148] sm:$0xff]
    %v4077 = vld [vmem:[#allocation8 + $0x150] sm:$0xff]
    %v4078 = vld [vmem:[#allocation8 + $0x158] sm:$0xff]
    %v4079 = vld [vmem:[#allocation8 + $0x160] sm:$0xff]
    %v4080 = vld [vmem:[#allocation8 + $0x168] sm:$0xff]
    %v4081 = vld [vmem:[#allocation8 + $0x170] sm:$0xff]
    %v4082 = vld [vmem:[#allocation8 + $0x178] sm:$0xff]
    %4083 = vmatprep.subr.mxu0 %v4036
    %4084 = vmatpush1.msra.mxu0 %v4035
    %4085 = vmatprep.subr.mxu0 %v4039
    %4086 = vmatpush1.msra.mxu0 %v4038
    %4087 = vmatprep.subr.mxu0 %v4042
    %4088 = vmatpush1.msra.mxu0 %v4041
    %4089 = vmatprep.subr.mxu0 %v4045
    %4090 = vmatpush1.msra.mxu0 %v4044
    %4091 = vmatprep.subr.mxu0 %v4048
    %4092 = vmatpush1.msra.mxu0 %v4047
    %4093 = vmatprep.subr.mxu0 %v4051
    %4094 = vmatpush1.msra.mxu0 %v4050
    %4095 = vmatprep.subr.mxu0 %v4054
    %4096 = vmatpush1.msra.mxu0 %v4053
    %4097 = vmatprep.subr.mxu0 %v4057
    %4098 = vmatpush1.msra.mxu0 %v4056
    %4099 = vmatprep.subr.mxu0 %v4060
    %4100 = vmatpush1.msra.mxu0 %v4059
    %4101 = vmatprep.subr.mxu0 %v4063
    %4102 = vmatpush1.msra.mxu0 %v4062
    %4103 = vmatprep.subr.mxu0 %v4066
    %4104 = vmatpush1.msra.mxu0 %v4065
    %4105 = vmatprep.subr.mxu0 %v4069
    %4106 = vmatpush1.msra.mxu0 %v4068
    %4107 = vmatprep.subr.mxu0 %v4072
    %4108 = vmatpush1.msra.mxu0 %v4071
    %4109 = vmatprep.subr.mxu0 %v4075
    %4110 = vmatpush1.msra.mxu0 %v4074
    %4111 = vmatprep.subr.mxu0 %v4078
    %4112 = vmatpush1.msra.mxu0 %v4077
    %4113 = vmatprep.subr.mxu0 %v4081
    %4114 = vmatpush1.msra.mxu0 %v4080
    %4115 = vmatprep.subr.mxu0 0.0
    %4116 = vmatpush1.msra.mxu0 0.0
    %4117 = vmatprep.subr.mxu0 0.0
    %4118 = vmatpush1.msra.mxu0 0.0
    %4119 = vmatprep.subr.mxu0 0.0
    %4120 = vmatpush1.msra.mxu0 0.0
    %4121 = vmatprep.subr.mxu0 0.0
    %4122 = vmatpush1.msra.mxu0 0.0
    %4123 = vmatprep.subr.mxu0 0.0
    %4124 = vmatpush1.msra.mxu0 0.0
    %4125 = vmatprep.subr.mxu0 0.0
    %4126 = vmatpush1.msra.mxu0 0.0
    %4127 = vmatprep.subr.mxu0 0.0
    %4128 = vmatpush1.msra.mxu0 0.0
    %4129 = vmatprep.subr.mxu0 0.0
    %4130 = vmatpush1.msra.mxu0 0.0
    %4131 = vmatprep.subr.mxu0 0.0
    %4132 = vmatpush1.msra.mxu0 0.0
    %4133 = vmatprep.subr.mxu0 0.0
    %4134 = vmatpush1.msra.mxu0 0.0
    %4135 = vmatprep.subr.mxu0 0.0
    %4136 = vmatpush1.msra.mxu0 0.0
    %4137 = vmatprep.subr.mxu0 0.0
    %4138 = vmatpush1.msra.mxu0 0.0
    %4139 = vmatprep.subr.mxu0 0.0
    %4140 = vmatpush1.msra.mxu0 0.0
    %4141 = vmatprep.subr.mxu0 0.0
    %4142 = vmatpush1.msra.mxu0 0.0
    %4143 = vmatprep.subr.mxu0 0.0
    %4144 = vmatpush1.msra.mxu0 0.0
    %4145 = vmatprep.subr.mxu0 0.0
    %4146 = vmatpush1.msra.mxu0 0.0
    %4147 = vmatprep.mubr.f32.mxu0 0.0
    %4148 = vmatmul.mubr.f32.gmra.mrb[0].mxu0 %v3640
    %v4149 = vpop.f32.mrb[0].mxu0
    %v4150 = vadd.f32 0.0, %v4149
    %v4151 = vpop.f32.mrb[0].mxu0
    %v4152 = vadd.f32 0.0, %v4151
    %4153 = vdwg.mxu0
    %4154 = vmatprep.subr.mxu0 0.0
    %4155 = vmatpush1.msra.mxu0 %v4037
    %4156 = vmatprep.subr.mxu0 0.0
    %4157 = vmatpush1.msra.mxu0 %v4040
    %4158 = vmatprep.subr.mxu0 0.0
    %4159 = vmatpush1.msra.mxu0 %v4043
    %4160 = vmatprep.subr.mxu0 0.0
    %4161 = vmatpush1.msra.mxu0 %v4046
    %4162 = vmatprep.subr.mxu0 0.0
    %4163 = vmatpush1.msra.mxu0 %v4049
    %4164 = vmatprep.subr.mxu0 0.0
    %4165 = vmatpush1.msra.mxu0 %v4052
    %4166 = vmatprep.subr.mxu0 0.0
    %4167 = vmatpush1.msra.mxu0 %v4055
    %4168 = vmatprep.subr.mxu0 0.0
    %4169 = vmatpush1.msra.mxu0 %v4058
    %4170 = vmatprep.subr.mxu0 0.0
    %4171 = vmatpush1.msra.mxu0 %v4061
    %4172 = vmatprep.subr.mxu0 0.0
    %4173 = vmatpush1.msra.mxu0 %v4064
    %4174 = vmatprep.subr.mxu0 0.0
    %4175 = vmatpush1.msra.mxu0 %v4067
    %4176 = vmatprep.subr.mxu0 0.0
    %4177 = vmatpush1.msra.mxu0 %v4070
    %4178 = vmatprep.subr.mxu0 0.0
    %4179 = vmatpush1.msra.mxu0 %v4073
    %4180 = vmatprep.subr.mxu0 0.0
    %4181 = vmatpush1.msra.mxu0 %v4076
    %4182 = vmatprep.subr.mxu0 0.0
    %4183 = vmatpush1.msra.mxu0 %v4079
    %4184 = vmatprep.subr.mxu0 0.0
    %4185 = vmatpush1.msra.mxu0 %v4082
    %4186 = vmatprep.subr.mxu0 0.0
    %4187 = vmatpush1.msra.mxu0 0.0
    %4188 = vmatprep.subr.mxu0 0.0
    %4189 = vmatpush1.msra.mxu0 0.0
    %4190 = vmatprep.subr.mxu0 0.0
    %4191 = vmatpush1.msra.mxu0 0.0
    %4192 = vmatprep.subr.mxu0 0.0
    %4193 = vmatpush1.msra.mxu0 0.0
    %4194 = vmatprep.subr.mxu0 0.0
    %4195 = vmatpush1.msra.mxu0 0.0
    %4196 = vmatprep.subr.mxu0 0.0
    %4197 = vmatpush1.msra.mxu0 0.0
    %4198 = vmatprep.subr.mxu0 0.0
    %4199 = vmatpush1.msra.mxu0 0.0
    %4200 = vmatprep.subr.mxu0 0.0
    %4201 = vmatpush1.msra.mxu0 0.0
    %4202 = vmatprep.subr.mxu0 0.0
    %4203 = vmatpush1.msra.mxu0 0.0
    %4204 = vmatprep.subr.mxu0 0.0
    %4205 = vmatpush1.msra.mxu0 0.0
    %4206 = vmatprep.subr.mxu0 0.0
    %4207 = vmatpush1.msra.mxu0 0.0
    %4208 = vmatprep.subr.mxu0 0.0
    %4209 = vmatpush1.msra.mxu0 0.0
    %4210 = vmatprep.subr.mxu0 0.0
    %4211 = vmatpush1.msra.mxu0 0.0
    %4212 = vmatprep.subr.mxu0 0.0
    %4213 = vmatpush1.msra.mxu0 0.0
    %4214 = vmatprep.subr.mxu0 0.0
    %4215 = vmatpush1.msra.mxu0 0.0
    %4216 = vmatprep.subr.mxu0 0.0
    %4217 = vmatpush1.msra.mxu0 0.0
    %4218 = vmatprep.mubr.f32.mxu0 0.0
    %4219 = vmatmul.mubr.f32.gmra.mrb[0].mxu0 %v3640
    %v4220 = vpop.f32.mrb[0].mxu0
    %v4221 = vadd.f32 0.0, %v4220
    %v4222 = vpop.f32.mrb[0].mxu0
    %4223 = vdwg.mxu0
    %v4224 = vadd.f32 %v3961, %v4150
    %v4225 = vxor.u32 %v4224, 2147483648
    %v4226 = vmul.f32 %v4225, 1.442695
    %v4227 = vpow.pop %v4226
    %v4228 = vadd.f32 %v4227, 1.0
    %v4229 = vrcp.pop %v4228
    %v4230 = vmul.f32 1.0, %v4229
    %v4231 = vadd.f32 %v3963, %v4152
    %v4232 = vxor.u32 %v4231, 2147483648
    %v4233 = vmul.f32 %v4232, 1.442695
    %v4234 = vpow.pop %v4233
    %v4235 = vadd.f32 %v4234, 1.0
    %v4236 = vrcp.pop %v4235
    %v4237 = vmul.f32 1.0, %v4236
    %v4238 = vadd.f32 %v4221, %v607
    %v4239 = vmul.f32 %v4230, %v4238
    %v4240 = vadd.f32 %v4032, %v4239
    %v4241 = vtanh.pop %v4240
    %v4242 = vsub.f32 %v3640, %v4241
    %v4243 = vmul.f32 %v4237, %v4242
    %v4244 = vadd.f32 %v4241, %v4243
    %v4245 = vld [vmem:[#allocation10] sm:$0xff]
    %v4246 = vld [vmem:[#allocation10 + $0x8] sm:$0xff]
    %v4247 = vld [vmem:[#allocation10 + $0x10] sm:$0xff]
    %v4248 = vld [vmem:[#allocation10 + $0x18] sm:$0xff]
    %v4249 = vld [vmem:[#allocation10 + $0x20] sm:$0xff]
    %v4250 = vld [vmem:[#allocation10 + $0x28] sm:$0xff]
    %v4251 = vld [vmem:[#allocation10 + $0x30] sm:$0xff]
    %v4252 = vld [vmem:[#allocation10 + $0x38] sm:$0xff]
    %v4253 = vld [vmem:[#allocation10 + $0x40] sm:$0xff]
    %v4254 = vld [vmem:[#allocation10 + $0x48] sm:$0xff]
    %v4255 = vld [vmem:[#allocation10 + $0x50] sm:$0xff]
    %v4256 = vld [vmem:[#allocation10 + $0x58] sm:$0xff]
    %v4257 = vld [vmem:[#allocation10 + $0x60] sm:$0xff]
    %v4258 = vld [vmem:[#allocation10 + $0x68] sm:$0xff]
    %v4259 = vld [vmem:[#allocation10 + $0x70] sm:$0xff]
    %v4260 = vld [vmem:[#allocation10 + $0x78] sm:$0xff]
    %4261 = vmatprep.subr.mxu0 0.0
    %4262 = vmatpush1.msra.mxu0 %v4245
    %4263 = vmatprep.subr.mxu0 0.0
    %4264 = vmatpush1.msra.mxu0 %v4246
    %4265 = vmatprep.subr.mxu0 0.0
    %4266 = vmatpush1.msra.mxu0 %v4247
    %4267 = vmatprep.subr.mxu0 0.0
    %4268 = vmatpush1.msra.mxu0 %v4248
    %4269 = vmatprep.subr.mxu0 0.0
    %4270 = vmatpush1.msra.mxu0 %v4249
    %4271 = vmatprep.subr.mxu0 0.0
    %4272 = vmatpush1.msra.mxu0 %v4250
    %4273 = vmatprep.subr.mxu0 0.0
    %4274 = vmatpush1.msra.mxu0 %v4251
    %4275 = vmatprep.subr.mxu0 0.0
    %4276 = vmatpush1.msra.mxu0 %v4252
    %4277 = vmatprep.subr.mxu0 0.0
    %4278 = vmatpush1.msra.mxu0 %v4253
    %4279 = vmatprep.subr.mxu0 0.0
    %4280 = vmatpush1.msra.mxu0 %v4254
    %4281 = vmatprep.subr.mxu0 0.0
    %4282 = vmatpush1.msra.mxu0 %v4255
    %4283 = vmatprep.subr.mxu0 0.0
    %4284 = vmatpush1.msra.mxu0 %v4256
    %4285 = vmatprep.subr.mxu0 0.0
    %4286 = vmatpush1.msra.mxu0 %v4257
    %4287 = vmatprep.subr.mxu0 0.0
    %4288 = vmatpush1.msra.mxu0 %v4258
    %4289 = vmatprep.subr.mxu0 0.0
    %4290 = vmatpush1.msra.mxu0 %v4259
    %4291 = vmatprep.subr.mxu0 0.0
    %4292 = vmatpush1.msra.mxu0 %v4260
    %4293 = vmatprep.subr.mxu0 0.0
    %4294 = vmatpush1.msra.mxu0 0.0
    %4295 = vmatprep.subr.mxu0 0.0
    %4296 = vmatpush1.msra.mxu0 0.0
    %4297 = vmatprep.subr.mxu0 0.0
    %4298 = vmatpush1.msra.mxu0 0.0
    %4299 = vmatprep.subr.mxu0 0.0
    %4300 = vmatpush1.msra.mxu0 0.0
    %4301 = vmatprep.subr.mxu0 0.0
    %4302 = vmatpush1.msra.mxu0 0.0
    %4303 = vmatprep.subr.mxu0 0.0
    %4304 = vmatpush1.msra.mxu0 0.0
    %4305 = vmatprep.subr.mxu0 0.0
    %4306 = vmatpush1.msra.mxu0 0.0
    %4307 = vmatprep.subr.mxu0 0.0
    %4308 = vmatpush1.msra.mxu0 0.0
    %4309 = vmatprep.subr.mxu0 0.0
    %4310 = vmatpush1.msra.mxu0 0.0
    %4311 = vmatprep.subr.mxu0 0.0
    %4312 = vmatpush1.msra.mxu0 0.0
    %4313 = vmatprep.subr.mxu0 0.0
    %4314 = vmatpush1.msra.mxu0 0.0
    %4315 = vmatprep.subr.mxu0 0.0
    %4316 = vmatpush1.msra.mxu0 0.0
    %4317 = vmatprep.subr.mxu0 0.0
    %4318 = vmatpush1.msra.mxu0 0.0
    %4319 = vmatprep.subr.mxu0 0.0
    %4320 = vmatpush1.msra.mxu0 0.0
    %4321 = vmatprep.subr.mxu0 0.0
    %4322 = vmatpush1.msra.mxu0 0.0
    %4323 = vmatprep.subr.mxu0 0.0
    %4324 = vmatpush1.msra.mxu0 0.0
    %4325 = vmatprep.mubr.f32.mxu0 0.0
    %4326 = vmatmul.mubr.f32.gmra.mrb[0].mxu0 %v4244
    %v4327 = vpop.f32.mrb[0].mxu0
    %v4328 = vadd.f32 %v636, %v4327
    %v4329 = vpop.f32.mrb[0].mxu0
    %4330 = vdwg.mxu0
    %4331 = vmax.xlane.f32.xlu0 %v4328
    %v4332 = vpop.xlane.xlu0 %4331
    %vm4333 = vcmp.eq.f32.partialorder %v4328, %v4332
    %v4334 = vsel %vm4333, %v100, 128
    %v4335 = vand.u32 %v4334, 65535
    %v4336 = vshra.s32 %v4334, 16
    %v4337 = vcvt.s32.f32 %v4335
    %v4338 = vcvt.s32.f32 %v4336
    %4339 = vmin.xlane.f32.xlu0 %v4338
    %v4340 = vpop.xlane.xlu0 %4339
    %vm4341 = vcmp.eq.f32.partialorder %v4338, %v4340
    %v4342 = vsel %vm4341, %v4337, inf
    %4343 = vmin.xlane.f32.xlu0 %v4342
    %v4344 = vpop.xlane.xlu0 %4343
    %v4345 = vcvt.f32.s32 %v4344
    %v4346 = vcvt.f32.s32 %v4340
    %v4347 = vshll.u32 %v4346, 16
    %v4348 = vadd.s32 %v4347, %v4345
    %v4349 = vsub.f32 %v4328, %v4332
    %v4350 = vmul.f32 %v4349, 1.442695
    %v4351 = vpow.pop %v4350
    %4352 = vadd.xlane.f32.xlu0 %v4351
    %v4353 = vpop.xlane.xlu0 %4352
    %v4354 = vlog2.pop %v4353
    %v4355 = vmul.f32 %v4354, 0.6931472
    %v4356 = vadd.f32 %v4332, %v4355
    %v4357 = vsub.f32 %v4328, %v4356
    %s4358 = scalar_lea.vmem [#allocation11], 48
    %4359 = vst [vmem:[%s4358] sm:$0xff] %v4357
    %vm4360 = vcmp.eq.s32.totalorder %v100, %v4348
    %v4361 = vsel %vm4360, 1, 0
    %v4362 = vcvt.s32.f32 %v4361
    %v4363 = vld [vmem:[#allocation5] sm:$0xff]
    %v4364 = vld [vmem:[#allocation5 + $0x8] sm:$0xff]
    %v4365 = vld [vmem:[#allocation5 + $0x10] sm:$0xff]
    %v4366 = vld [vmem:[#allocation5 + $0x18] sm:$0xff]
    %v4367 = vld [vmem:[#allocation5 + $0x20] sm:$0xff]
    %v4368 = vld [vmem:[#allocation5 + $0x28] sm:$0xff]
    %v4369 = vld [vmem:[#allocation5 + $0x30] sm:$0xff]
    %v4370 = vld [vmem:[#allocation5 + $0x38] sm:$0xff]
    %v4371 = vld [vmem:[#allocation5 + $0x40] sm:$0xff]
    %v4372 = vld [vmem:[#allocation5 + $0x48] sm:$0xff]
    %v4373 = vld [vmem:[#allocation5 + $0x50] sm:$0xff]
    %v4374 = vld [vmem:[#allocation5 + $0x58] sm:$0xff]
    %v4375 = vld [vmem:[#allocation5 + $0x60] sm:$0xff]
    %v4376 = vld [vmem:[#allocation5 + $0x68] sm:$0xff]
    %v4377 = vld [vmem:[#allocation5 + $0x70] sm:$0xff]
    %v4378 = vld [vmem:[#allocation5 + $0x78] sm:$0xff]
    %4379 = vmatprep.subr.mxu0 0.0
    %4380 = vmatpush1.msra.mxu0 %v4363
    %4381 = vmatprep.subr.mxu0 0.0
    %4382 = vmatpush1.msra.mxu0 %v4364
    %4383 = vmatprep.subr.mxu0 0.0
    %4384 = vmatpush1.msra.mxu0 %v4365
    %4385 = vmatprep.subr.mxu0 0.0
    %4386 = vmatpush1.msra.mxu0 %v4366
    %4387 = vmatprep.subr.mxu0 0.0
    %4388 = vmatpush1.msra.mxu0 %v4367
    %4389 = vmatprep.subr.mxu0 0.0
    %4390 = vmatpush1.msra.mxu0 %v4368
    %4391 = vmatprep.subr.mxu0 0.0
    %4392 = vmatpush1.msra.mxu0 %v4369
    %4393 = vmatprep.subr.mxu0 0.0
    %4394 = vmatpush1.msra.mxu0 %v4370
    %4395 = vmatprep.subr.mxu0 0.0
    %4396 = vmatpush1.msra.mxu0 %v4371
    %4397 = vmatprep.subr.mxu0 0.0
    %4398 = vmatpush1.msra.mxu0 %v4372
    %4399 = vmatprep.subr.mxu0 0.0
    %4400 = vmatpush1.msra.mxu0 %v4373
    %4401 = vmatprep.subr.mxu0 0.0
    %4402 = vmatpush1.msra.mxu0 %v4374
    %4403 = vmatprep.subr.mxu0 0.0
    %4404 = vmatpush1.msra.mxu0 %v4375
    %4405 = vmatprep.subr.mxu0 0.0
    %4406 = vmatpush1.msra.mxu0 %v4376
    %4407 = vmatprep.subr.mxu0 0.0
    %4408 = vmatpush1.msra.mxu0 %v4377
    %4409 = vmatprep.subr.mxu0 0.0
    %4410 = vmatpush1.msra.mxu0 %v4378
    %4411 = vmatprep.subr.mxu0 0.0
    %4412 = vmatpush1.msra.mxu0 0.0
    %4413 = vmatprep.subr.mxu0 0.0
    %4414 = vmatpush1.msra.mxu0 0.0
    %4415 = vmatprep.subr.mxu0 0.0
    %4416 = vmatpush1.msra.mxu0 0.0
    %4417 = vmatprep.subr.mxu0 0.0
    %4418 = vmatpush1.msra.mxu0 0.0
    %4419 = vmatprep.subr.mxu0 0.0
    %4420 = vmatpush1.msra.mxu0 0.0
    %4421 = vmatprep.subr.mxu0 0.0
    %4422 = vmatpush1.msra.mxu0 0.0
    %4423 = vmatprep.subr.mxu0 0.0
    %4424 = vmatpush1.msra.mxu0 0.0
    %4425 = vmatprep.subr.mxu0 0.0
    %4426 = vmatpush1.msra.mxu0 0.0
    %4427 = vmatprep.subr.mxu0 0.0
    %4428 = vmatpush1.msra.mxu0 0.0
    %4429 = vmatprep.subr.mxu0 0.0
    %4430 = vmatpush1.msra.mxu0 0.0
    %4431 = vmatprep.subr.mxu0 0.0
    %4432 = vmatpush1.msra.mxu0 0.0
    %4433 = vmatprep.subr.mxu0 0.0
    %4434 = vmatpush1.msra.mxu0 0.0
    %4435 = vmatprep.subr.mxu0 0.0
    %4436 = vmatpush1.msra.mxu0 0.0
    %4437 = vmatprep.subr.mxu0 0.0
    %4438 = vmatpush1.msra.mxu0 0.0
    %4439 = vmatprep.subr.mxu0 0.0
    %4440 = vmatpush1.msra.mxu0 0.0
    %4441 = vmatprep.subr.mxu0 0.0
    %4442 = vmatpush1.msra.mxu0 0.0
    %4443 = vmatprep.mubr.f32.mxu0 0.0
    %4444 = vmatmul.mubr.f32.gmra.mrb[0].mxu0 %v4362
    %v4445 = vpop.f32.mrb[0].mxu0
    %v4446 = vadd.f32 0.0, %v4445
    %v4447 = vpop.f32.mrb[0].mxu0
    %4448 = vdwg.mxu0
    %v4449 = vmax.f32 %v4446, 0.0
    %v4450 = vld [vmem:[#allocation7] sm:$0xff]
    %v4451 = vld [vmem:[#allocation7 + $0x8] sm:$0xff]
    %v4452 = vld [vmem:[#allocation7 + $0x10] sm:$0xff]
    %v4453 = vld [vmem:[#allocation7 + $0x18] sm:$0xff]
    %v4454 = vld [vmem:[#allocation7 + $0x20] sm:$0xff]
    %v4455 = vld [vmem:[#allocation7 + $0x28] sm:$0xff]
    %v4456 = vld [vmem:[#allocation7 + $0x30] sm:$0xff]
    %v4457 = vld [vmem:[#allocation7 + $0x38] sm:$0xff]
    %v4458 = vld [vmem:[#allocation7 + $0x40] sm:$0xff]
    %v4459 = vld [vmem:[#allocation7 + $0x48] sm:$0xff]
    %v4460 = vld [vmem:[#allocation7 + $0x50] sm:$0xff]
    %v4461 = vld [vmem:[#allocation7 + $0x58] sm:$0xff]
    %v4462 = vld [vmem:[#allocation7 + $0x60] sm:$0xff]
    %v4463 = vld [vmem:[#allocation7 + $0x68] sm:$0xff]
    %v4464 = vld [vmem:[#allocation7 + $0x70] sm:$0xff]
    %v4465 = vld [vmem:[#allocation7 + $0x78] sm:$0xff]
    %v4466 = vld [vmem:[#allocation7 + $0x80] sm:$0xff]
    %v4467 = vld [vmem:[#allocation7 + $0x88] sm:$0xff]
    %v4468 = vld [vmem:[#allocation7 + $0x90] sm:$0xff]
    %v4469 = vld [vmem:[#allocation7 + $0x98] sm:$0xff]
    %v4470 = vld [vmem:[#allocation7 + $0xa0] sm:$0xff]
    %v4471 = vld [vmem:[#allocation7 + $0xa8] sm:$0xff]
    %v4472 = vld [vmem:[#allocation7 + $0xb0] sm:$0xff]
    %v4473 = vld [vmem:[#allocation7 + $0xb8] sm:$0xff]
    %v4474 = vld [vmem:[#allocation7 + $0xc0] sm:$0xff]
    %v4475 = vld [vmem:[#allocation7 + $0xc8] sm:$0xff]
    %v4476 = vld [vmem:[#allocation7 + $0xd0] sm:$0xff]
    %v4477 = vld [vmem:[#allocation7 + $0xd8] sm:$0xff]
    %v4478 = vld [vmem:[#allocation7 + $0xe0] sm:$0xff]
    %v4479 = vld [vmem:[#allocation7 + $0xe8] sm:$0xff]
    %v4480 = vld [vmem:[#allocation7 + $0xf0] sm:$0xff]
    %v4481 = vld [vmem:[#allocation7 + $0xf8] sm:$0xff]
    %v4482 = vld [vmem:[#allocation7 + $0x100] sm:$0xff]
    %v4483 = vld [vmem:[#allocation7 + $0x108] sm:$0xff]
    %v4484 = vld [vmem:[#allocation7 + $0x110] sm:$0xff]
    %v4485 = vld [vmem:[#allocation7 + $0x118] sm:$0xff]
    %v4486 = vld [vmem:[#allocation7 + $0x120] sm:$0xff]
    %v4487 = vld [vmem:[#allocation7 + $0x128] sm:$0xff]
    %v4488 = vld [vmem:[#allocation7 + $0x130] sm:$0xff]
    %v4489 = vld [vmem:[#allocation7 + $0x138] sm:$0xff]
    %v4490 = vld [vmem:[#allocation7 + $0x140] sm:$0xff]
    %v4491 = vld [vmem:[#allocation7 + $0x148] sm:$0xff]
    %v4492 = vld [vmem:[#allocation7 + $0x150] sm:$0xff]
    %v4493 = vld [vmem:[#allocation7 + $0x158] sm:$0xff]
    %v4494 = vld [vmem:[#allocation7 + $0x160] sm:$0xff]
    %v4495 = vld [vmem:[#allocation7 + $0x168] sm:$0xff]
    %v4496 = vld [vmem:[#allocation7 + $0x170] sm:$0xff]
    %v4497 = vld [vmem:[#allocation7 + $0x178] sm:$0xff]
    %4498 = vmatprep.subr.mxu0 %v4451
    %4499 = vmatpush1.msra.mxu0 %v4450
    %4500 = vmatprep.subr.mxu0 %v4454
    %4501 = vmatpush1.msra.mxu0 %v4453
    %4502 = vmatprep.subr.mxu0 %v4457
    %4503 = vmatpush1.msra.mxu0 %v4456
    %4504 = vmatprep.subr.mxu0 %v4460
    %4505 = vmatpush1.msra.mxu0 %v4459
    %4506 = vmatprep.subr.mxu0 %v4463
    %4507 = vmatpush1.msra.mxu0 %v4462
    %4508 = vmatprep.subr.mxu0 %v4466
    %4509 = vmatpush1.msra.mxu0 %v4465
    %4510 = vmatprep.subr.mxu0 %v4469
    %4511 = vmatpush1.msra.mxu0 %v4468
    %4512 = vmatprep.subr.mxu0 %v4472
    %4513 = vmatpush1.msra.mxu0 %v4471
    %4514 = vmatprep.subr.mxu0 %v4475
    %4515 = vmatpush1.msra.mxu0 %v4474
    %4516 = vmatprep.subr.mxu0 %v4478
    %4517 = vmatpush1.msra.mxu0 %v4477
    %4518 = vmatprep.subr.mxu0 %v4481
    %4519 = vmatpush1.msra.mxu0 %v4480
    %4520 = vmatprep.subr.mxu0 %v4484
    %4521 = vmatpush1.msra.mxu0 %v4483
    %4522 = vmatprep.subr.mxu0 %v4487
    %4523 = vmatpush1.msra.mxu0 %v4486
    %4524 = vmatprep.subr.mxu0 %v4490
    %4525 = vmatpush1.msra.mxu0 %v4489
    %4526 = vmatprep.subr.mxu0 %v4493
    %4527 = vmatpush1.msra.mxu0 %v4492
    %4528 = vmatprep.subr.mxu0 %v4496
    %4529 = vmatpush1.msra.mxu0 %v4495
    %4530 = vmatprep.subr.mxu0 0.0
    %4531 = vmatpush1.msra.mxu0 0.0
    %4532 = vmatprep.subr.mxu0 0.0
    %4533 = vmatpush1.msra.mxu0 0.0
    %4534 = vmatprep.subr.mxu0 0.0
    %4535 = vmatpush1.msra.mxu0 0.0
    %4536 = vmatprep.subr.mxu0 0.0
    %4537 = vmatpush1.msra.mxu0 0.0
    %4538 = vmatprep.subr.mxu0 0.0
    %4539 = vmatpush1.msra.mxu0 0.0
    %4540 = vmatprep.subr.mxu0 0.0
    %4541 = vmatpush1.msra.mxu0 0.0
    %4542 = vmatprep.subr.mxu0 0.0
    %4543 = vmatpush1.msra.mxu0 0.0
    %4544 = vmatprep.subr.mxu0 0.0
    %4545 = vmatpush1.msra.mxu0 0.0
    %4546 = vmatprep.subr.mxu0 0.0
    %4547 = vmatpush1.msra.mxu0 0.0
    %4548 = vmatprep.subr.mxu0 0.0
    %4549 = vmatpush1.msra.mxu0 0.0
    %4550 = vmatprep.subr.mxu0 0.0
    %4551 = vmatpush1.msra.mxu0 0.0
    %4552 = vmatprep.subr.mxu0 0.0
    %4553 = vmatpush1.msra.mxu0 0.0
    %4554 = vmatprep.subr.mxu0 0.0
    %4555 = vmatpush1.msra.mxu0 0.0
    %4556 = vmatprep.subr.mxu0 0.0
    %4557 = vmatpush1.msra.mxu0 0.0
    %4558 = vmatprep.subr.mxu0 0.0
    %4559 = vmatpush1.msra.mxu0 0.0
    %4560 = vmatprep.subr.mxu0 0.0
    %4561 = vmatpush1.msra.mxu0 0.0
    %4562 = vmatprep.mubr.f32.mxu0 0.0
    %4563 = vmatmul.mubr.f32.gmra.mrb[0].mxu0 %v4449
    %v4564 = vpop.f32.mrb[0].mxu0
    %v4565 = vadd.f32 %v247, %v4564
    %v4566 = vpop.f32.mrb[0].mxu0
    %v4567 = vadd.f32 %v251, %v4566
    %4568 = vdwg.mxu0
    %4569 = vmatprep.subr.mxu0 0.0
    %4570 = vmatpush1.msra.mxu0 %v4452
    %4571 = vmatprep.subr.mxu0 0.0
    %4572 = vmatpush1.msra.mxu0 %v4455
    %4573 = vmatprep.subr.mxu0 0.0
    %4574 = vmatpush1.msra.mxu0 %v4458
    %4575 = vmatprep.subr.mxu0 0.0
    %4576 = vmatpush1.msra.mxu0 %v4461
    %4577 = vmatprep.subr.mxu0 0.0
    %4578 = vmatpush1.msra.mxu0 %v4464
    %4579 = vmatprep.subr.mxu0 0.0
    %4580 = vmatpush1.msra.mxu0 %v4467
    %4581 = vmatprep.subr.mxu0 0.0
    %4582 = vmatpush1.msra.mxu0 %v4470
    %4583 = vmatprep.subr.mxu0 0.0
    %4584 = vmatpush1.msra.mxu0 %v4473
    %4585 = vmatprep.subr.mxu0 0.0
    %4586 = vmatpush1.msra.mxu0 %v4476
    %4587 = vmatprep.subr.mxu0 0.0
    %4588 = vmatpush1.msra.mxu0 %v4479
    %4589 = vmatprep.subr.mxu0 0.0
    %4590 = vmatpush1.msra.mxu0 %v4482
    %4591 = vmatprep.subr.mxu0 0.0
    %4592 = vmatpush1.msra.mxu0 %v4485
    %4593 = vmatprep.subr.mxu0 0.0
    %4594 = vmatpush1.msra.mxu0 %v4488
    %4595 = vmatprep.subr.mxu0 0.0
    %4596 = vmatpush1.msra.mxu0 %v4491
    %4597 = vmatprep.subr.mxu0 0.0
    %4598 = vmatpush1.msra.mxu0 %v4494
    %4599 = vmatprep.subr.mxu0 0.0
    %4600 = vmatpush1.msra.mxu0 %v4497
    %4601 = vmatprep.subr.mxu0 0.0
    %4602 = vmatpush1.msra.mxu0 0.0
    %4603 = vmatprep.subr.mxu0 0.0
    %4604 = vmatpush1.msra.mxu0 0.0
    %4605 = vmatprep.subr.mxu0 0.0
    %4606 = vmatpush1.msra.mxu0 0.0
    %4607 = vmatprep.subr.mxu0 0.0
    %4608 = vmatpush1.msra.mxu0 0.0
    %4609 = vmatprep.subr.mxu0 0.0
    %4610 = vmatpush1.msra.mxu0 0.0
    %4611 = vmatprep.subr.mxu0 0.0
    %4612 = vmatpush1.msra.mxu0 0.0
    %4613 = vmatprep.subr.mxu0 0.0
    %4614 = vmatpush1.msra.mxu0 0.0
    %4615 = vmatprep.subr.mxu0 0.0
    %4616 = vmatpush1.msra.mxu0 0.0
    %4617 = vmatprep.subr.mxu0 0.0
    %4618 = vmatpush1.msra.mxu0 0.0
    %4619 = vmatprep.subr.mxu0 0.0
    %4620 = vmatpush1.msra.mxu0 0.0
    %4621 = vmatprep.subr.mxu0 0.0
    %4622 = vmatpush1.msra.mxu0 0.0
    %4623 = vmatprep.subr.mxu0 0.0
    %4624 = vmatpush1.msra.mxu0 0.0
    %4625 = vmatprep.subr.mxu0 0.0
    %4626 = vmatpush1.msra.mxu0 0.0
    %4627 = vmatprep.subr.mxu0 0.0
    %4628 = vmatpush1.msra.mxu0 0.0
    %4629 = vmatprep.subr.mxu0 0.0
    %4630 = vmatpush1.msra.mxu0 0.0
    %4631 = vmatprep.subr.mxu0 0.0
    %4632 = vmatpush1.msra.mxu0 0.0
    %4633 = vmatprep.mubr.f32.mxu0 0.0
    %4634 = vmatmul.mubr.f32.gmra.mrb[0].mxu0 %v4449
    %v4635 = vpop.f32.mrb[0].mxu0
    %v4636 = vadd.f32 %v255, %v4635
    %v4637 = vpop.f32.mrb[0].mxu0
    %4638 = vdwg.mxu0
    %v4639 = vld [vmem:[#allocation8] sm:$0xff]
    %v4640 = vld [vmem:[#allocation8 + $0x8] sm:$0xff]
    %v4641 = vld [vmem:[#allocation8 + $0x10] sm:$0xff]
    %v4642 = vld [vmem:[#allocation8 + $0x18] sm:$0xff]
    %v4643 = vld [vmem:[#allocation8 + $0x20] sm:$0xff]
    %v4644 = vld [vmem:[#allocation8 + $0x28] sm:$0xff]
    %v4645 = vld [vmem:[#allocation8 + $0x30] sm:$0xff]
    %v4646 = vld [vmem:[#allocation8 + $0x38] sm:$0xff]
    %v4647 = vld [vmem:[#allocation8 + $0x40] sm:$0xff]
    %v4648 = vld [vmem:[#allocation8 + $0x48] sm:$0xff]
    %v4649 = vld [vmem:[#allocation8 + $0x50] sm:$0xff]
    %v4650 = vld [vmem:[#allocation8 + $0x58] sm:$0xff]
    %v4651 = vld [vmem:[#allocation8 + $0x60] sm:$0xff]
    %v4652 = vld [vmem:[#allocation8 + $0x68] sm:$0xff]
    %v4653 = vld [vmem:[#allocation8 + $0x70] sm:$0xff]
    %v4654 = vld [vmem:[#allocation8 + $0x78] sm:$0xff]
    %v4655 = vld [vmem:[#allocation8 + $0x80] sm:$0xff]
    %v4656 = vld [vmem:[#allocation8 + $0x88] sm:$0xff]
    %v4657 = vld [vmem:[#allocation8 + $0x90] sm:$0xff]
    %v4658 = vld [vmem:[#allocation8 + $0x98] sm:$0xff]
    %v4659 = vld [vmem:[#allocation8 + $0xa0] sm:$0xff]
    %v4660 = vld [vmem:[#allocation8 + $0xa8] sm:$0xff]
    %v4661 = vld [vmem:[#allocation8 + $0xb0] sm:$0xff]
    %v4662 = vld [vmem:[#allocation8 + $0xb8] sm:$0xff]
    %v4663 = vld [vmem:[#allocation8 + $0xc0] sm:$0xff]
    %v4664 = vld [vmem:[#allocation8 + $0xc8] sm:$0xff]
    %v4665 = vld [vmem:[#allocation8 + $0xd0] sm:$0xff]
    %v4666 = vld [vmem:[#allocation8 + $0xd8] sm:$0xff]
    %v4667 = vld [vmem:[#allocation8 + $0xe0] sm:$0xff]
    %v4668 = vld [vmem:[#allocation8 + $0xe8] sm:$0xff]
    %v4669 = vld [vmem:[#allocation8 + $0xf0] sm:$0xff]
    %v4670 = vld [vmem:[#allocation8 + $0xf8] sm:$0xff]
    %v4671 = vld [vmem:[#allocation8 + $0x100] sm:$0xff]
    %v4672 = vld [vmem:[#allocation8 + $0x108] sm:$0xff]
    %v4673 = vld [vmem:[#allocation8 + $0x110] sm:$0xff]
    %v4674 = vld [vmem:[#allocation8 + $0x118] sm:$0xff]
    %v4675 = vld [vmem:[#allocation8 + $0x120] sm:$0xff]
    %v4676 = vld [vmem:[#allocation8 + $0x128] sm:$0xff]
    %v4677 = vld [vmem:[#allocation8 + $0x130] sm:$0xff]
    %v4678 = vld [vmem:[#allocation8 + $0x138] sm:$0xff]
    %v4679 = vld [vmem:[#allocation8 + $0x140] sm:$0xff]
    %v4680 = vld [vmem:[#allocation8 + $0x148] sm:$0xff]
    %v4681 = vld [vmem:[#allocation8 + $0x150] sm:$0xff]
    %v4682 = vld [vmem:[#allocation8 + $0x158] sm:$0xff]
    %v4683 = vld [vmem:[#allocation8 + $0x160] sm:$0xff]
    %v4684 = vld [vmem:[#allocation8 + $0x168] sm:$0xff]
    %v4685 = vld [vmem:[#allocation8 + $0x170] sm:$0xff]
    %v4686 = vld [vmem:[#allocation8 + $0x178] sm:$0xff]
    %4687 = vmatprep.subr.mxu0 %v4640
    %4688 = vmatpush1.msra.mxu0 %v4639
    %4689 = vmatprep.subr.mxu0 %v4643
    %4690 = vmatpush1.msra.mxu0 %v4642
    %4691 = vmatprep.subr.mxu0 %v4646
    %4692 = vmatpush1.msra.mxu0 %v4645
    %4693 = vmatprep.subr.mxu0 %v4649
    %4694 = vmatpush1.msra.mxu0 %v4648
    %4695 = vmatprep.subr.mxu0 %v4652
    %4696 = vmatpush1.msra.mxu0 %v4651
    %4697 = vmatprep.subr.mxu0 %v4655
    %4698 = vmatpush1.msra.mxu0 %v4654
    %4699 = vmatprep.subr.mxu0 %v4658
    %4700 = vmatpush1.msra.mxu0 %v4657
    %4701 = vmatprep.subr.mxu0 %v4661
    %4702 = vmatpush1.msra.mxu0 %v4660
    %4703 = vmatprep.subr.mxu0 %v4664
    %4704 = vmatpush1.msra.mxu0 %v4663
    %4705 = vmatprep.subr.mxu0 %v4667
    %4706 = vmatpush1.msra.mxu0 %v4666
    %4707 = vmatprep.subr.mxu0 %v4670
    %4708 = vmatpush1.msra.mxu0 %v4669
    %4709 = vmatprep.subr.mxu0 %v4673
    %4710 = vmatpush1.msra.mxu0 %v4672
    %4711 = vmatprep.subr.mxu0 %v4676
    %4712 = vmatpush1.msra.mxu0 %v4675
    %4713 = vmatprep.subr.mxu0 %v4679
    %4714 = vmatpush1.msra.mxu0 %v4678
    %4715 = vmatprep.subr.mxu0 %v4682
    %4716 = vmatpush1.msra.mxu0 %v4681
    %4717 = vmatprep.subr.mxu0 %v4685
    %4718 = vmatpush1.msra.mxu0 %v4684
    %4719 = vmatprep.subr.mxu0 0.0
    %4720 = vmatpush1.msra.mxu0 0.0
    %4721 = vmatprep.subr.mxu0 0.0
    %4722 = vmatpush1.msra.mxu0 0.0
    %4723 = vmatprep.subr.mxu0 0.0
    %4724 = vmatpush1.msra.mxu0 0.0
    %4725 = vmatprep.subr.mxu0 0.0
    %4726 = vmatpush1.msra.mxu0 0.0
    %4727 = vmatprep.subr.mxu0 0.0
    %4728 = vmatpush1.msra.mxu0 0.0
    %4729 = vmatprep.subr.mxu0 0.0
    %4730 = vmatpush1.msra.mxu0 0.0
    %4731 = vmatprep.subr.mxu0 0.0
    %4732 = vmatpush1.msra.mxu0 0.0
    %4733 = vmatprep.subr.mxu0 0.0
    %4734 = vmatpush1.msra.mxu0 0.0
    %4735 = vmatprep.subr.mxu0 0.0
    %4736 = vmatpush1.msra.mxu0 0.0
    %4737 = vmatprep.subr.mxu0 0.0
    %4738 = vmatpush1.msra.mxu0 0.0
    %4739 = vmatprep.subr.mxu0 0.0
    %4740 = vmatpush1.msra.mxu0 0.0
    %4741 = vmatprep.subr.mxu0 0.0
    %4742 = vmatpush1.msra.mxu0 0.0
    %4743 = vmatprep.subr.mxu0 0.0
    %4744 = vmatpush1.msra.mxu0 0.0
    %4745 = vmatprep.subr.mxu0 0.0
    %4746 = vmatpush1.msra.mxu0 0.0
    %4747 = vmatprep.subr.mxu0 0.0
    %4748 = vmatpush1.msra.mxu0 0.0
    %4749 = vmatprep.subr.mxu0 0.0
    %4750 = vmatpush1.msra.mxu0 0.0
    %4751 = vmatprep.mubr.f32.mxu0 0.0
    %4752 = vmatmul.mubr.f32.gmra.mrb[0].mxu0 %v4244
    %v4753 = vpop.f32.mrb[0].mxu0
    %v4754 = vadd.f32 0.0, %v4753
    %v4755 = vpop.f32.mrb[0].mxu0
    %v4756 = vadd.f32 0.0, %v4755
    %4757 = vdwg.mxu0
    %4758 = vmatprep.subr.mxu0 0.0
    %4759 = vmatpush1.msra.mxu0 %v4641
    %4760 = vmatprep.subr.mxu0 0.0
    %4761 = vmatpush1.msra.mxu0 %v4644
    %4762 = vmatprep.subr.mxu0 0.0
    %4763 = vmatpush1.msra.mxu0 %v4647
    %4764 = vmatprep.subr.mxu0 0.0
    %4765 = vmatpush1.msra.mxu0 %v4650
    %4766 = vmatprep.subr.mxu0 0.0
    %4767 = vmatpush1.msra.mxu0 %v4653
    %4768 = vmatprep.subr.mxu0 0.0
    %4769 = vmatpush1.msra.mxu0 %v4656
    %4770 = vmatprep.subr.mxu0 0.0
    %4771 = vmatpush1.msra.mxu0 %v4659
    %4772 = vmatprep.subr.mxu0 0.0
    %4773 = vmatpush1.msra.mxu0 %v4662
    %4774 = vmatprep.subr.mxu0 0.0
    %4775 = vmatpush1.msra.mxu0 %v4665
    %4776 = vmatprep.subr.mxu0 0.0
    %4777 = vmatpush1.msra.mxu0 %v4668
    %4778 = vmatprep.subr.mxu0 0.0
    %4779 = vmatpush1.msra.mxu0 %v4671
    %4780 = vmatprep.subr.mxu0 0.0
    %4781 = vmatpush1.msra.mxu0 %v4674
    %4782 = vmatprep.subr.mxu0 0.0
    %4783 = vmatpush1.msra.mxu0 %v4677
    %4784 = vmatprep.subr.mxu0 0.0
    %4785 = vmatpush1.msra.mxu0 %v4680
    %4786 = vmatprep.subr.mxu0 0.0
    %4787 = vmatpush1.msra.mxu0 %v4683
    %4788 = vmatprep.subr.mxu0 0.0
    %4789 = vmatpush1.msra.mxu0 %v4686
    %4790 = vmatprep.subr.mxu0 0.0
    %4791 = vmatpush1.msra.mxu0 0.0
    %4792 = vmatprep.subr.mxu0 0.0
    %4793 = vmatpush1.msra.mxu0 0.0
    %4794 = vmatprep.subr.mxu0 0.0
    %4795 = vmatpush1.msra.mxu0 0.0
    %4796 = vmatprep.subr.mxu0 0.0
    %4797 = vmatpush1.msra.mxu0 0.0
    %4798 = vmatprep.subr.mxu0 0.0
    %4799 = vmatpush1.msra.mxu0 0.0
    %4800 = vmatprep.subr.mxu0 0.0
    %4801 = vmatpush1.msra.mxu0 0.0
    %4802 = vmatprep.subr.mxu0 0.0
    %4803 = vmatpush1.msra.mxu0 0.0
    %4804 = vmatprep.subr.mxu0 0.0
    %4805 = vmatpush1.msra.mxu0 0.0
    %4806 = vmatprep.subr.mxu0 0.0
    %4807 = vmatpush1.msra.mxu0 0.0
    %4808 = vmatprep.subr.mxu0 0.0
    %4809 = vmatpush1.msra.mxu0 0.0
    %4810 = vmatprep.subr.mxu0 0.0
    %4811 = vmatpush1.msra.mxu0 0.0
    %4812 = vmatprep.subr.mxu0 0.0
    %4813 = vmatpush1.msra.mxu0 0.0
    %4814 = vmatprep.subr.mxu0 0.0
    %4815 = vmatpush1.msra.mxu0 0.0
    %4816 = vmatprep.subr.mxu0 0.0
    %4817 = vmatpush1.msra.mxu0 0.0
    %4818 = vmatprep.subr.mxu0 0.0
    %4819 = vmatpush1.msra.mxu0 0.0
    %4820 = vmatprep.subr.mxu0 0.0
    %4821 = vmatpush1.msra.mxu0 0.0
    %4822 = vmatprep.mubr.f32.mxu0 0.0
    %4823 = vmatmul.mubr.f32.gmra.mrb[0].mxu0 %v4244
    %v4824 = vpop.f32.mrb[0].mxu0
    %v4825 = vadd.f32 0.0, %v4824
    %v4826 = vpop.f32.mrb[0].mxu0
    %4827 = vdwg.mxu0
    %v4828 = vadd.f32 %v4565, %v4754
    %v4829 = vxor.u32 %v4828, 2147483648
    %v4830 = vmul.f32 %v4829, 1.442695
    %v4831 = vpow.pop %v4830
    %v4832 = vadd.f32 %v4831, 1.0
    %v4833 = vrcp.pop %v4832
    %v4834 = vmul.f32 1.0, %v4833
    %v4835 = vadd.f32 %v4567, %v4756
    %v4836 = vxor.u32 %v4835, 2147483648
    %v4837 = vmul.f32 %v4836, 1.442695
    %v4838 = vpow.pop %v4837
    %v4839 = vadd.f32 %v4838, 1.0
    %v4840 = vrcp.pop %v4839
    %v4841 = vmul.f32 1.0, %v4840
    %v4842 = vadd.f32 %v4825, %v607
    %v4843 = vmul.f32 %v4834, %v4842
    %v4844 = vadd.f32 %v4636, %v4843
    %v4845 = vtanh.pop %v4844
    %v4846 = vsub.f32 %v4244, %v4845
    %v4847 = vmul.f32 %v4841, %v4846
    %v4848 = vadd.f32 %v4845, %v4847
    %v4849 = vld [vmem:[#allocation10] sm:$0xff]
    %v4850 = vld [vmem:[#allocation10 + $0x8] sm:$0xff]
    %v4851 = vld [vmem:[#allocation10 + $0x10] sm:$0xff]
    %v4852 = vld [vmem:[#allocation10 + $0x18] sm:$0xff]
    %v4853 = vld [vmem:[#allocation10 + $0x20] sm:$0xff]
    %v4854 = vld [vmem:[#allocation10 + $0x28] sm:$0xff]
    %v4855 = vld [vmem:[#allocation10 + $0x30] sm:$0xff]
    %v4856 = vld [vmem:[#allocation10 + $0x38] sm:$0xff]
    %v4857 = vld [vmem:[#allocation10 + $0x40] sm:$0xff]
    %v4858 = vld [vmem:[#allocation10 + $0x48] sm:$0xff]
    %v4859 = vld [vmem:[#allocation10 + $0x50] sm:$0xff]
    %v4860 = vld [vmem:[#allocation10 + $0x58] sm:$0xff]
    %v4861 = vld [vmem:[#allocation10 + $0x60] sm:$0xff]
    %v4862 = vld [vmem:[#allocation10 + $0x68] sm:$0xff]
    %v4863 = vld [vmem:[#allocation10 + $0x70] sm:$0xff]
    %v4864 = vld [vmem:[#allocation10 + $0x78] sm:$0xff]
    %4865 = vmatprep.subr.mxu0 0.0
    %4866 = vmatpush1.msra.mxu0 %v4849
    %4867 = vmatprep.subr.mxu0 0.0
    %4868 = vmatpush1.msra.mxu0 %v4850
    %4869 = vmatprep.subr.mxu0 0.0
    %4870 = vmatpush1.msra.mxu0 %v4851
    %4871 = vmatprep.subr.mxu0 0.0
    %4872 = vmatpush1.msra.mxu0 %v4852
    %4873 = vmatprep.subr.mxu0 0.0
    %4874 = vmatpush1.msra.mxu0 %v4853
    %4875 = vmatprep.subr.mxu0 0.0
    %4876 = vmatpush1.msra.mxu0 %v4854
    %4877 = vmatprep.subr.mxu0 0.0
    %4878 = vmatpush1.msra.mxu0 %v4855
    %4879 = vmatprep.subr.mxu0 0.0
    %4880 = vmatpush1.msra.mxu0 %v4856
    %4881 = vmatprep.subr.mxu0 0.0
    %4882 = vmatpush1.msra.mxu0 %v4857
    %4883 = vmatprep.subr.mxu0 0.0
    %4884 = vmatpush1.msra.mxu0 %v4858
    %4885 = vmatprep.subr.mxu0 0.0
    %4886 = vmatpush1.msra.mxu0 %v4859
    %4887 = vmatprep.subr.mxu0 0.0
    %4888 = vmatpush1.msra.mxu0 %v4860
    %4889 = vmatprep.subr.mxu0 0.0
    %4890 = vmatpush1.msra.mxu0 %v4861
    %4891 = vmatprep.subr.mxu0 0.0
    %4892 = vmatpush1.msra.mxu0 %v4862
    %4893 = vmatprep.subr.mxu0 0.0
    %4894 = vmatpush1.msra.mxu0 %v4863
    %4895 = vmatprep.subr.mxu0 0.0
    %4896 = vmatpush1.msra.mxu0 %v4864
    %4897 = vmatprep.subr.mxu0 0.0
    %4898 = vmatpush1.msra.mxu0 0.0
    %4899 = vmatprep.subr.mxu0 0.0
    %4900 = vmatpush1.msra.mxu0 0.0
    %4901 = vmatprep.subr.mxu0 0.0
    %4902 = vmatpush1.msra.mxu0 0.0
    %4903 = vmatprep.subr.mxu0 0.0
    %4904 = vmatpush1.msra.mxu0 0.0
    %4905 = vmatprep.subr.mxu0 0.0
    %4906 = vmatpush1.msra.mxu0 0.0
    %4907 = vmatprep.subr.mxu0 0.0
    %4908 = vmatpush1.msra.mxu0 0.0
    %4909 = vmatprep.subr.mxu0 0.0
    %4910 = vmatpush1.msra.mxu0 0.0
    %4911 = vmatprep.subr.mxu0 0.0
    %4912 = vmatpush1.msra.mxu0 0.0
    %4913 = vmatprep.subr.mxu0 0.0
    %4914 = vmatpush1.msra.mxu0 0.0
    %4915 = vmatprep.subr.mxu0 0.0
    %4916 = vmatpush1.msra.mxu0 0.0
    %4917 = vmatprep.subr.mxu0 0.0
    %4918 = vmatpush1.msra.mxu0 0.0
    %4919 = vmatprep.subr.mxu0 0.0
    %4920 = vmatpush1.msra.mxu0 0.0
    %4921 = vmatprep.subr.mxu0 0.0
    %4922 = vmatpush1.msra.mxu0 0.0
    %4923 = vmatprep.subr.mxu0 0.0
    %4924 = vmatpush1.msra.mxu0 0.0
    %4925 = vmatprep.subr.mxu0 0.0
    %4926 = vmatpush1.msra.mxu0 0.0
    %4927 = vmatprep.subr.mxu0 0.0
    %4928 = vmatpush1.msra.mxu0 0.0
    %4929 = vmatprep.mubr.f32.mxu0 0.0
    %4930 = vmatmul.mubr.f32.gmra.mrb[0].mxu0 %v4848
    %v4931 = vpop.f32.mrb[0].mxu0
    %v4932 = vadd.f32 %v636, %v4931
    %v4933 = vpop.f32.mrb[0].mxu0
    %4934 = vdwg.mxu0
    %4935 = vmax.xlane.f32.xlu0 %v4932
    %v4936 = vpop.xlane.xlu0 %4935
    %vm4937 = vcmp.eq.f32.partialorder %v4932, %v4936
    %v4938 = vsel %vm4937, %v100, 128
    %v4939 = vand.u32 %v4938, 65535
    %v4940 = vshra.s32 %v4938, 16
    %v4941 = vcvt.s32.f32 %v4939
    %v4942 = vcvt.s32.f32 %v4940
    %4943 = vmin.xlane.f32.xlu0 %v4942
    %v4944 = vpop.xlane.xlu0 %4943
    %vm4945 = vcmp.eq.f32.partialorder %v4942, %v4944
    %v4946 = vsel %vm4945, %v4941, inf
    %4947 = vmin.xlane.f32.xlu0 %v4946
    %v4948 = vpop.xlane.xlu0 %4947
    %v4949 = vcvt.f32.s32 %v4948
    %v4950 = vcvt.f32.s32 %v4944
    %v4951 = vshll.u32 %v4950, 16
    %v4952 = vadd.s32 %v4951, %v4949
    %v4953 = vsub.f32 %v4932, %v4936
    %v4954 = vmul.f32 %v4953, 1.442695
    %v4955 = vpow.pop %v4954
    %4956 = vadd.xlane.f32.xlu0 %v4955
    %v4957 = vpop.xlane.xlu0 %4956
    %v4958 = vlog2.pop %v4957
    %v4959 = vmul.f32 %v4958, 0.6931472
    %v4960 = vadd.f32 %v4936, %v4959
    %v4961 = vsub.f32 %v4932, %v4960
    %s4962 = scalar_lea.vmem [#allocation11], 56
    %4963 = vst [vmem:[%s4962] sm:$0xff] %v4961
    %vm4964 = vcmp.eq.s32.totalorder %v100, %v4952
    %v4965 = vsel %vm4964, 1, 0
    %v4966 = vcvt.s32.f32 %v4965
    %v4967 = vld [vmem:[#allocation5] sm:$0xff]
    %v4968 = vld [vmem:[#allocation5 + $0x8] sm:$0xff]
    %v4969 = vld [vmem:[#allocation5 + $0x10] sm:$0xff]
    %v4970 = vld [vmem:[#allocation5 + $0x18] sm:$0xff]
    %v4971 = vld [vmem:[#allocation5 + $0x20] sm:$0xff]
    %v4972 = vld [vmem:[#allocation5 + $0x28] sm:$0xff]
    %v4973 = vld [vmem:[#allocation5 + $0x30] sm:$0xff]
    %v4974 = vld [vmem:[#allocation5 + $0x38] sm:$0xff]
    %v4975 = vld [vmem:[#allocation5 + $0x40] sm:$0xff]
    %v4976 = vld [vmem:[#allocation5 + $0x48] sm:$0xff]
    %v4977 = vld [vmem:[#allocation5 + $0x50] sm:$0xff]
    %v4978 = vld [vmem:[#allocation5 + $0x58] sm:$0xff]
    %v4979 = vld [vmem:[#allocation5 + $0x60] sm:$0xff]
    %v4980 = vld [vmem:[#allocation5 + $0x68] sm:$0xff]
    %v4981 = vld [vmem:[#allocation5 + $0x70] sm:$0xff]
    %v4982 = vld [vmem:[#allocation5 + $0x78] sm:$0xff]
    %4983 = vmatprep.subr.mxu0 0.0
    %4984 = vmatpush1.msra.mxu0 %v4967
    %4985 = vmatprep.subr.mxu0 0.0
    %4986 = vmatpush1.msra.mxu0 %v4968
    %4987 = vmatprep.subr.mxu0 0.0
    %4988 = vmatpush1.msra.mxu0 %v4969
    %4989 = vmatprep.subr.mxu0 0.0
    %4990 = vmatpush1.msra.mxu0 %v4970
    %4991 = vmatprep.subr.mxu0 0.0
    %4992 = vmatpush1.msra.mxu0 %v4971
    %4993 = vmatprep.subr.mxu0 0.0
    %4994 = vmatpush1.msra.mxu0 %v4972
    %4995 = vmatprep.subr.mxu0 0.0
    %4996 = vmatpush1.msra.mxu0 %v4973
    %4997 = vmatprep.subr.mxu0 0.0
    %4998 = vmatpush1.msra.mxu0 %v4974
    %4999 = vmatprep.subr.mxu0 0.0
    %5000 = vmatpush1.msra.mxu0 %v4975
    %5001 = vmatprep.subr.mxu0 0.0
    %5002 = vmatpush1.msra.mxu0 %v4976
    %5003 = vmatprep.subr.mxu0 0.0
    %5004 = vmatpush1.msra.mxu0 %v4977
    %5005 = vmatprep.subr.mxu0 0.0
    %5006 = vmatpush1.msra.mxu0 %v4978
    %5007 = vmatprep.subr.mxu0 0.0
    %5008 = vmatpush1.msra.mxu0 %v4979
    %5009 = vmatprep.subr.mxu0 0.0
    %5010 = vmatpush1.msra.mxu0 %v4980
    %5011 = vmatprep.subr.mxu0 0.0
    %5012 = vmatpush1.msra.mxu0 %v4981
    %5013 = vmatprep.subr.mxu0 0.0
    %5014 = vmatpush1.msra.mxu0 %v4982
    %5015 = vmatprep.subr.mxu0 0.0
    %5016 = vmatpush1.msra.mxu0 0.0
    %5017 = vmatprep.subr.mxu0 0.0
    %5018 = vmatpush1.msra.mxu0 0.0
    %5019 = vmatprep.subr.mxu0 0.0
    %5020 = vmatpush1.msra.mxu0 0.0
    %5021 = vmatprep.subr.mxu0 0.0
    %5022 = vmatpush1.msra.mxu0 0.0
    %5023 = vmatprep.subr.mxu0 0.0
    %5024 = vmatpush1.msra.mxu0 0.0
    %5025 = vmatprep.subr.mxu0 0.0
    %5026 = vmatpush1.msra.mxu0 0.0
    %5027 = vmatprep.subr.mxu0 0.0
    %5028 = vmatpush1.msra.mxu0 0.0
    %5029 = vmatprep.subr.mxu0 0.0
    %5030 = vmatpush1.msra.mxu0 0.0
    %5031 = vmatprep.subr.mxu0 0.0
    %5032 = vmatpush1.msra.mxu0 0.0
    %5033 = vmatprep.subr.mxu0 0.0
    %5034 = vmatpush1.msra.mxu0 0.0
    %5035 = vmatprep.subr.mxu0 0.0
    %5036 = vmatpush1.msra.mxu0 0.0
    %5037 = vmatprep.subr.mxu0 0.0
    %5038 = vmatpush1.msra.mxu0 0.0
    %5039 = vmatprep.subr.mxu0 0.0
    %5040 = vmatpush1.msra.mxu0 0.0
    %5041 = vmatprep.subr.mxu0 0.0
    %5042 = vmatpush1.msra.mxu0 0.0
    %5043 = vmatprep.subr.mxu0 0.0
    %5044 = vmatpush1.msra.mxu0 0.0
    %5045 = vmatprep.subr.mxu0 0.0
    %5046 = vmatpush1.msra.mxu0 0.0
    %5047 = vmatprep.mubr.f32.mxu0 0.0
    %5048 = vmatmul.mubr.f32.gmra.mrb[0].mxu0 %v4966
    %v5049 = vpop.f32.mrb[0].mxu0
    %v5050 = vadd.f32 0.0, %v5049
    %v5051 = vpop.f32.mrb[0].mxu0
    %5052 = vdwg.mxu0
    %v5053 = vmax.f32 %v5050, 0.0
    %v5054 = vld [vmem:[#allocation7] sm:$0xff]
    %v5055 = vld [vmem:[#allocation7 + $0x8] sm:$0xff]
    %v5056 = vld [vmem:[#allocation7 + $0x10] sm:$0xff]
    %v5057 = vld [vmem:[#allocation7 + $0x18] sm:$0xff]
    %v5058 = vld [vmem:[#allocation7 + $0x20] sm:$0xff]
    %v5059 = vld [vmem:[#allocation7 + $0x28] sm:$0xff]
    %v5060 = vld [vmem:[#allocation7 + $0x30] sm:$0xff]
    %v5061 = vld [vmem:[#allocation7 + $0x38] sm:$0xff]
    %v5062 = vld [vmem:[#allocation7 + $0x40] sm:$0xff]
    %v5063 = vld [vmem:[#allocation7 + $0x48] sm:$0xff]
    %v5064 = vld [vmem:[#allocation7 + $0x50] sm:$0xff]
    %v5065 = vld [vmem:[#allocation7 + $0x58] sm:$0xff]
    %v5066 = vld [vmem:[#allocation7 + $0x60] sm:$0xff]
    %v5067 = vld [vmem:[#allocation7 + $0x68] sm:$0xff]
    %v5068 = vld [vmem:[#allocation7 + $0x70] sm:$0xff]
    %v5069 = vld [vmem:[#allocation7 + $0x78] sm:$0xff]
    %v5070 = vld [vmem:[#allocation7 + $0x80] sm:$0xff]
    %v5071 = vld [vmem:[#allocation7 + $0x88] sm:$0xff]
    %v5072 = vld [vmem:[#allocation7 + $0x90] sm:$0xff]
    %v5073 = vld [vmem:[#allocation7 + $0x98] sm:$0xff]
    %v5074 = vld [vmem:[#allocation7 + $0xa0] sm:$0xff]
    %v5075 = vld [vmem:[#allocation7 + $0xa8] sm:$0xff]
    %v5076 = vld [vmem:[#allocation7 + $0xb0] sm:$0xff]
    %v5077 = vld [vmem:[#allocation7 + $0xb8] sm:$0xff]
    %v5078 = vld [vmem:[#allocation7 + $0xc0] sm:$0xff]
    %v5079 = vld [vmem:[#allocation7 + $0xc8] sm:$0xff]
    %v5080 = vld [vmem:[#allocation7 + $0xd0] sm:$0xff]
    %v5081 = vld [vmem:[#allocation7 + $0xd8] sm:$0xff]
    %v5082 = vld [vmem:[#allocation7 + $0xe0] sm:$0xff]
    %v5083 = vld [vmem:[#allocation7 + $0xe8] sm:$0xff]
    %v5084 = vld [vmem:[#allocation7 + $0xf0] sm:$0xff]
    %v5085 = vld [vmem:[#allocation7 + $0xf8] sm:$0xff]
    %v5086 = vld [vmem:[#allocation7 + $0x100] sm:$0xff]
    %v5087 = vld [vmem:[#allocation7 + $0x108] sm:$0xff]
    %v5088 = vld [vmem:[#allocation7 + $0x110] sm:$0xff]
    %v5089 = vld [vmem:[#allocation7 + $0x118] sm:$0xff]
    %v5090 = vld [vmem:[#allocation7 + $0x120] sm:$0xff]
    %v5091 = vld [vmem:[#allocation7 + $0x128] sm:$0xff]
    %v5092 = vld [vmem:[#allocation7 + $0x130] sm:$0xff]
    %v5093 = vld [vmem:[#allocation7 + $0x138] sm:$0xff]
    %v5094 = vld [vmem:[#allocation7 + $0x140] sm:$0xff]
    %v5095 = vld [vmem:[#allocation7 + $0x148] sm:$0xff]
    %v5096 = vld [vmem:[#allocation7 + $0x150] sm:$0xff]
    %v5097 = vld [vmem:[#allocation7 + $0x158] sm:$0xff]
    %v5098 = vld [vmem:[#allocation7 + $0x160] sm:$0xff]
    %v5099 = vld [vmem:[#allocation7 + $0x168] sm:$0xff]
    %v5100 = vld [vmem:[#allocation7 + $0x170] sm:$0xff]
    %v5101 = vld [vmem:[#allocation7 + $0x178] sm:$0xff]
    %5102 = vmatprep.subr.mxu0 %v5055
    %5103 = vmatpush1.msra.mxu0 %v5054
    %5104 = vmatprep.subr.mxu0 %v5058
    %5105 = vmatpush1.msra.mxu0 %v5057
    %5106 = vmatprep.subr.mxu0 %v5061
    %5107 = vmatpush1.msra.mxu0 %v5060
    %5108 = vmatprep.subr.mxu0 %v5064
    %5109 = vmatpush1.msra.mxu0 %v5063
    %5110 = vmatprep.subr.mxu0 %v5067
    %5111 = vmatpush1.msra.mxu0 %v5066
    %5112 = vmatprep.subr.mxu0 %v5070
    %5113 = vmatpush1.msra.mxu0 %v5069
    %5114 = vmatprep.subr.mxu0 %v5073
    %5115 = vmatpush1.msra.mxu0 %v5072
    %5116 = vmatprep.subr.mxu0 %v5076
    %5117 = vmatpush1.msra.mxu0 %v5075
    %5118 = vmatprep.subr.mxu0 %v5079
    %5119 = vmatpush1.msra.mxu0 %v5078
    %5120 = vmatprep.subr.mxu0 %v5082
    %5121 = vmatpush1.msra.mxu0 %v5081
    %5122 = vmatprep.subr.mxu0 %v5085
    %5123 = vmatpush1.msra.mxu0 %v5084
    %5124 = vmatprep.subr.mxu0 %v5088
    %5125 = vmatpush1.msra.mxu0 %v5087
    %5126 = vmatprep.subr.mxu0 %v5091
    %5127 = vmatpush1.msra.mxu0 %v5090
    %5128 = vmatprep.subr.mxu0 %v5094
    %5129 = vmatpush1.msra.mxu0 %v5093
    %5130 = vmatprep.subr.mxu0 %v5097
    %5131 = vmatpush1.msra.mxu0 %v5096
    %5132 = vmatprep.subr.mxu0 %v5100
    %5133 = vmatpush1.msra.mxu0 %v5099
    %5134 = vmatprep.subr.mxu0 0.0
    %5135 = vmatpush1.msra.mxu0 0.0
    %5136 = vmatprep.subr.mxu0 0.0
    %5137 = vmatpush1.msra.mxu0 0.0
    %5138 = vmatprep.subr.mxu0 0.0
    %5139 = vmatpush1.msra.mxu0 0.0
    %5140 = vmatprep.subr.mxu0 0.0
    %5141 = vmatpush1.msra.mxu0 0.0
    %5142 = vmatprep.subr.mxu0 0.0
    %5143 = vmatpush1.msra.mxu0 0.0
    %5144 = vmatprep.subr.mxu0 0.0
    %5145 = vmatpush1.msra.mxu0 0.0
    %5146 = vmatprep.subr.mxu0 0.0
    %5147 = vmatpush1.msra.mxu0 0.0
    %5148 = vmatprep.subr.mxu0 0.0
    %5149 = vmatpush1.msra.mxu0 0.0
    %5150 = vmatprep.subr.mxu0 0.0
    %5151 = vmatpush1.msra.mxu0 0.0
    %5152 = vmatprep.subr.mxu0 0.0
    %5153 = vmatpush1.msra.mxu0 0.0
    %5154 = vmatprep.subr.mxu0 0.0
    %5155 = vmatpush1.msra.mxu0 0.0
    %5156 = vmatprep.subr.mxu0 0.0
    %5157 = vmatpush1.msra.mxu0 0.0
    %5158 = vmatprep.subr.mxu0 0.0
    %5159 = vmatpush1.msra.mxu0 0.0
    %5160 = vmatprep.subr.mxu0 0.0
    %5161 = vmatpush1.msra.mxu0 0.0
    %5162 = vmatprep.subr.mxu0 0.0
    %5163 = vmatpush1.msra.mxu0 0.0
    %5164 = vmatprep.subr.mxu0 0.0
    %5165 = vmatpush1.msra.mxu0 0.0
    %5166 = vmatprep.mubr.f32.mxu0 0.0
    %5167 = vmatmul.mubr.f32.gmra.mrb[0].mxu0 %v5053
    %v5168 = vpop.f32.mrb[0].mxu0
    %v5169 = vadd.f32 %v247, %v5168
    %v5170 = vpop.f32.mrb[0].mxu0
    %v5171 = vadd.f32 %v251, %v5170
    %5172 = vdwg.mxu0
    %5173 = vmatprep.subr.mxu0 0.0
    %5174 = vmatpush1.msra.mxu0 %v5056
    %5175 = vmatprep.subr.mxu0 0.0
    %5176 = vmatpush1.msra.mxu0 %v5059
    %5177 = vmatprep.subr.mxu0 0.0
    %5178 = vmatpush1.msra.mxu0 %v5062
    %5179 = vmatprep.subr.mxu0 0.0
    %5180 = vmatpush1.msra.mxu0 %v5065
    %5181 = vmatprep.subr.mxu0 0.0
    %5182 = vmatpush1.msra.mxu0 %v5068
    %5183 = vmatprep.subr.mxu0 0.0
    %5184 = vmatpush1.msra.mxu0 %v5071
    %5185 = vmatprep.subr.mxu0 0.0
    %5186 = vmatpush1.msra.mxu0 %v5074
    %5187 = vmatprep.subr.mxu0 0.0
    %5188 = vmatpush1.msra.mxu0 %v5077
    %5189 = vmatprep.subr.mxu0 0.0
    %5190 = vmatpush1.msra.mxu0 %v5080
    %5191 = vmatprep.subr.mxu0 0.0
    %5192 = vmatpush1.msra.mxu0 %v5083
    %5193 = vmatprep.subr.mxu0 0.0
    %5194 = vmatpush1.msra.mxu0 %v5086
    %5195 = vmatprep.subr.mxu0 0.0
    %5196 = vmatpush1.msra.mxu0 %v5089
    %5197 = vmatprep.subr.mxu0 0.0
    %5198 = vmatpush1.msra.mxu0 %v5092
    %5199 = vmatprep.subr.mxu0 0.0
    %5200 = vmatpush1.msra.mxu0 %v5095
    %5201 = vmatprep.subr.mxu0 0.0
    %5202 = vmatpush1.msra.mxu0 %v5098
    %5203 = vmatprep.subr.mxu0 0.0
    %5204 = vmatpush1.msra.mxu0 %v5101
    %5205 = vmatprep.subr.mxu0 0.0
    %5206 = vmatpush1.msra.mxu0 0.0
    %5207 = vmatprep.subr.mxu0 0.0
    %5208 = vmatpush1.msra.mxu0 0.0
    %5209 = vmatprep.subr.mxu0 0.0
    %5210 = vmatpush1.msra.mxu0 0.0
    %5211 = vmatprep.subr.mxu0 0.0
    %5212 = vmatpush1.msra.mxu0 0.0
    %5213 = vmatprep.subr.mxu0 0.0
    %5214 = vmatpush1.msra.mxu0 0.0
    %5215 = vmatprep.subr.mxu0 0.0
    %5216 = vmatpush1.msra.mxu0 0.0
    %5217 = vmatprep.subr.mxu0 0.0
    %5218 = vmatpush1.msra.mxu0 0.0
    %5219 = vmatprep.subr.mxu0 0.0
    %5220 = vmatpush1.msra.mxu0 0.0
    %5221 = vmatprep.subr.mxu0 0.0
    %5222 = vmatpush1.msra.mxu0 0.0
    %5223 = vmatprep.subr.mxu0 0.0
    %5224 = vmatpush1.msra.mxu0 0.0
    %5225 = vmatprep.subr.mxu0 0.0
    %5226 = vmatpush1.msra.mxu0 0.0
    %5227 = vmatprep.subr.mxu0 0.0
    %5228 = vmatpush1.msra.mxu0 0.0
    %5229 = vmatprep.subr.mxu0 0.0
    %5230 = vmatpush1.msra.mxu0 0.0
    %5231 = vmatprep.subr.mxu0 0.0
    %5232 = vmatpush1.msra.mxu0 0.0
    %5233 = vmatprep.subr.mxu0 0.0
    %5234 = vmatpush1.msra.mxu0 0.0
    %5235 = vmatprep.subr.mxu0 0.0
    %5236 = vmatpush1.msra.mxu0 0.0
    %5237 = vmatprep.mubr.f32.mxu0 0.0
    %5238 = vmatmul.mubr.f32.gmra.mrb[0].mxu0 %v5053
    %v5239 = vpop.f32.mrb[0].mxu0
    %v5240 = vadd.f32 %v255, %v5239
    %v5241 = vpop.f32.mrb[0].mxu0
    %5242 = vdwg.mxu0
    %v5243 = vld [vmem:[#allocation8] sm:$0xff]
    %v5244 = vld [vmem:[#allocation8 + $0x8] sm:$0xff]
    %v5245 = vld [vmem:[#allocation8 + $0x10] sm:$0xff]
    %v5246 = vld [vmem:[#allocation8 + $0x18] sm:$0xff]
    %v5247 = vld [vmem:[#allocation8 + $0x20] sm:$0xff]
    %v5248 = vld [vmem:[#allocation8 + $0x28] sm:$0xff]
    %v5249 = vld [vmem:[#allocation8 + $0x30] sm:$0xff]
    %v5250 = vld [vmem:[#allocation8 + $0x38] sm:$0xff]
    %v5251 = vld [vmem:[#allocation8 + $0x40] sm:$0xff]
    %v5252 = vld [vmem:[#allocation8 + $0x48] sm:$0xff]
    %v5253 = vld [vmem:[#allocation8 + $0x50] sm:$0xff]
    %v5254 = vld [vmem:[#allocation8 + $0x58] sm:$0xff]
    %v5255 = vld [vmem:[#allocation8 + $0x60] sm:$0xff]
    %v5256 = vld [vmem:[#allocation8 + $0x68] sm:$0xff]
    %v5257 = vld [vmem:[#allocation8 + $0x70] sm:$0xff]
    %v5258 = vld [vmem:[#allocation8 + $0x78] sm:$0xff]
    %v5259 = vld [vmem:[#allocation8 + $0x80] sm:$0xff]
    %v5260 = vld [vmem:[#allocation8 + $0x88] sm:$0xff]
    %v5261 = vld [vmem:[#allocation8 + $0x90] sm:$0xff]
    %v5262 = vld [vmem:[#allocation8 + $0x98] sm:$0xff]
    %v5263 = vld [vmem:[#allocation8 + $0xa0] sm:$0xff]
    %v5264 = vld [vmem:[#allocation8 + $0xa8] sm:$0xff]
    %v5265 = vld [vmem:[#allocation8 + $0xb0] sm:$0xff]
    %v5266 = vld [vmem:[#allocation8 + $0xb8] sm:$0xff]
    %v5267 = vld [vmem:[#allocation8 + $0xc0] sm:$0xff]
    %v5268 = vld [vmem:[#allocation8 + $0xc8] sm:$0xff]
    %v5269 = vld [vmem:[#allocation8 + $0xd0] sm:$0xff]
    %v5270 = vld [vmem:[#allocation8 + $0xd8] sm:$0xff]
    %v5271 = vld [vmem:[#allocation8 + $0xe0] sm:$0xff]
    %v5272 = vld [vmem:[#allocation8 + $0xe8] sm:$0xff]
    %v5273 = vld [vmem:[#allocation8 + $0xf0] sm:$0xff]
    %v5274 = vld [vmem:[#allocation8 + $0xf8] sm:$0xff]
    %v5275 = vld [vmem:[#allocation8 + $0x100] sm:$0xff]
    %v5276 = vld [vmem:[#allocation8 + $0x108] sm:$0xff]
    %v5277 = vld [vmem:[#allocation8 + $0x110] sm:$0xff]
    %v5278 = vld [vmem:[#allocation8 + $0x118] sm:$0xff]
    %v5279 = vld [vmem:[#allocation8 + $0x120] sm:$0xff]
    %v5280 = vld [vmem:[#allocation8 + $0x128] sm:$0xff]
    %v5281 = vld [vmem:[#allocation8 + $0x130] sm:$0xff]
    %v5282 = vld [vmem:[#allocation8 + $0x138] sm:$0xff]
    %v5283 = vld [vmem:[#allocation8 + $0x140] sm:$0xff]
    %v5284 = vld [vmem:[#allocation8 + $0x148] sm:$0xff]
    %v5285 = vld [vmem:[#allocation8 + $0x150] sm:$0xff]
    %v5286 = vld [vmem:[#allocation8 + $0x158] sm:$0xff]
    %v5287 = vld [vmem:[#allocation8 + $0x160] sm:$0xff]
    %v5288 = vld [vmem:[#allocation8 + $0x168] sm:$0xff]
    %v5289 = vld [vmem:[#allocation8 + $0x170] sm:$0xff]
    %v5290 = vld [vmem:[#allocation8 + $0x178] sm:$0xff]
    %5291 = vmatprep.subr.mxu0 %v5244
    %5292 = vmatpush1.msra.mxu0 %v5243
    %5293 = vmatprep.subr.mxu0 %v5247
    %5294 = vmatpush1.msra.mxu0 %v5246
    %5295 = vmatprep.subr.mxu0 %v5250
    %5296 = vmatpush1.msra.mxu0 %v5249
    %5297 = vmatprep.subr.mxu0 %v5253
    %5298 = vmatpush1.msra.mxu0 %v5252
    %5299 = vmatprep.subr.mxu0 %v5256
    %5300 = vmatpush1.msra.mxu0 %v5255
    %5301 = vmatprep.subr.mxu0 %v5259
    %5302 = vmatpush1.msra.mxu0 %v5258
    %5303 = vmatprep.subr.mxu0 %v5262
    %5304 = vmatpush1.msra.mxu0 %v5261
    %5305 = vmatprep.subr.mxu0 %v5265
    %5306 = vmatpush1.msra.mxu0 %v5264
    %5307 = vmatprep.subr.mxu0 %v5268
    %5308 = vmatpush1.msra.mxu0 %v5267
    %5309 = vmatprep.subr.mxu0 %v5271
    %5310 = vmatpush1.msra.mxu0 %v5270
    %5311 = vmatprep.subr.mxu0 %v5274
    %5312 = vmatpush1.msra.mxu0 %v5273
    %5313 = vmatprep.subr.mxu0 %v5277
    %5314 = vmatpush1.msra.mxu0 %v5276
    %5315 = vmatprep.subr.mxu0 %v5280
    %5316 = vmatpush1.msra.mxu0 %v5279
    %5317 = vmatprep.subr.mxu0 %v5283
    %5318 = vmatpush1.msra.mxu0 %v5282
    %5319 = vmatprep.subr.mxu0 %v5286
    %5320 = vmatpush1.msra.mxu0 %v5285
    %5321 = vmatprep.subr.mxu0 %v5289
    %5322 = vmatpush1.msra.mxu0 %v5288
    %5323 = vmatprep.subr.mxu0 0.0
    %5324 = vmatpush1.msra.mxu0 0.0
    %5325 = vmatprep.subr.mxu0 0.0
    %5326 = vmatpush1.msra.mxu0 0.0
    %5327 = vmatprep.subr.mxu0 0.0
    %5328 = vmatpush1.msra.mxu0 0.0
    %5329 = vmatprep.subr.mxu0 0.0
    %5330 = vmatpush1.msra.mxu0 0.0
    %5331 = vmatprep.subr.mxu0 0.0
    %5332 = vmatpush1.msra.mxu0 0.0
    %5333 = vmatprep.subr.mxu0 0.0
    %5334 = vmatpush1.msra.mxu0 0.0
    %5335 = vmatprep.subr.mxu0 0.0
    %5336 = vmatpush1.msra.mxu0 0.0
    %5337 = vmatprep.subr.mxu0 0.0
    %5338 = vmatpush1.msra.mxu0 0.0
    %5339 = vmatprep.subr.mxu0 0.0
    %5340 = vmatpush1.msra.mxu0 0.0
    %5341 = vmatprep.subr.mxu0 0.0
    %5342 = vmatpush1.msra.mxu0 0.0
    %5343 = vmatprep.subr.mxu0 0.0
    %5344 = vmatpush1.msra.mxu0 0.0
    %5345 = vmatprep.subr.mxu0 0.0
    %5346 = vmatpush1.msra.mxu0 0.0
    %5347 = vmatprep.subr.mxu0 0.0
    %5348 = vmatpush1.msra.mxu0 0.0
    %5349 = vmatprep.subr.mxu0 0.0
    %5350 = vmatpush1.msra.mxu0 0.0
    %5351 = vmatprep.subr.mxu0 0.0
    %5352 = vmatpush1.msra.mxu0 0.0
    %5353 = vmatprep.subr.mxu0 0.0
    %5354 = vmatpush1.msra.mxu0 0.0
    %5355 = vmatprep.mubr.f32.mxu0 0.0
    %5356 = vmatmul.mubr.f32.gmra.mrb[0].mxu0 %v4848
    %v5357 = vpop.f32.mrb[0].mxu0
    %v5358 = vadd.f32 0.0, %v5357
    %v5359 = vpop.f32.mrb[0].mxu0
    %v5360 = vadd.f32 0.0, %v5359
    %5361 = vdwg.mxu0
    %5362 = vmatprep.subr.mxu0 0.0
    %5363 = vmatpush1.msra.mxu0 %v5245
    %5364 = vmatprep.subr.mxu0 0.0
    %5365 = vmatpush1.msra.mxu0 %v5248
    %5366 = vmatprep.subr.mxu0 0.0
    %5367 = vmatpush1.msra.mxu0 %v5251
    %5368 = vmatprep.subr.mxu0 0.0
    %5369 = vmatpush1.msra.mxu0 %v5254
    %5370 = vmatprep.subr.mxu0 0.0
    %5371 = vmatpush1.msra.mxu0 %v5257
    %5372 = vmatprep.subr.mxu0 0.0
    %5373 = vmatpush1.msra.mxu0 %v5260
    %5374 = vmatprep.subr.mxu0 0.0
    %5375 = vmatpush1.msra.mxu0 %v5263
    %5376 = vmatprep.subr.mxu0 0.0
    %5377 = vmatpush1.msra.mxu0 %v5266
    %5378 = vmatprep.subr.mxu0 0.0
    %5379 = vmatpush1.msra.mxu0 %v5269
    %5380 = vmatprep.subr.mxu0 0.0
    %5381 = vmatpush1.msra.mxu0 %v5272
    %5382 = vmatprep.subr.mxu0 0.0
    %5383 = vmatpush1.msra.mxu0 %v5275
    %5384 = vmatprep.subr.mxu0 0.0
    %5385 = vmatpush1.msra.mxu0 %v5278
    %5386 = vmatprep.subr.mxu0 0.0
    %5387 = vmatpush1.msra.mxu0 %v5281
    %5388 = vmatprep.subr.mxu0 0.0
    %5389 = vmatpush1.msra.mxu0 %v5284
    %5390 = vmatprep.subr.mxu0 0.0
    %5391 = vmatpush1.msra.mxu0 %v5287
    %5392 = vmatprep.subr.mxu0 0.0
    %5393 = vmatpush1.msra.mxu0 %v5290
    %5394 = vmatprep.subr.mxu0 0.0
    %5395 = vmatpush1.msra.mxu0 0.0
    %5396 = vmatprep.subr.mxu0 0.0
    %5397 = vmatpush1.msra.mxu0 0.0
    %5398 = vmatprep.subr.mxu0 0.0
    %5399 = vmatpush1.msra.mxu0 0.0
    %5400 = vmatprep.subr.mxu0 0.0
    %5401 = vmatpush1.msra.mxu0 0.0
    %5402 = vmatprep.subr.mxu0 0.0
    %5403 = vmatpush1.msra.mxu0 0.0
    %5404 = vmatprep.subr.mxu0 0.0
    %5405 = vmatpush1.msra.mxu0 0.0
    %5406 = vmatprep.subr.mxu0 0.0
    %5407 = vmatpush1.msra.mxu0 0.0
    %5408 = vmatprep.subr.mxu0 0.0
    %5409 = vmatpush1.msra.mxu0 0.0
    %5410 = vmatprep.subr.mxu0 0.0
    %5411 = vmatpush1.msra.mxu0 0.0
    %5412 = vmatprep.subr.mxu0 0.0
    %5413 = vmatpush1.msra.mxu0 0.0
    %5414 = vmatprep.subr.mxu0 0.0
    %5415 = vmatpush1.msra.mxu0 0.0
    %5416 = vmatprep.subr.mxu0 0.0
    %5417 = vmatpush1.msra.mxu0 0.0
    %5418 = vmatprep.subr.mxu0 0.0
    %5419 = vmatpush1.msra.mxu0 0.0
    %5420 = vmatprep.subr.mxu0 0.0
    %5421 = vmatpush1.msra.mxu0 0.0
    %5422 = vmatprep.subr.mxu0 0.0
    %5423 = vmatpush1.msra.mxu0 0.0
    %5424 = vmatprep.subr.mxu0 0.0
    %5425 = vmatpush1.msra.mxu0 0.0
    %5426 = vmatprep.mubr.f32.mxu0 0.0
    %5427 = vmatmul.mubr.f32.gmra.mrb[0].mxu0 %v4848
    %v5428 = vpop.f32.mrb[0].mxu0
    %v5429 = vadd.f32 0.0, %v5428
    %v5430 = vpop.f32.mrb[0].mxu0
    %5431 = vdwg.mxu0
    %v5432 = vadd.f32 %v5169, %v5358
    %v5433 = vxor.u32 %v5432, 2147483648
    %v5434 = vmul.f32 %v5433, 1.442695
    %v5435 = vpow.pop %v5434
    %v5436 = vadd.f32 %v5435, 1.0
    %v5437 = vrcp.pop %v5436
    %v5438 = vmul.f32 1.0, %v5437
    %v5439 = vadd.f32 %v5171, %v5360
    %v5440 = vxor.u32 %v5439, 2147483648
    %v5441 = vmul.f32 %v5440, 1.442695
    %v5442 = vpow.pop %v5441
    %v5443 = vadd.f32 %v5442, 1.0
    %v5444 = vrcp.pop %v5443
    %v5445 = vmul.f32 1.0, %v5444
    %v5446 = vadd.f32 %v5429, %v607
    %v5447 = vmul.f32 %v5438, %v5446
    %v5448 = vadd.f32 %v5240, %v5447
    %v5449 = vtanh.pop %v5448
    %v5450 = vsub.f32 %v4848, %v5449
    %v5451 = vmul.f32 %v5445, %v5450
    %v5452 = vadd.f32 %v5449, %v5451
    %v5453 = vld [vmem:[#allocation10] sm:$0xff]
    %v5454 = vld [vmem:[#allocation10 + $0x8] sm:$0xff]
    %v5455 = vld [vmem:[#allocation10 + $0x10] sm:$0xff]
    %v5456 = vld [vmem:[#allocation10 + $0x18] sm:$0xff]
    %v5457 = vld [vmem:[#allocation10 + $0x20] sm:$0xff]
    %v5458 = vld [vmem:[#allocation10 + $0x28] sm:$0xff]
    %v5459 = vld [vmem:[#allocation10 + $0x30] sm:$0xff]
    %v5460 = vld [vmem:[#allocation10 + $0x38] sm:$0xff]
    %v5461 = vld [vmem:[#allocation10 + $0x40] sm:$0xff]
    %v5462 = vld [vmem:[#allocation10 + $0x48] sm:$0xff]
    %v5463 = vld [vmem:[#allocation10 + $0x50] sm:$0xff]
    %v5464 = vld [vmem:[#allocation10 + $0x58] sm:$0xff]
    %v5465 = vld [vmem:[#allocation10 + $0x60] sm:$0xff]
    %v5466 = vld [vmem:[#allocation10 + $0x68] sm:$0xff]
    %v5467 = vld [vmem:[#allocation10 + $0x70] sm:$0xff]
    %v5468 = vld [vmem:[#allocation10 + $0x78] sm:$0xff]
    %5469 = vmatprep.subr.mxu0 0.0
    %5470 = vmatpush1.msra.mxu0 %v5453
    %5471 = vmatprep.subr.mxu0 0.0
    %5472 = vmatpush1.msra.mxu0 %v5454
    %5473 = vmatprep.subr.mxu0 0.0
    %5474 = vmatpush1.msra.mxu0 %v5455
    %5475 = vmatprep.subr.mxu0 0.0
    %5476 = vmatpush1.msra.mxu0 %v5456
    %5477 = vmatprep.subr.mxu0 0.0
    %5478 = vmatpush1.msra.mxu0 %v5457
    %5479 = vmatprep.subr.mxu0 0.0
    %5480 = vmatpush1.msra.mxu0 %v5458
    %5481 = vmatprep.subr.mxu0 0.0
    %5482 = vmatpush1.msra.mxu0 %v5459
    %5483 = vmatprep.subr.mxu0 0.0
    %5484 = vmatpush1.msra.mxu0 %v5460
    %5485 = vmatprep.subr.mxu0 0.0
    %5486 = vmatpush1.msra.mxu0 %v5461
    %5487 = vmatprep.subr.mxu0 0.0
    %5488 = vmatpush1.msra.mxu0 %v5462
    %5489 = vmatprep.subr.mxu0 0.0
    %5490 = vmatpush1.msra.mxu0 %v5463
    %5491 = vmatprep.subr.mxu0 0.0
    %5492 = vmatpush1.msra.mxu0 %v5464
    %5493 = vmatprep.subr.mxu0 0.0
    %5494 = vmatpush1.msra.mxu0 %v5465
    %5495 = vmatprep.subr.mxu0 0.0
    %5496 = vmatpush1.msra.mxu0 %v5466
    %5497 = vmatprep.subr.mxu0 0.0
    %5498 = vmatpush1.msra.mxu0 %v5467
    %5499 = vmatprep.subr.mxu0 0.0
    %5500 = vmatpush1.msra.mxu0 %v5468
    %5501 = vmatprep.subr.mxu0 0.0
    %5502 = vmatpush1.msra.mxu0 0.0
    %5503 = vmatprep.subr.mxu0 0.0
    %5504 = vmatpush1.msra.mxu0 0.0
    %5505 = vmatprep.subr.mxu0 0.0
    %5506 = vmatpush1.msra.mxu0 0.0
    %5507 = vmatprep.subr.mxu0 0.0
    %5508 = vmatpush1.msra.mxu0 0.0
    %5509 = vmatprep.subr.mxu0 0.0
    %5510 = vmatpush1.msra.mxu0 0.0
    %5511 = vmatprep.subr.mxu0 0.0
    %5512 = vmatpush1.msra.mxu0 0.0
    %5513 = vmatprep.subr.mxu0 0.0
    %5514 = vmatpush1.msra.mxu0 0.0
    %5515 = vmatprep.subr.mxu0 0.0
    %5516 = vmatpush1.msra.mxu0 0.0
    %5517 = vmatprep.subr.mxu0 0.0
    %5518 = vmatpush1.msra.mxu0 0.0
    %5519 = vmatprep.subr.mxu0 0.0
    %5520 = vmatpush1.msra.mxu0 0.0
    %5521 = vmatprep.subr.mxu0 0.0
    %5522 = vmatpush1.msra.mxu0 0.0
    %5523 = vmatprep.subr.mxu0 0.0
    %5524 = vmatpush1.msra.mxu0 0.0
    %5525 = vmatprep.subr.mxu0 0.0
    %5526 = vmatpush1.msra.mxu0 0.0
    %5527 = vmatprep.subr.mxu0 0.0
    %5528 = vmatpush1.msra.mxu0 0.0
    %5529 = vmatprep.subr.mxu0 0.0
    %5530 = vmatpush1.msra.mxu0 0.0
    %5531 = vmatprep.subr.mxu0 0.0
    %5532 = vmatpush1.msra.mxu0 0.0
    %5533 = vmatprep.mubr.f32.mxu0 0.0
    %5534 = vmatmul.mubr.f32.gmra.mrb[0].mxu0 %v5452
    %v5535 = vpop.f32.mrb[0].mxu0
    %v5536 = vadd.f32 %v636, %v5535
    %v5537 = vpop.f32.mrb[0].mxu0
    %5538 = vdwg.mxu0
    %5539 = vmax.xlane.f32.xlu0 %v5536
    %v5540 = vpop.xlane.xlu0 %5539
    %vm5541 = vcmp.eq.f32.partialorder %v5536, %v5540
    %v5542 = vsel %vm5541, %v100, 128
    %v5543 = vand.u32 %v5542, 65535
    %v5544 = vshra.s32 %v5542, 16
    %v5545 = vcvt.s32.f32 %v5543
    %v5546 = vcvt.s32.f32 %v5544
    %5547 = vmin.xlane.f32.xlu0 %v5546
    %v5548 = vpop.xlane.xlu0 %5547
    %vm5549 = vcmp.eq.f32.partialorder %v5546, %v5548
    %v5550 = vsel %vm5549, %v5545, inf
    %5551 = vmin.xlane.f32.xlu0 %v5550
    %v5552 = vpop.xlane.xlu0 %5551
    %v5553 = vcvt.f32.s32 %v5552
    %v5554 = vcvt.f32.s32 %v5548
    %v5555 = vshll.u32 %v5554, 16
    %v5556 = vadd.s32 %v5555, %v5553
    %v5557 = vsub.f32 %v5536, %v5540
    %v5558 = vmul.f32 %v5557, 1.442695
    %v5559 = vpow.pop %v5558
    %5560 = vadd.xlane.f32.xlu0 %v5559
    %v5561 = vpop.xlane.xlu0 %5560
    %v5562 = vlog2.pop %v5561
    %v5563 = vmul.f32 %v5562, 0.6931472
    %v5564 = vadd.f32 %v5540, %v5563
    %v5565 = vsub.f32 %v5536, %v5564
    %s5566 = scalar_lea.vmem [#allocation11], 64
    %5567 = vst [vmem:[%s5566] sm:$0xff] %v5565
    %vm5568 = vcmp.eq.s32.totalorder %v100, %v5556
    %v5569 = vsel %vm5568, 1, 0
    %v5570 = vcvt.s32.f32 %v5569
    %v5571 = vld [vmem:[#allocation5] sm:$0xff]
    %v5572 = vld [vmem:[#allocation5 + $0x8] sm:$0xff]
    %v5573 = vld [vmem:[#allocation5 + $0x10] sm:$0xff]
    %v5574 = vld [vmem:[#allocation5 + $0x18] sm:$0xff]
    %v5575 = vld [vmem:[#allocation5 + $0x20] sm:$0xff]
    %v5576 = vld [vmem:[#allocation5 + $0x28] sm:$0xff]
    %v5577 = vld [vmem:[#allocation5 + $0x30] sm:$0xff]
    %v5578 = vld [vmem:[#allocation5 + $0x38] sm:$0xff]
    %v5579 = vld [vmem:[#allocation5 + $0x40] sm:$0xff]
    %v5580 = vld [vmem:[#allocation5 + $0x48] sm:$0xff]
    %v5581 = vld [vmem:[#allocation5 + $0x50] sm:$0xff]
    %v5582 = vld [vmem:[#allocation5 + $0x58] sm:$0xff]
    %v5583 = vld [vmem:[#allocation5 + $0x60] sm:$0xff]
    %v5584 = vld [vmem:[#allocation5 + $0x68] sm:$0xff]
    %v5585 = vld [vmem:[#allocation5 + $0x70] sm:$0xff]
    %v5586 = vld [vmem:[#allocation5 + $0x78] sm:$0xff]
    %5587 = vmatprep.subr.mxu0 0.0
    %5588 = vmatpush1.msra.mxu0 %v5571
    %5589 = vmatprep.subr.mxu0 0.0
    %5590 = vmatpush1.msra.mxu0 %v5572
    %5591 = vmatprep.subr.mxu0 0.0
    %5592 = vmatpush1.msra.mxu0 %v5573
    %5593 = vmatprep.subr.mxu0 0.0
    %5594 = vmatpush1.msra.mxu0 %v5574
    %5595 = vmatprep.subr.mxu0 0.0
    %5596 = vmatpush1.msra.mxu0 %v5575
    %5597 = vmatprep.subr.mxu0 0.0
    %5598 = vmatpush1.msra.mxu0 %v5576
    %5599 = vmatprep.subr.mxu0 0.0
    %5600 = vmatpush1.msra.mxu0 %v5577
    %5601 = vmatprep.subr.mxu0 0.0
    %5602 = vmatpush1.msra.mxu0 %v5578
    %5603 = vmatprep.subr.mxu0 0.0
    %5604 = vmatpush1.msra.mxu0 %v5579
    %5605 = vmatprep.subr.mxu0 0.0
    %5606 = vmatpush1.msra.mxu0 %v5580
    %5607 = vmatprep.subr.mxu0 0.0
    %5608 = vmatpush1.msra.mxu0 %v5581
    %5609 = vmatprep.subr.mxu0 0.0
    %5610 = vmatpush1.msra.mxu0 %v5582
    %5611 = vmatprep.subr.mxu0 0.0
    %5612 = vmatpush1.msra.mxu0 %v5583
    %5613 = vmatprep.subr.mxu0 0.0
    %5614 = vmatpush1.msra.mxu0 %v5584
    %5615 = vmatprep.subr.mxu0 0.0
    %5616 = vmatpush1.msra.mxu0 %v5585
    %5617 = vmatprep.subr.mxu0 0.0
    %5618 = vmatpush1.msra.mxu0 %v5586
    %5619 = vmatprep.subr.mxu0 0.0
    %5620 = vmatpush1.msra.mxu0 0.0
    %5621 = vmatprep.subr.mxu0 0.0
    %5622 = vmatpush1.msra.mxu0 0.0
    %5623 = vmatprep.subr.mxu0 0.0
    %5624 = vmatpush1.msra.mxu0 0.0
    %5625 = vmatprep.subr.mxu0 0.0
    %5626 = vmatpush1.msra.mxu0 0.0
    %5627 = vmatprep.subr.mxu0 0.0
    %5628 = vmatpush1.msra.mxu0 0.0
    %5629 = vmatprep.subr.mxu0 0.0
    %5630 = vmatpush1.msra.mxu0 0.0
    %5631 = vmatprep.subr.mxu0 0.0
    %5632 = vmatpush1.msra.mxu0 0.0
    %5633 = vmatprep.subr.mxu0 0.0
    %5634 = vmatpush1.msra.mxu0 0.0
    %5635 = vmatprep.subr.mxu0 0.0
    %5636 = vmatpush1.msra.mxu0 0.0
    %5637 = vmatprep.subr.mxu0 0.0
    %5638 = vmatpush1.msra.mxu0 0.0
    %5639 = vmatprep.subr.mxu0 0.0
    %5640 = vmatpush1.msra.mxu0 0.0
    %5641 = vmatprep.subr.mxu0 0.0
    %5642 = vmatpush1.msra.mxu0 0.0
    %5643 = vmatprep.subr.mxu0 0.0
    %5644 = vmatpush1.msra.mxu0 0.0
    %5645 = vmatprep.subr.mxu0 0.0
    %5646 = vmatpush1.msra.mxu0 0.0
    %5647 = vmatprep.subr.mxu0 0.0
    %5648 = vmatpush1.msra.mxu0 0.0
    %5649 = vmatprep.subr.mxu0 0.0
    %5650 = vmatpush1.msra.mxu0 0.0
    %5651 = vmatprep.mubr.f32.mxu0 0.0
    %5652 = vmatmul.mubr.f32.gmra.mrb[0].mxu0 %v5570
    %v5653 = vpop.f32.mrb[0].mxu0
    %v5654 = vadd.f32 0.0, %v5653
    %v5655 = vpop.f32.mrb[0].mxu0
    %5656 = vdwg.mxu0
    %v5657 = vmax.f32 %v5654, 0.0
    %v5658 = vld [vmem:[#allocation7] sm:$0xff]
    %v5659 = vld [vmem:[#allocation7 + $0x8] sm:$0xff]
    %v5660 = vld [vmem:[#allocation7 + $0x10] sm:$0xff]
    %v5661 = vld [vmem:[#allocation7 + $0x18] sm:$0xff]
    %v5662 = vld [vmem:[#allocation7 + $0x20] sm:$0xff]
    %v5663 = vld [vmem:[#allocation7 + $0x28] sm:$0xff]
    %v5664 = vld [vmem:[#allocation7 + $0x30] sm:$0xff]
    %v5665 = vld [vmem:[#allocation7 + $0x38] sm:$0xff]
    %v5666 = vld [vmem:[#allocation7 + $0x40] sm:$0xff]
    %v5667 = vld [vmem:[#allocation7 + $0x48] sm:$0xff]
    %v5668 = vld [vmem:[#allocation7 + $0x50] sm:$0xff]
    %v5669 = vld [vmem:[#allocation7 + $0x58] sm:$0xff]
    %v5670 = vld [vmem:[#allocation7 + $0x60] sm:$0xff]
    %v5671 = vld [vmem:[#allocation7 + $0x68] sm:$0xff]
    %v5672 = vld [vmem:[#allocation7 + $0x70] sm:$0xff]
    %v5673 = vld [vmem:[#allocation7 + $0x78] sm:$0xff]
    %v5674 = vld [vmem:[#allocation7 + $0x80] sm:$0xff]
    %v5675 = vld [vmem:[#allocation7 + $0x88] sm:$0xff]
    %v5676 = vld [vmem:[#allocation7 + $0x90] sm:$0xff]
    %v5677 = vld [vmem:[#allocation7 + $0x98] sm:$0xff]
    %v5678 = vld [vmem:[#allocation7 + $0xa0] sm:$0xff]
    %v5679 = vld [vmem:[#allocation7 + $0xa8] sm:$0xff]
    %v5680 = vld [vmem:[#allocation7 + $0xb0] sm:$0xff]
    %v5681 = vld [vmem:[#allocation7 + $0xb8] sm:$0xff]
    %v5682 = vld [vmem:[#allocation7 + $0xc0] sm:$0xff]
    %v5683 = vld [vmem:[#allocation7 + $0xc8] sm:$0xff]
    %v5684 = vld [vmem:[#allocation7 + $0xd0] sm:$0xff]
    %v5685 = vld [vmem:[#allocation7 + $0xd8] sm:$0xff]
    %v5686 = vld [vmem:[#allocation7 + $0xe0] sm:$0xff]
    %v5687 = vld [vmem:[#allocation7 + $0xe8] sm:$0xff]
    %v5688 = vld [vmem:[#allocation7 + $0xf0] sm:$0xff]
    %v5689 = vld [vmem:[#allocation7 + $0xf8] sm:$0xff]
    %v5690 = vld [vmem:[#allocation7 + $0x100] sm:$0xff]
    %v5691 = vld [vmem:[#allocation7 + $0x108] sm:$0xff]
    %v5692 = vld [vmem:[#allocation7 + $0x110] sm:$0xff]
    %v5693 = vld [vmem:[#allocation7 + $0x118] sm:$0xff]
    %v5694 = vld [vmem:[#allocation7 + $0x120] sm:$0xff]
    %v5695 = vld [vmem:[#allocation7 + $0x128] sm:$0xff]
    %v5696 = vld [vmem:[#allocation7 + $0x130] sm:$0xff]
    %v5697 = vld [vmem:[#allocation7 + $0x138] sm:$0xff]
    %v5698 = vld [vmem:[#allocation7 + $0x140] sm:$0xff]
    %v5699 = vld [vmem:[#allocation7 + $0x148] sm:$0xff]
    %v5700 = vld [vmem:[#allocation7 + $0x150] sm:$0xff]
    %v5701 = vld [vmem:[#allocation7 + $0x158] sm:$0xff]
    %v5702 = vld [vmem:[#allocation7 + $0x160] sm:$0xff]
    %v5703 = vld [vmem:[#allocation7 + $0x168] sm:$0xff]
    %v5704 = vld [vmem:[#allocation7 + $0x170] sm:$0xff]
    %v5705 = vld [vmem:[#allocation7 + $0x178] sm:$0xff]
    %5706 = vmatprep.subr.mxu0 %v5659
    %5707 = vmatpush1.msra.mxu0 %v5658
    %5708 = vmatprep.subr.mxu0 %v5662
    %5709 = vmatpush1.msra.mxu0 %v5661
    %5710 = vmatprep.subr.mxu0 %v5665
    %5711 = vmatpush1.msra.mxu0 %v5664
    %5712 = vmatprep.subr.mxu0 %v5668
    %5713 = vmatpush1.msra.mxu0 %v5667
    %5714 = vmatprep.subr.mxu0 %v5671
    %5715 = vmatpush1.msra.mxu0 %v5670
    %5716 = vmatprep.subr.mxu0 %v5674
    %5717 = vmatpush1.msra.mxu0 %v5673
    %5718 = vmatprep.subr.mxu0 %v5677
    %5719 = vmatpush1.msra.mxu0 %v5676
    %5720 = vmatprep.subr.mxu0 %v5680
    %5721 = vmatpush1.msra.mxu0 %v5679
    %5722 = vmatprep.subr.mxu0 %v5683
    %5723 = vmatpush1.msra.mxu0 %v5682
    %5724 = vmatprep.subr.mxu0 %v5686
    %5725 = vmatpush1.msra.mxu0 %v5685
    %5726 = vmatprep.subr.mxu0 %v5689
    %5727 = vmatpush1.msra.mxu0 %v5688
    %5728 = vmatprep.subr.mxu0 %v5692
    %5729 = vmatpush1.msra.mxu0 %v5691
    %5730 = vmatprep.subr.mxu0 %v5695
    %5731 = vmatpush1.msra.mxu0 %v5694
    %5732 = vmatprep.subr.mxu0 %v5698
    %5733 = vmatpush1.msra.mxu0 %v5697
    %5734 = vmatprep.subr.mxu0 %v5701
    %5735 = vmatpush1.msra.mxu0 %v5700
    %5736 = vmatprep.subr.mxu0 %v5704
    %5737 = vmatpush1.msra.mxu0 %v5703
    %5738 = vmatprep.subr.mxu0 0.0
    %5739 = vmatpush1.msra.mxu0 0.0
    %5740 = vmatprep.subr.mxu0 0.0
    %5741 = vmatpush1.msra.mxu0 0.0
    %5742 = vmatprep.subr.mxu0 0.0
    %5743 = vmatpush1.msra.mxu0 0.0
    %5744 = vmatprep.subr.mxu0 0.0
    %5745 = vmatpush1.msra.mxu0 0.0
    %5746 = vmatprep.subr.mxu0 0.0
    %5747 = vmatpush1.msra.mxu0 0.0
    %5748 = vmatprep.subr.mxu0 0.0
    %5749 = vmatpush1.msra.mxu0 0.0
    %5750 = vmatprep.subr.mxu0 0.0
    %5751 = vmatpush1.msra.mxu0 0.0
    %5752 = vmatprep.subr.mxu0 0.0
    %5753 = vmatpush1.msra.mxu0 0.0
    %5754 = vmatprep.subr.mxu0 0.0
    %5755 = vmatpush1.msra.mxu0 0.0
    %5756 = vmatprep.subr.mxu0 0.0
    %5757 = vmatpush1.msra.mxu0 0.0
    %5758 = vmatprep.subr.mxu0 0.0
    %5759 = vmatpush1.msra.mxu0 0.0
    %5760 = vmatprep.subr.mxu0 0.0
    %5761 = vmatpush1.msra.mxu0 0.0
    %5762 = vmatprep.subr.mxu0 0.0
    %5763 = vmatpush1.msra.mxu0 0.0
    %5764 = vmatprep.subr.mxu0 0.0
    %5765 = vmatpush1.msra.mxu0 0.0
    %5766 = vmatprep.subr.mxu0 0.0
    %5767 = vmatpush1.msra.mxu0 0.0
    %5768 = vmatprep.subr.mxu0 0.0
    %5769 = vmatpush1.msra.mxu0 0.0
    %5770 = vmatprep.mubr.f32.mxu0 0.0
    %5771 = vmatmul.mubr.f32.gmra.mrb[0].mxu0 %v5657
    %v5772 = vpop.f32.mrb[0].mxu0
    %v5773 = vadd.f32 %v247, %v5772
    %v5774 = vpop.f32.mrb[0].mxu0
    %v5775 = vadd.f32 %v251, %v5774
    %5776 = vdwg.mxu0
    %5777 = vmatprep.subr.mxu0 0.0
    %5778 = vmatpush1.msra.mxu0 %v5660
    %5779 = vmatprep.subr.mxu0 0.0
    %5780 = vmatpush1.msra.mxu0 %v5663
    %5781 = vmatprep.subr.mxu0 0.0
    %5782 = vmatpush1.msra.mxu0 %v5666
    %5783 = vmatprep.subr.mxu0 0.0
    %5784 = vmatpush1.msra.mxu0 %v5669
    %5785 = vmatprep.subr.mxu0 0.0
    %5786 = vmatpush1.msra.mxu0 %v5672
    %5787 = vmatprep.subr.mxu0 0.0
    %5788 = vmatpush1.msra.mxu0 %v5675
    %5789 = vmatprep.subr.mxu0 0.0
    %5790 = vmatpush1.msra.mxu0 %v5678
    %5791 = vmatprep.subr.mxu0 0.0
    %5792 = vmatpush1.msra.mxu0 %v5681
    %5793 = vmatprep.subr.mxu0 0.0
    %5794 = vmatpush1.msra.mxu0 %v5684
    %5795 = vmatprep.subr.mxu0 0.0
    %5796 = vmatpush1.msra.mxu0 %v5687
    %5797 = vmatprep.subr.mxu0 0.0
    %5798 = vmatpush1.msra.mxu0 %v5690
    %5799 = vmatprep.subr.mxu0 0.0
    %5800 = vmatpush1.msra.mxu0 %v5693
    %5801 = vmatprep.subr.mxu0 0.0
    %5802 = vmatpush1.msra.mxu0 %v5696
    %5803 = vmatprep.subr.mxu0 0.0
    %5804 = vmatpush1.msra.mxu0 %v5699
    %5805 = vmatprep.subr.mxu0 0.0
    %5806 = vmatpush1.msra.mxu0 %v5702
    %5807 = vmatprep.subr.mxu0 0.0
    %5808 = vmatpush1.msra.mxu0 %v5705
    %5809 = vmatprep.subr.mxu0 0.0
    %5810 = vmatpush1.msra.mxu0 0.0
    %5811 = vmatprep.subr.mxu0 0.0
    %5812 = vmatpush1.msra.mxu0 0.0
    %5813 = vmatprep.subr.mxu0 0.0
    %5814 = vmatpush1.msra.mxu0 0.0
    %5815 = vmatprep.subr.mxu0 0.0
    %5816 = vmatpush1.msra.mxu0 0.0
    %5817 = vmatprep.subr.mxu0 0.0
    %5818 = vmatpush1.msra.mxu0 0.0
    %5819 = vmatprep.subr.mxu0 0.0
    %5820 = vmatpush1.msra.mxu0 0.0
    %5821 = vmatprep.subr.mxu0 0.0
    %5822 = vmatpush1.msra.mxu0 0.0
    %5823 = vmatprep.subr.mxu0 0.0
    %5824 = vmatpush1.msra.mxu0 0.0
    %5825 = vmatprep.subr.mxu0 0.0
    %5826 = vmatpush1.msra.mxu0 0.0
    %5827 = vmatprep.subr.mxu0 0.0
    %5828 = vmatpush1.msra.mxu0 0.0
    %5829 = vmatprep.subr.mxu0 0.0
    %5830 = vmatpush1.msra.mxu0 0.0
    %5831 = vmatprep.subr.mxu0 0.0
    %5832 = vmatpush1.msra.mxu0 0.0
    %5833 = vmatprep.subr.mxu0 0.0
    %5834 = vmatpush1.msra.mxu0 0.0
    %5835 = vmatprep.subr.mxu0 0.0
    %5836 = vmatpush1.msra.mxu0 0.0
    %5837 = vmatprep.subr.mxu0 0.0
    %5838 = vmatpush1.msra.mxu0 0.0
    %5839 = vmatprep.subr.mxu0 0.0
    %5840 = vmatpush1.msra.mxu0 0.0
    %5841 = vmatprep.mubr.f32.mxu0 0.0
    %5842 = vmatmul.mubr.f32.gmra.mrb[0].mxu0 %v5657
    %v5843 = vpop.f32.mrb[0].mxu0
    %v5844 = vadd.f32 %v255, %v5843
    %v5845 = vpop.f32.mrb[0].mxu0
    %5846 = vdwg.mxu0
    %v5847 = vld [vmem:[#allocation8] sm:$0xff]
    %v5848 = vld [vmem:[#allocation8 + $0x8] sm:$0xff]
    %v5849 = vld [vmem:[#allocation8 + $0x10] sm:$0xff]
    %v5850 = vld [vmem:[#allocation8 + $0x18] sm:$0xff]
    %v5851 = vld [vmem:[#allocation8 + $0x20] sm:$0xff]
    %v5852 = vld [vmem:[#allocation8 + $0x28] sm:$0xff]
    %v5853 = vld [vmem:[#allocation8 + $0x30] sm:$0xff]
    %v5854 = vld [vmem:[#allocation8 + $0x38] sm:$0xff]
    %v5855 = vld [vmem:[#allocation8 + $0x40] sm:$0xff]
    %v5856 = vld [vmem:[#allocation8 + $0x48] sm:$0xff]
    %v5857 = vld [vmem:[#allocation8 + $0x50] sm:$0xff]
    %v5858 = vld [vmem:[#allocation8 + $0x58] sm:$0xff]
    %v5859 = vld [vmem:[#allocation8 + $0x60] sm:$0xff]
    %v5860 = vld [vmem:[#allocation8 + $0x68] sm:$0xff]
    %v5861 = vld [vmem:[#allocation8 + $0x70] sm:$0xff]
    %v5862 = vld [vmem:[#allocation8 + $0x78] sm:$0xff]
    %v5863 = vld [vmem:[#allocation8 + $0x80] sm:$0xff]
    %v5864 = vld [vmem:[#allocation8 + $0x88] sm:$0xff]
    %v5865 = vld [vmem:[#allocation8 + $0x90] sm:$0xff]
    %v5866 = vld [vmem:[#allocation8 + $0x98] sm:$0xff]
    %v5867 = vld [vmem:[#allocation8 + $0xa0] sm:$0xff]
    %v5868 = vld [vmem:[#allocation8 + $0xa8] sm:$0xff]
    %v5869 = vld [vmem:[#allocation8 + $0xb0] sm:$0xff]
    %v5870 = vld [vmem:[#allocation8 + $0xb8] sm:$0xff]
    %v5871 = vld [vmem:[#allocation8 + $0xc0] sm:$0xff]
    %v5872 = vld [vmem:[#allocation8 + $0xc8] sm:$0xff]
    %v5873 = vld [vmem:[#allocation8 + $0xd0] sm:$0xff]
    %v5874 = vld [vmem:[#allocation8 + $0xd8] sm:$0xff]
    %v5875 = vld [vmem:[#allocation8 + $0xe0] sm:$0xff]
    %v5876 = vld [vmem:[#allocation8 + $0xe8] sm:$0xff]
    %v5877 = vld [vmem:[#allocation8 + $0xf0] sm:$0xff]
    %v5878 = vld [vmem:[#allocation8 + $0xf8] sm:$0xff]
    %v5879 = vld [vmem:[#allocation8 + $0x100] sm:$0xff]
    %v5880 = vld [vmem:[#allocation8 + $0x108] sm:$0xff]
    %v5881 = vld [vmem:[#allocation8 + $0x110] sm:$0xff]
    %v5882 = vld [vmem:[#allocation8 + $0x118] sm:$0xff]
    %v5883 = vld [vmem:[#allocation8 + $0x120] sm:$0xff]
    %v5884 = vld [vmem:[#allocation8 + $0x128] sm:$0xff]
    %v5885 = vld [vmem:[#allocation8 + $0x130] sm:$0xff]
    %v5886 = vld [vmem:[#allocation8 + $0x138] sm:$0xff]
    %v5887 = vld [vmem:[#allocation8 + $0x140] sm:$0xff]
    %v5888 = vld [vmem:[#allocation8 + $0x148] sm:$0xff]
    %v5889 = vld [vmem:[#allocation8 + $0x150] sm:$0xff]
    %v5890 = vld [vmem:[#allocation8 + $0x158] sm:$0xff]
    %v5891 = vld [vmem:[#allocation8 + $0x160] sm:$0xff]
    %v5892 = vld [vmem:[#allocation8 + $0x168] sm:$0xff]
    %v5893 = vld [vmem:[#allocation8 + $0x170] sm:$0xff]
    %v5894 = vld [vmem:[#allocation8 + $0x178] sm:$0xff]
    %5895 = vmatprep.subr.mxu0 %v5848
    %5896 = vmatpush1.msra.mxu0 %v5847
    %5897 = vmatprep.subr.mxu0 %v5851
    %5898 = vmatpush1.msra.mxu0 %v5850
    %5899 = vmatprep.subr.mxu0 %v5854
    %5900 = vmatpush1.msra.mxu0 %v5853
    %5901 = vmatprep.subr.mxu0 %v5857
    %5902 = vmatpush1.msra.mxu0 %v5856
    %5903 = vmatprep.subr.mxu0 %v5860
    %5904 = vmatpush1.msra.mxu0 %v5859
    %5905 = vmatprep.subr.mxu0 %v5863
    %5906 = vmatpush1.msra.mxu0 %v5862
    %5907 = vmatprep.subr.mxu0 %v5866
    %5908 = vmatpush1.msra.mxu0 %v5865
    %5909 = vmatprep.subr.mxu0 %v5869
    %5910 = vmatpush1.msra.mxu0 %v5868
    %5911 = vmatprep.subr.mxu0 %v5872
    %5912 = vmatpush1.msra.mxu0 %v5871
    %5913 = vmatprep.subr.mxu0 %v5875
    %5914 = vmatpush1.msra.mxu0 %v5874
    %5915 = vmatprep.subr.mxu0 %v5878
    %5916 = vmatpush1.msra.mxu0 %v5877
    %5917 = vmatprep.subr.mxu0 %v5881
    %5918 = vmatpush1.msra.mxu0 %v5880
    %5919 = vmatprep.subr.mxu0 %v5884
    %5920 = vmatpush1.msra.mxu0 %v5883
    %5921 = vmatprep.subr.mxu0 %v5887
    %5922 = vmatpush1.msra.mxu0 %v5886
    %5923 = vmatprep.subr.mxu0 %v5890
    %5924 = vmatpush1.msra.mxu0 %v5889
    %5925 = vmatprep.subr.mxu0 %v5893
    %5926 = vmatpush1.msra.mxu0 %v5892
    %5927 = vmatprep.subr.mxu0 0.0
    %5928 = vmatpush1.msra.mxu0 0.0
    %5929 = vmatprep.subr.mxu0 0.0
    %5930 = vmatpush1.msra.mxu0 0.0
    %5931 = vmatprep.subr.mxu0 0.0
    %5932 = vmatpush1.msra.mxu0 0.0
    %5933 = vmatprep.subr.mxu0 0.0
    %5934 = vmatpush1.msra.mxu0 0.0
    %5935 = vmatprep.subr.mxu0 0.0
    %5936 = vmatpush1.msra.mxu0 0.0
    %5937 = vmatprep.subr.mxu0 0.0
    %5938 = vmatpush1.msra.mxu0 0.0
    %5939 = vmatprep.subr.mxu0 0.0
    %5940 = vmatpush1.msra.mxu0 0.0
    %5941 = vmatprep.subr.mxu0 0.0
    %5942 = vmatpush1.msra.mxu0 0.0
    %5943 = vmatprep.subr.mxu0 0.0
    %5944 = vmatpush1.msra.mxu0 0.0
    %5945 = vmatprep.subr.mxu0 0.0
    %5946 = vmatpush1.msra.mxu0 0.0
    %5947 = vmatprep.subr.mxu0 0.0
    %5948 = vmatpush1.msra.mxu0 0.0
    %5949 = vmatprep.subr.mxu0 0.0
    %5950 = vmatpush1.msra.mxu0 0.0
    %5951 = vmatprep.subr.mxu0 0.0
    %5952 = vmatpush1.msra.mxu0 0.0
    %5953 = vmatprep.subr.mxu0 0.0
    %5954 = vmatpush1.msra.mxu0 0.0
    %5955 = vmatprep.subr.mxu0 0.0
    %5956 = vmatpush1.msra.mxu0 0.0
    %5957 = vmatprep.subr.mxu0 0.0
    %5958 = vmatpush1.msra.mxu0 0.0
    %5959 = vmatprep.mubr.f32.mxu0 0.0
    %5960 = vmatmul.mubr.f32.gmra.mrb[0].mxu0 %v5452
    %v5961 = vpop.f32.mrb[0].mxu0
    %v5962 = vadd.f32 0.0, %v5961
    %v5963 = vpop.f32.mrb[0].mxu0
    %v5964 = vadd.f32 0.0, %v5963
    %5965 = vdwg.mxu0
    %5966 = vmatprep.subr.mxu0 0.0
    %5967 = vmatpush1.msra.mxu0 %v5849
    %5968 = vmatprep.subr.mxu0 0.0
    %5969 = vmatpush1.msra.mxu0 %v5852
    %5970 = vmatprep.subr.mxu0 0.0
    %5971 = vmatpush1.msra.mxu0 %v5855
    %5972 = vmatprep.subr.mxu0 0.0
    %5973 = vmatpush1.msra.mxu0 %v5858
    %5974 = vmatprep.subr.mxu0 0.0
    %5975 = vmatpush1.msra.mxu0 %v5861
    %5976 = vmatprep.subr.mxu0 0.0
    %5977 = vmatpush1.msra.mxu0 %v5864
    %5978 = vmatprep.subr.mxu0 0.0
    %5979 = vmatpush1.msra.mxu0 %v5867
    %5980 = vmatprep.subr.mxu0 0.0
    %5981 = vmatpush1.msra.mxu0 %v5870
    %5982 = vmatprep.subr.mxu0 0.0
    %5983 = vmatpush1.msra.mxu0 %v5873
    %5984 = vmatprep.subr.mxu0 0.0
    %5985 = vmatpush1.msra.mxu0 %v5876
    %5986 = vmatprep.subr.mxu0 0.0
    %5987 = vmatpush1.msra.mxu0 %v5879
    %5988 = vmatprep.subr.mxu0 0.0
    %5989 = vmatpush1.msra.mxu0 %v5882
    %5990 = vmatprep.subr.mxu0 0.0
    %5991 = vmatpush1.msra.mxu0 %v5885
    %5992 = vmatprep.subr.mxu0 0.0
    %5993 = vmatpush1.msra.mxu0 %v5888
    %5994 = vmatprep.subr.mxu0 0.0
    %5995 = vmatpush1.msra.mxu0 %v5891
    %5996 = vmatprep.subr.mxu0 0.0
    %5997 = vmatpush1.msra.mxu0 %v5894
    %5998 = vmatprep.subr.mxu0 0.0
    %5999 = vmatpush1.msra.mxu0 0.0
    %6000 = vmatprep.subr.mxu0 0.0
    %6001 = vmatpush1.msra.mxu0 0.0
    %6002 = vmatprep.subr.mxu0 0.0
    %6003 = vmatpush1.msra.mxu0 0.0
    %6004 = vmatprep.subr.mxu0 0.0
    %6005 = vmatpush1.msra.mxu0 0.0
    %6006 = vmatprep.subr.mxu0 0.0
    %6007 = vmatpush1.msra.mxu0 0.0
    %6008 = vmatprep.subr.mxu0 0.0
    %6009 = vmatpush1.msra.mxu0 0.0
    %6010 = vmatprep.subr.mxu0 0.0
    %6011 = vmatpush1.msra.mxu0 0.0
    %6012 = vmatprep.subr.mxu0 0.0
    %6013 = vmatpush1.msra.mxu0 0.0
    %6014 = vmatprep.subr.mxu0 0.0
    %6015 = vmatpush1.msra.mxu0 0.0
    %6016 = vmatprep.subr.mxu0 0.0
    %6017 = vmatpush1.msra.mxu0 0.0
    %6018 = vmatprep.subr.mxu0 0.0
    %6019 = vmatpush1.msra.mxu0 0.0
    %6020 = vmatprep.subr.mxu0 0.0
    %6021 = vmatpush1.msra.mxu0 0.0
    %6022 = vmatprep.subr.mxu0 0.0
    %6023 = vmatpush1.msra.mxu0 0.0
    %6024 = vmatprep.subr.mxu0 0.0
    %6025 = vmatpush1.msra.mxu0 0.0
    %6026 = vmatprep.subr.mxu0 0.0
    %6027 = vmatpush1.msra.mxu0 0.0
    %6028 = vmatprep.subr.mxu0 0.0
    %6029 = vmatpush1.msra.mxu0 0.0
    %6030 = vmatprep.mubr.f32.mxu0 0.0
    %6031 = vmatmul.mubr.f32.gmra.mrb[0].mxu0 %v5452
    %v6032 = vpop.f32.mrb[0].mxu0
    %v6033 = vadd.f32 0.0, %v6032
    %v6034 = vpop.f32.mrb[0].mxu0
    %6035 = vdwg.mxu0
    %v6036 = vadd.f32 %v5773, %v5962
    %v6037 = vxor.u32 %v6036, 2147483648
    %v6038 = vmul.f32 %v6037, 1.442695
    %v6039 = vpow.pop %v6038
    %v6040 = vadd.f32 %v6039, 1.0
    %v6041 = vrcp.pop %v6040
    %v6042 = vmul.f32 1.0, %v6041
    %v6043 = vadd.f32 %v5775, %v5964
    %v6044 = vxor.u32 %v6043, 2147483648
    %v6045 = vmul.f32 %v6044, 1.442695
    %v6046 = vpow.pop %v6045
    %v6047 = vadd.f32 %v6046, 1.0
    %v6048 = vrcp.pop %v6047
    %v6049 = vmul.f32 1.0, %v6048
    %v6050 = vadd.f32 %v6033, %v607
    %v6051 = vmul.f32 %v6042, %v6050
    %v6052 = vadd.f32 %v5844, %v6051
    %v6053 = vtanh.pop %v6052
    %v6054 = vsub.f32 %v5452, %v6053
    %v6055 = vmul.f32 %v6049, %v6054
    %v6056 = vadd.f32 %v6053, %v6055
    %v6057 = vld [vmem:[#allocation10] sm:$0xff]
    %v6058 = vld [vmem:[#allocation10 + $0x8] sm:$0xff]
    %v6059 = vld [vmem:[#allocation10 + $0x10] sm:$0xff]
    %v6060 = vld [vmem:[#allocation10 + $0x18] sm:$0xff]
    %v6061 = vld [vmem:[#allocation10 + $0x20] sm:$0xff]
    %v6062 = vld [vmem:[#allocation10 + $0x28] sm:$0xff]
    %v6063 = vld [vmem:[#allocation10 + $0x30] sm:$0xff]
    %v6064 = vld [vmem:[#allocation10 + $0x38] sm:$0xff]
    %v6065 = vld [vmem:[#allocation10 + $0x40] sm:$0xff]
    %v6066 = vld [vmem:[#allocation10 + $0x48] sm:$0xff]
    %v6067 = vld [vmem:[#allocation10 + $0x50] sm:$0xff]
    %v6068 = vld [vmem:[#allocation10 + $0x58] sm:$0xff]
    %v6069 = vld [vmem:[#allocation10 + $0x60] sm:$0xff]
    %v6070 = vld [vmem:[#allocation10 + $0x68] sm:$0xff]
    %v6071 = vld [vmem:[#allocation10 + $0x70] sm:$0xff]
    %v6072 = vld [vmem:[#allocation10 + $0x78] sm:$0xff]
    %6073 = vmatprep.subr.mxu0 0.0
    %6074 = vmatpush1.msra.mxu0 %v6057
    %6075 = vmatprep.subr.mxu0 0.0
    %6076 = vmatpush1.msra.mxu0 %v6058
    %6077 = vmatprep.subr.mxu0 0.0
    %6078 = vmatpush1.msra.mxu0 %v6059
    %6079 = vmatprep.subr.mxu0 0.0
    %6080 = vmatpush1.msra.mxu0 %v6060
    %6081 = vmatprep.subr.mxu0 0.0
    %6082 = vmatpush1.msra.mxu0 %v6061
    %6083 = vmatprep.subr.mxu0 0.0
    %6084 = vmatpush1.msra.mxu0 %v6062
    %6085 = vmatprep.subr.mxu0 0.0
    %6086 = vmatpush1.msra.mxu0 %v6063
    %6087 = vmatprep.subr.mxu0 0.0
    %6088 = vmatpush1.msra.mxu0 %v6064
    %6089 = vmatprep.subr.mxu0 0.0
    %6090 = vmatpush1.msra.mxu0 %v6065
    %6091 = vmatprep.subr.mxu0 0.0
    %6092 = vmatpush1.msra.mxu0 %v6066
    %6093 = vmatprep.subr.mxu0 0.0
    %6094 = vmatpush1.msra.mxu0 %v6067
    %6095 = vmatprep.subr.mxu0 0.0
    %6096 = vmatpush1.msra.mxu0 %v6068
    %6097 = vmatprep.subr.mxu0 0.0
    %6098 = vmatpush1.msra.mxu0 %v6069
    %6099 = vmatprep.subr.mxu0 0.0
    %6100 = vmatpush1.msra.mxu0 %v6070
    %6101 = vmatprep.subr.mxu0 0.0
    %6102 = vmatpush1.msra.mxu0 %v6071
    %6103 = vmatprep.subr.mxu0 0.0
    %6104 = vmatpush1.msra.mxu0 %v6072
    %6105 = vmatprep.subr.mxu0 0.0
    %6106 = vmatpush1.msra.mxu0 0.0
    %6107 = vmatprep.subr.mxu0 0.0
    %6108 = vmatpush1.msra.mxu0 0.0
    %6109 = vmatprep.subr.mxu0 0.0
    %6110 = vmatpush1.msra.mxu0 0.0
    %6111 = vmatprep.subr.mxu0 0.0
    %6112 = vmatpush1.msra.mxu0 0.0
    %6113 = vmatprep.subr.mxu0 0.0
    %6114 = vmatpush1.msra.mxu0 0.0
    %6115 = vmatprep.subr.mxu0 0.0
    %6116 = vmatpush1.msra.mxu0 0.0
    %6117 = vmatprep.subr.mxu0 0.0
    %6118 = vmatpush1.msra.mxu0 0.0
    %6119 = vmatprep.subr.mxu0 0.0
    %6120 = vmatpush1.msra.mxu0 0.0
    %6121 = vmatprep.subr.mxu0 0.0
    %6122 = vmatpush1.msra.mxu0 0.0
    %6123 = vmatprep.subr.mxu0 0.0
    %6124 = vmatpush1.msra.mxu0 0.0
    %6125 = vmatprep.subr.mxu0 0.0
    %6126 = vmatpush1.msra.mxu0 0.0
    %6127 = vmatprep.subr.mxu0 0.0
    %6128 = vmatpush1.msra.mxu0 0.0
    %6129 = vmatprep.subr.mxu0 0.0
    %6130 = vmatpush1.msra.mxu0 0.0
    %6131 = vmatprep.subr.mxu0 0.0
    %6132 = vmatpush1.msra.mxu0 0.0
    %6133 = vmatprep.subr.mxu0 0.0
    %6134 = vmatpush1.msra.mxu0 0.0
    %6135 = vmatprep.subr.mxu0 0.0
    %6136 = vmatpush1.msra.mxu0 0.0
    %6137 = vmatprep.mubr.f32.mxu0 0.0
    %6138 = vmatmul.mubr.f32.gmra.mrb[0].mxu0 %v6056
    %v6139 = vpop.f32.mrb[0].mxu0
    %v6140 = vadd.f32 %v636, %v6139
    %v6141 = vpop.f32.mrb[0].mxu0
    %6142 = vdwg.mxu0
    %6143 = vmax.xlane.f32.xlu0 %v6140
    %v6144 = vpop.xlane.xlu0 %6143
    %v6145 = vsub.f32 %v6140, %v6144
    %v6146 = vmul.f32 %v6145, 1.442695
    %v6147 = vpow.pop %v6146
    %6148 = vadd.xlane.f32.xlu0 %v6147
    %v6149 = vpop.xlane.xlu0 %6148
    %v6150 = vlog2.pop %v6149
    %v6151 = vmul.f32 %v6150, 0.6931472
    %v6152 = vadd.f32 %v6144, %v6151
    %v6153 = vsub.f32 %v6140, %v6152
    %s6154 = scalar_lea.vmem [#allocation11], 72
    %6155 = vst [vmem:[%s6154] sm:$0xff] %v6153
    %6156 = vst [vmem:[#allocation12] sm:$0xff] %v6056
    // Predicated region
    $region54: #{tpu_custom_call.1} parent=1 // pred_check
      _
    $region55: #{tpu_custom_call.1} parent=1 // pred_check_branch
      %6158 = sbr.rel (0) target = $region57
    $region56: #{tpu_custom_call.1} parent=1 // pred_region
      %s6160 = ssub.s32 1280, 1280
      %6161 = vsyncadd [#allocation4], %s6160
      %s6162 = sshll.u32 [#allocation11], 4
      %s6163 = int_to_ptr.vmem [resolvable:$true] %s6162
      %6168 = dma.vmem_to_hbm [thread:$0]  %s6163, 1280, %s8, [#allocation4], 128, 128, 8
    $region57: #{tpu_custom_call.1} parent=1 // pred_fallthru
      _
    // Predicated region
    $region58: #{tpu_custom_call.1} parent=1 // pred_check
      _
    $region59: #{tpu_custom_call.1} parent=1 // pred_check_branch
      %6170 = sbr.rel (0) target = $region61
    $region60: #{tpu_custom_call.1} parent=1 // pred_region
      %s6172 = ssub.s32 128, 128
      %6173 = vsyncadd [#allocation13], %s6172
      %s6175 = sshll.u32 [#allocation12], 4
      %s6176 = int_to_ptr.vmem [resolvable:$true] %s6175
      %6178 = dma.vmem_to_hbm [thread:$0]  %s6176, 128, %s9, [#allocation13]
    $region61: #{tpu_custom_call.1} parent=1 // pred_fallthru
      _
    // Predicated region
    $region62: #{tpu_custom_call.1} parent=1 // pred_check
      _
    $region63: #{tpu_custom_call.1} parent=1 // pred_check_branch
      %6180 = sbr.rel (0) target = $region65
    $region64: #{tpu_custom_call.1} parent=1 // pred_region
      %6181 = dma.done [#allocation4], 1280
    $region65: #{tpu_custom_call.1} parent=1 // pred_fallthru
      _
    // Predicated region
    $region66: #{tpu_custom_call.1} parent=1 // pred_check
      _
    $region67: #{tpu_custom_call.1} parent=1 // pred_check_branch
      %6183 = sbr.rel (0) target = $region69
    $region68: #{tpu_custom_call.1} parent=1 // pred_region
      %6184 = dma.done [#allocation13], 128
    $region69: #{tpu_custom_call.1} parent=1 // pred_fallthru
      _
    %6185 = vsyncpa [#allocation3], 1
    %6186 = vsyncpa [#allocation6], 1
    %6187 = vsyncpa [#allocation9], 1
    %6188 = vsyncpa [#allocation4], 1
    %6189 = vsyncpa [#allocation13], 1

</llo_original>
